<compile_context>
chip_gen: v7x
topology: tpu7x:2x2x1
jax: 0.10.0
libtpu: 0.0.40
codegen_flags: <defaults>
</compile_context>

<pallas_src>
import numpy as np
import jax
import jax.numpy as jnp
from jax.experimental import pallas as pl
from jax.experimental.pallas import tpu as pltpu


def _rotary_kernel(pos_ref, inv_freq2_ref, phase_ref, out_ref):
    """One T-tile of the (T, 2E) sin/cos table.

    pos_ref      : (tT, 1)  f32  -- positions (column vector)
    inv_freq2_ref: (1, 2E)  f32  -- [inv_freqs, inv_freqs]
    phase_ref    : (1, 2E)  f32  -- [0]*E + [pi/2]*E   (cos(a) = sin(a + pi/2))
    out_ref      : (tT, 2E)      -- lane-dense output slab
    """
    # Broadcasted multiply + add on the VPU -> (tT, 2E) angles.
    angles = pos_ref[...] * inv_freq2_ref[...] + phase_ref[...]
    # Single transcendental pass over the tile, one unmasked full-tile store.
    out_ref[...] = jnp.sin(angles).astype(out_ref.dtype)


def _round_up(n, m):
    return ((n + m - 1) // m) * m


def rotary_embedding(x, position, embed_dim, sinusoidal_embedding=None,
                     *, out_dtype=jnp.float32, min_pallas_elems=1 << 16):
    """JAX/Pallas equivalent of RotaryEmbedding.forward(x, position).

    x        : (B, T, D) -- only its shape is used (as in the PyTorch module)
    position : (T,) float -- token positions
    returns  : (B, T, 2*embed_dim) in `out_dtype` (f32 default for torch parity;
               pass jnp.bfloat16 to halve HBM writeback on the Pallas path)
    """
    B, T, _ = x.shape
    # NOTE: the nn.Parameter `sinusoidal_embedding` is never used in the torch
    # forward(); accepted here only for interface parity.
    del sinusoidal_embedding

    E = int(embed_dim)
    two_e = 2 * E
    out_dtype = jnp.dtype(out_dtype)
    pos = position.astype(jnp.float32)
    # Precomputed reciprocal: 1 / 10000**(2i/E)  (multiply on the VPU instead
    # of a divide).
    inv_freqs = 10000.0 ** (
        -2.0 * jnp.arange(E, dtype=jnp.float32) / float(E)
    )  # (E,)

    lane_dense = (two_e % 128 == 0)
    # Fast path: tiny tables (Pallas fixed launch + >=1 grid step at ~0.35 us
    # loses to fused XLA) or non-lane-dense 2E (would hit masked partial
    # stores, wasting most of every store lane).
    if (T * two_e < min_pallas_elems) or not lane_dense:
        angles = pos[:, None] * inv_freqs[None, :]
        emb = jnp.concatenate([jnp.sin(angles), jnp.cos(angles)], axis=-1)
        return jnp.broadcast_to(emb.astype(out_dtype)[None], (B, T, two_e))

    # --- Pallas path: grid over T tiles only (batch-independent result). ---
    # Row-vector constants for the lane-dense single-store trick.
    inv_freq2 = jnp.concatenate([inv_freqs, inv_freqs]).reshape(1, two_e)
    phase = jnp.concatenate(
        [jnp.zeros((E,), jnp.float32),
         jnp.full((E,), np.float32(np.pi / 2), jnp.float32)]
    ).reshape(1, two_e)

    # Sublane multiple follows the output dtype (8 rows f32, 16 rows bf16).
    sub = max(8, 32 // out_dtype.itemsize)
    t_round = _round_up(T, sub)
    bytes_per_row = two_e * out_dtype.itemsize

    # Tile sized by bytes: ~4 MiB output block (8 MiB double-buffered) -- big
    # enough that the ~0.35 us per-step pipeline overhead is amortized, small
    # enough for v5e's 16 MiB scoped-VMEM default and v7x's 64 MiB physical.
    target_block_bytes = 4 << 20
    tT = min(t_round,
             max(sub, (target_block_bytes // bytes_per_row) // sub * sub))
    # Keep >= 2 tiles whenever T allows, so the "parallel" grid axis can be
    # split across v7x's two TensorCores (free on single-TC v5e/v6e).
    if pl.cdiv(t_round, tT) < 2 and t_round >= 2 * sub:
        tT = _round_up(pl.cdiv(t_round, 2), sub)
    num_tiles = pl.cdiv(t_round, tT)
    T_pad = num_tiles * tT

    pos2d = jnp.pad(pos, (0, T_pad - T)).reshape(T_pad, 1)

    out2d = pl.pallas_call(
        _rotary_kernel,
        out_shape=jax.ShapeDtypeStruct((T_pad, two_e), out_dtype),
        grid=(num_tiles,),
        in_specs=[
            pl.BlockSpec((tT, 1), lambda t: (t, 0)),
            pl.BlockSpec((1, two_e), lambda t: (0, 0)),
            pl.BlockSpec((1, two_e), lambda t: (0, 0)),
        ],
        out_specs=pl.BlockSpec((tT, two_e), lambda t: (t, 0)),
        compiler_params=pltpu.CompilerParams(
            dimension_semantics=("parallel",),
        ),
    )(pos2d, inv_freq2, phase)

    # Padded rows (T..T_pad) hold sin(phase) garbage -- slice them off before
    # the (lazy) batch broadcast.
    out2d = out2d[:T]
    return jnp.broadcast_to(out2d[None], (B, T, two_e))


def _reference(x, position, embed_dim):
    B, T, _ = x.shape
    angles = position.astype(jnp.float32)[:, None] / 10000.0 ** (
        2.0 * jnp.arange(embed_dim, dtype=jnp.float32) / embed_dim
    )
    angles = jnp.broadcast_to(angles[None], (B, T, embed_dim))
    return jnp.concatenate([jnp.sin(angles), jnp.cos(angles)], axis=-1)


if __name__ == "__main__":
    key = jax.random.PRNGKey(0)

    # Case 1: module-scale demo shape -> small/non-lane-dense fast path (XLA).
    B, T, D, E = 2, 8, 32, 16
    kx, key = jax.random.split(key)
    x = jax.random.normal(kx, (B, T, D), dtype=jnp.float32)
    position = jnp.arange(T, dtype=jnp.float32)
    sin_emb = jnp.zeros((2 * E,), dtype=jnp.float32)  # parity with nn.Parameter
    out_small = jax.block_until_ready(rotary_embedding(x, position, E, sin_emb))
    assert out_small.shape == (B, T, 2 * E)
    assert jnp.allclose(out_small, _reference(x, position, E),
                        atol=1e-5, rtol=1e-5)

    # Case 2: Pallas path -- lane-dense 2E=128, >=2 parallel tiles, T padding
    # (1000 -> 1008 rows), f32 output.
    B2, T2, D2, E2 = 2, 1000, 32, 64
    kx2, key = jax.random.split(key)
    x2 = jax.random.normal(kx2, (B2, T2, D2), dtype=jnp.float32)
    position2 = jnp.arange(T2, dtype=jnp.float32)
    ref2 = _reference(x2, position2, E2)
    out_big = jax.block_until_ready(rotary_embedding(x2, position2, E2))
    assert out_big.shape == (B2, T2, 2 * E2)
    # Tolerance covers reciprocal-multiply (~1 ulp), cos->sin(+pi/2), and f32
    # sin range-reduction differences (Mosaic vs XLA) at angles up to ~1000.
    assert jnp.allclose(out_big, ref2, atol=3e-3, rtol=1e-3)

    # Case 3: bf16 table (halves HBM writeback on the mem-bound Pallas path).
    out_bf16 = jax.block_until_ready(
        rotary_embedding(x2, position2, E2, out_dtype=jnp.bfloat16))
    assert out_bf16.shape == (B2, T2, 2 * E2)
    assert out_bf16.dtype == jnp.bfloat16
    assert jnp.allclose(out_bf16.astype(jnp.float32), ref2,
                        atol=2e-2, rtol=2e-2)

    print("KERNEL_OK")
</pallas_src>

<mosaic_0001>
module attributes {stable_mosaic.version = 11 : i64} {
  func.func @_rotary_kernel(%arg0: i32, %arg1: memref<504x1xf32, #tpu.memory_space<vmem>>, %arg2: memref<1x128xf32, #tpu.memory_space<vmem>>, %arg3: memref<1x128xf32, #tpu.memory_space<vmem>>, %arg4: memref<504x128xf32, #tpu.memory_space<vmem>>) attributes {dimension_semantics = [#tpu.dimension_semantics<parallel>], iteration_bounds = array<i64: 2>, scalar_prefetch = 0 : i64, scratch_operands = 0 : i64, tpu.core_type = #tpu.core_type<tc>, window_params = [{transform_indices = @transform_0, window_bounds = array<i64: 504, 1>}, {pipeline_mode = #tpu.pipeline_mode<synchronous>, transform_indices = @transform_1, window_bounds = array<i64: 1, 128>}, {pipeline_mode = #tpu.pipeline_mode<synchronous>, transform_indices = @transform_2, window_bounds = array<i64: 1, 128>}, {transform_indices = @transform_3, window_bounds = array<i64: 504, 128>}]} {
    %c0 = arith.constant 0 : index
    %c0_0 = arith.constant 0 : index
    %0 = vector.load %arg1[%c0, %c0_0] : memref<504x1xf32, #tpu.memory_space<vmem>>, vector<504x1xf32>
    %c0_1 = arith.constant 0 : index
    %c0_2 = arith.constant 0 : index
    %1 = vector.load %arg2[%c0_1, %c0_2] : memref<1x128xf32, #tpu.memory_space<vmem>>, vector<1x128xf32>
    %2 = vector.broadcast %0 : vector<504x1xf32> to vector<504x128xf32>
    %3 = vector.broadcast %1 : vector<1x128xf32> to vector<504x128xf32>
    %4 = arith.mulf %2, %3 : vector<504x128xf32>
    %c0_3 = arith.constant 0 : index
    %c0_4 = arith.constant 0 : index
    %5 = vector.load %arg3[%c0_3, %c0_4] : memref<1x128xf32, #tpu.memory_space<vmem>>, vector<1x128xf32>
    %6 = vector.broadcast %5 : vector<1x128xf32> to vector<504x128xf32>
    %7 = arith.addf %4, %6 : vector<504x128xf32>
    %8 = math.sin %7 : vector<504x128xf32>
    %c0_5 = arith.constant 0 : index
    %c0_6 = arith.constant 0 : index
    %9 = vector.load %arg4[%c0_5, %c0_6] : memref<504x128xf32, #tpu.memory_space<vmem>>, vector<504x128xf32>
    tpu.vector_store %arg4[%c0_5, %c0_6], %8 {strides = array<i32>} : memref<504x128xf32, #tpu.memory_space<vmem>>, vector<504x128xf32>,
    return
  }
  func.func @transform_0(%arg0: i32) -> (i32, i32) {
    %c0_i32 = arith.constant 0 : i32
    %c0_i32_0 = arith.constant 0 : i32
    return %arg0, %c0_i32 : i32, i32
  }
  func.func @transform_1(%arg0: i32) -> (i32, i32) {
    %c0_i32 = arith.constant 0 : i32
    %c0_i32_0 = arith.constant 0 : i32
    %c0_i32_1 = arith.constant 0 : i32
    return %c0_i32, %c0_i32_0 : i32, i32
  }
  func.func @transform_2(%arg0: i32) -> (i32, i32) {
    %c0_i32 = arith.constant 0 : i32
    %c0_i32_0 = arith.constant 0 : i32
    %c0_i32_1 = arith.constant 0 : i32
    return %c0_i32, %c0_i32_0 : i32, i32
  }
  func.func @transform_3(%arg0: i32) -> (i32, i32) {
    %c0_i32 = arith.constant 0 : i32
    %c0_i32_0 = arith.constant 0 : i32
    return %arg0, %c0_i32 : i32, i32
  }
}

</mosaic_0001>

<llo_original>
// kernel: tpu_custom_call.1
$region0: #{tpu_custom_call.1}
  #allocation0 [shape = 'u32[]', space=smem, size = 0x4, offset = 0x4, fixed_abs, tag = 'smem constant byte address 0x4 - core index']
  #allocation1 [shape = 'u32[144,128]{1,0:T(1,128)}', space=vmem, size = 0x12000, scoped, tag = 'internal scratch']
  %s0 = inlined_call_operand.vmem [shape: f32[1008,1], index: 0, kind: input, shape index: {}]
  %s1 = inlined_call_operand.vmem [shape: f32[1,128], index: 1, kind: input, shape index: {}]
  %s2 = inlined_call_operand.vmem [shape: f32[1,128], index: 2, kind: input, shape index: {}]
  %s3 = inlined_call_operand.hbm [shape: f32[1008,128], index: 3, kind: output, shape index: {}]
  %s4 = sld [smem:[#allocation0]]
  $region45: #{tpu_custom_call.1} parent=0
    _
  %s6 = ssub.s32 1, %s4
  %s7 = scalar_select 0, %s6, %s4
  $region1: #{tpu_custom_call.1} parent=0
    #allocation2 [shape = 'u8[516096]{0}', space=vmem, size = 0x7e000, scoped, tag = 'output window, operand 0']
    #allocation3 [shape = 's32[2]{0}', space=sflag, size = 0x8, scoped, tag = 'scoped memory for tpu_custom_call.1']
    %8 = vsyncpa [#allocation3], 0
    %s9 = scalar_lea.sflag [#allocation3], 1
    %10 = vsyncpa %s9, 0
    loop: start=0, step=1, limit=4
    $region2: #{tpu_custom_call.1} parent=1 // loop_pre_header
      _
    $region3: #{tpu_custom_call.1} parent=1 // loop_header
      %s12 = sphi 0, %s16
      %p13 = scmp.ge.s32.totalorder %s12, 4
      %s22 = sphi 0, %s24
      %s25 = sphi 0, %s22
      %s26 = sphi 0, %s25
      %s42 = sphi 0, %s26
      %s46 = sphi 0, %s46
      %s48 = sphi 0, %s46
      %s49 = sphi 0, %s48
      %s63 = sphi 0, %s49
      %s67 = sphi 0, %s67
      %s69 = sphi 0, %s67
      %s70 = sphi 0, %s69
      %s84 = sphi 0, %s70
      %s90 = sphi 0, %s92
      %s93 = sphi 0, %s90
      %s94 = sphi 0, %s93
      %s110 = sphi 0, %s94
    $region4: #{tpu_custom_call.1} parent=1 // loop_header_branch
      %15 = sbr.rel (%p13) target = $region8
    $region5: #{tpu_custom_call.1} parent=1 // loop_body
      %s17 = ssub.s32 %s12, 1
      %s18 = ssub.s32 %s12, 2
      %s19 = sadd.s32 %s12, 1
      %s20 = ssub.s32 %s12, %s19
      %p21 = scmp.eq.s32.totalorder %s20, 0
      %s23 = sadd.s32 %s22, 1
      %s24 = scalar_select %p21, %s22, %s23
      %p27 = pneg %p21
      %p28 = scmp.eq.s32.totalorder %s12, 1
      %p29 = por %p27, %p28
      %p30 = scmp.ne.s32.totalorder %s22, %s25
      %p31 = scmp.eq.s32.totalorder %s12, 0
      %p32 = por %p30, %p31
      %p33 = scmp.ne.s32.totalorder %s22, %s25
      %p34 = scmp.eq.s32.totalorder %s17, 1
      %p35 = por %p33, %p34
      %p36 = scmp.ne.s32.totalorder %s25, %s26
      %p37 = scmp.eq.s32.totalorder %s17, 0
      %p38 = por %p36, %p37
      %p39 = scmp.ne.s32.totalorder %s25, %s26
      %p40 = scmp.eq.s32.totalorder %s18, 1
      %p41 = por %p39, %p40
      %p43 = scmp.ne.s32.totalorder %s26, %s42
      %p44 = scmp.eq.s32.totalorder %s18, 0
      %p45 = por %p43, %p44
      %s47 = sadd.s32 %s46, 1
      %p50 = scmp.eq.s32.totalorder %s12, 1
      %p51 = scmp.ne.s32.totalorder %s46, %s48
      %p52 = scmp.eq.s32.totalorder %s12, 0
      %p53 = por %p51, %p52
      %p54 = scmp.ne.s32.totalorder %s46, %s48
      %p55 = scmp.eq.s32.totalorder %s17, 1
      %p56 = por %p54, %p55
      %p57 = scmp.ne.s32.totalorder %s48, %s49
      %p58 = scmp.eq.s32.totalorder %s17, 0
      %p59 = por %p57, %p58
      %p60 = scmp.ne.s32.totalorder %s48, %s49
      %p61 = scmp.eq.s32.totalorder %s18, 1
      %p62 = por %p60, %p61
      %p64 = scmp.ne.s32.totalorder %s49, %s63
      %p65 = scmp.eq.s32.totalorder %s18, 0
      %p66 = por %p64, %p65
      %s68 = sadd.s32 %s67, 1
      %p71 = scmp.eq.s32.totalorder %s12, 1
      %p72 = scmp.ne.s32.totalorder %s67, %s69
      %p73 = scmp.eq.s32.totalorder %s12, 0
      %p74 = por %p72, %p73
      %p75 = scmp.ne.s32.totalorder %s67, %s69
      %p76 = scmp.eq.s32.totalorder %s17, 1
      %p77 = por %p75, %p76
      %p78 = scmp.ne.s32.totalorder %s69, %s70
      %p79 = scmp.eq.s32.totalorder %s17, 0
      %p80 = por %p78, %p79
      %p81 = scmp.ne.s32.totalorder %s69, %s70
      %p82 = scmp.eq.s32.totalorder %s18, 1
      %p83 = por %p81, %p82
      %p85 = scmp.ne.s32.totalorder %s70, %s84
      %p86 = scmp.eq.s32.totalorder %s18, 0
      %p87 = por %p85, %p86
      %s88 = ssub.s32 %s12, %s19
      %p89 = scmp.eq.s32.totalorder %s88, 0
      %s91 = sadd.s32 %s90, 1
      %s92 = scalar_select %p89, %s90, %s91
      %p95 = pneg %p89
      %p96 = scmp.eq.s32.totalorder %s12, 1
      %p97 = por %p95, %p96
      %p98 = scmp.ne.s32.totalorder %s90, %s93
      %p99 = scmp.eq.s32.totalorder %s12, 0
      %p100 = por %p98, %p99
      %p101 = scmp.ne.s32.totalorder %s90, %s93
      %p102 = scmp.eq.s32.totalorder %s17, 1
      %p103 = por %p101, %p102
      %p104 = scmp.ne.s32.totalorder %s93, %s94
      %p105 = scmp.eq.s32.totalorder %s17, 0
      %p106 = por %p104, %p105
      %p107 = scmp.ne.s32.totalorder %s93, %s94
      %p108 = scmp.eq.s32.totalorder %s18, 1
      %p109 = por %p107, %p108
      %p111 = scmp.ne.s32.totalorder %s94, %s110
      %p112 = scmp.eq.s32.totalorder %s18, 0
      %p113 = por %p111, %p112
      %p114 = scmp.le.s32.totalorder 1, %s12
      %p115 = scmp.lt.s32.totalorder %s12, 3
      %p116 = pnand %p114, %p115
      %p117 = pneg %p116
      // Predicated region
      $region9: #{tpu_custom_call.1} parent=5 // pred_check
        _
      $region10: #{tpu_custom_call.1} parent=5 // pred_check_branch
        %119 = sbr.rel (%p116) target = $region12
      $region11: #{tpu_custom_call.1} parent=5 // pred_region
        %s120 = ssub.s32 %s12, 1
        // Predicated region
        $region13: #{tpu_custom_call.1} parent=11 // pred_check
          %p121 = pneg %p59
        $region14: #{tpu_custom_call.1} parent=11 // pred_check_branch
          %123 = sbr.rel (%p121) target = $region16
        $region15: #{tpu_custom_call.1} parent=11 // pred_region
          _
        $region16: #{tpu_custom_call.1} parent=11 // pred_fallthru
          _
        // Predicated region
        $region17: #{tpu_custom_call.1} parent=11 // pred_check
          %p124 = pneg %p80
        $region18: #{tpu_custom_call.1} parent=11 // pred_check_branch
          %126 = sbr.rel (%p124) target = $region20
        $region19: #{tpu_custom_call.1} parent=11 // pred_region
          _
        $region20: #{tpu_custom_call.1} parent=11 // pred_fallthru
          _
      $region12: #{tpu_custom_call.1} parent=5 // pred_fallthru
        _
      %p127 = scmp.lt.s32.totalorder %s12, 2
      // Predicated region
      $region21: #{tpu_custom_call.1} parent=5 // pred_check
        %p128 = pneg %p127
      $region22: #{tpu_custom_call.1} parent=5 // pred_check_branch
        %130 = sbr.rel (%p128) target = $region24
      $region23: #{tpu_custom_call.1} parent=5 // pred_region
        // Predicated region
        $region25: #{tpu_custom_call.1} parent=23 // pred_check
          %p131 = pneg %p32
        $region26: #{tpu_custom_call.1} parent=23 // pred_check_branch
          %133 = sbr.rel (%p131) target = $region28
        $region27: #{tpu_custom_call.1} parent=23 // pred_region
          %s134 = smul.u32 63, %s12
          %p135 = scmp.lt.s32.totalorder %s134, 125
          %s136 = scalar_select %p135, %s134, 125
          %s137 = smul.addr %s136, 8
          %s138 = scalar_lea.vmem %s0, %s137
          %s139 = smul.u32 63, %s12
        $region28: #{tpu_custom_call.1} parent=23 // pred_fallthru
          _
      $region24: #{tpu_custom_call.1} parent=5 // pred_fallthru
        _
      %p140 = scmp.le.s32.totalorder 1, %s12
      %p141 = scmp.lt.s32.totalorder %s12, 3
      %p142 = pnand %p140, %p141
      %p143 = pneg %p142
      // Predicated region
      $region29: #{tpu_custom_call.1} parent=5 // pred_check
        _
      $region30: #{tpu_custom_call.1} parent=5 // pred_check_branch
        %145 = sbr.rel (%p142) target = $region32
      $region31: #{tpu_custom_call.1} parent=5 // pred_region
        %s146 = ssub.s32 %s12, 1
        %s147 = smul.u32 63, %s17
        %p148 = scmp.lt.s32.totalorder %s147, 125
        %s149 = scalar_select %p148, %s147, 125
        %s150 = smul.addr %s149, 8
        %s151 = scalar_lea.vmem %s0, %s150
        %p152 = pneg %p38
        %p153 = pneg %p35
        %p154 = pneg %p59
        %p155 = pneg %p56
        %p156 = pneg %p80
        %p157 = pneg %p77
        %p158 = pneg %p106
        %p159 = pneg %p103
        %s160 = sand.u32 %s93, 1
        %s161 = scalar_lea.sflag [#allocation3], %s160
        %s162 = sand.u32 %s93, 1
        %s163 = smul.addr %s162, 504
        %s164 = scalar_lea.vmem [#allocation2], %s163
        %s165 = smul.u32 63, %s17
        %p166 = scmp.lt.s32.totalorder %s165, 125
        %s167 = scalar_select %p166, %s165, 125
        %s168 = smul.addr %s167, 8
        %s169 = scalar_lea.vmem %s0, %s168
        %s170 = smul.u32 63, %s17
        %s171 = smul.u32 63, %s17
        %v172 = vld [vmem:[%s169] sm:$0xff]
        %v173 = vld [vmem:[%s169 + $0x8] sm:$0xff]
        %v174 = vld [vmem:[%s169 + $0x10] sm:$0xff]
        %v175 = vld [vmem:[%s169 + $0x18] sm:$0xff]
        %v176 = vld [vmem:[%s169 + $0x20] sm:$0xff]
        %v177 = vld [vmem:[%s169 + $0x28] sm:$0xff]
        %v178 = vld [vmem:[%s169 + $0x30] sm:$0xff]
        %v179 = vld [vmem:[%s169 + $0x38] sm:$0xff]
        %v180 = vld [vmem:[%s169 + $0x40] sm:$0xff]
        %v181 = vld [vmem:[%s169 + $0x48] sm:$0xff]
        %v182 = vld [vmem:[%s169 + $0x50] sm:$0xff]
        %v183 = vld [vmem:[%s169 + $0x58] sm:$0xff]
        %v184 = vld [vmem:[%s169 + $0x60] sm:$0xff]
        %v185 = vld [vmem:[%s169 + $0x68] sm:$0xff]
        %v186 = vld [vmem:[%s169 + $0x70] sm:$0xff]
        %v187 = vld [vmem:[%s169 + $0x78] sm:$0xff]
        %v188 = vld [vmem:[%s169 + $0x80] sm:$0xff]
        %v189 = vld [vmem:[%s169 + $0x88] sm:$0xff]
        %v190 = vld [vmem:[%s169 + $0x90] sm:$0xff]
        %v191 = vld [vmem:[%s169 + $0x98] sm:$0xff]
        %v192 = vld [vmem:[%s169 + $0xa0] sm:$0xff]
        %v193 = vld [vmem:[%s169 + $0xa8] sm:$0xff]
        %v194 = vld [vmem:[%s169 + $0xb0] sm:$0xff]
        %v195 = vld [vmem:[%s169 + $0xb8] sm:$0xff]
        %v196 = vld [vmem:[%s169 + $0xc0] sm:$0xff]
        %v197 = vld [vmem:[%s169 + $0xc8] sm:$0xff]
        %v198 = vld [vmem:[%s169 + $0xd0] sm:$0xff]
        %v199 = vld [vmem:[%s169 + $0xd8] sm:$0xff]
        %v200 = vld [vmem:[%s169 + $0xe0] sm:$0xff]
        %v201 = vld [vmem:[%s169 + $0xe8] sm:$0xff]
        %v202 = vld [vmem:[%s169 + $0xf0] sm:$0xff]
        %v203 = vld [vmem:[%s169 + $0xf8] sm:$0xff]
        %v204 = vld [vmem:[%s169 + $0x100] sm:$0xff]
        %v205 = vld [vmem:[%s169 + $0x108] sm:$0xff]
        %v206 = vld [vmem:[%s169 + $0x110] sm:$0xff]
        %v207 = vld [vmem:[%s169 + $0x118] sm:$0xff]
        %v208 = vld [vmem:[%s169 + $0x120] sm:$0xff]
        %v209 = vld [vmem:[%s169 + $0x128] sm:$0xff]
        %v210 = vld [vmem:[%s169 + $0x130] sm:$0xff]
        %v211 = vld [vmem:[%s169 + $0x138] sm:$0xff]
        %v212 = vld [vmem:[%s169 + $0x140] sm:$0xff]
        %v213 = vld [vmem:[%s169 + $0x148] sm:$0xff]
        %v214 = vld [vmem:[%s169 + $0x150] sm:$0xff]
        %v215 = vld [vmem:[%s169 + $0x158] sm:$0xff]
        %v216 = vld [vmem:[%s169 + $0x160] sm:$0xff]
        %v217 = vld [vmem:[%s169 + $0x168] sm:$0xff]
        %v218 = vld [vmem:[%s169 + $0x170] sm:$0xff]
        %v219 = vld [vmem:[%s169 + $0x178] sm:$0xff]
        %v220 = vld [vmem:[%s169 + $0x180] sm:$0xff]
        %v221 = vld [vmem:[%s169 + $0x188] sm:$0xff]
        %v222 = vld [vmem:[%s169 + $0x190] sm:$0xff]
        %v223 = vld [vmem:[%s169 + $0x198] sm:$0xff]
        %v224 = vld [vmem:[%s169 + $0x1a0] sm:$0xff]
        %v225 = vld [vmem:[%s169 + $0x1a8] sm:$0xff]
        %v226 = vld [vmem:[%s169 + $0x1b0] sm:$0xff]
        %v227 = vld [vmem:[%s169 + $0x1b8] sm:$0xff]
        %v228 = vld [vmem:[%s169 + $0x1c0] sm:$0xff]
        %v229 = vld [vmem:[%s169 + $0x1c8] sm:$0xff]
        %v230 = vld [vmem:[%s169 + $0x1d0] sm:$0xff]
        %v231 = vld [vmem:[%s169 + $0x1d8] sm:$0xff]
        %v232 = vld [vmem:[%s169 + $0x1e0] sm:$0xff]
        %v233 = vld [vmem:[%s169 + $0x1e8] sm:$0xff]
        %v234 = vld [vmem:[%s169 + $0x1f0] sm:$0xff]
        %v235 = vld [vmem:[%s1] sm:$0x1]
        %237 = vset.pattern.permute.xlu0 0
        %238 = vperm.xlu0 %237, %v172
        %v239 = vpop.permute.xlu0 %238
        %242 = vset.pattern.permute.xlu0 0
        %243 = vperm.xlu0 %242, %v173
        %v244 = vpop.permute.xlu0 %243
        %247 = vset.pattern.permute.xlu0 0
        %248 = vperm.xlu0 %247, %v174
        %v249 = vpop.permute.xlu0 %248
        %252 = vset.pattern.permute.xlu0 0
        %253 = vperm.xlu0 %252, %v175
        %v254 = vpop.permute.xlu0 %253
        %257 = vset.pattern.permute.xlu0 0
        %258 = vperm.xlu0 %257, %v176
        %v259 = vpop.permute.xlu0 %258
        %262 = vset.pattern.permute.xlu0 0
        %263 = vperm.xlu0 %262, %v177
        %v264 = vpop.permute.xlu0 %263
        %267 = vset.pattern.permute.xlu0 0
        %268 = vperm.xlu0 %267, %v178
        %v269 = vpop.permute.xlu0 %268
        %272 = vset.pattern.permute.xlu0 0
        %273 = vperm.xlu0 %272, %v179
        %v274 = vpop.permute.xlu0 %273
        %277 = vset.pattern.permute.xlu0 0
        %278 = vperm.xlu0 %277, %v180
        %v279 = vpop.permute.xlu0 %278
        %282 = vset.pattern.permute.xlu0 0
        %283 = vperm.xlu0 %282, %v181
        %v284 = vpop.permute.xlu0 %283
        %287 = vset.pattern.permute.xlu0 0
        %288 = vperm.xlu0 %287, %v182
        %v289 = vpop.permute.xlu0 %288
        %292 = vset.pattern.permute.xlu0 0
        %293 = vperm.xlu0 %292, %v183
        %v294 = vpop.permute.xlu0 %293
        %297 = vset.pattern.permute.xlu0 0
        %298 = vperm.xlu0 %297, %v184
        %v299 = vpop.permute.xlu0 %298
        %302 = vset.pattern.permute.xlu0 0
        %303 = vperm.xlu0 %302, %v185
        %v304 = vpop.permute.xlu0 %303
        %307 = vset.pattern.permute.xlu0 0
        %308 = vperm.xlu0 %307, %v186
        %v309 = vpop.permute.xlu0 %308
        %312 = vset.pattern.permute.xlu0 0
        %313 = vperm.xlu0 %312, %v187
        %v314 = vpop.permute.xlu0 %313
        %317 = vset.pattern.permute.xlu0 0
        %318 = vperm.xlu0 %317, %v188
        %v319 = vpop.permute.xlu0 %318
        %322 = vset.pattern.permute.xlu0 0
        %323 = vperm.xlu0 %322, %v189
        %v324 = vpop.permute.xlu0 %323
        %327 = vset.pattern.permute.xlu0 0
        %328 = vperm.xlu0 %327, %v190
        %v329 = vpop.permute.xlu0 %328
        %332 = vset.pattern.permute.xlu0 0
        %333 = vperm.xlu0 %332, %v191
        %v334 = vpop.permute.xlu0 %333
        %337 = vset.pattern.permute.xlu0 0
        %338 = vperm.xlu0 %337, %v192
        %v339 = vpop.permute.xlu0 %338
        %342 = vset.pattern.permute.xlu0 0
        %343 = vperm.xlu0 %342, %v193
        %v344 = vpop.permute.xlu0 %343
        %347 = vset.pattern.permute.xlu0 0
        %348 = vperm.xlu0 %347, %v194
        %v349 = vpop.permute.xlu0 %348
        %352 = vset.pattern.permute.xlu0 0
        %353 = vperm.xlu0 %352, %v195
        %v354 = vpop.permute.xlu0 %353
        %357 = vset.pattern.permute.xlu0 0
        %358 = vperm.xlu0 %357, %v196
        %v359 = vpop.permute.xlu0 %358
        %362 = vset.pattern.permute.xlu0 0
        %363 = vperm.xlu0 %362, %v197
        %v364 = vpop.permute.xlu0 %363
        %367 = vset.pattern.permute.xlu0 0
        %368 = vperm.xlu0 %367, %v198
        %v369 = vpop.permute.xlu0 %368
        %372 = vset.pattern.permute.xlu0 0
        %373 = vperm.xlu0 %372, %v199
        %v374 = vpop.permute.xlu0 %373
        %377 = vset.pattern.permute.xlu0 0
        %378 = vperm.xlu0 %377, %v200
        %v379 = vpop.permute.xlu0 %378
        %382 = vset.pattern.permute.xlu0 0
        %383 = vperm.xlu0 %382, %v201
        %v384 = vpop.permute.xlu0 %383
        %387 = vset.pattern.permute.xlu0 0
        %388 = vperm.xlu0 %387, %v202
        %v389 = vpop.permute.xlu0 %388
        %392 = vset.pattern.permute.xlu0 0
        %393 = vperm.xlu0 %392, %v203
        %v394 = vpop.permute.xlu0 %393
        %397 = vset.pattern.permute.xlu0 0
        %398 = vperm.xlu0 %397, %v204
        %v399 = vpop.permute.xlu0 %398
        %402 = vset.pattern.permute.xlu0 0
        %403 = vperm.xlu0 %402, %v205
        %v404 = vpop.permute.xlu0 %403
        %407 = vset.pattern.permute.xlu0 0
        %408 = vperm.xlu0 %407, %v206
        %v409 = vpop.permute.xlu0 %408
        %412 = vset.pattern.permute.xlu0 0
        %413 = vperm.xlu0 %412, %v207
        %v414 = vpop.permute.xlu0 %413
        %417 = vset.pattern.permute.xlu0 0
        %418 = vperm.xlu0 %417, %v208
        %v419 = vpop.permute.xlu0 %418
        %422 = vset.pattern.permute.xlu0 0
        %423 = vperm.xlu0 %422, %v209
        %v424 = vpop.permute.xlu0 %423
        %427 = vset.pattern.permute.xlu0 0
        %428 = vperm.xlu0 %427, %v210
        %v429 = vpop.permute.xlu0 %428
        %432 = vset.pattern.permute.xlu0 0
        %433 = vperm.xlu0 %432, %v211
        %v434 = vpop.permute.xlu0 %433
        %437 = vset.pattern.permute.xlu0 0
        %438 = vperm.xlu0 %437, %v212
        %v439 = vpop.permute.xlu0 %438
        %442 = vset.pattern.permute.xlu0 0
        %443 = vperm.xlu0 %442, %v213
        %v444 = vpop.permute.xlu0 %443
        %447 = vset.pattern.permute.xlu0 0
        %448 = vperm.xlu0 %447, %v214
        %v449 = vpop.permute.xlu0 %448
        %452 = vset.pattern.permute.xlu0 0
        %453 = vperm.xlu0 %452, %v215
        %v454 = vpop.permute.xlu0 %453
        %457 = vset.pattern.permute.xlu0 0
        %458 = vperm.xlu0 %457, %v216
        %v459 = vpop.permute.xlu0 %458
        %462 = vset.pattern.permute.xlu0 0
        %463 = vperm.xlu0 %462, %v217
        %v464 = vpop.permute.xlu0 %463
        %467 = vset.pattern.permute.xlu0 0
        %468 = vperm.xlu0 %467, %v218
        %v469 = vpop.permute.xlu0 %468
        %472 = vset.pattern.permute.xlu0 0
        %473 = vperm.xlu0 %472, %v219
        %v474 = vpop.permute.xlu0 %473
        %477 = vset.pattern.permute.xlu0 0
        %478 = vperm.xlu0 %477, %v220
        %v479 = vpop.permute.xlu0 %478
        %482 = vset.pattern.permute.xlu0 0
        %483 = vperm.xlu0 %482, %v221
        %v484 = vpop.permute.xlu0 %483
        %487 = vset.pattern.permute.xlu0 0
        %488 = vperm.xlu0 %487, %v222
        %v489 = vpop.permute.xlu0 %488
        %492 = vset.pattern.permute.xlu0 0
        %493 = vperm.xlu0 %492, %v223
        %v494 = vpop.permute.xlu0 %493
        %497 = vset.pattern.permute.xlu0 0
        %498 = vperm.xlu0 %497, %v224
        %v499 = vpop.permute.xlu0 %498
        %502 = vset.pattern.permute.xlu0 0
        %503 = vperm.xlu0 %502, %v225
        %v504 = vpop.permute.xlu0 %503
        %507 = vset.pattern.permute.xlu0 0
        %508 = vperm.xlu0 %507, %v226
        %v509 = vpop.permute.xlu0 %508
        %512 = vset.pattern.permute.xlu0 0
        %513 = vperm.xlu0 %512, %v227
        %v514 = vpop.permute.xlu0 %513
        %517 = vset.pattern.permute.xlu0 0
        %518 = vperm.xlu0 %517, %v228
        %v519 = vpop.permute.xlu0 %518
        %522 = vset.pattern.permute.xlu0 0
        %523 = vperm.xlu0 %522, %v229
        %v524 = vpop.permute.xlu0 %523
        %527 = vset.pattern.permute.xlu0 0
        %528 = vperm.xlu0 %527, %v230
        %v529 = vpop.permute.xlu0 %528
        %532 = vset.pattern.permute.xlu0 0
        %533 = vperm.xlu0 %532, %v231
        %v534 = vpop.permute.xlu0 %533
        %537 = vset.pattern.permute.xlu0 0
        %538 = vperm.xlu0 %537, %v232
        %v539 = vpop.permute.xlu0 %538
        %542 = vset.pattern.permute.xlu0 0
        %543 = vperm.xlu0 %542, %v233
        %v544 = vpop.permute.xlu0 %543
        %547 = vset.pattern.permute.xlu0 0
        %548 = vperm.xlu0 %547, %v234
        %v549 = vpop.permute.xlu0 %548
        %v552 = vlaneseq
        %v553 = vshrl.u32 %v552, 7
        %v554 = vsub.s32 0, %v553
        %v555 = vrot.slane %v235, %v554
        %v557 = vmul.f32 %v239, %v555
        %v558 = vmul.f32 %v244, %v555
        %v559 = vmul.f32 %v249, %v555
        %v560 = vmul.f32 %v254, %v555
        %v561 = vmul.f32 %v259, %v555
        %v562 = vmul.f32 %v264, %v555
        %v563 = vmul.f32 %v269, %v555
        %v564 = vmul.f32 %v274, %v555
        %v565 = vmul.f32 %v279, %v555
        %v566 = vmul.f32 %v284, %v555
        %v567 = vmul.f32 %v289, %v555
        %v568 = vmul.f32 %v294, %v555
        %v569 = vmul.f32 %v299, %v555
        %v570 = vmul.f32 %v304, %v555
        %v571 = vmul.f32 %v309, %v555
        %v572 = vmul.f32 %v314, %v555
        %v573 = vmul.f32 %v319, %v555
        %v574 = vmul.f32 %v324, %v555
        %v575 = vmul.f32 %v329, %v555
        %v576 = vmul.f32 %v334, %v555
        %v577 = vmul.f32 %v339, %v555
        %v578 = vmul.f32 %v344, %v555
        %v579 = vmul.f32 %v349, %v555
        %v580 = vmul.f32 %v354, %v555
        %v581 = vmul.f32 %v359, %v555
        %v582 = vmul.f32 %v364, %v555
        %v583 = vmul.f32 %v369, %v555
        %v584 = vmul.f32 %v374, %v555
        %v585 = vmul.f32 %v379, %v555
        %v586 = vmul.f32 %v384, %v555
        %v587 = vmul.f32 %v389, %v555
        %v588 = vmul.f32 %v394, %v555
        %v589 = vmul.f32 %v399, %v555
        %v590 = vmul.f32 %v404, %v555
        %v591 = vmul.f32 %v409, %v555
        %v592 = vmul.f32 %v414, %v555
        %v593 = vmul.f32 %v419, %v555
        %v594 = vmul.f32 %v424, %v555
        %v595 = vmul.f32 %v429, %v555
        %v596 = vmul.f32 %v434, %v555
        %v597 = vmul.f32 %v439, %v555
        %v598 = vmul.f32 %v444, %v555
        %v599 = vmul.f32 %v449, %v555
        %v600 = vmul.f32 %v454, %v555
        %v601 = vmul.f32 %v459, %v555
        %v602 = vmul.f32 %v464, %v555
        %v603 = vmul.f32 %v469, %v555
        %v604 = vmul.f32 %v474, %v555
        %v605 = vmul.f32 %v479, %v555
        %v606 = vmul.f32 %v484, %v555
        %v607 = vmul.f32 %v489, %v555
        %v608 = vmul.f32 %v494, %v555
        %v609 = vmul.f32 %v499, %v555
        %v610 = vmul.f32 %v504, %v555
        %v611 = vmul.f32 %v509, %v555
        %v612 = vmul.f32 %v514, %v555
        %v613 = vmul.f32 %v519, %v555
        %v614 = vmul.f32 %v524, %v555
        %v615 = vmul.f32 %v529, %v555
        %v616 = vmul.f32 %v534, %v555
        %v617 = vmul.f32 %v539, %v555
        %v618 = vmul.f32 %v544, %v555
        %v619 = vmul.f32 %v549, %v555
        %v620 = vld [vmem:[%s2] sm:$0x1]
        %v622 = vlaneseq
        %v623 = vshrl.u32 %v622, 7
        %v624 = vsub.s32 0, %v623
        %v625 = vrot.slane %v620, %v624
        %v627 = vadd.f32 %v557, %v625
        %v628 = vadd.f32 %v558, %v625
        %v629 = vadd.f32 %v559, %v625
        %v630 = vadd.f32 %v560, %v625
        %v631 = vadd.f32 %v561, %v625
        %v632 = vadd.f32 %v562, %v625
        %v633 = vadd.f32 %v563, %v625
        %v634 = vadd.f32 %v564, %v625
        %v635 = vadd.f32 %v565, %v625
        %v636 = vadd.f32 %v566, %v625
        %v637 = vadd.f32 %v567, %v625
        %v638 = vadd.f32 %v568, %v625
        %v639 = vadd.f32 %v569, %v625
        %v640 = vadd.f32 %v570, %v625
        %v641 = vadd.f32 %v571, %v625
        %v642 = vadd.f32 %v572, %v625
        %v643 = vadd.f32 %v573, %v625
        %v644 = vadd.f32 %v574, %v625
        %v645 = vadd.f32 %v575, %v625
        %v646 = vadd.f32 %v576, %v625
        %v647 = vadd.f32 %v577, %v625
        %v648 = vadd.f32 %v578, %v625
        %v649 = vadd.f32 %v579, %v625
        %v650 = vadd.f32 %v580, %v625
        %v651 = vadd.f32 %v581, %v625
        %v652 = vadd.f32 %v582, %v625
        %v653 = vadd.f32 %v583, %v625
        %v654 = vadd.f32 %v584, %v625
        %v655 = vadd.f32 %v585, %v625
        %v656 = vadd.f32 %v586, %v625
        %v657 = vadd.f32 %v587, %v625
        %v658 = vadd.f32 %v588, %v625
        %v659 = vadd.f32 %v589, %v625
        %v660 = vadd.f32 %v590, %v625
        %v661 = vadd.f32 %v591, %v625
        %v662 = vadd.f32 %v592, %v625
        %v663 = vadd.f32 %v593, %v625
        %v664 = vadd.f32 %v594, %v625
        %v665 = vadd.f32 %v595, %v625
        %v666 = vadd.f32 %v596, %v625
        %v667 = vadd.f32 %v597, %v625
        %v668 = vadd.f32 %v598, %v625
        %v669 = vadd.f32 %v599, %v625
        %v670 = vadd.f32 %v600, %v625
        %v671 = vadd.f32 %v601, %v625
        %v672 = vadd.f32 %v602, %v625
        %v673 = vadd.f32 %v603, %v625
        %v674 = vadd.f32 %v604, %v625
        %v675 = vadd.f32 %v605, %v625
        %v676 = vadd.f32 %v606, %v625
        %v677 = vadd.f32 %v607, %v625
        %v678 = vadd.f32 %v608, %v625
        %v679 = vadd.f32 %v609, %v625
        %v680 = vadd.f32 %v610, %v625
        %v681 = vadd.f32 %v611, %v625
        %v682 = vadd.f32 %v612, %v625
        %v683 = vadd.f32 %v613, %v625
        %v684 = vadd.f32 %v614, %v625
        %v685 = vadd.f32 %v615, %v625
        %v686 = vadd.f32 %v616, %v625
        %v687 = vadd.f32 %v617, %v625
        %v688 = vadd.f32 %v618, %v625
        %v689 = vadd.f32 %v619, %v625
        %v690 = vand.u32 2147483647, %v627
        %vm691 = vcmp.le.f32.partialorder %v690, 0.7853982
        %vm692 = vcmp.lt.s32.totalorder %v627, 0
        %v693 = vand.u32 %v627, 2139095040
        %v694 = vshrl.u32 %v693, 23
        %v695 = vsub.s32 %v694, 127
        %v696 = vand.u32 2147483647, %v627
        %v697 = vand.u32 %v696, 8388607
        %v698 = vor.u32 %v697, 8388608
        %v699 = vsub.s32 0, %v698
        %v700 = vadd.s32 %v695, 1
        %vm701 = vcmp.gt.s32.totalorder %v700, 0
        %v702 = vsel %vm701, %v700, 0
        %v703 = vshrl.u32 %v702, 5
        %v704 = vand.u32 %v702, 31
        %v705 = vsub.s32 32, %v704
        %v706 = vshrl.u32 683565275, %v705
        %v707 = vshll.u32 683565275, %v704
        %v708 = vshrl.u32 2475754826, %v705
        %v709 = vor.u32 %v707, %v708
        %v710 = vshll.u32 2475754826, %v704
        %v711 = vshrl.u32 2131351028, %v705
        %v712 = vor.u32 %v710, %v711
        %v713 = vshll.u32 2131351028, %v704
        %v714 = vshrl.u32 2102212464, %v705
        %v715 = vor.u32 %v713, %v714
        %v716 = vshll.u32 2102212464, %v704
        %v717 = vshrl.u32 920167782, %v705
        %v718 = vor.u32 %v716, %v717
        %v719 = vshll.u32 920167782, %v704
        %v720 = vshrl.u32 1326507024, %v705
        %v721 = vor.u32 %v719, %v720
        %vm722 = vcmp.lt.s32.totalorder %v703, 1
        %vm723 = vcmp.lt.s32.totalorder %v703, 2
        %vm724 = vcmp.lt.s32.totalorder %v703, 3
        %vm725 = vcmp.lt.s32.totalorder %v703, 4
        %v726 = vsel %vm722, %v706, %v709
        %v727 = vsel %vm725, %v715, 2102212464
        %v728 = vsel %vm724, %v712, %v727
        %v729 = vsel %vm723, %v726, %v728
        %v730 = vsel %vm722, %v709, %v712
        %v731 = vsel %vm725, %v718, 920167782
        %v732 = vsel %vm724, %v715, %v731
        %v733 = vsel %vm723, %v730, %v732
        %v734 = vsel %vm722, %v712, %v715
        %v735 = vsel %vm725, %v721, 1326507024
        %v736 = vsel %vm724, %v718, %v735
        %v737 = vsel %vm723, %v734, %v736
        %v738 = vshll.u32 %v698, 8
        %v739 = vmul.u32.u64.compose %v738, %v737
        %v740 = vextract.low.u32 %v739
        %v741 = vextract.high.u32 %v739
        %v742 = vmul.u32.u64.compose %v738, %v733
        %v743 = vextract.low.u32 %v742
        %v744 = vextract.high.u32 %v742
        %v745 = vmul.u32 %v738, %v729
        %v746 = vadd.s32 %v741, %v743
        %vm747 = vc.u32 %v741, %v743
        %v748 = vadd.s32 %v744, 1
        %v749 = vsel %vm747, %v748, %v744
        %v750 = vadd.s32 %v745, %v749
        %v751 = vadd.s32 %v750, 536870912
        %v752 = vshrl.u32 %v751, 30
        %v753 = vshll.u32 %v752, 30
        %v754 = vsub.s32 %v750, %v753
        %vm755 = vcmp.lt.s32.totalorder %v754, 0
        %v756 = vsub.s32 0, %v754
        %v757 = vsel %vm755, %v756, %v754
        %v758 = vclz %v757
        %v759 = vsub.s32 %v758, 2
        %vm760 = vcmp.gt.s32.totalorder 0, %v759
        %v761 = vsel %vm760, 0, %v759
        %v762 = vsub.s32 32, %v761
        %v763 = vshll.u32 %v754, %v761
        %v764 = vshrl.u32 %v746, %v762
        %v765 = vor.u32 %v763, %v764
        %v766 = vsub.s32 4294967266, %v761
        %v767 = vadd.s32 %v766, 127
        %v768 = vshll.u32 %v767, 23
        %v769 = vor.u32 4788187, %v768
        %v770 = vand.u32 2147483647, %v769
        %v772 = vcvt.s32.f32 %v765
        %v773 = vmul.f32 %v772, %v770
        %v774 = vxor.u32 %v773, 2147483648
        %v775 = vsel %vm692, %v774, %v773
        %v776 = vsub.s32 4, %v752
        %v777 = vsel %vm692, %v776, %v752
        %v778 = vsel %vm691, %v627, %v775
        %v779 = vsel %vm691, 0, %v777
        %v780 = vcosq.f32.pop %v778
        %v781 = vsinq.f32.pop %v778
        %vm782 = vweird.f32 %v627
        %v783 = vadd.s32 %v779, 3
        %v784 = vand.u32 %v783, 3
        %vm785 = vcmp.lt.s32.totalorder %v784, 2
        %vm786 = vcmp.eq.s32.totalorder %v784, 0
        %v787 = vxor.u32 %v781, 2147483648
        %v788 = vsel %vm786, %v780, %v787
        %vm789 = vcmp.eq.s32.totalorder %v784, 2
        %v790 = vxor.u32 %v780, 2147483648
        %v791 = vsel %vm789, %v790, %v781
        %v792 = vsel %vm785, %v788, %v791
        %v793 = vsel %vm782, nan, %v792
        %v794 = vand.u32 2147483647, %v628
        %vm795 = vcmp.le.f32.partialorder %v794, 0.7853982
        %vm796 = vcmp.lt.s32.totalorder %v628, 0
        %v797 = vand.u32 %v628, 2139095040
        %v798 = vshrl.u32 %v797, 23
        %v799 = vsub.s32 %v798, 127
        %v800 = vand.u32 2147483647, %v628
        %v801 = vand.u32 %v800, 8388607
        %v802 = vor.u32 %v801, 8388608
        %v803 = vsub.s32 0, %v802
        %v804 = vadd.s32 %v799, 1
        %vm805 = vcmp.gt.s32.totalorder %v804, 0
        %v806 = vsel %vm805, %v804, 0
        %v807 = vshrl.u32 %v806, 5
        %v808 = vand.u32 %v806, 31
        %v809 = vsub.s32 32, %v808
        %v810 = vshrl.u32 683565275, %v809
        %v811 = vshll.u32 683565275, %v808
        %v812 = vshrl.u32 2475754826, %v809
        %v813 = vor.u32 %v811, %v812
        %v814 = vshll.u32 2475754826, %v808
        %v815 = vshrl.u32 2131351028, %v809
        %v816 = vor.u32 %v814, %v815
        %v817 = vshll.u32 2131351028, %v808
        %v818 = vshrl.u32 2102212464, %v809
        %v819 = vor.u32 %v817, %v818
        %v820 = vshll.u32 2102212464, %v808
        %v821 = vshrl.u32 920167782, %v809
        %v822 = vor.u32 %v820, %v821
        %v823 = vshll.u32 920167782, %v808
        %v824 = vshrl.u32 1326507024, %v809
        %v825 = vor.u32 %v823, %v824
        %vm826 = vcmp.lt.s32.totalorder %v807, 1
        %vm827 = vcmp.lt.s32.totalorder %v807, 2
        %vm828 = vcmp.lt.s32.totalorder %v807, 3
        %vm829 = vcmp.lt.s32.totalorder %v807, 4
        %v830 = vsel %vm826, %v810, %v813
        %v831 = vsel %vm829, %v819, 2102212464
        %v832 = vsel %vm828, %v816, %v831
        %v833 = vsel %vm827, %v830, %v832
        %v834 = vsel %vm826, %v813, %v816
        %v835 = vsel %vm829, %v822, 920167782
        %v836 = vsel %vm828, %v819, %v835
        %v837 = vsel %vm827, %v834, %v836
        %v838 = vsel %vm826, %v816, %v819
        %v839 = vsel %vm829, %v825, 1326507024
        %v840 = vsel %vm828, %v822, %v839
        %v841 = vsel %vm827, %v838, %v840
        %v842 = vshll.u32 %v802, 8
        %v843 = vmul.u32.u64.compose %v842, %v841
        %v844 = vextract.low.u32 %v843
        %v845 = vextract.high.u32 %v843
        %v846 = vmul.u32.u64.compose %v842, %v837
        %v847 = vextract.low.u32 %v846
        %v848 = vextract.high.u32 %v846
        %v849 = vmul.u32 %v842, %v833
        %v850 = vadd.s32 %v845, %v847
        %vm851 = vc.u32 %v845, %v847
        %v852 = vadd.s32 %v848, 1
        %v853 = vsel %vm851, %v852, %v848
        %v854 = vadd.s32 %v849, %v853
        %v855 = vadd.s32 %v854, 536870912
        %v856 = vshrl.u32 %v855, 30
        %v857 = vshll.u32 %v856, 30
        %v858 = vsub.s32 %v854, %v857
        %vm859 = vcmp.lt.s32.totalorder %v858, 0
        %v860 = vsub.s32 0, %v858
        %v861 = vsel %vm859, %v860, %v858
        %v862 = vclz %v861
        %v863 = vsub.s32 %v862, 2
        %vm864 = vcmp.gt.s32.totalorder 0, %v863
        %v865 = vsel %vm864, 0, %v863
        %v866 = vsub.s32 32, %v865
        %v867 = vshll.u32 %v858, %v865
        %v868 = vshrl.u32 %v850, %v866
        %v869 = vor.u32 %v867, %v868
        %v870 = vsub.s32 4294967266, %v865
        %v871 = vadd.s32 %v870, 127
        %v872 = vshll.u32 %v871, 23
        %v873 = vor.u32 4788187, %v872
        %v874 = vand.u32 2147483647, %v873
        %v876 = vcvt.s32.f32 %v869
        %v877 = vmul.f32 %v876, %v874
        %v878 = vxor.u32 %v877, 2147483648
        %v879 = vsel %vm796, %v878, %v877
        %v880 = vsub.s32 4, %v856
        %v881 = vsel %vm796, %v880, %v856
        %v882 = vsel %vm795, %v628, %v879
        %v883 = vsel %vm795, 0, %v881
        %v884 = vcosq.f32.pop %v882
        %v885 = vsinq.f32.pop %v882
        %vm886 = vweird.f32 %v628
        %v887 = vadd.s32 %v883, 3
        %v888 = vand.u32 %v887, 3
        %vm889 = vcmp.lt.s32.totalorder %v888, 2
        %vm890 = vcmp.eq.s32.totalorder %v888, 0
        %v891 = vxor.u32 %v885, 2147483648
        %v892 = vsel %vm890, %v884, %v891
        %vm893 = vcmp.eq.s32.totalorder %v888, 2
        %v894 = vxor.u32 %v884, 2147483648
        %v895 = vsel %vm893, %v894, %v885
        %v896 = vsel %vm889, %v892, %v895
        %v897 = vsel %vm886, nan, %v896
        %v898 = vand.u32 2147483647, %v629
        %vm899 = vcmp.le.f32.partialorder %v898, 0.7853982
        %vm900 = vcmp.lt.s32.totalorder %v629, 0
        %v901 = vand.u32 %v629, 2139095040
        %v902 = vshrl.u32 %v901, 23
        %v903 = vsub.s32 %v902, 127
        %v904 = vand.u32 2147483647, %v629
        %v905 = vand.u32 %v904, 8388607
        %v906 = vor.u32 %v905, 8388608
        %v907 = vsub.s32 0, %v906
        %v908 = vadd.s32 %v903, 1
        %vm909 = vcmp.gt.s32.totalorder %v908, 0
        %v910 = vsel %vm909, %v908, 0
        %v911 = vshrl.u32 %v910, 5
        %v912 = vand.u32 %v910, 31
        %v913 = vsub.s32 32, %v912
        %v914 = vshrl.u32 683565275, %v913
        %v915 = vshll.u32 683565275, %v912
        %v916 = vshrl.u32 2475754826, %v913
        %v917 = vor.u32 %v915, %v916
        %v918 = vshll.u32 2475754826, %v912
        %v919 = vshrl.u32 2131351028, %v913
        %v920 = vor.u32 %v918, %v919
        %v921 = vshll.u32 2131351028, %v912
        %v922 = vshrl.u32 2102212464, %v913
        %v923 = vor.u32 %v921, %v922
        %v924 = vshll.u32 2102212464, %v912
        %v925 = vshrl.u32 920167782, %v913
        %v926 = vor.u32 %v924, %v925
        %v927 = vshll.u32 920167782, %v912
        %v928 = vshrl.u32 1326507024, %v913
        %v929 = vor.u32 %v927, %v928
        %vm930 = vcmp.lt.s32.totalorder %v911, 1
        %vm931 = vcmp.lt.s32.totalorder %v911, 2
        %vm932 = vcmp.lt.s32.totalorder %v911, 3
        %vm933 = vcmp.lt.s32.totalorder %v911, 4
        %v934 = vsel %vm930, %v914, %v917
        %v935 = vsel %vm933, %v923, 2102212464
        %v936 = vsel %vm932, %v920, %v935
        %v937 = vsel %vm931, %v934, %v936
        %v938 = vsel %vm930, %v917, %v920
        %v939 = vsel %vm933, %v926, 920167782
        %v940 = vsel %vm932, %v923, %v939
        %v941 = vsel %vm931, %v938, %v940
        %v942 = vsel %vm930, %v920, %v923
        %v943 = vsel %vm933, %v929, 1326507024
        %v944 = vsel %vm932, %v926, %v943
        %v945 = vsel %vm931, %v942, %v944
        %v946 = vshll.u32 %v906, 8
        %v947 = vmul.u32.u64.compose %v946, %v945
        %v948 = vextract.low.u32 %v947
        %v949 = vextract.high.u32 %v947
        %v950 = vmul.u32.u64.compose %v946, %v941
        %v951 = vextract.low.u32 %v950
        %v952 = vextract.high.u32 %v950
        %v953 = vmul.u32 %v946, %v937
        %v954 = vadd.s32 %v949, %v951
        %vm955 = vc.u32 %v949, %v951
        %v956 = vadd.s32 %v952, 1
        %v957 = vsel %vm955, %v956, %v952
        %v958 = vadd.s32 %v953, %v957
        %v959 = vadd.s32 %v958, 536870912
        %v960 = vshrl.u32 %v959, 30
        %v961 = vshll.u32 %v960, 30
        %v962 = vsub.s32 %v958, %v961
        %vm963 = vcmp.lt.s32.totalorder %v962, 0
        %v964 = vsub.s32 0, %v962
        %v965 = vsel %vm963, %v964, %v962
        %v966 = vclz %v965
        %v967 = vsub.s32 %v966, 2
        %vm968 = vcmp.gt.s32.totalorder 0, %v967
        %v969 = vsel %vm968, 0, %v967
        %v970 = vsub.s32 32, %v969
        %v971 = vshll.u32 %v962, %v969
        %v972 = vshrl.u32 %v954, %v970
        %v973 = vor.u32 %v971, %v972
        %v974 = vsub.s32 4294967266, %v969
        %v975 = vadd.s32 %v974, 127
        %v976 = vshll.u32 %v975, 23
        %v977 = vor.u32 4788187, %v976
        %v978 = vand.u32 2147483647, %v977
        %v980 = vcvt.s32.f32 %v973
        %v981 = vmul.f32 %v980, %v978
        %v982 = vxor.u32 %v981, 2147483648
        %v983 = vsel %vm900, %v982, %v981
        %v984 = vsub.s32 4, %v960
        %v985 = vsel %vm900, %v984, %v960
        %v986 = vsel %vm899, %v629, %v983
        %v987 = vsel %vm899, 0, %v985
        %v988 = vcosq.f32.pop %v986
        %v989 = vsinq.f32.pop %v986
        %vm990 = vweird.f32 %v629
        %v991 = vadd.s32 %v987, 3
        %v992 = vand.u32 %v991, 3
        %vm993 = vcmp.lt.s32.totalorder %v992, 2
        %vm994 = vcmp.eq.s32.totalorder %v992, 0
        %v995 = vxor.u32 %v989, 2147483648
        %v996 = vsel %vm994, %v988, %v995
        %vm997 = vcmp.eq.s32.totalorder %v992, 2
        %v998 = vxor.u32 %v988, 2147483648
        %v999 = vsel %vm997, %v998, %v989
        %v1000 = vsel %vm993, %v996, %v999
        %v1001 = vsel %vm990, nan, %v1000
        %v1002 = vand.u32 2147483647, %v630
        %vm1003 = vcmp.le.f32.partialorder %v1002, 0.7853982
        %vm1004 = vcmp.lt.s32.totalorder %v630, 0
        %v1005 = vand.u32 %v630, 2139095040
        %v1006 = vshrl.u32 %v1005, 23
        %v1007 = vsub.s32 %v1006, 127
        %v1008 = vand.u32 2147483647, %v630
        %v1009 = vand.u32 %v1008, 8388607
        %v1010 = vor.u32 %v1009, 8388608
        %v1011 = vsub.s32 0, %v1010
        %v1012 = vadd.s32 %v1007, 1
        %vm1013 = vcmp.gt.s32.totalorder %v1012, 0
        %v1014 = vsel %vm1013, %v1012, 0
        %v1015 = vshrl.u32 %v1014, 5
        %v1016 = vand.u32 %v1014, 31
        %v1017 = vsub.s32 32, %v1016
        %v1018 = vshrl.u32 683565275, %v1017
        %v1019 = vshll.u32 683565275, %v1016
        %v1020 = vshrl.u32 2475754826, %v1017
        %v1021 = vor.u32 %v1019, %v1020
        %v1022 = vshll.u32 2475754826, %v1016
        %v1023 = vshrl.u32 2131351028, %v1017
        %v1024 = vor.u32 %v1022, %v1023
        %v1025 = vshll.u32 2131351028, %v1016
        %v1026 = vshrl.u32 2102212464, %v1017
        %v1027 = vor.u32 %v1025, %v1026
        %v1028 = vshll.u32 2102212464, %v1016
        %v1029 = vshrl.u32 920167782, %v1017
        %v1030 = vor.u32 %v1028, %v1029
        %v1031 = vshll.u32 920167782, %v1016
        %v1032 = vshrl.u32 1326507024, %v1017
        %v1033 = vor.u32 %v1031, %v1032
        %vm1034 = vcmp.lt.s32.totalorder %v1015, 1
        %vm1035 = vcmp.lt.s32.totalorder %v1015, 2
        %vm1036 = vcmp.lt.s32.totalorder %v1015, 3
        %vm1037 = vcmp.lt.s32.totalorder %v1015, 4
        %v1038 = vsel %vm1034, %v1018, %v1021
        %v1039 = vsel %vm1037, %v1027, 2102212464
        %v1040 = vsel %vm1036, %v1024, %v1039
        %v1041 = vsel %vm1035, %v1038, %v1040
        %v1042 = vsel %vm1034, %v1021, %v1024
        %v1043 = vsel %vm1037, %v1030, 920167782
        %v1044 = vsel %vm1036, %v1027, %v1043
        %v1045 = vsel %vm1035, %v1042, %v1044
        %v1046 = vsel %vm1034, %v1024, %v1027
        %v1047 = vsel %vm1037, %v1033, 1326507024
        %v1048 = vsel %vm1036, %v1030, %v1047
        %v1049 = vsel %vm1035, %v1046, %v1048
        %v1050 = vshll.u32 %v1010, 8
        %v1051 = vmul.u32.u64.compose %v1050, %v1049
        %v1052 = vextract.low.u32 %v1051
        %v1053 = vextract.high.u32 %v1051
        %v1054 = vmul.u32.u64.compose %v1050, %v1045
        %v1055 = vextract.low.u32 %v1054
        %v1056 = vextract.high.u32 %v1054
        %v1057 = vmul.u32 %v1050, %v1041
        %v1058 = vadd.s32 %v1053, %v1055
        %vm1059 = vc.u32 %v1053, %v1055
        %v1060 = vadd.s32 %v1056, 1
        %v1061 = vsel %vm1059, %v1060, %v1056
        %v1062 = vadd.s32 %v1057, %v1061
        %v1063 = vadd.s32 %v1062, 536870912
        %v1064 = vshrl.u32 %v1063, 30
        %v1065 = vshll.u32 %v1064, 30
        %v1066 = vsub.s32 %v1062, %v1065
        %vm1067 = vcmp.lt.s32.totalorder %v1066, 0
        %v1068 = vsub.s32 0, %v1066
        %v1069 = vsel %vm1067, %v1068, %v1066
        %v1070 = vclz %v1069
        %v1071 = vsub.s32 %v1070, 2
        %vm1072 = vcmp.gt.s32.totalorder 0, %v1071
        %v1073 = vsel %vm1072, 0, %v1071
        %v1074 = vsub.s32 32, %v1073
        %v1075 = vshll.u32 %v1066, %v1073
        %v1076 = vshrl.u32 %v1058, %v1074
        %v1077 = vor.u32 %v1075, %v1076
        %v1078 = vsub.s32 4294967266, %v1073
        %v1079 = vadd.s32 %v1078, 127
        %v1080 = vshll.u32 %v1079, 23
        %v1081 = vor.u32 4788187, %v1080
        %v1082 = vand.u32 2147483647, %v1081
        %v1084 = vcvt.s32.f32 %v1077
        %v1085 = vmul.f32 %v1084, %v1082
        %v1086 = vxor.u32 %v1085, 2147483648
        %v1087 = vsel %vm1004, %v1086, %v1085
        %v1088 = vsub.s32 4, %v1064
        %v1089 = vsel %vm1004, %v1088, %v1064
        %v1090 = vsel %vm1003, %v630, %v1087
        %v1091 = vsel %vm1003, 0, %v1089
        %v1092 = vcosq.f32.pop %v1090
        %v1093 = vsinq.f32.pop %v1090
        %vm1094 = vweird.f32 %v630
        %v1095 = vadd.s32 %v1091, 3
        %v1096 = vand.u32 %v1095, 3
        %vm1097 = vcmp.lt.s32.totalorder %v1096, 2
        %vm1098 = vcmp.eq.s32.totalorder %v1096, 0
        %v1099 = vxor.u32 %v1093, 2147483648
        %v1100 = vsel %vm1098, %v1092, %v1099
        %vm1101 = vcmp.eq.s32.totalorder %v1096, 2
        %v1102 = vxor.u32 %v1092, 2147483648
        %v1103 = vsel %vm1101, %v1102, %v1093
        %v1104 = vsel %vm1097, %v1100, %v1103
        %v1105 = vsel %vm1094, nan, %v1104
        %v1106 = vand.u32 2147483647, %v631
        %vm1107 = vcmp.le.f32.partialorder %v1106, 0.7853982
        %vm1108 = vcmp.lt.s32.totalorder %v631, 0
        %v1109 = vand.u32 %v631, 2139095040
        %v1110 = vshrl.u32 %v1109, 23
        %v1111 = vsub.s32 %v1110, 127
        %v1112 = vand.u32 2147483647, %v631
        %v1113 = vand.u32 %v1112, 8388607
        %v1114 = vor.u32 %v1113, 8388608
        %v1115 = vsub.s32 0, %v1114
        %v1116 = vadd.s32 %v1111, 1
        %vm1117 = vcmp.gt.s32.totalorder %v1116, 0
        %v1118 = vsel %vm1117, %v1116, 0
        %v1119 = vshrl.u32 %v1118, 5
        %v1120 = vand.u32 %v1118, 31
        %v1121 = vsub.s32 32, %v1120
        %v1122 = vshrl.u32 683565275, %v1121
        %v1123 = vshll.u32 683565275, %v1120
        %v1124 = vshrl.u32 2475754826, %v1121
        %v1125 = vor.u32 %v1123, %v1124
        %v1126 = vshll.u32 2475754826, %v1120
        %v1127 = vshrl.u32 2131351028, %v1121
        %v1128 = vor.u32 %v1126, %v1127
        %v1129 = vshll.u32 2131351028, %v1120
        %v1130 = vshrl.u32 2102212464, %v1121
        %v1131 = vor.u32 %v1129, %v1130
        %v1132 = vshll.u32 2102212464, %v1120
        %v1133 = vshrl.u32 920167782, %v1121
        %v1134 = vor.u32 %v1132, %v1133
        %v1135 = vshll.u32 920167782, %v1120
        %v1136 = vshrl.u32 1326507024, %v1121
        %v1137 = vor.u32 %v1135, %v1136
        %vm1138 = vcmp.lt.s32.totalorder %v1119, 1
        %vm1139 = vcmp.lt.s32.totalorder %v1119, 2
        %vm1140 = vcmp.lt.s32.totalorder %v1119, 3
        %vm1141 = vcmp.lt.s32.totalorder %v1119, 4
        %v1142 = vsel %vm1138, %v1122, %v1125
        %v1143 = vsel %vm1141, %v1131, 2102212464
        %v1144 = vsel %vm1140, %v1128, %v1143
        %v1145 = vsel %vm1139, %v1142, %v1144
        %v1146 = vsel %vm1138, %v1125, %v1128
        %v1147 = vsel %vm1141, %v1134, 920167782
        %v1148 = vsel %vm1140, %v1131, %v1147
        %v1149 = vsel %vm1139, %v1146, %v1148
        %v1150 = vsel %vm1138, %v1128, %v1131
        %v1151 = vsel %vm1141, %v1137, 1326507024
        %v1152 = vsel %vm1140, %v1134, %v1151
        %v1153 = vsel %vm1139, %v1150, %v1152
        %v1154 = vshll.u32 %v1114, 8
        %v1155 = vmul.u32.u64.compose %v1154, %v1153
        %v1156 = vextract.low.u32 %v1155
        %v1157 = vextract.high.u32 %v1155
        %v1158 = vmul.u32.u64.compose %v1154, %v1149
        %v1159 = vextract.low.u32 %v1158
        %v1160 = vextract.high.u32 %v1158
        %v1161 = vmul.u32 %v1154, %v1145
        %v1162 = vadd.s32 %v1157, %v1159
        %vm1163 = vc.u32 %v1157, %v1159
        %v1164 = vadd.s32 %v1160, 1
        %v1165 = vsel %vm1163, %v1164, %v1160
        %v1166 = vadd.s32 %v1161, %v1165
        %v1167 = vadd.s32 %v1166, 536870912
        %v1168 = vshrl.u32 %v1167, 30
        %v1169 = vshll.u32 %v1168, 30
        %v1170 = vsub.s32 %v1166, %v1169
        %vm1171 = vcmp.lt.s32.totalorder %v1170, 0
        %v1172 = vsub.s32 0, %v1170
        %v1173 = vsel %vm1171, %v1172, %v1170
        %v1174 = vclz %v1173
        %v1175 = vsub.s32 %v1174, 2
        %vm1176 = vcmp.gt.s32.totalorder 0, %v1175
        %v1177 = vsel %vm1176, 0, %v1175
        %v1178 = vsub.s32 32, %v1177
        %v1179 = vshll.u32 %v1170, %v1177
        %v1180 = vshrl.u32 %v1162, %v1178
        %v1181 = vor.u32 %v1179, %v1180
        %v1182 = vsub.s32 4294967266, %v1177
        %v1183 = vadd.s32 %v1182, 127
        %v1184 = vshll.u32 %v1183, 23
        %v1185 = vor.u32 4788187, %v1184
        %v1186 = vand.u32 2147483647, %v1185
        %v1188 = vcvt.s32.f32 %v1181
        %v1189 = vmul.f32 %v1188, %v1186
        %v1190 = vxor.u32 %v1189, 2147483648
        %v1191 = vsel %vm1108, %v1190, %v1189
        %v1192 = vsub.s32 4, %v1168
        %v1193 = vsel %vm1108, %v1192, %v1168
        %v1194 = vsel %vm1107, %v631, %v1191
        %v1195 = vsel %vm1107, 0, %v1193
        %v1196 = vcosq.f32.pop %v1194
        %v1197 = vsinq.f32.pop %v1194
        %vm1198 = vweird.f32 %v631
        %v1199 = vadd.s32 %v1195, 3
        %v1200 = vand.u32 %v1199, 3
        %vm1201 = vcmp.lt.s32.totalorder %v1200, 2
        %vm1202 = vcmp.eq.s32.totalorder %v1200, 0
        %v1203 = vxor.u32 %v1197, 2147483648
        %v1204 = vsel %vm1202, %v1196, %v1203
        %vm1205 = vcmp.eq.s32.totalorder %v1200, 2
        %v1206 = vxor.u32 %v1196, 2147483648
        %v1207 = vsel %vm1205, %v1206, %v1197
        %v1208 = vsel %vm1201, %v1204, %v1207
        %v1209 = vsel %vm1198, nan, %v1208
        %v1210 = vand.u32 2147483647, %v632
        %vm1211 = vcmp.le.f32.partialorder %v1210, 0.7853982
        %vm1212 = vcmp.lt.s32.totalorder %v632, 0
        %v1213 = vand.u32 %v632, 2139095040
        %v1214 = vshrl.u32 %v1213, 23
        %v1215 = vsub.s32 %v1214, 127
        %v1216 = vand.u32 2147483647, %v632
        %v1217 = vand.u32 %v1216, 8388607
        %v1218 = vor.u32 %v1217, 8388608
        %v1219 = vsub.s32 0, %v1218
        %v1220 = vadd.s32 %v1215, 1
        %vm1221 = vcmp.gt.s32.totalorder %v1220, 0
        %v1222 = vsel %vm1221, %v1220, 0
        %v1223 = vshrl.u32 %v1222, 5
        %v1224 = vand.u32 %v1222, 31
        %v1225 = vsub.s32 32, %v1224
        %v1226 = vshrl.u32 683565275, %v1225
        %v1227 = vshll.u32 683565275, %v1224
        %v1228 = vshrl.u32 2475754826, %v1225
        %v1229 = vor.u32 %v1227, %v1228
        %v1230 = vshll.u32 2475754826, %v1224
        %v1231 = vshrl.u32 2131351028, %v1225
        %v1232 = vor.u32 %v1230, %v1231
        %v1233 = vshll.u32 2131351028, %v1224
        %v1234 = vshrl.u32 2102212464, %v1225
        %v1235 = vor.u32 %v1233, %v1234
        %v1236 = vshll.u32 2102212464, %v1224
        %v1237 = vshrl.u32 920167782, %v1225
        %v1238 = vor.u32 %v1236, %v1237
        %v1239 = vshll.u32 920167782, %v1224
        %v1240 = vshrl.u32 1326507024, %v1225
        %v1241 = vor.u32 %v1239, %v1240
        %vm1242 = vcmp.lt.s32.totalorder %v1223, 1
        %vm1243 = vcmp.lt.s32.totalorder %v1223, 2
        %vm1244 = vcmp.lt.s32.totalorder %v1223, 3
        %vm1245 = vcmp.lt.s32.totalorder %v1223, 4
        %v1246 = vsel %vm1242, %v1226, %v1229
        %v1247 = vsel %vm1245, %v1235, 2102212464
        %v1248 = vsel %vm1244, %v1232, %v1247
        %v1249 = vsel %vm1243, %v1246, %v1248
        %v1250 = vsel %vm1242, %v1229, %v1232
        %v1251 = vsel %vm1245, %v1238, 920167782
        %v1252 = vsel %vm1244, %v1235, %v1251
        %v1253 = vsel %vm1243, %v1250, %v1252
        %v1254 = vsel %vm1242, %v1232, %v1235
        %v1255 = vsel %vm1245, %v1241, 1326507024
        %v1256 = vsel %vm1244, %v1238, %v1255
        %v1257 = vsel %vm1243, %v1254, %v1256
        %v1258 = vshll.u32 %v1218, 8
        %v1259 = vmul.u32.u64.compose %v1258, %v1257
        %v1260 = vextract.low.u32 %v1259
        %v1261 = vextract.high.u32 %v1259
        %v1262 = vmul.u32.u64.compose %v1258, %v1253
        %v1263 = vextract.low.u32 %v1262
        %v1264 = vextract.high.u32 %v1262
        %v1265 = vmul.u32 %v1258, %v1249
        %v1266 = vadd.s32 %v1261, %v1263
        %vm1267 = vc.u32 %v1261, %v1263
        %v1268 = vadd.s32 %v1264, 1
        %v1269 = vsel %vm1267, %v1268, %v1264
        %v1270 = vadd.s32 %v1265, %v1269
        %v1271 = vadd.s32 %v1270, 536870912
        %v1272 = vshrl.u32 %v1271, 30
        %v1273 = vshll.u32 %v1272, 30
        %v1274 = vsub.s32 %v1270, %v1273
        %vm1275 = vcmp.lt.s32.totalorder %v1274, 0
        %v1276 = vsub.s32 0, %v1274
        %v1277 = vsel %vm1275, %v1276, %v1274
        %v1278 = vclz %v1277
        %v1279 = vsub.s32 %v1278, 2
        %vm1280 = vcmp.gt.s32.totalorder 0, %v1279
        %v1281 = vsel %vm1280, 0, %v1279
        %v1282 = vsub.s32 32, %v1281
        %v1283 = vshll.u32 %v1274, %v1281
        %v1284 = vshrl.u32 %v1266, %v1282
        %v1285 = vor.u32 %v1283, %v1284
        %v1286 = vsub.s32 4294967266, %v1281
        %v1287 = vadd.s32 %v1286, 127
        %v1288 = vshll.u32 %v1287, 23
        %v1289 = vor.u32 4788187, %v1288
        %v1290 = vand.u32 2147483647, %v1289
        %v1292 = vcvt.s32.f32 %v1285
        %v1293 = vmul.f32 %v1292, %v1290
        %v1294 = vxor.u32 %v1293, 2147483648
        %v1295 = vsel %vm1212, %v1294, %v1293
        %v1296 = vsub.s32 4, %v1272
        %v1297 = vsel %vm1212, %v1296, %v1272
        %v1298 = vsel %vm1211, %v632, %v1295
        %v1299 = vsel %vm1211, 0, %v1297
        %v1300 = vcosq.f32.pop %v1298
        %v1301 = vsinq.f32.pop %v1298
        %vm1302 = vweird.f32 %v632
        %v1303 = vadd.s32 %v1299, 3
        %v1304 = vand.u32 %v1303, 3
        %vm1305 = vcmp.lt.s32.totalorder %v1304, 2
        %vm1306 = vcmp.eq.s32.totalorder %v1304, 0
        %v1307 = vxor.u32 %v1301, 2147483648
        %v1308 = vsel %vm1306, %v1300, %v1307
        %vm1309 = vcmp.eq.s32.totalorder %v1304, 2
        %v1310 = vxor.u32 %v1300, 2147483648
        %v1311 = vsel %vm1309, %v1310, %v1301
        %v1312 = vsel %vm1305, %v1308, %v1311
        %v1313 = vsel %vm1302, nan, %v1312
        %v1314 = vand.u32 2147483647, %v633
        %vm1315 = vcmp.le.f32.partialorder %v1314, 0.7853982
        %vm1316 = vcmp.lt.s32.totalorder %v633, 0
        %v1317 = vand.u32 %v633, 2139095040
        %v1318 = vshrl.u32 %v1317, 23
        %v1319 = vsub.s32 %v1318, 127
        %v1320 = vand.u32 2147483647, %v633
        %v1321 = vand.u32 %v1320, 8388607
        %v1322 = vor.u32 %v1321, 8388608
        %v1323 = vsub.s32 0, %v1322
        %v1324 = vadd.s32 %v1319, 1
        %vm1325 = vcmp.gt.s32.totalorder %v1324, 0
        %v1326 = vsel %vm1325, %v1324, 0
        %v1327 = vshrl.u32 %v1326, 5
        %v1328 = vand.u32 %v1326, 31
        %v1329 = vsub.s32 32, %v1328
        %v1330 = vshrl.u32 683565275, %v1329
        %v1331 = vshll.u32 683565275, %v1328
        %v1332 = vshrl.u32 2475754826, %v1329
        %v1333 = vor.u32 %v1331, %v1332
        %v1334 = vshll.u32 2475754826, %v1328
        %v1335 = vshrl.u32 2131351028, %v1329
        %v1336 = vor.u32 %v1334, %v1335
        %v1337 = vshll.u32 2131351028, %v1328
        %v1338 = vshrl.u32 2102212464, %v1329
        %v1339 = vor.u32 %v1337, %v1338
        %v1340 = vshll.u32 2102212464, %v1328
        %v1341 = vshrl.u32 920167782, %v1329
        %v1342 = vor.u32 %v1340, %v1341
        %v1343 = vshll.u32 920167782, %v1328
        %v1344 = vshrl.u32 1326507024, %v1329
        %v1345 = vor.u32 %v1343, %v1344
        %vm1346 = vcmp.lt.s32.totalorder %v1327, 1
        %vm1347 = vcmp.lt.s32.totalorder %v1327, 2
        %vm1348 = vcmp.lt.s32.totalorder %v1327, 3
        %vm1349 = vcmp.lt.s32.totalorder %v1327, 4
        %v1350 = vsel %vm1346, %v1330, %v1333
        %v1351 = vsel %vm1349, %v1339, 2102212464
        %v1352 = vsel %vm1348, %v1336, %v1351
        %v1353 = vsel %vm1347, %v1350, %v1352
        %v1354 = vsel %vm1346, %v1333, %v1336
        %v1355 = vsel %vm1349, %v1342, 920167782
        %v1356 = vsel %vm1348, %v1339, %v1355
        %v1357 = vsel %vm1347, %v1354, %v1356
        %v1358 = vsel %vm1346, %v1336, %v1339
        %v1359 = vsel %vm1349, %v1345, 1326507024
        %v1360 = vsel %vm1348, %v1342, %v1359
        %v1361 = vsel %vm1347, %v1358, %v1360
        %v1362 = vshll.u32 %v1322, 8
        %v1363 = vmul.u32.u64.compose %v1362, %v1361
        %v1364 = vextract.low.u32 %v1363
        %v1365 = vextract.high.u32 %v1363
        %v1366 = vmul.u32.u64.compose %v1362, %v1357
        %v1367 = vextract.low.u32 %v1366
        %v1368 = vextract.high.u32 %v1366
        %v1369 = vmul.u32 %v1362, %v1353
        %v1370 = vadd.s32 %v1365, %v1367
        %vm1371 = vc.u32 %v1365, %v1367
        %v1372 = vadd.s32 %v1368, 1
        %v1373 = vsel %vm1371, %v1372, %v1368
        %v1374 = vadd.s32 %v1369, %v1373
        %v1375 = vadd.s32 %v1374, 536870912
        %v1376 = vshrl.u32 %v1375, 30
        %v1377 = vshll.u32 %v1376, 30
        %v1378 = vsub.s32 %v1374, %v1377
        %vm1379 = vcmp.lt.s32.totalorder %v1378, 0
        %v1380 = vsub.s32 0, %v1378
        %v1381 = vsel %vm1379, %v1380, %v1378
        %v1382 = vclz %v1381
        %v1383 = vsub.s32 %v1382, 2
        %vm1384 = vcmp.gt.s32.totalorder 0, %v1383
        %v1385 = vsel %vm1384, 0, %v1383
        %v1386 = vsub.s32 32, %v1385
        %v1387 = vshll.u32 %v1378, %v1385
        %v1388 = vshrl.u32 %v1370, %v1386
        %v1389 = vor.u32 %v1387, %v1388
        %v1390 = vsub.s32 4294967266, %v1385
        %v1391 = vadd.s32 %v1390, 127
        %v1392 = vshll.u32 %v1391, 23
        %v1393 = vor.u32 4788187, %v1392
        %v1394 = vand.u32 2147483647, %v1393
        %v1396 = vcvt.s32.f32 %v1389
        %v1397 = vmul.f32 %v1396, %v1394
        %v1398 = vxor.u32 %v1397, 2147483648
        %v1399 = vsel %vm1316, %v1398, %v1397
        %v1400 = vsub.s32 4, %v1376
        %v1401 = vsel %vm1316, %v1400, %v1376
        %v1402 = vsel %vm1315, %v633, %v1399
        %v1403 = vsel %vm1315, 0, %v1401
        %v1404 = vcosq.f32.pop %v1402
        %v1405 = vsinq.f32.pop %v1402
        %vm1406 = vweird.f32 %v633
        %v1407 = vadd.s32 %v1403, 3
        %v1408 = vand.u32 %v1407, 3
        %vm1409 = vcmp.lt.s32.totalorder %v1408, 2
        %vm1410 = vcmp.eq.s32.totalorder %v1408, 0
        %v1411 = vxor.u32 %v1405, 2147483648
        %v1412 = vsel %vm1410, %v1404, %v1411
        %vm1413 = vcmp.eq.s32.totalorder %v1408, 2
        %v1414 = vxor.u32 %v1404, 2147483648
        %v1415 = vsel %vm1413, %v1414, %v1405
        %v1416 = vsel %vm1409, %v1412, %v1415
        %v1417 = vsel %vm1406, nan, %v1416
        %v1418 = vand.u32 2147483647, %v634
        %vm1419 = vcmp.le.f32.partialorder %v1418, 0.7853982
        %vm1420 = vcmp.lt.s32.totalorder %v634, 0
        %v1421 = vand.u32 %v634, 2139095040
        %v1422 = vshrl.u32 %v1421, 23
        %v1423 = vsub.s32 %v1422, 127
        %v1424 = vand.u32 2147483647, %v634
        %v1425 = vand.u32 %v1424, 8388607
        %v1426 = vor.u32 %v1425, 8388608
        %v1427 = vsub.s32 0, %v1426
        %v1428 = vadd.s32 %v1423, 1
        %vm1429 = vcmp.gt.s32.totalorder %v1428, 0
        %v1430 = vsel %vm1429, %v1428, 0
        %v1431 = vshrl.u32 %v1430, 5
        %v1432 = vand.u32 %v1430, 31
        %v1433 = vsub.s32 32, %v1432
        %v1434 = vshrl.u32 683565275, %v1433
        %v1435 = vshll.u32 683565275, %v1432
        %v1436 = vshrl.u32 2475754826, %v1433
        %v1437 = vor.u32 %v1435, %v1436
        %v1438 = vshll.u32 2475754826, %v1432
        %v1439 = vshrl.u32 2131351028, %v1433
        %v1440 = vor.u32 %v1438, %v1439
        %v1441 = vshll.u32 2131351028, %v1432
        %v1442 = vshrl.u32 2102212464, %v1433
        %v1443 = vor.u32 %v1441, %v1442
        %v1444 = vshll.u32 2102212464, %v1432
        %v1445 = vshrl.u32 920167782, %v1433
        %v1446 = vor.u32 %v1444, %v1445
        %v1447 = vshll.u32 920167782, %v1432
        %v1448 = vshrl.u32 1326507024, %v1433
        %v1449 = vor.u32 %v1447, %v1448
        %vm1450 = vcmp.lt.s32.totalorder %v1431, 1
        %vm1451 = vcmp.lt.s32.totalorder %v1431, 2
        %vm1452 = vcmp.lt.s32.totalorder %v1431, 3
        %vm1453 = vcmp.lt.s32.totalorder %v1431, 4
        %v1454 = vsel %vm1450, %v1434, %v1437
        %v1455 = vsel %vm1453, %v1443, 2102212464
        %v1456 = vsel %vm1452, %v1440, %v1455
        %v1457 = vsel %vm1451, %v1454, %v1456
        %v1458 = vsel %vm1450, %v1437, %v1440
        %v1459 = vsel %vm1453, %v1446, 920167782
        %v1460 = vsel %vm1452, %v1443, %v1459
        %v1461 = vsel %vm1451, %v1458, %v1460
        %v1462 = vsel %vm1450, %v1440, %v1443
        %v1463 = vsel %vm1453, %v1449, 1326507024
        %v1464 = vsel %vm1452, %v1446, %v1463
        %v1465 = vsel %vm1451, %v1462, %v1464
        %v1466 = vshll.u32 %v1426, 8
        %v1467 = vmul.u32.u64.compose %v1466, %v1465
        %v1468 = vextract.low.u32 %v1467
        %v1469 = vextract.high.u32 %v1467
        %v1470 = vmul.u32.u64.compose %v1466, %v1461
        %v1471 = vextract.low.u32 %v1470
        %v1472 = vextract.high.u32 %v1470
        %v1473 = vmul.u32 %v1466, %v1457
        %v1474 = vadd.s32 %v1469, %v1471
        %vm1475 = vc.u32 %v1469, %v1471
        %v1476 = vadd.s32 %v1472, 1
        %v1477 = vsel %vm1475, %v1476, %v1472
        %v1478 = vadd.s32 %v1473, %v1477
        %v1479 = vadd.s32 %v1478, 536870912
        %v1480 = vshrl.u32 %v1479, 30
        %v1481 = vshll.u32 %v1480, 30
        %v1482 = vsub.s32 %v1478, %v1481
        %vm1483 = vcmp.lt.s32.totalorder %v1482, 0
        %v1484 = vsub.s32 0, %v1482
        %v1485 = vsel %vm1483, %v1484, %v1482
        %v1486 = vclz %v1485
        %v1487 = vsub.s32 %v1486, 2
        %vm1488 = vcmp.gt.s32.totalorder 0, %v1487
        %v1489 = vsel %vm1488, 0, %v1487
        %v1490 = vsub.s32 32, %v1489
        %v1491 = vshll.u32 %v1482, %v1489
        %v1492 = vshrl.u32 %v1474, %v1490
        %v1493 = vor.u32 %v1491, %v1492
        %v1494 = vsub.s32 4294967266, %v1489
        %v1495 = vadd.s32 %v1494, 127
        %v1496 = vshll.u32 %v1495, 23
        %v1497 = vor.u32 4788187, %v1496
        %v1498 = vand.u32 2147483647, %v1497
        %v1500 = vcvt.s32.f32 %v1493
        %v1501 = vmul.f32 %v1500, %v1498
        %v1502 = vxor.u32 %v1501, 2147483648
        %v1503 = vsel %vm1420, %v1502, %v1501
        %v1504 = vsub.s32 4, %v1480
        %v1505 = vsel %vm1420, %v1504, %v1480
        %v1506 = vsel %vm1419, %v634, %v1503
        %v1507 = vsel %vm1419, 0, %v1505
        %v1508 = vcosq.f32.pop %v1506
        %v1509 = vsinq.f32.pop %v1506
        %vm1510 = vweird.f32 %v634
        %v1511 = vadd.s32 %v1507, 3
        %v1512 = vand.u32 %v1511, 3
        %vm1513 = vcmp.lt.s32.totalorder %v1512, 2
        %vm1514 = vcmp.eq.s32.totalorder %v1512, 0
        %v1515 = vxor.u32 %v1509, 2147483648
        %v1516 = vsel %vm1514, %v1508, %v1515
        %vm1517 = vcmp.eq.s32.totalorder %v1512, 2
        %v1518 = vxor.u32 %v1508, 2147483648
        %v1519 = vsel %vm1517, %v1518, %v1509
        %v1520 = vsel %vm1513, %v1516, %v1519
        %v1521 = vsel %vm1510, nan, %v1520
        %v1522 = vand.u32 2147483647, %v635
        %vm1523 = vcmp.le.f32.partialorder %v1522, 0.7853982
        %vm1524 = vcmp.lt.s32.totalorder %v635, 0
        %v1525 = vand.u32 %v635, 2139095040
        %v1526 = vshrl.u32 %v1525, 23
        %v1527 = vsub.s32 %v1526, 127
        %v1528 = vand.u32 2147483647, %v635
        %v1529 = vand.u32 %v1528, 8388607
        %v1530 = vor.u32 %v1529, 8388608
        %v1531 = vsub.s32 0, %v1530
        %v1532 = vadd.s32 %v1527, 1
        %vm1533 = vcmp.gt.s32.totalorder %v1532, 0
        %v1534 = vsel %vm1533, %v1532, 0
        %v1535 = vshrl.u32 %v1534, 5
        %v1536 = vand.u32 %v1534, 31
        %v1537 = vsub.s32 32, %v1536
        %v1538 = vshrl.u32 683565275, %v1537
        %v1539 = vshll.u32 683565275, %v1536
        %v1540 = vshrl.u32 2475754826, %v1537
        %v1541 = vor.u32 %v1539, %v1540
        %v1542 = vshll.u32 2475754826, %v1536
        %v1543 = vshrl.u32 2131351028, %v1537
        %v1544 = vor.u32 %v1542, %v1543
        %v1545 = vshll.u32 2131351028, %v1536
        %v1546 = vshrl.u32 2102212464, %v1537
        %v1547 = vor.u32 %v1545, %v1546
        %v1548 = vshll.u32 2102212464, %v1536
        %v1549 = vshrl.u32 920167782, %v1537
        %v1550 = vor.u32 %v1548, %v1549
        %v1551 = vshll.u32 920167782, %v1536
        %v1552 = vshrl.u32 1326507024, %v1537
        %v1553 = vor.u32 %v1551, %v1552
        %vm1554 = vcmp.lt.s32.totalorder %v1535, 1
        %vm1555 = vcmp.lt.s32.totalorder %v1535, 2
        %vm1556 = vcmp.lt.s32.totalorder %v1535, 3
        %vm1557 = vcmp.lt.s32.totalorder %v1535, 4
        %v1558 = vsel %vm1554, %v1538, %v1541
        %v1559 = vsel %vm1557, %v1547, 2102212464
        %v1560 = vsel %vm1556, %v1544, %v1559
        %v1561 = vsel %vm1555, %v1558, %v1560
        %v1562 = vsel %vm1554, %v1541, %v1544
        %v1563 = vsel %vm1557, %v1550, 920167782
        %v1564 = vsel %vm1556, %v1547, %v1563
        %v1565 = vsel %vm1555, %v1562, %v1564
        %v1566 = vsel %vm1554, %v1544, %v1547
        %v1567 = vsel %vm1557, %v1553, 1326507024
        %v1568 = vsel %vm1556, %v1550, %v1567
        %v1569 = vsel %vm1555, %v1566, %v1568
        %v1570 = vshll.u32 %v1530, 8
        %v1571 = vmul.u32.u64.compose %v1570, %v1569
        %v1572 = vextract.low.u32 %v1571
        %v1573 = vextract.high.u32 %v1571
        %v1574 = vmul.u32.u64.compose %v1570, %v1565
        %v1575 = vextract.low.u32 %v1574
        %v1576 = vextract.high.u32 %v1574
        %v1577 = vmul.u32 %v1570, %v1561
        %v1578 = vadd.s32 %v1573, %v1575
        %vm1579 = vc.u32 %v1573, %v1575
        %v1580 = vadd.s32 %v1576, 1
        %v1581 = vsel %vm1579, %v1580, %v1576
        %v1582 = vadd.s32 %v1577, %v1581
        %v1583 = vadd.s32 %v1582, 536870912
        %v1584 = vshrl.u32 %v1583, 30
        %v1585 = vshll.u32 %v1584, 30
        %v1586 = vsub.s32 %v1582, %v1585
        %vm1587 = vcmp.lt.s32.totalorder %v1586, 0
        %v1588 = vsub.s32 0, %v1586
        %v1589 = vsel %vm1587, %v1588, %v1586
        %v1590 = vclz %v1589
        %v1591 = vsub.s32 %v1590, 2
        %vm1592 = vcmp.gt.s32.totalorder 0, %v1591
        %v1593 = vsel %vm1592, 0, %v1591
        %v1594 = vsub.s32 32, %v1593
        %v1595 = vshll.u32 %v1586, %v1593
        %v1596 = vshrl.u32 %v1578, %v1594
        %v1597 = vor.u32 %v1595, %v1596
        %v1598 = vsub.s32 4294967266, %v1593
        %v1599 = vadd.s32 %v1598, 127
        %v1600 = vshll.u32 %v1599, 23
        %v1601 = vor.u32 4788187, %v1600
        %v1602 = vand.u32 2147483647, %v1601
        %v1604 = vcvt.s32.f32 %v1597
        %v1605 = vmul.f32 %v1604, %v1602
        %v1606 = vxor.u32 %v1605, 2147483648
        %v1607 = vsel %vm1524, %v1606, %v1605
        %v1608 = vsub.s32 4, %v1584
        %v1609 = vsel %vm1524, %v1608, %v1584
        %v1610 = vsel %vm1523, %v635, %v1607
        %v1611 = vsel %vm1523, 0, %v1609
        %v1612 = vcosq.f32.pop %v1610
        %v1613 = vsinq.f32.pop %v1610
        %vm1614 = vweird.f32 %v635
        %v1615 = vadd.s32 %v1611, 3
        %v1616 = vand.u32 %v1615, 3
        %vm1617 = vcmp.lt.s32.totalorder %v1616, 2
        %vm1618 = vcmp.eq.s32.totalorder %v1616, 0
        %v1619 = vxor.u32 %v1613, 2147483648
        %v1620 = vsel %vm1618, %v1612, %v1619
        %vm1621 = vcmp.eq.s32.totalorder %v1616, 2
        %v1622 = vxor.u32 %v1612, 2147483648
        %v1623 = vsel %vm1621, %v1622, %v1613
        %v1624 = vsel %vm1617, %v1620, %v1623
        %v1625 = vsel %vm1614, nan, %v1624
        %v1626 = vand.u32 2147483647, %v636
        %vm1627 = vcmp.le.f32.partialorder %v1626, 0.7853982
        %vm1628 = vcmp.lt.s32.totalorder %v636, 0
        %v1629 = vand.u32 %v636, 2139095040
        %v1630 = vshrl.u32 %v1629, 23
        %v1631 = vsub.s32 %v1630, 127
        %v1632 = vand.u32 2147483647, %v636
        %v1633 = vand.u32 %v1632, 8388607
        %v1634 = vor.u32 %v1633, 8388608
        %v1635 = vsub.s32 0, %v1634
        %v1636 = vadd.s32 %v1631, 1
        %vm1637 = vcmp.gt.s32.totalorder %v1636, 0
        %v1638 = vsel %vm1637, %v1636, 0
        %v1639 = vshrl.u32 %v1638, 5
        %v1640 = vand.u32 %v1638, 31
        %v1641 = vsub.s32 32, %v1640
        %v1642 = vshrl.u32 683565275, %v1641
        %v1643 = vshll.u32 683565275, %v1640
        %v1644 = vshrl.u32 2475754826, %v1641
        %v1645 = vor.u32 %v1643, %v1644
        %v1646 = vshll.u32 2475754826, %v1640
        %v1647 = vshrl.u32 2131351028, %v1641
        %v1648 = vor.u32 %v1646, %v1647
        %v1649 = vshll.u32 2131351028, %v1640
        %v1650 = vshrl.u32 2102212464, %v1641
        %v1651 = vor.u32 %v1649, %v1650
        %v1652 = vshll.u32 2102212464, %v1640
        %v1653 = vshrl.u32 920167782, %v1641
        %v1654 = vor.u32 %v1652, %v1653
        %v1655 = vshll.u32 920167782, %v1640
        %v1656 = vshrl.u32 1326507024, %v1641
        %v1657 = vor.u32 %v1655, %v1656
        %vm1658 = vcmp.lt.s32.totalorder %v1639, 1
        %vm1659 = vcmp.lt.s32.totalorder %v1639, 2
        %vm1660 = vcmp.lt.s32.totalorder %v1639, 3
        %vm1661 = vcmp.lt.s32.totalorder %v1639, 4
        %v1662 = vsel %vm1658, %v1642, %v1645
        %v1663 = vsel %vm1661, %v1651, 2102212464
        %v1664 = vsel %vm1660, %v1648, %v1663
        %v1665 = vsel %vm1659, %v1662, %v1664
        %v1666 = vsel %vm1658, %v1645, %v1648
        %v1667 = vsel %vm1661, %v1654, 920167782
        %v1668 = vsel %vm1660, %v1651, %v1667
        %v1669 = vsel %vm1659, %v1666, %v1668
        %v1670 = vsel %vm1658, %v1648, %v1651
        %v1671 = vsel %vm1661, %v1657, 1326507024
        %v1672 = vsel %vm1660, %v1654, %v1671
        %v1673 = vsel %vm1659, %v1670, %v1672
        %v1674 = vshll.u32 %v1634, 8
        %v1675 = vmul.u32.u64.compose %v1674, %v1673
        %v1676 = vextract.low.u32 %v1675
        %v1677 = vextract.high.u32 %v1675
        %v1678 = vmul.u32.u64.compose %v1674, %v1669
        %v1679 = vextract.low.u32 %v1678
        %v1680 = vextract.high.u32 %v1678
        %v1681 = vmul.u32 %v1674, %v1665
        %v1682 = vadd.s32 %v1677, %v1679
        %vm1683 = vc.u32 %v1677, %v1679
        %v1684 = vadd.s32 %v1680, 1
        %v1685 = vsel %vm1683, %v1684, %v1680
        %v1686 = vadd.s32 %v1681, %v1685
        %v1687 = vadd.s32 %v1686, 536870912
        %v1688 = vshrl.u32 %v1687, 30
        %v1689 = vshll.u32 %v1688, 30
        %v1690 = vsub.s32 %v1686, %v1689
        %vm1691 = vcmp.lt.s32.totalorder %v1690, 0
        %v1692 = vsub.s32 0, %v1690
        %v1693 = vsel %vm1691, %v1692, %v1690
        %v1694 = vclz %v1693
        %v1695 = vsub.s32 %v1694, 2
        %vm1696 = vcmp.gt.s32.totalorder 0, %v1695
        %v1697 = vsel %vm1696, 0, %v1695
        %v1698 = vsub.s32 32, %v1697
        %v1699 = vshll.u32 %v1690, %v1697
        %v1700 = vshrl.u32 %v1682, %v1698
        %v1701 = vor.u32 %v1699, %v1700
        %v1702 = vsub.s32 4294967266, %v1697
        %v1703 = vadd.s32 %v1702, 127
        %v1704 = vshll.u32 %v1703, 23
        %v1705 = vor.u32 4788187, %v1704
        %v1706 = vand.u32 2147483647, %v1705
        %v1708 = vcvt.s32.f32 %v1701
        %v1709 = vmul.f32 %v1708, %v1706
        %v1710 = vxor.u32 %v1709, 2147483648
        %v1711 = vsel %vm1628, %v1710, %v1709
        %v1712 = vsub.s32 4, %v1688
        %v1713 = vsel %vm1628, %v1712, %v1688
        %v1714 = vsel %vm1627, %v636, %v1711
        %v1715 = vsel %vm1627, 0, %v1713
        %v1716 = vcosq.f32.pop %v1714
        %v1717 = vsinq.f32.pop %v1714
        %vm1718 = vweird.f32 %v636
        %v1719 = vadd.s32 %v1715, 3
        %v1720 = vand.u32 %v1719, 3
        %vm1721 = vcmp.lt.s32.totalorder %v1720, 2
        %vm1722 = vcmp.eq.s32.totalorder %v1720, 0
        %v1723 = vxor.u32 %v1717, 2147483648
        %v1724 = vsel %vm1722, %v1716, %v1723
        %vm1725 = vcmp.eq.s32.totalorder %v1720, 2
        %v1726 = vxor.u32 %v1716, 2147483648
        %v1727 = vsel %vm1725, %v1726, %v1717
        %v1728 = vsel %vm1721, %v1724, %v1727
        %v1729 = vsel %vm1718, nan, %v1728
        %v1730 = vand.u32 2147483647, %v637
        %vm1731 = vcmp.le.f32.partialorder %v1730, 0.7853982
        %vm1732 = vcmp.lt.s32.totalorder %v637, 0
        %v1733 = vand.u32 %v637, 2139095040
        %v1734 = vshrl.u32 %v1733, 23
        %v1735 = vsub.s32 %v1734, 127
        %v1736 = vand.u32 2147483647, %v637
        %v1737 = vand.u32 %v1736, 8388607
        %v1738 = vor.u32 %v1737, 8388608
        %v1739 = vsub.s32 0, %v1738
        %v1740 = vadd.s32 %v1735, 1
        %vm1741 = vcmp.gt.s32.totalorder %v1740, 0
        %v1742 = vsel %vm1741, %v1740, 0
        %v1743 = vshrl.u32 %v1742, 5
        %v1744 = vand.u32 %v1742, 31
        %v1745 = vsub.s32 32, %v1744
        %v1746 = vshrl.u32 683565275, %v1745
        %v1747 = vshll.u32 683565275, %v1744
        %v1748 = vshrl.u32 2475754826, %v1745
        %v1749 = vor.u32 %v1747, %v1748
        %v1750 = vshll.u32 2475754826, %v1744
        %v1751 = vshrl.u32 2131351028, %v1745
        %v1752 = vor.u32 %v1750, %v1751
        %v1753 = vshll.u32 2131351028, %v1744
        %v1754 = vshrl.u32 2102212464, %v1745
        %v1755 = vor.u32 %v1753, %v1754
        %v1756 = vshll.u32 2102212464, %v1744
        %v1757 = vshrl.u32 920167782, %v1745
        %v1758 = vor.u32 %v1756, %v1757
        %v1759 = vshll.u32 920167782, %v1744
        %v1760 = vshrl.u32 1326507024, %v1745
        %v1761 = vor.u32 %v1759, %v1760
        %vm1762 = vcmp.lt.s32.totalorder %v1743, 1
        %vm1763 = vcmp.lt.s32.totalorder %v1743, 2
        %vm1764 = vcmp.lt.s32.totalorder %v1743, 3
        %vm1765 = vcmp.lt.s32.totalorder %v1743, 4
        %v1766 = vsel %vm1762, %v1746, %v1749
        %v1767 = vsel %vm1765, %v1755, 2102212464
        %v1768 = vsel %vm1764, %v1752, %v1767
        %v1769 = vsel %vm1763, %v1766, %v1768
        %v1770 = vsel %vm1762, %v1749, %v1752
        %v1771 = vsel %vm1765, %v1758, 920167782
        %v1772 = vsel %vm1764, %v1755, %v1771
        %v1773 = vsel %vm1763, %v1770, %v1772
        %v1774 = vsel %vm1762, %v1752, %v1755
        %v1775 = vsel %vm1765, %v1761, 1326507024
        %v1776 = vsel %vm1764, %v1758, %v1775
        %v1777 = vsel %vm1763, %v1774, %v1776
        %v1778 = vshll.u32 %v1738, 8
        %v1779 = vmul.u32.u64.compose %v1778, %v1777
        %v1780 = vextract.low.u32 %v1779
        %v1781 = vextract.high.u32 %v1779
        %v1782 = vmul.u32.u64.compose %v1778, %v1773
        %v1783 = vextract.low.u32 %v1782
        %v1784 = vextract.high.u32 %v1782
        %v1785 = vmul.u32 %v1778, %v1769
        %v1786 = vadd.s32 %v1781, %v1783
        %vm1787 = vc.u32 %v1781, %v1783
        %v1788 = vadd.s32 %v1784, 1
        %v1789 = vsel %vm1787, %v1788, %v1784
        %v1790 = vadd.s32 %v1785, %v1789
        %v1791 = vadd.s32 %v1790, 536870912
        %v1792 = vshrl.u32 %v1791, 30
        %v1793 = vshll.u32 %v1792, 30
        %v1794 = vsub.s32 %v1790, %v1793
        %vm1795 = vcmp.lt.s32.totalorder %v1794, 0
        %v1796 = vsub.s32 0, %v1794
        %v1797 = vsel %vm1795, %v1796, %v1794
        %v1798 = vclz %v1797
        %v1799 = vsub.s32 %v1798, 2
        %vm1800 = vcmp.gt.s32.totalorder 0, %v1799
        %v1801 = vsel %vm1800, 0, %v1799
        %v1802 = vsub.s32 32, %v1801
        %v1803 = vshll.u32 %v1794, %v1801
        %v1804 = vshrl.u32 %v1786, %v1802
        %v1805 = vor.u32 %v1803, %v1804
        %v1806 = vsub.s32 4294967266, %v1801
        %v1807 = vadd.s32 %v1806, 127
        %v1808 = vshll.u32 %v1807, 23
        %v1809 = vor.u32 4788187, %v1808
        %v1810 = vand.u32 2147483647, %v1809
        %v1812 = vcvt.s32.f32 %v1805
        %v1813 = vmul.f32 %v1812, %v1810
        %v1814 = vxor.u32 %v1813, 2147483648
        %v1815 = vsel %vm1732, %v1814, %v1813
        %v1816 = vsub.s32 4, %v1792
        %v1817 = vsel %vm1732, %v1816, %v1792
        %v1818 = vsel %vm1731, %v637, %v1815
        %v1819 = vsel %vm1731, 0, %v1817
        %v1820 = vcosq.f32.pop %v1818
        %v1821 = vsinq.f32.pop %v1818
        %vm1822 = vweird.f32 %v637
        %v1823 = vadd.s32 %v1819, 3
        %v1824 = vand.u32 %v1823, 3
        %vm1825 = vcmp.lt.s32.totalorder %v1824, 2
        %vm1826 = vcmp.eq.s32.totalorder %v1824, 0
        %v1827 = vxor.u32 %v1821, 2147483648
        %v1828 = vsel %vm1826, %v1820, %v1827
        %vm1829 = vcmp.eq.s32.totalorder %v1824, 2
        %v1830 = vxor.u32 %v1820, 2147483648
        %v1831 = vsel %vm1829, %v1830, %v1821
        %v1832 = vsel %vm1825, %v1828, %v1831
        %v1833 = vsel %vm1822, nan, %v1832
        %v1834 = vand.u32 2147483647, %v638
        %vm1835 = vcmp.le.f32.partialorder %v1834, 0.7853982
        %vm1836 = vcmp.lt.s32.totalorder %v638, 0
        %v1837 = vand.u32 %v638, 2139095040
        %v1838 = vshrl.u32 %v1837, 23
        %v1839 = vsub.s32 %v1838, 127
        %v1840 = vand.u32 2147483647, %v638
        %v1841 = vand.u32 %v1840, 8388607
        %v1842 = vor.u32 %v1841, 8388608
        %v1843 = vsub.s32 0, %v1842
        %v1844 = vadd.s32 %v1839, 1
        %vm1845 = vcmp.gt.s32.totalorder %v1844, 0
        %v1846 = vsel %vm1845, %v1844, 0
        %v1847 = vshrl.u32 %v1846, 5
        %v1848 = vand.u32 %v1846, 31
        %v1849 = vsub.s32 32, %v1848
        %v1850 = vshrl.u32 683565275, %v1849
        %v1851 = vshll.u32 683565275, %v1848
        %v1852 = vshrl.u32 2475754826, %v1849
        %v1853 = vor.u32 %v1851, %v1852
        %v1854 = vshll.u32 2475754826, %v1848
        %v1855 = vshrl.u32 2131351028, %v1849
        %v1856 = vor.u32 %v1854, %v1855
        %v1857 = vshll.u32 2131351028, %v1848
        %v1858 = vshrl.u32 2102212464, %v1849
        %v1859 = vor.u32 %v1857, %v1858
        %v1860 = vshll.u32 2102212464, %v1848
        %v1861 = vshrl.u32 920167782, %v1849
        %v1862 = vor.u32 %v1860, %v1861
        %v1863 = vshll.u32 920167782, %v1848
        %v1864 = vshrl.u32 1326507024, %v1849
        %v1865 = vor.u32 %v1863, %v1864
        %vm1866 = vcmp.lt.s32.totalorder %v1847, 1
        %vm1867 = vcmp.lt.s32.totalorder %v1847, 2
        %vm1868 = vcmp.lt.s32.totalorder %v1847, 3
        %vm1869 = vcmp.lt.s32.totalorder %v1847, 4
        %v1870 = vsel %vm1866, %v1850, %v1853
        %v1871 = vsel %vm1869, %v1859, 2102212464
        %v1872 = vsel %vm1868, %v1856, %v1871
        %v1873 = vsel %vm1867, %v1870, %v1872
        %v1874 = vsel %vm1866, %v1853, %v1856
        %v1875 = vsel %vm1869, %v1862, 920167782
        %v1876 = vsel %vm1868, %v1859, %v1875
        %v1877 = vsel %vm1867, %v1874, %v1876
        %v1878 = vsel %vm1866, %v1856, %v1859
        %v1879 = vsel %vm1869, %v1865, 1326507024
        %v1880 = vsel %vm1868, %v1862, %v1879
        %v1881 = vsel %vm1867, %v1878, %v1880
        %v1882 = vshll.u32 %v1842, 8
        %v1883 = vmul.u32.u64.compose %v1882, %v1881
        %v1884 = vextract.low.u32 %v1883
        %v1885 = vextract.high.u32 %v1883
        %v1886 = vmul.u32.u64.compose %v1882, %v1877
        %v1887 = vextract.low.u32 %v1886
        %v1888 = vextract.high.u32 %v1886
        %v1889 = vmul.u32 %v1882, %v1873
        %v1890 = vadd.s32 %v1885, %v1887
        %vm1891 = vc.u32 %v1885, %v1887
        %v1892 = vadd.s32 %v1888, 1
        %v1893 = vsel %vm1891, %v1892, %v1888
        %v1894 = vadd.s32 %v1889, %v1893
        %v1895 = vadd.s32 %v1894, 536870912
        %v1896 = vshrl.u32 %v1895, 30
        %v1897 = vshll.u32 %v1896, 30
        %v1898 = vsub.s32 %v1894, %v1897
        %vm1899 = vcmp.lt.s32.totalorder %v1898, 0
        %v1900 = vsub.s32 0, %v1898
        %v1901 = vsel %vm1899, %v1900, %v1898
        %v1902 = vclz %v1901
        %v1903 = vsub.s32 %v1902, 2
        %vm1904 = vcmp.gt.s32.totalorder 0, %v1903
        %v1905 = vsel %vm1904, 0, %v1903
        %v1906 = vsub.s32 32, %v1905
        %v1907 = vshll.u32 %v1898, %v1905
        %v1908 = vshrl.u32 %v1890, %v1906
        %v1909 = vor.u32 %v1907, %v1908
        %v1910 = vsub.s32 4294967266, %v1905
        %v1911 = vadd.s32 %v1910, 127
        %v1912 = vshll.u32 %v1911, 23
        %v1913 = vor.u32 4788187, %v1912
        %v1914 = vand.u32 2147483647, %v1913
        %v1916 = vcvt.s32.f32 %v1909
        %v1917 = vmul.f32 %v1916, %v1914
        %v1918 = vxor.u32 %v1917, 2147483648
        %v1919 = vsel %vm1836, %v1918, %v1917
        %v1920 = vsub.s32 4, %v1896
        %v1921 = vsel %vm1836, %v1920, %v1896
        %v1922 = vsel %vm1835, %v638, %v1919
        %v1923 = vsel %vm1835, 0, %v1921
        %v1924 = vcosq.f32.pop %v1922
        %v1925 = vsinq.f32.pop %v1922
        %vm1926 = vweird.f32 %v638
        %v1927 = vadd.s32 %v1923, 3
        %v1928 = vand.u32 %v1927, 3
        %vm1929 = vcmp.lt.s32.totalorder %v1928, 2
        %vm1930 = vcmp.eq.s32.totalorder %v1928, 0
        %v1931 = vxor.u32 %v1925, 2147483648
        %v1932 = vsel %vm1930, %v1924, %v1931
        %vm1933 = vcmp.eq.s32.totalorder %v1928, 2
        %v1934 = vxor.u32 %v1924, 2147483648
        %v1935 = vsel %vm1933, %v1934, %v1925
        %v1936 = vsel %vm1929, %v1932, %v1935
        %v1937 = vsel %vm1926, nan, %v1936
        %v1938 = vand.u32 2147483647, %v639
        %vm1939 = vcmp.le.f32.partialorder %v1938, 0.7853982
        %vm1940 = vcmp.lt.s32.totalorder %v639, 0
        %v1941 = vand.u32 %v639, 2139095040
        %v1942 = vshrl.u32 %v1941, 23
        %v1943 = vsub.s32 %v1942, 127
        %v1944 = vand.u32 2147483647, %v639
        %v1945 = vand.u32 %v1944, 8388607
        %v1946 = vor.u32 %v1945, 8388608
        %v1947 = vsub.s32 0, %v1946
        %v1948 = vadd.s32 %v1943, 1
        %vm1949 = vcmp.gt.s32.totalorder %v1948, 0
        %v1950 = vsel %vm1949, %v1948, 0
        %v1951 = vshrl.u32 %v1950, 5
        %v1952 = vand.u32 %v1950, 31
        %v1953 = vsub.s32 32, %v1952
        %v1954 = vshrl.u32 683565275, %v1953
        %v1955 = vshll.u32 683565275, %v1952
        %v1956 = vshrl.u32 2475754826, %v1953
        %v1957 = vor.u32 %v1955, %v1956
        %v1958 = vshll.u32 2475754826, %v1952
        %v1959 = vshrl.u32 2131351028, %v1953
        %v1960 = vor.u32 %v1958, %v1959
        %v1961 = vshll.u32 2131351028, %v1952
        %v1962 = vshrl.u32 2102212464, %v1953
        %v1963 = vor.u32 %v1961, %v1962
        %v1964 = vshll.u32 2102212464, %v1952
        %v1965 = vshrl.u32 920167782, %v1953
        %v1966 = vor.u32 %v1964, %v1965
        %v1967 = vshll.u32 920167782, %v1952
        %v1968 = vshrl.u32 1326507024, %v1953
        %v1969 = vor.u32 %v1967, %v1968
        %vm1970 = vcmp.lt.s32.totalorder %v1951, 1
        %vm1971 = vcmp.lt.s32.totalorder %v1951, 2
        %vm1972 = vcmp.lt.s32.totalorder %v1951, 3
        %vm1973 = vcmp.lt.s32.totalorder %v1951, 4
        %v1974 = vsel %vm1970, %v1954, %v1957
        %v1975 = vsel %vm1973, %v1963, 2102212464
        %v1976 = vsel %vm1972, %v1960, %v1975
        %v1977 = vsel %vm1971, %v1974, %v1976
        %v1978 = vsel %vm1970, %v1957, %v1960
        %v1979 = vsel %vm1973, %v1966, 920167782
        %v1980 = vsel %vm1972, %v1963, %v1979
        %v1981 = vsel %vm1971, %v1978, %v1980
        %v1982 = vsel %vm1970, %v1960, %v1963
        %v1983 = vsel %vm1973, %v1969, 1326507024
        %v1984 = vsel %vm1972, %v1966, %v1983
        %v1985 = vsel %vm1971, %v1982, %v1984
        %v1986 = vshll.u32 %v1946, 8
        %v1987 = vmul.u32.u64.compose %v1986, %v1985
        %v1988 = vextract.low.u32 %v1987
        %v1989 = vextract.high.u32 %v1987
        %v1990 = vmul.u32.u64.compose %v1986, %v1981
        %v1991 = vextract.low.u32 %v1990
        %v1992 = vextract.high.u32 %v1990
        %v1993 = vmul.u32 %v1986, %v1977
        %v1994 = vadd.s32 %v1989, %v1991
        %vm1995 = vc.u32 %v1989, %v1991
        %v1996 = vadd.s32 %v1992, 1
        %v1997 = vsel %vm1995, %v1996, %v1992
        %v1998 = vadd.s32 %v1993, %v1997
        %v1999 = vadd.s32 %v1998, 536870912
        %v2000 = vshrl.u32 %v1999, 30
        %v2001 = vshll.u32 %v2000, 30
        %v2002 = vsub.s32 %v1998, %v2001
        %vm2003 = vcmp.lt.s32.totalorder %v2002, 0
        %v2004 = vsub.s32 0, %v2002
        %v2005 = vsel %vm2003, %v2004, %v2002
        %v2006 = vclz %v2005
        %v2007 = vsub.s32 %v2006, 2
        %vm2008 = vcmp.gt.s32.totalorder 0, %v2007
        %v2009 = vsel %vm2008, 0, %v2007
        %v2010 = vsub.s32 32, %v2009
        %v2011 = vshll.u32 %v2002, %v2009
        %v2012 = vshrl.u32 %v1994, %v2010
        %v2013 = vor.u32 %v2011, %v2012
        %v2014 = vsub.s32 4294967266, %v2009
        %v2015 = vadd.s32 %v2014, 127
        %v2016 = vshll.u32 %v2015, 23
        %v2017 = vor.u32 4788187, %v2016
        %v2018 = vand.u32 2147483647, %v2017
        %v2020 = vcvt.s32.f32 %v2013
        %v2021 = vmul.f32 %v2020, %v2018
        %v2022 = vxor.u32 %v2021, 2147483648
        %v2023 = vsel %vm1940, %v2022, %v2021
        %v2024 = vsub.s32 4, %v2000
        %v2025 = vsel %vm1940, %v2024, %v2000
        %v2026 = vsel %vm1939, %v639, %v2023
        %v2027 = vsel %vm1939, 0, %v2025
        %v2028 = vcosq.f32.pop %v2026
        %v2029 = vsinq.f32.pop %v2026
        %vm2030 = vweird.f32 %v639
        %v2031 = vadd.s32 %v2027, 3
        %v2032 = vand.u32 %v2031, 3
        %vm2033 = vcmp.lt.s32.totalorder %v2032, 2
        %vm2034 = vcmp.eq.s32.totalorder %v2032, 0
        %v2035 = vxor.u32 %v2029, 2147483648
        %v2036 = vsel %vm2034, %v2028, %v2035
        %vm2037 = vcmp.eq.s32.totalorder %v2032, 2
        %v2038 = vxor.u32 %v2028, 2147483648
        %v2039 = vsel %vm2037, %v2038, %v2029
        %v2040 = vsel %vm2033, %v2036, %v2039
        %v2041 = vsel %vm2030, nan, %v2040
        %v2042 = vand.u32 2147483647, %v640
        %vm2043 = vcmp.le.f32.partialorder %v2042, 0.7853982
        %vm2044 = vcmp.lt.s32.totalorder %v640, 0
        %v2045 = vand.u32 %v640, 2139095040
        %v2046 = vshrl.u32 %v2045, 23
        %v2047 = vsub.s32 %v2046, 127
        %v2048 = vand.u32 2147483647, %v640
        %v2049 = vand.u32 %v2048, 8388607
        %v2050 = vor.u32 %v2049, 8388608
        %v2051 = vsub.s32 0, %v2050
        %v2052 = vadd.s32 %v2047, 1
        %vm2053 = vcmp.gt.s32.totalorder %v2052, 0
        %v2054 = vsel %vm2053, %v2052, 0
        %v2055 = vshrl.u32 %v2054, 5
        %v2056 = vand.u32 %v2054, 31
        %v2057 = vsub.s32 32, %v2056
        %v2058 = vshrl.u32 683565275, %v2057
        %v2059 = vshll.u32 683565275, %v2056
        %v2060 = vshrl.u32 2475754826, %v2057
        %v2061 = vor.u32 %v2059, %v2060
        %v2062 = vshll.u32 2475754826, %v2056
        %v2063 = vshrl.u32 2131351028, %v2057
        %v2064 = vor.u32 %v2062, %v2063
        %v2065 = vshll.u32 2131351028, %v2056
        %v2066 = vshrl.u32 2102212464, %v2057
        %v2067 = vor.u32 %v2065, %v2066
        %v2068 = vshll.u32 2102212464, %v2056
        %v2069 = vshrl.u32 920167782, %v2057
        %v2070 = vor.u32 %v2068, %v2069
        %v2071 = vshll.u32 920167782, %v2056
        %v2072 = vshrl.u32 1326507024, %v2057
        %v2073 = vor.u32 %v2071, %v2072
        %vm2074 = vcmp.lt.s32.totalorder %v2055, 1
        %vm2075 = vcmp.lt.s32.totalorder %v2055, 2
        %vm2076 = vcmp.lt.s32.totalorder %v2055, 3
        %vm2077 = vcmp.lt.s32.totalorder %v2055, 4
        %v2078 = vsel %vm2074, %v2058, %v2061
        %v2079 = vsel %vm2077, %v2067, 2102212464
        %v2080 = vsel %vm2076, %v2064, %v2079
        %v2081 = vsel %vm2075, %v2078, %v2080
        %v2082 = vsel %vm2074, %v2061, %v2064
        %v2083 = vsel %vm2077, %v2070, 920167782
        %v2084 = vsel %vm2076, %v2067, %v2083
        %v2085 = vsel %vm2075, %v2082, %v2084
        %v2086 = vsel %vm2074, %v2064, %v2067
        %v2087 = vsel %vm2077, %v2073, 1326507024
        %v2088 = vsel %vm2076, %v2070, %v2087
        %v2089 = vsel %vm2075, %v2086, %v2088
        %v2090 = vshll.u32 %v2050, 8
        %v2091 = vmul.u32.u64.compose %v2090, %v2089
        %v2092 = vextract.low.u32 %v2091
        %v2093 = vextract.high.u32 %v2091
        %v2094 = vmul.u32.u64.compose %v2090, %v2085
        %v2095 = vextract.low.u32 %v2094
        %v2096 = vextract.high.u32 %v2094
        %v2097 = vmul.u32 %v2090, %v2081
        %v2098 = vadd.s32 %v2093, %v2095
        %vm2099 = vc.u32 %v2093, %v2095
        %v2100 = vadd.s32 %v2096, 1
        %v2101 = vsel %vm2099, %v2100, %v2096
        %v2102 = vadd.s32 %v2097, %v2101
        %v2103 = vadd.s32 %v2102, 536870912
        %v2104 = vshrl.u32 %v2103, 30
        %v2105 = vshll.u32 %v2104, 30
        %v2106 = vsub.s32 %v2102, %v2105
        %vm2107 = vcmp.lt.s32.totalorder %v2106, 0
        %v2108 = vsub.s32 0, %v2106
        %v2109 = vsel %vm2107, %v2108, %v2106
        %v2110 = vclz %v2109
        %v2111 = vsub.s32 %v2110, 2
        %vm2112 = vcmp.gt.s32.totalorder 0, %v2111
        %v2113 = vsel %vm2112, 0, %v2111
        %v2114 = vsub.s32 32, %v2113
        %v2115 = vshll.u32 %v2106, %v2113
        %v2116 = vshrl.u32 %v2098, %v2114
        %v2117 = vor.u32 %v2115, %v2116
        %v2118 = vsub.s32 4294967266, %v2113
        %v2119 = vadd.s32 %v2118, 127
        %v2120 = vshll.u32 %v2119, 23
        %v2121 = vor.u32 4788187, %v2120
        %v2122 = vand.u32 2147483647, %v2121
        %v2124 = vcvt.s32.f32 %v2117
        %v2125 = vmul.f32 %v2124, %v2122
        %v2126 = vxor.u32 %v2125, 2147483648
        %v2127 = vsel %vm2044, %v2126, %v2125
        %v2128 = vsub.s32 4, %v2104
        %v2129 = vsel %vm2044, %v2128, %v2104
        %v2130 = vsel %vm2043, %v640, %v2127
        %v2131 = vsel %vm2043, 0, %v2129
        %v2132 = vcosq.f32.pop %v2130
        %v2133 = vsinq.f32.pop %v2130
        %vm2134 = vweird.f32 %v640
        %v2135 = vadd.s32 %v2131, 3
        %v2136 = vand.u32 %v2135, 3
        %vm2137 = vcmp.lt.s32.totalorder %v2136, 2
        %vm2138 = vcmp.eq.s32.totalorder %v2136, 0
        %v2139 = vxor.u32 %v2133, 2147483648
        %v2140 = vsel %vm2138, %v2132, %v2139
        %vm2141 = vcmp.eq.s32.totalorder %v2136, 2
        %v2142 = vxor.u32 %v2132, 2147483648
        %v2143 = vsel %vm2141, %v2142, %v2133
        %v2144 = vsel %vm2137, %v2140, %v2143
        %v2145 = vsel %vm2134, nan, %v2144
        %v2146 = vand.u32 2147483647, %v641
        %vm2147 = vcmp.le.f32.partialorder %v2146, 0.7853982
        %vm2148 = vcmp.lt.s32.totalorder %v641, 0
        %v2149 = vand.u32 %v641, 2139095040
        %v2150 = vshrl.u32 %v2149, 23
        %v2151 = vsub.s32 %v2150, 127
        %v2152 = vand.u32 2147483647, %v641
        %v2153 = vand.u32 %v2152, 8388607
        %v2154 = vor.u32 %v2153, 8388608
        %v2155 = vsub.s32 0, %v2154
        %v2156 = vadd.s32 %v2151, 1
        %vm2157 = vcmp.gt.s32.totalorder %v2156, 0
        %v2158 = vsel %vm2157, %v2156, 0
        %v2159 = vshrl.u32 %v2158, 5
        %v2160 = vand.u32 %v2158, 31
        %v2161 = vsub.s32 32, %v2160
        %v2162 = vshrl.u32 683565275, %v2161
        %v2163 = vshll.u32 683565275, %v2160
        %v2164 = vshrl.u32 2475754826, %v2161
        %v2165 = vor.u32 %v2163, %v2164
        %v2166 = vshll.u32 2475754826, %v2160
        %v2167 = vshrl.u32 2131351028, %v2161
        %v2168 = vor.u32 %v2166, %v2167
        %v2169 = vshll.u32 2131351028, %v2160
        %v2170 = vshrl.u32 2102212464, %v2161
        %v2171 = vor.u32 %v2169, %v2170
        %v2172 = vshll.u32 2102212464, %v2160
        %v2173 = vshrl.u32 920167782, %v2161
        %v2174 = vor.u32 %v2172, %v2173
        %v2175 = vshll.u32 920167782, %v2160
        %v2176 = vshrl.u32 1326507024, %v2161
        %v2177 = vor.u32 %v2175, %v2176
        %vm2178 = vcmp.lt.s32.totalorder %v2159, 1
        %vm2179 = vcmp.lt.s32.totalorder %v2159, 2
        %vm2180 = vcmp.lt.s32.totalorder %v2159, 3
        %vm2181 = vcmp.lt.s32.totalorder %v2159, 4
        %v2182 = vsel %vm2178, %v2162, %v2165
        %v2183 = vsel %vm2181, %v2171, 2102212464
        %v2184 = vsel %vm2180, %v2168, %v2183
        %v2185 = vsel %vm2179, %v2182, %v2184
        %v2186 = vsel %vm2178, %v2165, %v2168
        %v2187 = vsel %vm2181, %v2174, 920167782
        %v2188 = vsel %vm2180, %v2171, %v2187
        %v2189 = vsel %vm2179, %v2186, %v2188
        %v2190 = vsel %vm2178, %v2168, %v2171
        %v2191 = vsel %vm2181, %v2177, 1326507024
        %v2192 = vsel %vm2180, %v2174, %v2191
        %v2193 = vsel %vm2179, %v2190, %v2192
        %v2194 = vshll.u32 %v2154, 8
        %v2195 = vmul.u32.u64.compose %v2194, %v2193
        %v2196 = vextract.low.u32 %v2195
        %v2197 = vextract.high.u32 %v2195
        %v2198 = vmul.u32.u64.compose %v2194, %v2189
        %v2199 = vextract.low.u32 %v2198
        %v2200 = vextract.high.u32 %v2198
        %v2201 = vmul.u32 %v2194, %v2185
        %v2202 = vadd.s32 %v2197, %v2199
        %vm2203 = vc.u32 %v2197, %v2199
        %v2204 = vadd.s32 %v2200, 1
        %v2205 = vsel %vm2203, %v2204, %v2200
        %v2206 = vadd.s32 %v2201, %v2205
        %v2207 = vadd.s32 %v2206, 536870912
        %v2208 = vshrl.u32 %v2207, 30
        %v2209 = vshll.u32 %v2208, 30
        %v2210 = vsub.s32 %v2206, %v2209
        %vm2211 = vcmp.lt.s32.totalorder %v2210, 0
        %v2212 = vsub.s32 0, %v2210
        %v2213 = vsel %vm2211, %v2212, %v2210
        %v2214 = vclz %v2213
        %v2215 = vsub.s32 %v2214, 2
        %vm2216 = vcmp.gt.s32.totalorder 0, %v2215
        %v2217 = vsel %vm2216, 0, %v2215
        %v2218 = vsub.s32 32, %v2217
        %v2219 = vshll.u32 %v2210, %v2217
        %v2220 = vshrl.u32 %v2202, %v2218
        %v2221 = vor.u32 %v2219, %v2220
        %v2222 = vsub.s32 4294967266, %v2217
        %v2223 = vadd.s32 %v2222, 127
        %v2224 = vshll.u32 %v2223, 23
        %v2225 = vor.u32 4788187, %v2224
        %v2226 = vand.u32 2147483647, %v2225
        %v2228 = vcvt.s32.f32 %v2221
        %v2229 = vmul.f32 %v2228, %v2226
        %v2230 = vxor.u32 %v2229, 2147483648
        %v2231 = vsel %vm2148, %v2230, %v2229
        %v2232 = vsub.s32 4, %v2208
        %v2233 = vsel %vm2148, %v2232, %v2208
        %v2234 = vsel %vm2147, %v641, %v2231
        %v2235 = vsel %vm2147, 0, %v2233
        %v2236 = vcosq.f32.pop %v2234
        %v2237 = vsinq.f32.pop %v2234
        %vm2238 = vweird.f32 %v641
        %v2239 = vadd.s32 %v2235, 3
        %v2240 = vand.u32 %v2239, 3
        %vm2241 = vcmp.lt.s32.totalorder %v2240, 2
        %vm2242 = vcmp.eq.s32.totalorder %v2240, 0
        %v2243 = vxor.u32 %v2237, 2147483648
        %v2244 = vsel %vm2242, %v2236, %v2243
        %vm2245 = vcmp.eq.s32.totalorder %v2240, 2
        %v2246 = vxor.u32 %v2236, 2147483648
        %v2247 = vsel %vm2245, %v2246, %v2237
        %v2248 = vsel %vm2241, %v2244, %v2247
        %v2249 = vsel %vm2238, nan, %v2248
        %v2250 = vand.u32 2147483647, %v642
        %vm2251 = vcmp.le.f32.partialorder %v2250, 0.7853982
        %vm2252 = vcmp.lt.s32.totalorder %v642, 0
        %v2253 = vand.u32 %v642, 2139095040
        %v2254 = vshrl.u32 %v2253, 23
        %v2255 = vsub.s32 %v2254, 127
        %v2256 = vand.u32 2147483647, %v642
        %v2257 = vand.u32 %v2256, 8388607
        %v2258 = vor.u32 %v2257, 8388608
        %v2259 = vsub.s32 0, %v2258
        %v2260 = vadd.s32 %v2255, 1
        %vm2261 = vcmp.gt.s32.totalorder %v2260, 0
        %v2262 = vsel %vm2261, %v2260, 0
        %v2263 = vshrl.u32 %v2262, 5
        %v2264 = vand.u32 %v2262, 31
        %v2265 = vsub.s32 32, %v2264
        %v2266 = vshrl.u32 683565275, %v2265
        %v2267 = vshll.u32 683565275, %v2264
        %v2268 = vshrl.u32 2475754826, %v2265
        %v2269 = vor.u32 %v2267, %v2268
        %v2270 = vshll.u32 2475754826, %v2264
        %v2271 = vshrl.u32 2131351028, %v2265
        %v2272 = vor.u32 %v2270, %v2271
        %v2273 = vshll.u32 2131351028, %v2264
        %v2274 = vshrl.u32 2102212464, %v2265
        %v2275 = vor.u32 %v2273, %v2274
        %v2276 = vshll.u32 2102212464, %v2264
        %v2277 = vshrl.u32 920167782, %v2265
        %v2278 = vor.u32 %v2276, %v2277
        %v2279 = vshll.u32 920167782, %v2264
        %v2280 = vshrl.u32 1326507024, %v2265
        %v2281 = vor.u32 %v2279, %v2280
        %vm2282 = vcmp.lt.s32.totalorder %v2263, 1
        %vm2283 = vcmp.lt.s32.totalorder %v2263, 2
        %vm2284 = vcmp.lt.s32.totalorder %v2263, 3
        %vm2285 = vcmp.lt.s32.totalorder %v2263, 4
        %v2286 = vsel %vm2282, %v2266, %v2269
        %v2287 = vsel %vm2285, %v2275, 2102212464
        %v2288 = vsel %vm2284, %v2272, %v2287
        %v2289 = vsel %vm2283, %v2286, %v2288
        %v2290 = vsel %vm2282, %v2269, %v2272
        %v2291 = vsel %vm2285, %v2278, 920167782
        %v2292 = vsel %vm2284, %v2275, %v2291
        %v2293 = vsel %vm2283, %v2290, %v2292
        %v2294 = vsel %vm2282, %v2272, %v2275
        %v2295 = vsel %vm2285, %v2281, 1326507024
        %v2296 = vsel %vm2284, %v2278, %v2295
        %v2297 = vsel %vm2283, %v2294, %v2296
        %v2298 = vshll.u32 %v2258, 8
        %v2299 = vmul.u32.u64.compose %v2298, %v2297
        %v2300 = vextract.low.u32 %v2299
        %v2301 = vextract.high.u32 %v2299
        %v2302 = vmul.u32.u64.compose %v2298, %v2293
        %v2303 = vextract.low.u32 %v2302
        %v2304 = vextract.high.u32 %v2302
        %v2305 = vmul.u32 %v2298, %v2289
        %v2306 = vadd.s32 %v2301, %v2303
        %vm2307 = vc.u32 %v2301, %v2303
        %v2308 = vadd.s32 %v2304, 1
        %v2309 = vsel %vm2307, %v2308, %v2304
        %v2310 = vadd.s32 %v2305, %v2309
        %v2311 = vadd.s32 %v2310, 536870912
        %v2312 = vshrl.u32 %v2311, 30
        %v2313 = vshll.u32 %v2312, 30
        %v2314 = vsub.s32 %v2310, %v2313
        %vm2315 = vcmp.lt.s32.totalorder %v2314, 0
        %v2316 = vsub.s32 0, %v2314
        %v2317 = vsel %vm2315, %v2316, %v2314
        %v2318 = vclz %v2317
        %v2319 = vsub.s32 %v2318, 2
        %vm2320 = vcmp.gt.s32.totalorder 0, %v2319
        %v2321 = vsel %vm2320, 0, %v2319
        %v2322 = vsub.s32 32, %v2321
        %v2323 = vshll.u32 %v2314, %v2321
        %v2324 = vshrl.u32 %v2306, %v2322
        %v2325 = vor.u32 %v2323, %v2324
        %v2326 = vsub.s32 4294967266, %v2321
        %v2327 = vadd.s32 %v2326, 127
        %v2328 = vshll.u32 %v2327, 23
        %v2329 = vor.u32 4788187, %v2328
        %v2330 = vand.u32 2147483647, %v2329
        %v2332 = vcvt.s32.f32 %v2325
        %v2333 = vmul.f32 %v2332, %v2330
        %v2334 = vxor.u32 %v2333, 2147483648
        %v2335 = vsel %vm2252, %v2334, %v2333
        %v2336 = vsub.s32 4, %v2312
        %v2337 = vsel %vm2252, %v2336, %v2312
        %v2338 = vsel %vm2251, %v642, %v2335
        %v2339 = vsel %vm2251, 0, %v2337
        %v2340 = vcosq.f32.pop %v2338
        %v2341 = vsinq.f32.pop %v2338
        %vm2342 = vweird.f32 %v642
        %v2343 = vadd.s32 %v2339, 3
        %v2344 = vand.u32 %v2343, 3
        %vm2345 = vcmp.lt.s32.totalorder %v2344, 2
        %vm2346 = vcmp.eq.s32.totalorder %v2344, 0
        %v2347 = vxor.u32 %v2341, 2147483648
        %v2348 = vsel %vm2346, %v2340, %v2347
        %vm2349 = vcmp.eq.s32.totalorder %v2344, 2
        %v2350 = vxor.u32 %v2340, 2147483648
        %v2351 = vsel %vm2349, %v2350, %v2341
        %v2352 = vsel %vm2345, %v2348, %v2351
        %v2353 = vsel %vm2342, nan, %v2352
        %v2354 = vand.u32 2147483647, %v643
        %vm2355 = vcmp.le.f32.partialorder %v2354, 0.7853982
        %vm2356 = vcmp.lt.s32.totalorder %v643, 0
        %v2357 = vand.u32 %v643, 2139095040
        %v2358 = vshrl.u32 %v2357, 23
        %v2359 = vsub.s32 %v2358, 127
        %v2360 = vand.u32 2147483647, %v643
        %v2361 = vand.u32 %v2360, 8388607
        %v2362 = vor.u32 %v2361, 8388608
        %v2363 = vsub.s32 0, %v2362
        %v2364 = vadd.s32 %v2359, 1
        %vm2365 = vcmp.gt.s32.totalorder %v2364, 0
        %v2366 = vsel %vm2365, %v2364, 0
        %v2367 = vshrl.u32 %v2366, 5
        %v2368 = vand.u32 %v2366, 31
        %v2369 = vsub.s32 32, %v2368
        %v2370 = vshrl.u32 683565275, %v2369
        %v2371 = vshll.u32 683565275, %v2368
        %v2372 = vshrl.u32 2475754826, %v2369
        %v2373 = vor.u32 %v2371, %v2372
        %v2374 = vshll.u32 2475754826, %v2368
        %v2375 = vshrl.u32 2131351028, %v2369
        %v2376 = vor.u32 %v2374, %v2375
        %v2377 = vshll.u32 2131351028, %v2368
        %v2378 = vshrl.u32 2102212464, %v2369
        %v2379 = vor.u32 %v2377, %v2378
        %v2380 = vshll.u32 2102212464, %v2368
        %v2381 = vshrl.u32 920167782, %v2369
        %v2382 = vor.u32 %v2380, %v2381
        %v2383 = vshll.u32 920167782, %v2368
        %v2384 = vshrl.u32 1326507024, %v2369
        %v2385 = vor.u32 %v2383, %v2384
        %vm2386 = vcmp.lt.s32.totalorder %v2367, 1
        %vm2387 = vcmp.lt.s32.totalorder %v2367, 2
        %vm2388 = vcmp.lt.s32.totalorder %v2367, 3
        %vm2389 = vcmp.lt.s32.totalorder %v2367, 4
        %v2390 = vsel %vm2386, %v2370, %v2373
        %v2391 = vsel %vm2389, %v2379, 2102212464
        %v2392 = vsel %vm2388, %v2376, %v2391
        %v2393 = vsel %vm2387, %v2390, %v2392
        %v2394 = vsel %vm2386, %v2373, %v2376
        %v2395 = vsel %vm2389, %v2382, 920167782
        %v2396 = vsel %vm2388, %v2379, %v2395
        %v2397 = vsel %vm2387, %v2394, %v2396
        %v2398 = vsel %vm2386, %v2376, %v2379
        %v2399 = vsel %vm2389, %v2385, 1326507024
        %v2400 = vsel %vm2388, %v2382, %v2399
        %v2401 = vsel %vm2387, %v2398, %v2400
        %v2402 = vshll.u32 %v2362, 8
        %v2403 = vmul.u32.u64.compose %v2402, %v2401
        %v2404 = vextract.low.u32 %v2403
        %v2405 = vextract.high.u32 %v2403
        %v2406 = vmul.u32.u64.compose %v2402, %v2397
        %v2407 = vextract.low.u32 %v2406
        %v2408 = vextract.high.u32 %v2406
        %v2409 = vmul.u32 %v2402, %v2393
        %v2410 = vadd.s32 %v2405, %v2407
        %vm2411 = vc.u32 %v2405, %v2407
        %v2412 = vadd.s32 %v2408, 1
        %v2413 = vsel %vm2411, %v2412, %v2408
        %v2414 = vadd.s32 %v2409, %v2413
        %v2415 = vadd.s32 %v2414, 536870912
        %v2416 = vshrl.u32 %v2415, 30
        %v2417 = vshll.u32 %v2416, 30
        %v2418 = vsub.s32 %v2414, %v2417
        %vm2419 = vcmp.lt.s32.totalorder %v2418, 0
        %v2420 = vsub.s32 0, %v2418
        %v2421 = vsel %vm2419, %v2420, %v2418
        %v2422 = vclz %v2421
        %v2423 = vsub.s32 %v2422, 2
        %vm2424 = vcmp.gt.s32.totalorder 0, %v2423
        %v2425 = vsel %vm2424, 0, %v2423
        %v2426 = vsub.s32 32, %v2425
        %v2427 = vshll.u32 %v2418, %v2425
        %v2428 = vshrl.u32 %v2410, %v2426
        %v2429 = vor.u32 %v2427, %v2428
        %v2430 = vsub.s32 4294967266, %v2425
        %v2431 = vadd.s32 %v2430, 127
        %v2432 = vshll.u32 %v2431, 23
        %v2433 = vor.u32 4788187, %v2432
        %v2434 = vand.u32 2147483647, %v2433
        %v2436 = vcvt.s32.f32 %v2429
        %v2437 = vmul.f32 %v2436, %v2434
        %v2438 = vxor.u32 %v2437, 2147483648
        %v2439 = vsel %vm2356, %v2438, %v2437
        %v2440 = vsub.s32 4, %v2416
        %v2441 = vsel %vm2356, %v2440, %v2416
        %v2442 = vsel %vm2355, %v643, %v2439
        %v2443 = vsel %vm2355, 0, %v2441
        %v2444 = vcosq.f32.pop %v2442
        %v2445 = vsinq.f32.pop %v2442
        %vm2446 = vweird.f32 %v643
        %v2447 = vadd.s32 %v2443, 3
        %v2448 = vand.u32 %v2447, 3
        %vm2449 = vcmp.lt.s32.totalorder %v2448, 2
        %vm2450 = vcmp.eq.s32.totalorder %v2448, 0
        %v2451 = vxor.u32 %v2445, 2147483648
        %v2452 = vsel %vm2450, %v2444, %v2451
        %vm2453 = vcmp.eq.s32.totalorder %v2448, 2
        %v2454 = vxor.u32 %v2444, 2147483648
        %v2455 = vsel %vm2453, %v2454, %v2445
        %v2456 = vsel %vm2449, %v2452, %v2455
        %v2457 = vsel %vm2446, nan, %v2456
        %v2458 = vand.u32 2147483647, %v644
        %vm2459 = vcmp.le.f32.partialorder %v2458, 0.7853982
        %vm2460 = vcmp.lt.s32.totalorder %v644, 0
        %v2461 = vand.u32 %v644, 2139095040
        %v2462 = vshrl.u32 %v2461, 23
        %v2463 = vsub.s32 %v2462, 127
        %v2464 = vand.u32 2147483647, %v644
        %v2465 = vand.u32 %v2464, 8388607
        %v2466 = vor.u32 %v2465, 8388608
        %v2467 = vsub.s32 0, %v2466
        %v2468 = vadd.s32 %v2463, 1
        %vm2469 = vcmp.gt.s32.totalorder %v2468, 0
        %v2470 = vsel %vm2469, %v2468, 0
        %v2471 = vshrl.u32 %v2470, 5
        %v2472 = vand.u32 %v2470, 31
        %v2473 = vsub.s32 32, %v2472
        %v2474 = vshrl.u32 683565275, %v2473
        %v2475 = vshll.u32 683565275, %v2472
        %v2476 = vshrl.u32 2475754826, %v2473
        %v2477 = vor.u32 %v2475, %v2476
        %v2478 = vshll.u32 2475754826, %v2472
        %v2479 = vshrl.u32 2131351028, %v2473
        %v2480 = vor.u32 %v2478, %v2479
        %v2481 = vshll.u32 2131351028, %v2472
        %v2482 = vshrl.u32 2102212464, %v2473
        %v2483 = vor.u32 %v2481, %v2482
        %v2484 = vshll.u32 2102212464, %v2472
        %v2485 = vshrl.u32 920167782, %v2473
        %v2486 = vor.u32 %v2484, %v2485
        %v2487 = vshll.u32 920167782, %v2472
        %v2488 = vshrl.u32 1326507024, %v2473
        %v2489 = vor.u32 %v2487, %v2488
        %vm2490 = vcmp.lt.s32.totalorder %v2471, 1
        %vm2491 = vcmp.lt.s32.totalorder %v2471, 2
        %vm2492 = vcmp.lt.s32.totalorder %v2471, 3
        %vm2493 = vcmp.lt.s32.totalorder %v2471, 4
        %v2494 = vsel %vm2490, %v2474, %v2477
        %v2495 = vsel %vm2493, %v2483, 2102212464
        %v2496 = vsel %vm2492, %v2480, %v2495
        %v2497 = vsel %vm2491, %v2494, %v2496
        %v2498 = vsel %vm2490, %v2477, %v2480
        %v2499 = vsel %vm2493, %v2486, 920167782
        %v2500 = vsel %vm2492, %v2483, %v2499
        %v2501 = vsel %vm2491, %v2498, %v2500
        %v2502 = vsel %vm2490, %v2480, %v2483
        %v2503 = vsel %vm2493, %v2489, 1326507024
        %v2504 = vsel %vm2492, %v2486, %v2503
        %v2505 = vsel %vm2491, %v2502, %v2504
        %v2506 = vshll.u32 %v2466, 8
        %v2507 = vmul.u32.u64.compose %v2506, %v2505
        %v2508 = vextract.low.u32 %v2507
        %v2509 = vextract.high.u32 %v2507
        %v2510 = vmul.u32.u64.compose %v2506, %v2501
        %v2511 = vextract.low.u32 %v2510
        %v2512 = vextract.high.u32 %v2510
        %v2513 = vmul.u32 %v2506, %v2497
        %v2514 = vadd.s32 %v2509, %v2511
        %vm2515 = vc.u32 %v2509, %v2511
        %v2516 = vadd.s32 %v2512, 1
        %v2517 = vsel %vm2515, %v2516, %v2512
        %v2518 = vadd.s32 %v2513, %v2517
        %v2519 = vadd.s32 %v2518, 536870912
        %v2520 = vshrl.u32 %v2519, 30
        %v2521 = vshll.u32 %v2520, 30
        %v2522 = vsub.s32 %v2518, %v2521
        %vm2523 = vcmp.lt.s32.totalorder %v2522, 0
        %v2524 = vsub.s32 0, %v2522
        %v2525 = vsel %vm2523, %v2524, %v2522
        %v2526 = vclz %v2525
        %v2527 = vsub.s32 %v2526, 2
        %vm2528 = vcmp.gt.s32.totalorder 0, %v2527
        %v2529 = vsel %vm2528, 0, %v2527
        %v2530 = vsub.s32 32, %v2529
        %v2531 = vshll.u32 %v2522, %v2529
        %v2532 = vshrl.u32 %v2514, %v2530
        %v2533 = vor.u32 %v2531, %v2532
        %v2534 = vsub.s32 4294967266, %v2529
        %v2535 = vadd.s32 %v2534, 127
        %v2536 = vshll.u32 %v2535, 23
        %v2537 = vor.u32 4788187, %v2536
        %v2538 = vand.u32 2147483647, %v2537
        %v2540 = vcvt.s32.f32 %v2533
        %v2541 = vmul.f32 %v2540, %v2538
        %v2542 = vxor.u32 %v2541, 2147483648
        %v2543 = vsel %vm2460, %v2542, %v2541
        %v2544 = vsub.s32 4, %v2520
        %v2545 = vsel %vm2460, %v2544, %v2520
        %v2546 = vsel %vm2459, %v644, %v2543
        %v2547 = vsel %vm2459, 0, %v2545
        %v2548 = vcosq.f32.pop %v2546
        %v2549 = vsinq.f32.pop %v2546
        %vm2550 = vweird.f32 %v644
        %v2551 = vadd.s32 %v2547, 3
        %v2552 = vand.u32 %v2551, 3
        %vm2553 = vcmp.lt.s32.totalorder %v2552, 2
        %vm2554 = vcmp.eq.s32.totalorder %v2552, 0
        %v2555 = vxor.u32 %v2549, 2147483648
        %v2556 = vsel %vm2554, %v2548, %v2555
        %vm2557 = vcmp.eq.s32.totalorder %v2552, 2
        %v2558 = vxor.u32 %v2548, 2147483648
        %v2559 = vsel %vm2557, %v2558, %v2549
        %v2560 = vsel %vm2553, %v2556, %v2559
        %v2561 = vsel %vm2550, nan, %v2560
        %v2562 = vand.u32 2147483647, %v645
        %vm2563 = vcmp.le.f32.partialorder %v2562, 0.7853982
        %vm2564 = vcmp.lt.s32.totalorder %v645, 0
        %v2565 = vand.u32 %v645, 2139095040
        %v2566 = vshrl.u32 %v2565, 23
        %v2567 = vsub.s32 %v2566, 127
        %v2568 = vand.u32 2147483647, %v645
        %v2569 = vand.u32 %v2568, 8388607
        %v2570 = vor.u32 %v2569, 8388608
        %v2571 = vsub.s32 0, %v2570
        %v2572 = vadd.s32 %v2567, 1
        %vm2573 = vcmp.gt.s32.totalorder %v2572, 0
        %v2574 = vsel %vm2573, %v2572, 0
        %v2575 = vshrl.u32 %v2574, 5
        %v2576 = vand.u32 %v2574, 31
        %v2577 = vsub.s32 32, %v2576
        %v2578 = vshrl.u32 683565275, %v2577
        %v2579 = vshll.u32 683565275, %v2576
        %v2580 = vshrl.u32 2475754826, %v2577
        %v2581 = vor.u32 %v2579, %v2580
        %v2582 = vshll.u32 2475754826, %v2576
        %v2583 = vshrl.u32 2131351028, %v2577
        %v2584 = vor.u32 %v2582, %v2583
        %v2585 = vshll.u32 2131351028, %v2576
        %v2586 = vshrl.u32 2102212464, %v2577
        %v2587 = vor.u32 %v2585, %v2586
        %v2588 = vshll.u32 2102212464, %v2576
        %v2589 = vshrl.u32 920167782, %v2577
        %v2590 = vor.u32 %v2588, %v2589
        %v2591 = vshll.u32 920167782, %v2576
        %v2592 = vshrl.u32 1326507024, %v2577
        %v2593 = vor.u32 %v2591, %v2592
        %vm2594 = vcmp.lt.s32.totalorder %v2575, 1
        %vm2595 = vcmp.lt.s32.totalorder %v2575, 2
        %vm2596 = vcmp.lt.s32.totalorder %v2575, 3
        %vm2597 = vcmp.lt.s32.totalorder %v2575, 4
        %v2598 = vsel %vm2594, %v2578, %v2581
        %v2599 = vsel %vm2597, %v2587, 2102212464
        %v2600 = vsel %vm2596, %v2584, %v2599
        %v2601 = vsel %vm2595, %v2598, %v2600
        %v2602 = vsel %vm2594, %v2581, %v2584
        %v2603 = vsel %vm2597, %v2590, 920167782
        %v2604 = vsel %vm2596, %v2587, %v2603
        %v2605 = vsel %vm2595, %v2602, %v2604
        %v2606 = vsel %vm2594, %v2584, %v2587
        %v2607 = vsel %vm2597, %v2593, 1326507024
        %v2608 = vsel %vm2596, %v2590, %v2607
        %v2609 = vsel %vm2595, %v2606, %v2608
        %v2610 = vshll.u32 %v2570, 8
        %v2611 = vmul.u32.u64.compose %v2610, %v2609
        %v2612 = vextract.low.u32 %v2611
        %v2613 = vextract.high.u32 %v2611
        %v2614 = vmul.u32.u64.compose %v2610, %v2605
        %v2615 = vextract.low.u32 %v2614
        %v2616 = vextract.high.u32 %v2614
        %v2617 = vmul.u32 %v2610, %v2601
        %v2618 = vadd.s32 %v2613, %v2615
        %vm2619 = vc.u32 %v2613, %v2615
        %v2620 = vadd.s32 %v2616, 1
        %v2621 = vsel %vm2619, %v2620, %v2616
        %v2622 = vadd.s32 %v2617, %v2621
        %v2623 = vadd.s32 %v2622, 536870912
        %v2624 = vshrl.u32 %v2623, 30
        %v2625 = vshll.u32 %v2624, 30
        %v2626 = vsub.s32 %v2622, %v2625
        %vm2627 = vcmp.lt.s32.totalorder %v2626, 0
        %v2628 = vsub.s32 0, %v2626
        %v2629 = vsel %vm2627, %v2628, %v2626
        %v2630 = vclz %v2629
        %v2631 = vsub.s32 %v2630, 2
        %vm2632 = vcmp.gt.s32.totalorder 0, %v2631
        %v2633 = vsel %vm2632, 0, %v2631
        %v2634 = vsub.s32 32, %v2633
        %v2635 = vshll.u32 %v2626, %v2633
        %v2636 = vshrl.u32 %v2618, %v2634
        %v2637 = vor.u32 %v2635, %v2636
        %v2638 = vsub.s32 4294967266, %v2633
        %v2639 = vadd.s32 %v2638, 127
        %v2640 = vshll.u32 %v2639, 23
        %v2641 = vor.u32 4788187, %v2640
        %v2642 = vand.u32 2147483647, %v2641
        %v2644 = vcvt.s32.f32 %v2637
        %v2645 = vmul.f32 %v2644, %v2642
        %v2646 = vxor.u32 %v2645, 2147483648
        %v2647 = vsel %vm2564, %v2646, %v2645
        %v2648 = vsub.s32 4, %v2624
        %v2649 = vsel %vm2564, %v2648, %v2624
        %v2650 = vsel %vm2563, %v645, %v2647
        %v2651 = vsel %vm2563, 0, %v2649
        %v2652 = vcosq.f32.pop %v2650
        %v2653 = vsinq.f32.pop %v2650
        %vm2654 = vweird.f32 %v645
        %v2655 = vadd.s32 %v2651, 3
        %v2656 = vand.u32 %v2655, 3
        %vm2657 = vcmp.lt.s32.totalorder %v2656, 2
        %vm2658 = vcmp.eq.s32.totalorder %v2656, 0
        %v2659 = vxor.u32 %v2653, 2147483648
        %v2660 = vsel %vm2658, %v2652, %v2659
        %vm2661 = vcmp.eq.s32.totalorder %v2656, 2
        %v2662 = vxor.u32 %v2652, 2147483648
        %v2663 = vsel %vm2661, %v2662, %v2653
        %v2664 = vsel %vm2657, %v2660, %v2663
        %v2665 = vsel %vm2654, nan, %v2664
        %v2666 = vand.u32 2147483647, %v646
        %vm2667 = vcmp.le.f32.partialorder %v2666, 0.7853982
        %vm2668 = vcmp.lt.s32.totalorder %v646, 0
        %v2669 = vand.u32 %v646, 2139095040
        %v2670 = vshrl.u32 %v2669, 23
        %v2671 = vsub.s32 %v2670, 127
        %v2672 = vand.u32 2147483647, %v646
        %v2673 = vand.u32 %v2672, 8388607
        %v2674 = vor.u32 %v2673, 8388608
        %v2675 = vsub.s32 0, %v2674
        %v2676 = vadd.s32 %v2671, 1
        %vm2677 = vcmp.gt.s32.totalorder %v2676, 0
        %v2678 = vsel %vm2677, %v2676, 0
        %v2679 = vshrl.u32 %v2678, 5
        %v2680 = vand.u32 %v2678, 31
        %v2681 = vsub.s32 32, %v2680
        %v2682 = vshrl.u32 683565275, %v2681
        %v2683 = vshll.u32 683565275, %v2680
        %v2684 = vshrl.u32 2475754826, %v2681
        %v2685 = vor.u32 %v2683, %v2684
        %v2686 = vshll.u32 2475754826, %v2680
        %v2687 = vshrl.u32 2131351028, %v2681
        %v2688 = vor.u32 %v2686, %v2687
        %v2689 = vshll.u32 2131351028, %v2680
        %v2690 = vshrl.u32 2102212464, %v2681
        %v2691 = vor.u32 %v2689, %v2690
        %v2692 = vshll.u32 2102212464, %v2680
        %v2693 = vshrl.u32 920167782, %v2681
        %v2694 = vor.u32 %v2692, %v2693
        %v2695 = vshll.u32 920167782, %v2680
        %v2696 = vshrl.u32 1326507024, %v2681
        %v2697 = vor.u32 %v2695, %v2696
        %vm2698 = vcmp.lt.s32.totalorder %v2679, 1
        %vm2699 = vcmp.lt.s32.totalorder %v2679, 2
        %vm2700 = vcmp.lt.s32.totalorder %v2679, 3
        %vm2701 = vcmp.lt.s32.totalorder %v2679, 4
        %v2702 = vsel %vm2698, %v2682, %v2685
        %v2703 = vsel %vm2701, %v2691, 2102212464
        %v2704 = vsel %vm2700, %v2688, %v2703
        %v2705 = vsel %vm2699, %v2702, %v2704
        %v2706 = vsel %vm2698, %v2685, %v2688
        %v2707 = vsel %vm2701, %v2694, 920167782
        %v2708 = vsel %vm2700, %v2691, %v2707
        %v2709 = vsel %vm2699, %v2706, %v2708
        %v2710 = vsel %vm2698, %v2688, %v2691
        %v2711 = vsel %vm2701, %v2697, 1326507024
        %v2712 = vsel %vm2700, %v2694, %v2711
        %v2713 = vsel %vm2699, %v2710, %v2712
        %v2714 = vshll.u32 %v2674, 8
        %v2715 = vmul.u32.u64.compose %v2714, %v2713
        %v2716 = vextract.low.u32 %v2715
        %v2717 = vextract.high.u32 %v2715
        %v2718 = vmul.u32.u64.compose %v2714, %v2709
        %v2719 = vextract.low.u32 %v2718
        %v2720 = vextract.high.u32 %v2718
        %v2721 = vmul.u32 %v2714, %v2705
        %v2722 = vadd.s32 %v2717, %v2719
        %vm2723 = vc.u32 %v2717, %v2719
        %v2724 = vadd.s32 %v2720, 1
        %v2725 = vsel %vm2723, %v2724, %v2720
        %v2726 = vadd.s32 %v2721, %v2725
        %v2727 = vadd.s32 %v2726, 536870912
        %v2728 = vshrl.u32 %v2727, 30
        %v2729 = vshll.u32 %v2728, 30
        %v2730 = vsub.s32 %v2726, %v2729
        %vm2731 = vcmp.lt.s32.totalorder %v2730, 0
        %v2732 = vsub.s32 0, %v2730
        %v2733 = vsel %vm2731, %v2732, %v2730
        %v2734 = vclz %v2733
        %v2735 = vsub.s32 %v2734, 2
        %vm2736 = vcmp.gt.s32.totalorder 0, %v2735
        %v2737 = vsel %vm2736, 0, %v2735
        %v2738 = vsub.s32 32, %v2737
        %v2739 = vshll.u32 %v2730, %v2737
        %v2740 = vshrl.u32 %v2722, %v2738
        %v2741 = vor.u32 %v2739, %v2740
        %v2742 = vsub.s32 4294967266, %v2737
        %v2743 = vadd.s32 %v2742, 127
        %v2744 = vshll.u32 %v2743, 23
        %v2745 = vor.u32 4788187, %v2744
        %v2746 = vand.u32 2147483647, %v2745
        %v2748 = vcvt.s32.f32 %v2741
        %v2749 = vmul.f32 %v2748, %v2746
        %v2750 = vxor.u32 %v2749, 2147483648
        %v2751 = vsel %vm2668, %v2750, %v2749
        %v2752 = vsub.s32 4, %v2728
        %v2753 = vsel %vm2668, %v2752, %v2728
        %v2754 = vsel %vm2667, %v646, %v2751
        %v2755 = vsel %vm2667, 0, %v2753
        %v2756 = vcosq.f32.pop %v2754
        %v2757 = vsinq.f32.pop %v2754
        %vm2758 = vweird.f32 %v646
        %v2759 = vadd.s32 %v2755, 3
        %v2760 = vand.u32 %v2759, 3
        %vm2761 = vcmp.lt.s32.totalorder %v2760, 2
        %vm2762 = vcmp.eq.s32.totalorder %v2760, 0
        %v2763 = vxor.u32 %v2757, 2147483648
        %v2764 = vsel %vm2762, %v2756, %v2763
        %vm2765 = vcmp.eq.s32.totalorder %v2760, 2
        %v2766 = vxor.u32 %v2756, 2147483648
        %v2767 = vsel %vm2765, %v2766, %v2757
        %v2768 = vsel %vm2761, %v2764, %v2767
        %v2769 = vsel %vm2758, nan, %v2768
        %v2770 = vand.u32 2147483647, %v647
        %vm2771 = vcmp.le.f32.partialorder %v2770, 0.7853982
        %vm2772 = vcmp.lt.s32.totalorder %v647, 0
        %v2773 = vand.u32 %v647, 2139095040
        %v2774 = vshrl.u32 %v2773, 23
        %v2775 = vsub.s32 %v2774, 127
        %v2776 = vand.u32 2147483647, %v647
        %v2777 = vand.u32 %v2776, 8388607
        %v2778 = vor.u32 %v2777, 8388608
        %v2779 = vsub.s32 0, %v2778
        %v2780 = vadd.s32 %v2775, 1
        %vm2781 = vcmp.gt.s32.totalorder %v2780, 0
        %v2782 = vsel %vm2781, %v2780, 0
        %v2783 = vshrl.u32 %v2782, 5
        %v2784 = vand.u32 %v2782, 31
        %v2785 = vsub.s32 32, %v2784
        %v2786 = vshrl.u32 683565275, %v2785
        %v2787 = vshll.u32 683565275, %v2784
        %v2788 = vshrl.u32 2475754826, %v2785
        %v2789 = vor.u32 %v2787, %v2788
        %v2790 = vshll.u32 2475754826, %v2784
        %v2791 = vshrl.u32 2131351028, %v2785
        %v2792 = vor.u32 %v2790, %v2791
        %v2793 = vshll.u32 2131351028, %v2784
        %v2794 = vshrl.u32 2102212464, %v2785
        %v2795 = vor.u32 %v2793, %v2794
        %v2796 = vshll.u32 2102212464, %v2784
        %v2797 = vshrl.u32 920167782, %v2785
        %v2798 = vor.u32 %v2796, %v2797
        %v2799 = vshll.u32 920167782, %v2784
        %v2800 = vshrl.u32 1326507024, %v2785
        %v2801 = vor.u32 %v2799, %v2800
        %vm2802 = vcmp.lt.s32.totalorder %v2783, 1
        %vm2803 = vcmp.lt.s32.totalorder %v2783, 2
        %vm2804 = vcmp.lt.s32.totalorder %v2783, 3
        %vm2805 = vcmp.lt.s32.totalorder %v2783, 4
        %v2806 = vsel %vm2802, %v2786, %v2789
        %v2807 = vsel %vm2805, %v2795, 2102212464
        %v2808 = vsel %vm2804, %v2792, %v2807
        %v2809 = vsel %vm2803, %v2806, %v2808
        %v2810 = vsel %vm2802, %v2789, %v2792
        %v2811 = vsel %vm2805, %v2798, 920167782
        %v2812 = vsel %vm2804, %v2795, %v2811
        %v2813 = vsel %vm2803, %v2810, %v2812
        %v2814 = vsel %vm2802, %v2792, %v2795
        %v2815 = vsel %vm2805, %v2801, 1326507024
        %v2816 = vsel %vm2804, %v2798, %v2815
        %v2817 = vsel %vm2803, %v2814, %v2816
        %v2818 = vshll.u32 %v2778, 8
        %v2819 = vmul.u32.u64.compose %v2818, %v2817
        %v2820 = vextract.low.u32 %v2819
        %v2821 = vextract.high.u32 %v2819
        %v2822 = vmul.u32.u64.compose %v2818, %v2813
        %v2823 = vextract.low.u32 %v2822
        %v2824 = vextract.high.u32 %v2822
        %v2825 = vmul.u32 %v2818, %v2809
        %v2826 = vadd.s32 %v2821, %v2823
        %vm2827 = vc.u32 %v2821, %v2823
        %v2828 = vadd.s32 %v2824, 1
        %v2829 = vsel %vm2827, %v2828, %v2824
        %v2830 = vadd.s32 %v2825, %v2829
        %v2831 = vadd.s32 %v2830, 536870912
        %v2832 = vshrl.u32 %v2831, 30
        %v2833 = vshll.u32 %v2832, 30
        %v2834 = vsub.s32 %v2830, %v2833
        %vm2835 = vcmp.lt.s32.totalorder %v2834, 0
        %v2836 = vsub.s32 0, %v2834
        %v2837 = vsel %vm2835, %v2836, %v2834
        %v2838 = vclz %v2837
        %v2839 = vsub.s32 %v2838, 2
        %vm2840 = vcmp.gt.s32.totalorder 0, %v2839
        %v2841 = vsel %vm2840, 0, %v2839
        %v2842 = vsub.s32 32, %v2841
        %v2843 = vshll.u32 %v2834, %v2841
        %v2844 = vshrl.u32 %v2826, %v2842
        %v2845 = vor.u32 %v2843, %v2844
        %v2846 = vsub.s32 4294967266, %v2841
        %v2847 = vadd.s32 %v2846, 127
        %v2848 = vshll.u32 %v2847, 23
        %v2849 = vor.u32 4788187, %v2848
        %v2850 = vand.u32 2147483647, %v2849
        %v2852 = vcvt.s32.f32 %v2845
        %v2853 = vmul.f32 %v2852, %v2850
        %v2854 = vxor.u32 %v2853, 2147483648
        %v2855 = vsel %vm2772, %v2854, %v2853
        %v2856 = vsub.s32 4, %v2832
        %v2857 = vsel %vm2772, %v2856, %v2832
        %v2858 = vsel %vm2771, %v647, %v2855
        %v2859 = vsel %vm2771, 0, %v2857
        %v2860 = vcosq.f32.pop %v2858
        %v2861 = vsinq.f32.pop %v2858
        %vm2862 = vweird.f32 %v647
        %v2863 = vadd.s32 %v2859, 3
        %v2864 = vand.u32 %v2863, 3
        %vm2865 = vcmp.lt.s32.totalorder %v2864, 2
        %vm2866 = vcmp.eq.s32.totalorder %v2864, 0
        %v2867 = vxor.u32 %v2861, 2147483648
        %v2868 = vsel %vm2866, %v2860, %v2867
        %vm2869 = vcmp.eq.s32.totalorder %v2864, 2
        %v2870 = vxor.u32 %v2860, 2147483648
        %v2871 = vsel %vm2869, %v2870, %v2861
        %v2872 = vsel %vm2865, %v2868, %v2871
        %v2873 = vsel %vm2862, nan, %v2872
        %v2874 = vand.u32 2147483647, %v648
        %vm2875 = vcmp.le.f32.partialorder %v2874, 0.7853982
        %vm2876 = vcmp.lt.s32.totalorder %v648, 0
        %v2877 = vand.u32 %v648, 2139095040
        %v2878 = vshrl.u32 %v2877, 23
        %v2879 = vsub.s32 %v2878, 127
        %v2880 = vand.u32 2147483647, %v648
        %v2881 = vand.u32 %v2880, 8388607
        %v2882 = vor.u32 %v2881, 8388608
        %v2883 = vsub.s32 0, %v2882
        %v2884 = vadd.s32 %v2879, 1
        %vm2885 = vcmp.gt.s32.totalorder %v2884, 0
        %v2886 = vsel %vm2885, %v2884, 0
        %v2887 = vshrl.u32 %v2886, 5
        %v2888 = vand.u32 %v2886, 31
        %v2889 = vsub.s32 32, %v2888
        %v2890 = vshrl.u32 683565275, %v2889
        %v2891 = vshll.u32 683565275, %v2888
        %v2892 = vshrl.u32 2475754826, %v2889
        %v2893 = vor.u32 %v2891, %v2892
        %v2894 = vshll.u32 2475754826, %v2888
        %v2895 = vshrl.u32 2131351028, %v2889
        %v2896 = vor.u32 %v2894, %v2895
        %v2897 = vshll.u32 2131351028, %v2888
        %v2898 = vshrl.u32 2102212464, %v2889
        %v2899 = vor.u32 %v2897, %v2898
        %v2900 = vshll.u32 2102212464, %v2888
        %v2901 = vshrl.u32 920167782, %v2889
        %v2902 = vor.u32 %v2900, %v2901
        %v2903 = vshll.u32 920167782, %v2888
        %v2904 = vshrl.u32 1326507024, %v2889
        %v2905 = vor.u32 %v2903, %v2904
        %vm2906 = vcmp.lt.s32.totalorder %v2887, 1
        %vm2907 = vcmp.lt.s32.totalorder %v2887, 2
        %vm2908 = vcmp.lt.s32.totalorder %v2887, 3
        %vm2909 = vcmp.lt.s32.totalorder %v2887, 4
        %v2910 = vsel %vm2906, %v2890, %v2893
        %v2911 = vsel %vm2909, %v2899, 2102212464
        %v2912 = vsel %vm2908, %v2896, %v2911
        %v2913 = vsel %vm2907, %v2910, %v2912
        %v2914 = vsel %vm2906, %v2893, %v2896
        %v2915 = vsel %vm2909, %v2902, 920167782
        %v2916 = vsel %vm2908, %v2899, %v2915
        %v2917 = vsel %vm2907, %v2914, %v2916
        %v2918 = vsel %vm2906, %v2896, %v2899
        %v2919 = vsel %vm2909, %v2905, 1326507024
        %v2920 = vsel %vm2908, %v2902, %v2919
        %v2921 = vsel %vm2907, %v2918, %v2920
        %v2922 = vshll.u32 %v2882, 8
        %v2923 = vmul.u32.u64.compose %v2922, %v2921
        %v2924 = vextract.low.u32 %v2923
        %v2925 = vextract.high.u32 %v2923
        %v2926 = vmul.u32.u64.compose %v2922, %v2917
        %v2927 = vextract.low.u32 %v2926
        %v2928 = vextract.high.u32 %v2926
        %v2929 = vmul.u32 %v2922, %v2913
        %v2930 = vadd.s32 %v2925, %v2927
        %vm2931 = vc.u32 %v2925, %v2927
        %v2932 = vadd.s32 %v2928, 1
        %v2933 = vsel %vm2931, %v2932, %v2928
        %v2934 = vadd.s32 %v2929, %v2933
        %v2935 = vadd.s32 %v2934, 536870912
        %v2936 = vshrl.u32 %v2935, 30
        %v2937 = vshll.u32 %v2936, 30
        %v2938 = vsub.s32 %v2934, %v2937
        %vm2939 = vcmp.lt.s32.totalorder %v2938, 0
        %v2940 = vsub.s32 0, %v2938
        %v2941 = vsel %vm2939, %v2940, %v2938
        %v2942 = vclz %v2941
        %v2943 = vsub.s32 %v2942, 2
        %vm2944 = vcmp.gt.s32.totalorder 0, %v2943
        %v2945 = vsel %vm2944, 0, %v2943
        %v2946 = vsub.s32 32, %v2945
        %v2947 = vshll.u32 %v2938, %v2945
        %v2948 = vshrl.u32 %v2930, %v2946
        %v2949 = vor.u32 %v2947, %v2948
        %v2950 = vsub.s32 4294967266, %v2945
        %v2951 = vadd.s32 %v2950, 127
        %v2952 = vshll.u32 %v2951, 23
        %v2953 = vor.u32 4788187, %v2952
        %v2954 = vand.u32 2147483647, %v2953
        %v2956 = vcvt.s32.f32 %v2949
        %v2957 = vmul.f32 %v2956, %v2954
        %v2958 = vxor.u32 %v2957, 2147483648
        %v2959 = vsel %vm2876, %v2958, %v2957
        %v2960 = vsub.s32 4, %v2936
        %v2961 = vsel %vm2876, %v2960, %v2936
        %v2962 = vsel %vm2875, %v648, %v2959
        %v2963 = vsel %vm2875, 0, %v2961
        %v2964 = vcosq.f32.pop %v2962
        %v2965 = vsinq.f32.pop %v2962
        %vm2966 = vweird.f32 %v648
        %v2967 = vadd.s32 %v2963, 3
        %v2968 = vand.u32 %v2967, 3
        %vm2969 = vcmp.lt.s32.totalorder %v2968, 2
        %vm2970 = vcmp.eq.s32.totalorder %v2968, 0
        %v2971 = vxor.u32 %v2965, 2147483648
        %v2972 = vsel %vm2970, %v2964, %v2971
        %vm2973 = vcmp.eq.s32.totalorder %v2968, 2
        %v2974 = vxor.u32 %v2964, 2147483648
        %v2975 = vsel %vm2973, %v2974, %v2965
        %v2976 = vsel %vm2969, %v2972, %v2975
        %v2977 = vsel %vm2966, nan, %v2976
        %v2978 = vand.u32 2147483647, %v649
        %vm2979 = vcmp.le.f32.partialorder %v2978, 0.7853982
        %vm2980 = vcmp.lt.s32.totalorder %v649, 0
        %v2981 = vand.u32 %v649, 2139095040
        %v2982 = vshrl.u32 %v2981, 23
        %v2983 = vsub.s32 %v2982, 127
        %v2984 = vand.u32 2147483647, %v649
        %v2985 = vand.u32 %v2984, 8388607
        %v2986 = vor.u32 %v2985, 8388608
        %v2987 = vsub.s32 0, %v2986
        %v2988 = vadd.s32 %v2983, 1
        %vm2989 = vcmp.gt.s32.totalorder %v2988, 0
        %v2990 = vsel %vm2989, %v2988, 0
        %v2991 = vshrl.u32 %v2990, 5
        %v2992 = vand.u32 %v2990, 31
        %v2993 = vsub.s32 32, %v2992
        %v2994 = vshrl.u32 683565275, %v2993
        %v2995 = vshll.u32 683565275, %v2992
        %v2996 = vshrl.u32 2475754826, %v2993
        %v2997 = vor.u32 %v2995, %v2996
        %v2998 = vshll.u32 2475754826, %v2992
        %v2999 = vshrl.u32 2131351028, %v2993
        %v3000 = vor.u32 %v2998, %v2999
        %v3001 = vshll.u32 2131351028, %v2992
        %v3002 = vshrl.u32 2102212464, %v2993
        %v3003 = vor.u32 %v3001, %v3002
        %v3004 = vshll.u32 2102212464, %v2992
        %v3005 = vshrl.u32 920167782, %v2993
        %v3006 = vor.u32 %v3004, %v3005
        %v3007 = vshll.u32 920167782, %v2992
        %v3008 = vshrl.u32 1326507024, %v2993
        %v3009 = vor.u32 %v3007, %v3008
        %vm3010 = vcmp.lt.s32.totalorder %v2991, 1
        %vm3011 = vcmp.lt.s32.totalorder %v2991, 2
        %vm3012 = vcmp.lt.s32.totalorder %v2991, 3
        %vm3013 = vcmp.lt.s32.totalorder %v2991, 4
        %v3014 = vsel %vm3010, %v2994, %v2997
        %v3015 = vsel %vm3013, %v3003, 2102212464
        %v3016 = vsel %vm3012, %v3000, %v3015
        %v3017 = vsel %vm3011, %v3014, %v3016
        %v3018 = vsel %vm3010, %v2997, %v3000
        %v3019 = vsel %vm3013, %v3006, 920167782
        %v3020 = vsel %vm3012, %v3003, %v3019
        %v3021 = vsel %vm3011, %v3018, %v3020
        %v3022 = vsel %vm3010, %v3000, %v3003
        %v3023 = vsel %vm3013, %v3009, 1326507024
        %v3024 = vsel %vm3012, %v3006, %v3023
        %v3025 = vsel %vm3011, %v3022, %v3024
        %v3026 = vshll.u32 %v2986, 8
        %v3027 = vmul.u32.u64.compose %v3026, %v3025
        %v3028 = vextract.low.u32 %v3027
        %v3029 = vextract.high.u32 %v3027
        %v3030 = vmul.u32.u64.compose %v3026, %v3021
        %v3031 = vextract.low.u32 %v3030
        %v3032 = vextract.high.u32 %v3030
        %v3033 = vmul.u32 %v3026, %v3017
        %v3034 = vadd.s32 %v3029, %v3031
        %vm3035 = vc.u32 %v3029, %v3031
        %v3036 = vadd.s32 %v3032, 1
        %v3037 = vsel %vm3035, %v3036, %v3032
        %v3038 = vadd.s32 %v3033, %v3037
        %v3039 = vadd.s32 %v3038, 536870912
        %v3040 = vshrl.u32 %v3039, 30
        %v3041 = vshll.u32 %v3040, 30
        %v3042 = vsub.s32 %v3038, %v3041
        %vm3043 = vcmp.lt.s32.totalorder %v3042, 0
        %v3044 = vsub.s32 0, %v3042
        %v3045 = vsel %vm3043, %v3044, %v3042
        %v3046 = vclz %v3045
        %v3047 = vsub.s32 %v3046, 2
        %vm3048 = vcmp.gt.s32.totalorder 0, %v3047
        %v3049 = vsel %vm3048, 0, %v3047
        %v3050 = vsub.s32 32, %v3049
        %v3051 = vshll.u32 %v3042, %v3049
        %v3052 = vshrl.u32 %v3034, %v3050
        %v3053 = vor.u32 %v3051, %v3052
        %v3054 = vsub.s32 4294967266, %v3049
        %v3055 = vadd.s32 %v3054, 127
        %v3056 = vshll.u32 %v3055, 23
        %v3057 = vor.u32 4788187, %v3056
        %v3058 = vand.u32 2147483647, %v3057
        %v3060 = vcvt.s32.f32 %v3053
        %v3061 = vmul.f32 %v3060, %v3058
        %v3062 = vxor.u32 %v3061, 2147483648
        %v3063 = vsel %vm2980, %v3062, %v3061
        %v3064 = vsub.s32 4, %v3040
        %v3065 = vsel %vm2980, %v3064, %v3040
        %v3066 = vsel %vm2979, %v649, %v3063
        %v3067 = vsel %vm2979, 0, %v3065
        %v3068 = vcosq.f32.pop %v3066
        %v3069 = vsinq.f32.pop %v3066
        %vm3070 = vweird.f32 %v649
        %v3071 = vadd.s32 %v3067, 3
        %v3072 = vand.u32 %v3071, 3
        %vm3073 = vcmp.lt.s32.totalorder %v3072, 2
        %vm3074 = vcmp.eq.s32.totalorder %v3072, 0
        %v3075 = vxor.u32 %v3069, 2147483648
        %v3076 = vsel %vm3074, %v3068, %v3075
        %vm3077 = vcmp.eq.s32.totalorder %v3072, 2
        %v3078 = vxor.u32 %v3068, 2147483648
        %v3079 = vsel %vm3077, %v3078, %v3069
        %v3080 = vsel %vm3073, %v3076, %v3079
        %v3081 = vsel %vm3070, nan, %v3080
        %v3082 = vand.u32 2147483647, %v650
        %vm3083 = vcmp.le.f32.partialorder %v3082, 0.7853982
        %vm3084 = vcmp.lt.s32.totalorder %v650, 0
        %v3085 = vand.u32 %v650, 2139095040
        %v3086 = vshrl.u32 %v3085, 23
        %v3087 = vsub.s32 %v3086, 127
        %v3088 = vand.u32 2147483647, %v650
        %v3089 = vand.u32 %v3088, 8388607
        %v3090 = vor.u32 %v3089, 8388608
        %v3091 = vsub.s32 0, %v3090
        %v3092 = vadd.s32 %v3087, 1
        %vm3093 = vcmp.gt.s32.totalorder %v3092, 0
        %v3094 = vsel %vm3093, %v3092, 0
        %v3095 = vshrl.u32 %v3094, 5
        %v3096 = vand.u32 %v3094, 31
        %v3097 = vsub.s32 32, %v3096
        %v3098 = vshrl.u32 683565275, %v3097
        %v3099 = vshll.u32 683565275, %v3096
        %v3100 = vshrl.u32 2475754826, %v3097
        %v3101 = vor.u32 %v3099, %v3100
        %v3102 = vshll.u32 2475754826, %v3096
        %v3103 = vshrl.u32 2131351028, %v3097
        %v3104 = vor.u32 %v3102, %v3103
        %v3105 = vshll.u32 2131351028, %v3096
        %v3106 = vshrl.u32 2102212464, %v3097
        %v3107 = vor.u32 %v3105, %v3106
        %v3108 = vshll.u32 2102212464, %v3096
        %v3109 = vshrl.u32 920167782, %v3097
        %v3110 = vor.u32 %v3108, %v3109
        %v3111 = vshll.u32 920167782, %v3096
        %v3112 = vshrl.u32 1326507024, %v3097
        %v3113 = vor.u32 %v3111, %v3112
        %vm3114 = vcmp.lt.s32.totalorder %v3095, 1
        %vm3115 = vcmp.lt.s32.totalorder %v3095, 2
        %vm3116 = vcmp.lt.s32.totalorder %v3095, 3
        %vm3117 = vcmp.lt.s32.totalorder %v3095, 4
        %v3118 = vsel %vm3114, %v3098, %v3101
        %v3119 = vsel %vm3117, %v3107, 2102212464
        %v3120 = vsel %vm3116, %v3104, %v3119
        %v3121 = vsel %vm3115, %v3118, %v3120
        %v3122 = vsel %vm3114, %v3101, %v3104
        %v3123 = vsel %vm3117, %v3110, 920167782
        %v3124 = vsel %vm3116, %v3107, %v3123
        %v3125 = vsel %vm3115, %v3122, %v3124
        %v3126 = vsel %vm3114, %v3104, %v3107
        %v3127 = vsel %vm3117, %v3113, 1326507024
        %v3128 = vsel %vm3116, %v3110, %v3127
        %v3129 = vsel %vm3115, %v3126, %v3128
        %v3130 = vshll.u32 %v3090, 8
        %v3131 = vmul.u32.u64.compose %v3130, %v3129
        %v3132 = vextract.low.u32 %v3131
        %v3133 = vextract.high.u32 %v3131
        %v3134 = vmul.u32.u64.compose %v3130, %v3125
        %v3135 = vextract.low.u32 %v3134
        %v3136 = vextract.high.u32 %v3134
        %v3137 = vmul.u32 %v3130, %v3121
        %v3138 = vadd.s32 %v3133, %v3135
        %vm3139 = vc.u32 %v3133, %v3135
        %v3140 = vadd.s32 %v3136, 1
        %v3141 = vsel %vm3139, %v3140, %v3136
        %v3142 = vadd.s32 %v3137, %v3141
        %v3143 = vadd.s32 %v3142, 536870912
        %v3144 = vshrl.u32 %v3143, 30
        %v3145 = vshll.u32 %v3144, 30
        %v3146 = vsub.s32 %v3142, %v3145
        %vm3147 = vcmp.lt.s32.totalorder %v3146, 0
        %v3148 = vsub.s32 0, %v3146
        %v3149 = vsel %vm3147, %v3148, %v3146
        %v3150 = vclz %v3149
        %v3151 = vsub.s32 %v3150, 2
        %vm3152 = vcmp.gt.s32.totalorder 0, %v3151
        %v3153 = vsel %vm3152, 0, %v3151
        %v3154 = vsub.s32 32, %v3153
        %v3155 = vshll.u32 %v3146, %v3153
        %v3156 = vshrl.u32 %v3138, %v3154
        %v3157 = vor.u32 %v3155, %v3156
        %v3158 = vsub.s32 4294967266, %v3153
        %v3159 = vadd.s32 %v3158, 127
        %v3160 = vshll.u32 %v3159, 23
        %v3161 = vor.u32 4788187, %v3160
        %v3162 = vand.u32 2147483647, %v3161
        %v3164 = vcvt.s32.f32 %v3157
        %v3165 = vmul.f32 %v3164, %v3162
        %v3166 = vxor.u32 %v3165, 2147483648
        %v3167 = vsel %vm3084, %v3166, %v3165
        %v3168 = vsub.s32 4, %v3144
        %v3169 = vsel %vm3084, %v3168, %v3144
        %v3170 = vsel %vm3083, %v650, %v3167
        %v3171 = vsel %vm3083, 0, %v3169
        %v3172 = vcosq.f32.pop %v3170
        %v3173 = vsinq.f32.pop %v3170
        %vm3174 = vweird.f32 %v650
        %v3175 = vadd.s32 %v3171, 3
        %v3176 = vand.u32 %v3175, 3
        %vm3177 = vcmp.lt.s32.totalorder %v3176, 2
        %vm3178 = vcmp.eq.s32.totalorder %v3176, 0
        %v3179 = vxor.u32 %v3173, 2147483648
        %v3180 = vsel %vm3178, %v3172, %v3179
        %vm3181 = vcmp.eq.s32.totalorder %v3176, 2
        %v3182 = vxor.u32 %v3172, 2147483648
        %v3183 = vsel %vm3181, %v3182, %v3173
        %v3184 = vsel %vm3177, %v3180, %v3183
        %v3185 = vsel %vm3174, nan, %v3184
        %v3186 = vand.u32 2147483647, %v651
        %vm3187 = vcmp.le.f32.partialorder %v3186, 0.7853982
        %vm3188 = vcmp.lt.s32.totalorder %v651, 0
        %v3189 = vand.u32 %v651, 2139095040
        %v3190 = vshrl.u32 %v3189, 23
        %v3191 = vsub.s32 %v3190, 127
        %v3192 = vand.u32 2147483647, %v651
        %v3193 = vand.u32 %v3192, 8388607
        %v3194 = vor.u32 %v3193, 8388608
        %v3195 = vsub.s32 0, %v3194
        %v3196 = vadd.s32 %v3191, 1
        %vm3197 = vcmp.gt.s32.totalorder %v3196, 0
        %v3198 = vsel %vm3197, %v3196, 0
        %v3199 = vshrl.u32 %v3198, 5
        %v3200 = vand.u32 %v3198, 31
        %v3201 = vsub.s32 32, %v3200
        %v3202 = vshrl.u32 683565275, %v3201
        %v3203 = vshll.u32 683565275, %v3200
        %v3204 = vshrl.u32 2475754826, %v3201
        %v3205 = vor.u32 %v3203, %v3204
        %v3206 = vshll.u32 2475754826, %v3200
        %v3207 = vshrl.u32 2131351028, %v3201
        %v3208 = vor.u32 %v3206, %v3207
        %v3209 = vshll.u32 2131351028, %v3200
        %v3210 = vshrl.u32 2102212464, %v3201
        %v3211 = vor.u32 %v3209, %v3210
        %v3212 = vshll.u32 2102212464, %v3200
        %v3213 = vshrl.u32 920167782, %v3201
        %v3214 = vor.u32 %v3212, %v3213
        %v3215 = vshll.u32 920167782, %v3200
        %v3216 = vshrl.u32 1326507024, %v3201
        %v3217 = vor.u32 %v3215, %v3216
        %vm3218 = vcmp.lt.s32.totalorder %v3199, 1
        %vm3219 = vcmp.lt.s32.totalorder %v3199, 2
        %vm3220 = vcmp.lt.s32.totalorder %v3199, 3
        %vm3221 = vcmp.lt.s32.totalorder %v3199, 4
        %v3222 = vsel %vm3218, %v3202, %v3205
        %v3223 = vsel %vm3221, %v3211, 2102212464
        %v3224 = vsel %vm3220, %v3208, %v3223
        %v3225 = vsel %vm3219, %v3222, %v3224
        %v3226 = vsel %vm3218, %v3205, %v3208
        %v3227 = vsel %vm3221, %v3214, 920167782
        %v3228 = vsel %vm3220, %v3211, %v3227
        %v3229 = vsel %vm3219, %v3226, %v3228
        %v3230 = vsel %vm3218, %v3208, %v3211
        %v3231 = vsel %vm3221, %v3217, 1326507024
        %v3232 = vsel %vm3220, %v3214, %v3231
        %v3233 = vsel %vm3219, %v3230, %v3232
        %v3234 = vshll.u32 %v3194, 8
        %v3235 = vmul.u32.u64.compose %v3234, %v3233
        %v3236 = vextract.low.u32 %v3235
        %v3237 = vextract.high.u32 %v3235
        %v3238 = vmul.u32.u64.compose %v3234, %v3229
        %v3239 = vextract.low.u32 %v3238
        %v3240 = vextract.high.u32 %v3238
        %v3241 = vmul.u32 %v3234, %v3225
        %v3242 = vadd.s32 %v3237, %v3239
        %vm3243 = vc.u32 %v3237, %v3239
        %v3244 = vadd.s32 %v3240, 1
        %v3245 = vsel %vm3243, %v3244, %v3240
        %v3246 = vadd.s32 %v3241, %v3245
        %v3247 = vadd.s32 %v3246, 536870912
        %v3248 = vshrl.u32 %v3247, 30
        %v3249 = vshll.u32 %v3248, 30
        %v3250 = vsub.s32 %v3246, %v3249
        %vm3251 = vcmp.lt.s32.totalorder %v3250, 0
        %v3252 = vsub.s32 0, %v3250
        %v3253 = vsel %vm3251, %v3252, %v3250
        %v3254 = vclz %v3253
        %v3255 = vsub.s32 %v3254, 2
        %vm3256 = vcmp.gt.s32.totalorder 0, %v3255
        %v3257 = vsel %vm3256, 0, %v3255
        %v3258 = vsub.s32 32, %v3257
        %v3259 = vshll.u32 %v3250, %v3257
        %v3260 = vshrl.u32 %v3242, %v3258
        %v3261 = vor.u32 %v3259, %v3260
        %v3262 = vsub.s32 4294967266, %v3257
        %v3263 = vadd.s32 %v3262, 127
        %v3264 = vshll.u32 %v3263, 23
        %v3265 = vor.u32 4788187, %v3264
        %v3266 = vand.u32 2147483647, %v3265
        %v3268 = vcvt.s32.f32 %v3261
        %v3269 = vmul.f32 %v3268, %v3266
        %v3270 = vxor.u32 %v3269, 2147483648
        %v3271 = vsel %vm3188, %v3270, %v3269
        %v3272 = vsub.s32 4, %v3248
        %v3273 = vsel %vm3188, %v3272, %v3248
        %v3274 = vsel %vm3187, %v651, %v3271
        %v3275 = vsel %vm3187, 0, %v3273
        %v3276 = vcosq.f32.pop %v3274
        %v3277 = vsinq.f32.pop %v3274
        %vm3278 = vweird.f32 %v651
        %v3279 = vadd.s32 %v3275, 3
        %v3280 = vand.u32 %v3279, 3
        %vm3281 = vcmp.lt.s32.totalorder %v3280, 2
        %vm3282 = vcmp.eq.s32.totalorder %v3280, 0
        %v3283 = vxor.u32 %v3277, 2147483648
        %v3284 = vsel %vm3282, %v3276, %v3283
        %vm3285 = vcmp.eq.s32.totalorder %v3280, 2
        %v3286 = vxor.u32 %v3276, 2147483648
        %v3287 = vsel %vm3285, %v3286, %v3277
        %v3288 = vsel %vm3281, %v3284, %v3287
        %v3289 = vsel %vm3278, nan, %v3288
        %v3290 = vand.u32 2147483647, %v652
        %vm3291 = vcmp.le.f32.partialorder %v3290, 0.7853982
        %vm3292 = vcmp.lt.s32.totalorder %v652, 0
        %v3293 = vand.u32 %v652, 2139095040
        %v3294 = vshrl.u32 %v3293, 23
        %v3295 = vsub.s32 %v3294, 127
        %v3296 = vand.u32 2147483647, %v652
        %v3297 = vand.u32 %v3296, 8388607
        %v3298 = vor.u32 %v3297, 8388608
        %v3299 = vsub.s32 0, %v3298
        %v3300 = vadd.s32 %v3295, 1
        %vm3301 = vcmp.gt.s32.totalorder %v3300, 0
        %v3302 = vsel %vm3301, %v3300, 0
        %v3303 = vshrl.u32 %v3302, 5
        %v3304 = vand.u32 %v3302, 31
        %v3305 = vsub.s32 32, %v3304
        %v3306 = vshrl.u32 683565275, %v3305
        %v3307 = vshll.u32 683565275, %v3304
        %v3308 = vshrl.u32 2475754826, %v3305
        %v3309 = vor.u32 %v3307, %v3308
        %v3310 = vshll.u32 2475754826, %v3304
        %v3311 = vshrl.u32 2131351028, %v3305
        %v3312 = vor.u32 %v3310, %v3311
        %v3313 = vshll.u32 2131351028, %v3304
        %v3314 = vshrl.u32 2102212464, %v3305
        %v3315 = vor.u32 %v3313, %v3314
        %v3316 = vshll.u32 2102212464, %v3304
        %v3317 = vshrl.u32 920167782, %v3305
        %v3318 = vor.u32 %v3316, %v3317
        %v3319 = vshll.u32 920167782, %v3304
        %v3320 = vshrl.u32 1326507024, %v3305
        %v3321 = vor.u32 %v3319, %v3320
        %vm3322 = vcmp.lt.s32.totalorder %v3303, 1
        %vm3323 = vcmp.lt.s32.totalorder %v3303, 2
        %vm3324 = vcmp.lt.s32.totalorder %v3303, 3
        %vm3325 = vcmp.lt.s32.totalorder %v3303, 4
        %v3326 = vsel %vm3322, %v3306, %v3309
        %v3327 = vsel %vm3325, %v3315, 2102212464
        %v3328 = vsel %vm3324, %v3312, %v3327
        %v3329 = vsel %vm3323, %v3326, %v3328
        %v3330 = vsel %vm3322, %v3309, %v3312
        %v3331 = vsel %vm3325, %v3318, 920167782
        %v3332 = vsel %vm3324, %v3315, %v3331
        %v3333 = vsel %vm3323, %v3330, %v3332
        %v3334 = vsel %vm3322, %v3312, %v3315
        %v3335 = vsel %vm3325, %v3321, 1326507024
        %v3336 = vsel %vm3324, %v3318, %v3335
        %v3337 = vsel %vm3323, %v3334, %v3336
        %v3338 = vshll.u32 %v3298, 8
        %v3339 = vmul.u32.u64.compose %v3338, %v3337
        %v3340 = vextract.low.u32 %v3339
        %v3341 = vextract.high.u32 %v3339
        %v3342 = vmul.u32.u64.compose %v3338, %v3333
        %v3343 = vextract.low.u32 %v3342
        %v3344 = vextract.high.u32 %v3342
        %v3345 = vmul.u32 %v3338, %v3329
        %v3346 = vadd.s32 %v3341, %v3343
        %vm3347 = vc.u32 %v3341, %v3343
        %v3348 = vadd.s32 %v3344, 1
        %v3349 = vsel %vm3347, %v3348, %v3344
        %v3350 = vadd.s32 %v3345, %v3349
        %v3351 = vadd.s32 %v3350, 536870912
        %v3352 = vshrl.u32 %v3351, 30
        %v3353 = vshll.u32 %v3352, 30
        %v3354 = vsub.s32 %v3350, %v3353
        %vm3355 = vcmp.lt.s32.totalorder %v3354, 0
        %v3356 = vsub.s32 0, %v3354
        %v3357 = vsel %vm3355, %v3356, %v3354
        %v3358 = vclz %v3357
        %v3359 = vsub.s32 %v3358, 2
        %vm3360 = vcmp.gt.s32.totalorder 0, %v3359
        %v3361 = vsel %vm3360, 0, %v3359
        %v3362 = vsub.s32 32, %v3361
        %v3363 = vshll.u32 %v3354, %v3361
        %v3364 = vshrl.u32 %v3346, %v3362
        %v3365 = vor.u32 %v3363, %v3364
        %v3366 = vsub.s32 4294967266, %v3361
        %v3367 = vadd.s32 %v3366, 127
        %v3368 = vshll.u32 %v3367, 23
        %v3369 = vor.u32 4788187, %v3368
        %v3370 = vand.u32 2147483647, %v3369
        %v3372 = vcvt.s32.f32 %v3365
        %v3373 = vmul.f32 %v3372, %v3370
        %v3374 = vxor.u32 %v3373, 2147483648
        %v3375 = vsel %vm3292, %v3374, %v3373
        %v3376 = vsub.s32 4, %v3352
        %v3377 = vsel %vm3292, %v3376, %v3352
        %v3378 = vsel %vm3291, %v652, %v3375
        %v3379 = vsel %vm3291, 0, %v3377
        %v3380 = vcosq.f32.pop %v3378
        %v3381 = vsinq.f32.pop %v3378
        %vm3382 = vweird.f32 %v652
        %v3383 = vadd.s32 %v3379, 3
        %v3384 = vand.u32 %v3383, 3
        %vm3385 = vcmp.lt.s32.totalorder %v3384, 2
        %vm3386 = vcmp.eq.s32.totalorder %v3384, 0
        %v3387 = vxor.u32 %v3381, 2147483648
        %v3388 = vsel %vm3386, %v3380, %v3387
        %vm3389 = vcmp.eq.s32.totalorder %v3384, 2
        %v3390 = vxor.u32 %v3380, 2147483648
        %v3391 = vsel %vm3389, %v3390, %v3381
        %v3392 = vsel %vm3385, %v3388, %v3391
        %v3393 = vsel %vm3382, nan, %v3392
        %v3394 = vand.u32 2147483647, %v653
        %vm3395 = vcmp.le.f32.partialorder %v3394, 0.7853982
        %vm3396 = vcmp.lt.s32.totalorder %v653, 0
        %v3397 = vand.u32 %v653, 2139095040
        %v3398 = vshrl.u32 %v3397, 23
        %v3399 = vsub.s32 %v3398, 127
        %v3400 = vand.u32 2147483647, %v653
        %v3401 = vand.u32 %v3400, 8388607
        %v3402 = vor.u32 %v3401, 8388608
        %v3403 = vsub.s32 0, %v3402
        %v3404 = vadd.s32 %v3399, 1
        %vm3405 = vcmp.gt.s32.totalorder %v3404, 0
        %v3406 = vsel %vm3405, %v3404, 0
        %v3407 = vshrl.u32 %v3406, 5
        %v3408 = vand.u32 %v3406, 31
        %v3409 = vsub.s32 32, %v3408
        %v3410 = vshrl.u32 683565275, %v3409
        %v3411 = vshll.u32 683565275, %v3408
        %v3412 = vshrl.u32 2475754826, %v3409
        %v3413 = vor.u32 %v3411, %v3412
        %v3414 = vshll.u32 2475754826, %v3408
        %v3415 = vshrl.u32 2131351028, %v3409
        %v3416 = vor.u32 %v3414, %v3415
        %v3417 = vshll.u32 2131351028, %v3408
        %v3418 = vshrl.u32 2102212464, %v3409
        %v3419 = vor.u32 %v3417, %v3418
        %v3420 = vshll.u32 2102212464, %v3408
        %v3421 = vshrl.u32 920167782, %v3409
        %v3422 = vor.u32 %v3420, %v3421
        %v3423 = vshll.u32 920167782, %v3408
        %v3424 = vshrl.u32 1326507024, %v3409
        %v3425 = vor.u32 %v3423, %v3424
        %vm3426 = vcmp.lt.s32.totalorder %v3407, 1
        %vm3427 = vcmp.lt.s32.totalorder %v3407, 2
        %vm3428 = vcmp.lt.s32.totalorder %v3407, 3
        %vm3429 = vcmp.lt.s32.totalorder %v3407, 4
        %v3430 = vsel %vm3426, %v3410, %v3413
        %v3431 = vsel %vm3429, %v3419, 2102212464
        %v3432 = vsel %vm3428, %v3416, %v3431
        %v3433 = vsel %vm3427, %v3430, %v3432
        %v3434 = vsel %vm3426, %v3413, %v3416
        %v3435 = vsel %vm3429, %v3422, 920167782
        %v3436 = vsel %vm3428, %v3419, %v3435
        %v3437 = vsel %vm3427, %v3434, %v3436
        %v3438 = vsel %vm3426, %v3416, %v3419
        %v3439 = vsel %vm3429, %v3425, 1326507024
        %v3440 = vsel %vm3428, %v3422, %v3439
        %v3441 = vsel %vm3427, %v3438, %v3440
        %v3442 = vshll.u32 %v3402, 8
        %v3443 = vmul.u32.u64.compose %v3442, %v3441
        %v3444 = vextract.low.u32 %v3443
        %v3445 = vextract.high.u32 %v3443
        %v3446 = vmul.u32.u64.compose %v3442, %v3437
        %v3447 = vextract.low.u32 %v3446
        %v3448 = vextract.high.u32 %v3446
        %v3449 = vmul.u32 %v3442, %v3433
        %v3450 = vadd.s32 %v3445, %v3447
        %vm3451 = vc.u32 %v3445, %v3447
        %v3452 = vadd.s32 %v3448, 1
        %v3453 = vsel %vm3451, %v3452, %v3448
        %v3454 = vadd.s32 %v3449, %v3453
        %v3455 = vadd.s32 %v3454, 536870912
        %v3456 = vshrl.u32 %v3455, 30
        %v3457 = vshll.u32 %v3456, 30
        %v3458 = vsub.s32 %v3454, %v3457
        %vm3459 = vcmp.lt.s32.totalorder %v3458, 0
        %v3460 = vsub.s32 0, %v3458
        %v3461 = vsel %vm3459, %v3460, %v3458
        %v3462 = vclz %v3461
        %v3463 = vsub.s32 %v3462, 2
        %vm3464 = vcmp.gt.s32.totalorder 0, %v3463
        %v3465 = vsel %vm3464, 0, %v3463
        %v3466 = vsub.s32 32, %v3465
        %v3467 = vshll.u32 %v3458, %v3465
        %v3468 = vshrl.u32 %v3450, %v3466
        %v3469 = vor.u32 %v3467, %v3468
        %v3470 = vsub.s32 4294967266, %v3465
        %v3471 = vadd.s32 %v3470, 127
        %v3472 = vshll.u32 %v3471, 23
        %v3473 = vor.u32 4788187, %v3472
        %v3474 = vand.u32 2147483647, %v3473
        %v3476 = vcvt.s32.f32 %v3469
        %v3477 = vmul.f32 %v3476, %v3474
        %v3478 = vxor.u32 %v3477, 2147483648
        %v3479 = vsel %vm3396, %v3478, %v3477
        %v3480 = vsub.s32 4, %v3456
        %v3481 = vsel %vm3396, %v3480, %v3456
        %v3482 = vsel %vm3395, %v653, %v3479
        %v3483 = vsel %vm3395, 0, %v3481
        %v3484 = vcosq.f32.pop %v3482
        %v3485 = vsinq.f32.pop %v3482
        %vm3486 = vweird.f32 %v653
        %v3487 = vadd.s32 %v3483, 3
        %v3488 = vand.u32 %v3487, 3
        %vm3489 = vcmp.lt.s32.totalorder %v3488, 2
        %vm3490 = vcmp.eq.s32.totalorder %v3488, 0
        %v3491 = vxor.u32 %v3485, 2147483648
        %v3492 = vsel %vm3490, %v3484, %v3491
        %vm3493 = vcmp.eq.s32.totalorder %v3488, 2
        %v3494 = vxor.u32 %v3484, 2147483648
        %v3495 = vsel %vm3493, %v3494, %v3485
        %v3496 = vsel %vm3489, %v3492, %v3495
        %v3497 = vsel %vm3486, nan, %v3496
        %v3498 = vand.u32 2147483647, %v654
        %vm3499 = vcmp.le.f32.partialorder %v3498, 0.7853982
        %vm3500 = vcmp.lt.s32.totalorder %v654, 0
        %v3501 = vand.u32 %v654, 2139095040
        %v3502 = vshrl.u32 %v3501, 23
        %v3503 = vsub.s32 %v3502, 127
        %v3504 = vand.u32 2147483647, %v654
        %v3505 = vand.u32 %v3504, 8388607
        %v3506 = vor.u32 %v3505, 8388608
        %v3507 = vsub.s32 0, %v3506
        %v3508 = vadd.s32 %v3503, 1
        %vm3509 = vcmp.gt.s32.totalorder %v3508, 0
        %v3510 = vsel %vm3509, %v3508, 0
        %v3511 = vshrl.u32 %v3510, 5
        %v3512 = vand.u32 %v3510, 31
        %v3513 = vsub.s32 32, %v3512
        %v3514 = vshrl.u32 683565275, %v3513
        %v3515 = vshll.u32 683565275, %v3512
        %v3516 = vshrl.u32 2475754826, %v3513
        %v3517 = vor.u32 %v3515, %v3516
        %v3518 = vshll.u32 2475754826, %v3512
        %v3519 = vshrl.u32 2131351028, %v3513
        %v3520 = vor.u32 %v3518, %v3519
        %v3521 = vshll.u32 2131351028, %v3512
        %v3522 = vshrl.u32 2102212464, %v3513
        %v3523 = vor.u32 %v3521, %v3522
        %v3524 = vshll.u32 2102212464, %v3512
        %v3525 = vshrl.u32 920167782, %v3513
        %v3526 = vor.u32 %v3524, %v3525
        %v3527 = vshll.u32 920167782, %v3512
        %v3528 = vshrl.u32 1326507024, %v3513
        %v3529 = vor.u32 %v3527, %v3528
        %vm3530 = vcmp.lt.s32.totalorder %v3511, 1
        %vm3531 = vcmp.lt.s32.totalorder %v3511, 2
        %vm3532 = vcmp.lt.s32.totalorder %v3511, 3
        %vm3533 = vcmp.lt.s32.totalorder %v3511, 4
        %v3534 = vsel %vm3530, %v3514, %v3517
        %v3535 = vsel %vm3533, %v3523, 2102212464
        %v3536 = vsel %vm3532, %v3520, %v3535
        %v3537 = vsel %vm3531, %v3534, %v3536
        %v3538 = vsel %vm3530, %v3517, %v3520
        %v3539 = vsel %vm3533, %v3526, 920167782
        %v3540 = vsel %vm3532, %v3523, %v3539
        %v3541 = vsel %vm3531, %v3538, %v3540
        %v3542 = vsel %vm3530, %v3520, %v3523
        %v3543 = vsel %vm3533, %v3529, 1326507024
        %v3544 = vsel %vm3532, %v3526, %v3543
        %v3545 = vsel %vm3531, %v3542, %v3544
        %v3546 = vshll.u32 %v3506, 8
        %v3547 = vmul.u32.u64.compose %v3546, %v3545
        %v3548 = vextract.low.u32 %v3547
        %v3549 = vextract.high.u32 %v3547
        %v3550 = vmul.u32.u64.compose %v3546, %v3541
        %v3551 = vextract.low.u32 %v3550
        %v3552 = vextract.high.u32 %v3550
        %v3553 = vmul.u32 %v3546, %v3537
        %v3554 = vadd.s32 %v3549, %v3551
        %vm3555 = vc.u32 %v3549, %v3551
        %v3556 = vadd.s32 %v3552, 1
        %v3557 = vsel %vm3555, %v3556, %v3552
        %v3558 = vadd.s32 %v3553, %v3557
        %v3559 = vadd.s32 %v3558, 536870912
        %v3560 = vshrl.u32 %v3559, 30
        %v3561 = vshll.u32 %v3560, 30
        %v3562 = vsub.s32 %v3558, %v3561
        %vm3563 = vcmp.lt.s32.totalorder %v3562, 0
        %v3564 = vsub.s32 0, %v3562
        %v3565 = vsel %vm3563, %v3564, %v3562
        %v3566 = vclz %v3565
        %v3567 = vsub.s32 %v3566, 2
        %vm3568 = vcmp.gt.s32.totalorder 0, %v3567
        %v3569 = vsel %vm3568, 0, %v3567
        %v3570 = vsub.s32 32, %v3569
        %v3571 = vshll.u32 %v3562, %v3569
        %v3572 = vshrl.u32 %v3554, %v3570
        %v3573 = vor.u32 %v3571, %v3572
        %v3574 = vsub.s32 4294967266, %v3569
        %v3575 = vadd.s32 %v3574, 127
        %v3576 = vshll.u32 %v3575, 23
        %v3577 = vor.u32 4788187, %v3576
        %v3578 = vand.u32 2147483647, %v3577
        %v3580 = vcvt.s32.f32 %v3573
        %v3581 = vmul.f32 %v3580, %v3578
        %v3582 = vxor.u32 %v3581, 2147483648
        %v3583 = vsel %vm3500, %v3582, %v3581
        %v3584 = vsub.s32 4, %v3560
        %v3585 = vsel %vm3500, %v3584, %v3560
        %v3586 = vsel %vm3499, %v654, %v3583
        %v3587 = vsel %vm3499, 0, %v3585
        %v3588 = vcosq.f32.pop %v3586
        %v3589 = vsinq.f32.pop %v3586
        %vm3590 = vweird.f32 %v654
        %v3591 = vadd.s32 %v3587, 3
        %v3592 = vand.u32 %v3591, 3
        %vm3593 = vcmp.lt.s32.totalorder %v3592, 2
        %vm3594 = vcmp.eq.s32.totalorder %v3592, 0
        %v3595 = vxor.u32 %v3589, 2147483648
        %v3596 = vsel %vm3594, %v3588, %v3595
        %vm3597 = vcmp.eq.s32.totalorder %v3592, 2
        %v3598 = vxor.u32 %v3588, 2147483648
        %v3599 = vsel %vm3597, %v3598, %v3589
        %v3600 = vsel %vm3593, %v3596, %v3599
        %v3601 = vsel %vm3590, nan, %v3600
        %v3602 = vand.u32 2147483647, %v655
        %vm3603 = vcmp.le.f32.partialorder %v3602, 0.7853982
        %vm3604 = vcmp.lt.s32.totalorder %v655, 0
        %v3605 = vand.u32 %v655, 2139095040
        %v3606 = vshrl.u32 %v3605, 23
        %v3607 = vsub.s32 %v3606, 127
        %v3608 = vand.u32 2147483647, %v655
        %v3609 = vand.u32 %v3608, 8388607
        %v3610 = vor.u32 %v3609, 8388608
        %v3611 = vsub.s32 0, %v3610
        %v3612 = vadd.s32 %v3607, 1
        %vm3613 = vcmp.gt.s32.totalorder %v3612, 0
        %v3614 = vsel %vm3613, %v3612, 0
        %v3615 = vshrl.u32 %v3614, 5
        %v3616 = vand.u32 %v3614, 31
        %v3617 = vsub.s32 32, %v3616
        %v3618 = vshrl.u32 683565275, %v3617
        %v3619 = vshll.u32 683565275, %v3616
        %v3620 = vshrl.u32 2475754826, %v3617
        %v3621 = vor.u32 %v3619, %v3620
        %v3622 = vshll.u32 2475754826, %v3616
        %v3623 = vshrl.u32 2131351028, %v3617
        %v3624 = vor.u32 %v3622, %v3623
        %v3625 = vshll.u32 2131351028, %v3616
        %v3626 = vshrl.u32 2102212464, %v3617
        %v3627 = vor.u32 %v3625, %v3626
        %v3628 = vshll.u32 2102212464, %v3616
        %v3629 = vshrl.u32 920167782, %v3617
        %v3630 = vor.u32 %v3628, %v3629
        %v3631 = vshll.u32 920167782, %v3616
        %v3632 = vshrl.u32 1326507024, %v3617
        %v3633 = vor.u32 %v3631, %v3632
        %vm3634 = vcmp.lt.s32.totalorder %v3615, 1
        %vm3635 = vcmp.lt.s32.totalorder %v3615, 2
        %vm3636 = vcmp.lt.s32.totalorder %v3615, 3
        %vm3637 = vcmp.lt.s32.totalorder %v3615, 4
        %v3638 = vsel %vm3634, %v3618, %v3621
        %v3639 = vsel %vm3637, %v3627, 2102212464
        %v3640 = vsel %vm3636, %v3624, %v3639
        %v3641 = vsel %vm3635, %v3638, %v3640
        %v3642 = vsel %vm3634, %v3621, %v3624
        %v3643 = vsel %vm3637, %v3630, 920167782
        %v3644 = vsel %vm3636, %v3627, %v3643
        %v3645 = vsel %vm3635, %v3642, %v3644
        %v3646 = vsel %vm3634, %v3624, %v3627
        %v3647 = vsel %vm3637, %v3633, 1326507024
        %v3648 = vsel %vm3636, %v3630, %v3647
        %v3649 = vsel %vm3635, %v3646, %v3648
        %v3650 = vshll.u32 %v3610, 8
        %v3651 = vmul.u32.u64.compose %v3650, %v3649
        %v3652 = vextract.low.u32 %v3651
        %v3653 = vextract.high.u32 %v3651
        %v3654 = vmul.u32.u64.compose %v3650, %v3645
        %v3655 = vextract.low.u32 %v3654
        %v3656 = vextract.high.u32 %v3654
        %v3657 = vmul.u32 %v3650, %v3641
        %v3658 = vadd.s32 %v3653, %v3655
        %vm3659 = vc.u32 %v3653, %v3655
        %v3660 = vadd.s32 %v3656, 1
        %v3661 = vsel %vm3659, %v3660, %v3656
        %v3662 = vadd.s32 %v3657, %v3661
        %v3663 = vadd.s32 %v3662, 536870912
        %v3664 = vshrl.u32 %v3663, 30
        %v3665 = vshll.u32 %v3664, 30
        %v3666 = vsub.s32 %v3662, %v3665
        %vm3667 = vcmp.lt.s32.totalorder %v3666, 0
        %v3668 = vsub.s32 0, %v3666
        %v3669 = vsel %vm3667, %v3668, %v3666
        %v3670 = vclz %v3669
        %v3671 = vsub.s32 %v3670, 2
        %vm3672 = vcmp.gt.s32.totalorder 0, %v3671
        %v3673 = vsel %vm3672, 0, %v3671
        %v3674 = vsub.s32 32, %v3673
        %v3675 = vshll.u32 %v3666, %v3673
        %v3676 = vshrl.u32 %v3658, %v3674
        %v3677 = vor.u32 %v3675, %v3676
        %v3678 = vsub.s32 4294967266, %v3673
        %v3679 = vadd.s32 %v3678, 127
        %v3680 = vshll.u32 %v3679, 23
        %v3681 = vor.u32 4788187, %v3680
        %v3682 = vand.u32 2147483647, %v3681
        %v3684 = vcvt.s32.f32 %v3677
        %v3685 = vmul.f32 %v3684, %v3682
        %v3686 = vxor.u32 %v3685, 2147483648
        %v3687 = vsel %vm3604, %v3686, %v3685
        %v3688 = vsub.s32 4, %v3664
        %v3689 = vsel %vm3604, %v3688, %v3664
        %v3690 = vsel %vm3603, %v655, %v3687
        %v3691 = vsel %vm3603, 0, %v3689
        %v3692 = vcosq.f32.pop %v3690
        %v3693 = vsinq.f32.pop %v3690
        %vm3694 = vweird.f32 %v655
        %v3695 = vadd.s32 %v3691, 3
        %v3696 = vand.u32 %v3695, 3
        %vm3697 = vcmp.lt.s32.totalorder %v3696, 2
        %vm3698 = vcmp.eq.s32.totalorder %v3696, 0
        %v3699 = vxor.u32 %v3693, 2147483648
        %v3700 = vsel %vm3698, %v3692, %v3699
        %vm3701 = vcmp.eq.s32.totalorder %v3696, 2
        %v3702 = vxor.u32 %v3692, 2147483648
        %v3703 = vsel %vm3701, %v3702, %v3693
        %v3704 = vsel %vm3697, %v3700, %v3703
        %v3705 = vsel %vm3694, nan, %v3704
        %v3706 = vand.u32 2147483647, %v656
        %vm3707 = vcmp.le.f32.partialorder %v3706, 0.7853982
        %vm3708 = vcmp.lt.s32.totalorder %v656, 0
        %v3709 = vand.u32 %v656, 2139095040
        %v3710 = vshrl.u32 %v3709, 23
        %v3711 = vsub.s32 %v3710, 127
        %v3712 = vand.u32 2147483647, %v656
        %v3713 = vand.u32 %v3712, 8388607
        %v3714 = vor.u32 %v3713, 8388608
        %v3715 = vsub.s32 0, %v3714
        %v3716 = vadd.s32 %v3711, 1
        %vm3717 = vcmp.gt.s32.totalorder %v3716, 0
        %v3718 = vsel %vm3717, %v3716, 0
        %v3719 = vshrl.u32 %v3718, 5
        %v3720 = vand.u32 %v3718, 31
        %v3721 = vsub.s32 32, %v3720
        %v3722 = vshrl.u32 683565275, %v3721
        %v3723 = vshll.u32 683565275, %v3720
        %v3724 = vshrl.u32 2475754826, %v3721
        %v3725 = vor.u32 %v3723, %v3724
        %v3726 = vshll.u32 2475754826, %v3720
        %v3727 = vshrl.u32 2131351028, %v3721
        %v3728 = vor.u32 %v3726, %v3727
        %v3729 = vshll.u32 2131351028, %v3720
        %v3730 = vshrl.u32 2102212464, %v3721
        %v3731 = vor.u32 %v3729, %v3730
        %v3732 = vshll.u32 2102212464, %v3720
        %v3733 = vshrl.u32 920167782, %v3721
        %v3734 = vor.u32 %v3732, %v3733
        %v3735 = vshll.u32 920167782, %v3720
        %v3736 = vshrl.u32 1326507024, %v3721
        %v3737 = vor.u32 %v3735, %v3736
        %vm3738 = vcmp.lt.s32.totalorder %v3719, 1
        %vm3739 = vcmp.lt.s32.totalorder %v3719, 2
        %vm3740 = vcmp.lt.s32.totalorder %v3719, 3
        %vm3741 = vcmp.lt.s32.totalorder %v3719, 4
        %v3742 = vsel %vm3738, %v3722, %v3725
        %v3743 = vsel %vm3741, %v3731, 2102212464
        %v3744 = vsel %vm3740, %v3728, %v3743
        %v3745 = vsel %vm3739, %v3742, %v3744
        %v3746 = vsel %vm3738, %v3725, %v3728
        %v3747 = vsel %vm3741, %v3734, 920167782
        %v3748 = vsel %vm3740, %v3731, %v3747
        %v3749 = vsel %vm3739, %v3746, %v3748
        %v3750 = vsel %vm3738, %v3728, %v3731
        %v3751 = vsel %vm3741, %v3737, 1326507024
        %v3752 = vsel %vm3740, %v3734, %v3751
        %v3753 = vsel %vm3739, %v3750, %v3752
        %v3754 = vshll.u32 %v3714, 8
        %v3755 = vmul.u32.u64.compose %v3754, %v3753
        %v3756 = vextract.low.u32 %v3755
        %v3757 = vextract.high.u32 %v3755
        %v3758 = vmul.u32.u64.compose %v3754, %v3749
        %v3759 = vextract.low.u32 %v3758
        %v3760 = vextract.high.u32 %v3758
        %v3761 = vmul.u32 %v3754, %v3745
        %v3762 = vadd.s32 %v3757, %v3759
        %vm3763 = vc.u32 %v3757, %v3759
        %v3764 = vadd.s32 %v3760, 1
        %v3765 = vsel %vm3763, %v3764, %v3760
        %v3766 = vadd.s32 %v3761, %v3765
        %v3767 = vadd.s32 %v3766, 536870912
        %v3768 = vshrl.u32 %v3767, 30
        %v3769 = vshll.u32 %v3768, 30
        %v3770 = vsub.s32 %v3766, %v3769
        %vm3771 = vcmp.lt.s32.totalorder %v3770, 0
        %v3772 = vsub.s32 0, %v3770
        %v3773 = vsel %vm3771, %v3772, %v3770
        %v3774 = vclz %v3773
        %v3775 = vsub.s32 %v3774, 2
        %vm3776 = vcmp.gt.s32.totalorder 0, %v3775
        %v3777 = vsel %vm3776, 0, %v3775
        %v3778 = vsub.s32 32, %v3777
        %v3779 = vshll.u32 %v3770, %v3777
        %v3780 = vshrl.u32 %v3762, %v3778
        %v3781 = vor.u32 %v3779, %v3780
        %v3782 = vsub.s32 4294967266, %v3777
        %v3783 = vadd.s32 %v3782, 127
        %v3784 = vshll.u32 %v3783, 23
        %v3785 = vor.u32 4788187, %v3784
        %v3786 = vand.u32 2147483647, %v3785
        %v3788 = vcvt.s32.f32 %v3781
        %v3789 = vmul.f32 %v3788, %v3786
        %v3790 = vxor.u32 %v3789, 2147483648
        %v3791 = vsel %vm3708, %v3790, %v3789
        %v3792 = vsub.s32 4, %v3768
        %v3793 = vsel %vm3708, %v3792, %v3768
        %v3794 = vsel %vm3707, %v656, %v3791
        %v3795 = vsel %vm3707, 0, %v3793
        %v3796 = vcosq.f32.pop %v3794
        %v3797 = vsinq.f32.pop %v3794
        %vm3798 = vweird.f32 %v656
        %v3799 = vadd.s32 %v3795, 3
        %v3800 = vand.u32 %v3799, 3
        %vm3801 = vcmp.lt.s32.totalorder %v3800, 2
        %vm3802 = vcmp.eq.s32.totalorder %v3800, 0
        %v3803 = vxor.u32 %v3797, 2147483648
        %v3804 = vsel %vm3802, %v3796, %v3803
        %vm3805 = vcmp.eq.s32.totalorder %v3800, 2
        %v3806 = vxor.u32 %v3796, 2147483648
        %v3807 = vsel %vm3805, %v3806, %v3797
        %v3808 = vsel %vm3801, %v3804, %v3807
        %v3809 = vsel %vm3798, nan, %v3808
        %v3810 = vand.u32 2147483647, %v657
        %vm3811 = vcmp.le.f32.partialorder %v3810, 0.7853982
        %vm3812 = vcmp.lt.s32.totalorder %v657, 0
        %v3813 = vand.u32 %v657, 2139095040
        %v3814 = vshrl.u32 %v3813, 23
        %v3815 = vsub.s32 %v3814, 127
        %v3816 = vand.u32 2147483647, %v657
        %v3817 = vand.u32 %v3816, 8388607
        %v3818 = vor.u32 %v3817, 8388608
        %v3819 = vsub.s32 0, %v3818
        %v3820 = vadd.s32 %v3815, 1
        %vm3821 = vcmp.gt.s32.totalorder %v3820, 0
        %v3822 = vsel %vm3821, %v3820, 0
        %v3823 = vshrl.u32 %v3822, 5
        %v3824 = vand.u32 %v3822, 31
        %v3825 = vsub.s32 32, %v3824
        %v3826 = vshrl.u32 683565275, %v3825
        %v3827 = vshll.u32 683565275, %v3824
        %v3828 = vshrl.u32 2475754826, %v3825
        %v3829 = vor.u32 %v3827, %v3828
        %v3830 = vshll.u32 2475754826, %v3824
        %v3831 = vshrl.u32 2131351028, %v3825
        %v3832 = vor.u32 %v3830, %v3831
        %v3833 = vshll.u32 2131351028, %v3824
        %v3834 = vshrl.u32 2102212464, %v3825
        %v3835 = vor.u32 %v3833, %v3834
        %v3836 = vshll.u32 2102212464, %v3824
        %v3837 = vshrl.u32 920167782, %v3825
        %v3838 = vor.u32 %v3836, %v3837
        %v3839 = vshll.u32 920167782, %v3824
        %v3840 = vshrl.u32 1326507024, %v3825
        %v3841 = vor.u32 %v3839, %v3840
        %vm3842 = vcmp.lt.s32.totalorder %v3823, 1
        %vm3843 = vcmp.lt.s32.totalorder %v3823, 2
        %vm3844 = vcmp.lt.s32.totalorder %v3823, 3
        %vm3845 = vcmp.lt.s32.totalorder %v3823, 4
        %v3846 = vsel %vm3842, %v3826, %v3829
        %v3847 = vsel %vm3845, %v3835, 2102212464
        %v3848 = vsel %vm3844, %v3832, %v3847
        %v3849 = vsel %vm3843, %v3846, %v3848
        %v3850 = vsel %vm3842, %v3829, %v3832
        %v3851 = vsel %vm3845, %v3838, 920167782
        %v3852 = vsel %vm3844, %v3835, %v3851
        %v3853 = vsel %vm3843, %v3850, %v3852
        %v3854 = vsel %vm3842, %v3832, %v3835
        %v3855 = vsel %vm3845, %v3841, 1326507024
        %v3856 = vsel %vm3844, %v3838, %v3855
        %v3857 = vsel %vm3843, %v3854, %v3856
        %v3858 = vshll.u32 %v3818, 8
        %v3859 = vmul.u32.u64.compose %v3858, %v3857
        %v3860 = vextract.low.u32 %v3859
        %v3861 = vextract.high.u32 %v3859
        %v3862 = vmul.u32.u64.compose %v3858, %v3853
        %v3863 = vextract.low.u32 %v3862
        %v3864 = vextract.high.u32 %v3862
        %v3865 = vmul.u32 %v3858, %v3849
        %v3866 = vadd.s32 %v3861, %v3863
        %vm3867 = vc.u32 %v3861, %v3863
        %v3868 = vadd.s32 %v3864, 1
        %v3869 = vsel %vm3867, %v3868, %v3864
        %v3870 = vadd.s32 %v3865, %v3869
        %v3871 = vadd.s32 %v3870, 536870912
        %v3872 = vshrl.u32 %v3871, 30
        %v3873 = vshll.u32 %v3872, 30
        %v3874 = vsub.s32 %v3870, %v3873
        %vm3875 = vcmp.lt.s32.totalorder %v3874, 0
        %v3876 = vsub.s32 0, %v3874
        %v3877 = vsel %vm3875, %v3876, %v3874
        %v3878 = vclz %v3877
        %v3879 = vsub.s32 %v3878, 2
        %vm3880 = vcmp.gt.s32.totalorder 0, %v3879
        %v3881 = vsel %vm3880, 0, %v3879
        %v3882 = vsub.s32 32, %v3881
        %v3883 = vshll.u32 %v3874, %v3881
        %v3884 = vshrl.u32 %v3866, %v3882
        %v3885 = vor.u32 %v3883, %v3884
        %v3886 = vsub.s32 4294967266, %v3881
        %v3887 = vadd.s32 %v3886, 127
        %v3888 = vshll.u32 %v3887, 23
        %v3889 = vor.u32 4788187, %v3888
        %v3890 = vand.u32 2147483647, %v3889
        %v3892 = vcvt.s32.f32 %v3885
        %v3893 = vmul.f32 %v3892, %v3890
        %v3894 = vxor.u32 %v3893, 2147483648
        %v3895 = vsel %vm3812, %v3894, %v3893
        %v3896 = vsub.s32 4, %v3872
        %v3897 = vsel %vm3812, %v3896, %v3872
        %v3898 = vsel %vm3811, %v657, %v3895
        %v3899 = vsel %vm3811, 0, %v3897
        %v3900 = vcosq.f32.pop %v3898
        %v3901 = vsinq.f32.pop %v3898
        %vm3902 = vweird.f32 %v657
        %v3903 = vadd.s32 %v3899, 3
        %v3904 = vand.u32 %v3903, 3
        %vm3905 = vcmp.lt.s32.totalorder %v3904, 2
        %vm3906 = vcmp.eq.s32.totalorder %v3904, 0
        %v3907 = vxor.u32 %v3901, 2147483648
        %v3908 = vsel %vm3906, %v3900, %v3907
        %vm3909 = vcmp.eq.s32.totalorder %v3904, 2
        %v3910 = vxor.u32 %v3900, 2147483648
        %v3911 = vsel %vm3909, %v3910, %v3901
        %v3912 = vsel %vm3905, %v3908, %v3911
        %v3913 = vsel %vm3902, nan, %v3912
        %v3914 = vand.u32 2147483647, %v658
        %vm3915 = vcmp.le.f32.partialorder %v3914, 0.7853982
        %vm3916 = vcmp.lt.s32.totalorder %v658, 0
        %v3917 = vand.u32 %v658, 2139095040
        %v3918 = vshrl.u32 %v3917, 23
        %v3919 = vsub.s32 %v3918, 127
        %v3920 = vand.u32 2147483647, %v658
        %v3921 = vand.u32 %v3920, 8388607
        %v3922 = vor.u32 %v3921, 8388608
        %v3923 = vsub.s32 0, %v3922
        %v3924 = vadd.s32 %v3919, 1
        %vm3925 = vcmp.gt.s32.totalorder %v3924, 0
        %v3926 = vsel %vm3925, %v3924, 0
        %v3927 = vshrl.u32 %v3926, 5
        %v3928 = vand.u32 %v3926, 31
        %v3929 = vsub.s32 32, %v3928
        %v3930 = vshrl.u32 683565275, %v3929
        %v3931 = vshll.u32 683565275, %v3928
        %v3932 = vshrl.u32 2475754826, %v3929
        %v3933 = vor.u32 %v3931, %v3932
        %v3934 = vshll.u32 2475754826, %v3928
        %v3935 = vshrl.u32 2131351028, %v3929
        %v3936 = vor.u32 %v3934, %v3935
        %v3937 = vshll.u32 2131351028, %v3928
        %v3938 = vshrl.u32 2102212464, %v3929
        %v3939 = vor.u32 %v3937, %v3938
        %v3940 = vshll.u32 2102212464, %v3928
        %v3941 = vshrl.u32 920167782, %v3929
        %v3942 = vor.u32 %v3940, %v3941
        %v3943 = vshll.u32 920167782, %v3928
        %v3944 = vshrl.u32 1326507024, %v3929
        %v3945 = vor.u32 %v3943, %v3944
        %vm3946 = vcmp.lt.s32.totalorder %v3927, 1
        %vm3947 = vcmp.lt.s32.totalorder %v3927, 2
        %vm3948 = vcmp.lt.s32.totalorder %v3927, 3
        %vm3949 = vcmp.lt.s32.totalorder %v3927, 4
        %v3950 = vsel %vm3946, %v3930, %v3933
        %v3951 = vsel %vm3949, %v3939, 2102212464
        %v3952 = vsel %vm3948, %v3936, %v3951
        %v3953 = vsel %vm3947, %v3950, %v3952
        %v3954 = vsel %vm3946, %v3933, %v3936
        %v3955 = vsel %vm3949, %v3942, 920167782
        %v3956 = vsel %vm3948, %v3939, %v3955
        %v3957 = vsel %vm3947, %v3954, %v3956
        %v3958 = vsel %vm3946, %v3936, %v3939
        %v3959 = vsel %vm3949, %v3945, 1326507024
        %v3960 = vsel %vm3948, %v3942, %v3959
        %v3961 = vsel %vm3947, %v3958, %v3960
        %v3962 = vshll.u32 %v3922, 8
        %v3963 = vmul.u32.u64.compose %v3962, %v3961
        %v3964 = vextract.low.u32 %v3963
        %v3965 = vextract.high.u32 %v3963
        %v3966 = vmul.u32.u64.compose %v3962, %v3957
        %v3967 = vextract.low.u32 %v3966
        %v3968 = vextract.high.u32 %v3966
        %v3969 = vmul.u32 %v3962, %v3953
        %v3970 = vadd.s32 %v3965, %v3967
        %vm3971 = vc.u32 %v3965, %v3967
        %v3972 = vadd.s32 %v3968, 1
        %v3973 = vsel %vm3971, %v3972, %v3968
        %v3974 = vadd.s32 %v3969, %v3973
        %v3975 = vadd.s32 %v3974, 536870912
        %v3976 = vshrl.u32 %v3975, 30
        %v3977 = vshll.u32 %v3976, 30
        %v3978 = vsub.s32 %v3974, %v3977
        %vm3979 = vcmp.lt.s32.totalorder %v3978, 0
        %v3980 = vsub.s32 0, %v3978
        %v3981 = vsel %vm3979, %v3980, %v3978
        %v3982 = vclz %v3981
        %v3983 = vsub.s32 %v3982, 2
        %vm3984 = vcmp.gt.s32.totalorder 0, %v3983
        %v3985 = vsel %vm3984, 0, %v3983
        %v3986 = vsub.s32 32, %v3985
        %v3987 = vshll.u32 %v3978, %v3985
        %v3988 = vshrl.u32 %v3970, %v3986
        %v3989 = vor.u32 %v3987, %v3988
        %v3990 = vsub.s32 4294967266, %v3985
        %v3991 = vadd.s32 %v3990, 127
        %v3992 = vshll.u32 %v3991, 23
        %v3993 = vor.u32 4788187, %v3992
        %v3994 = vand.u32 2147483647, %v3993
        %v3996 = vcvt.s32.f32 %v3989
        %v3997 = vmul.f32 %v3996, %v3994
        %v3998 = vxor.u32 %v3997, 2147483648
        %v3999 = vsel %vm3916, %v3998, %v3997
        %v4000 = vsub.s32 4, %v3976
        %v4001 = vsel %vm3916, %v4000, %v3976
        %v4002 = vsel %vm3915, %v658, %v3999
        %v4003 = vsel %vm3915, 0, %v4001
        %v4004 = vcosq.f32.pop %v4002
        %v4005 = vsinq.f32.pop %v4002
        %vm4006 = vweird.f32 %v658
        %v4007 = vadd.s32 %v4003, 3
        %v4008 = vand.u32 %v4007, 3
        %vm4009 = vcmp.lt.s32.totalorder %v4008, 2
        %vm4010 = vcmp.eq.s32.totalorder %v4008, 0
        %v4011 = vxor.u32 %v4005, 2147483648
        %v4012 = vsel %vm4010, %v4004, %v4011
        %vm4013 = vcmp.eq.s32.totalorder %v4008, 2
        %v4014 = vxor.u32 %v4004, 2147483648
        %v4015 = vsel %vm4013, %v4014, %v4005
        %v4016 = vsel %vm4009, %v4012, %v4015
        %v4017 = vsel %vm4006, nan, %v4016
        %v4018 = vand.u32 2147483647, %v659
        %vm4019 = vcmp.le.f32.partialorder %v4018, 0.7853982
        %vm4020 = vcmp.lt.s32.totalorder %v659, 0
        %v4021 = vand.u32 %v659, 2139095040
        %v4022 = vshrl.u32 %v4021, 23
        %v4023 = vsub.s32 %v4022, 127
        %v4024 = vand.u32 2147483647, %v659
        %v4025 = vand.u32 %v4024, 8388607
        %v4026 = vor.u32 %v4025, 8388608
        %v4027 = vsub.s32 0, %v4026
        %v4028 = vadd.s32 %v4023, 1
        %vm4029 = vcmp.gt.s32.totalorder %v4028, 0
        %v4030 = vsel %vm4029, %v4028, 0
        %v4031 = vshrl.u32 %v4030, 5
        %v4032 = vand.u32 %v4030, 31
        %v4033 = vsub.s32 32, %v4032
        %v4034 = vshrl.u32 683565275, %v4033
        %v4035 = vshll.u32 683565275, %v4032
        %v4036 = vshrl.u32 2475754826, %v4033
        %v4037 = vor.u32 %v4035, %v4036
        %v4038 = vshll.u32 2475754826, %v4032
        %v4039 = vshrl.u32 2131351028, %v4033
        %v4040 = vor.u32 %v4038, %v4039
        %v4041 = vshll.u32 2131351028, %v4032
        %v4042 = vshrl.u32 2102212464, %v4033
        %v4043 = vor.u32 %v4041, %v4042
        %v4044 = vshll.u32 2102212464, %v4032
        %v4045 = vshrl.u32 920167782, %v4033
        %v4046 = vor.u32 %v4044, %v4045
        %v4047 = vshll.u32 920167782, %v4032
        %v4048 = vshrl.u32 1326507024, %v4033
        %v4049 = vor.u32 %v4047, %v4048
        %vm4050 = vcmp.lt.s32.totalorder %v4031, 1
        %vm4051 = vcmp.lt.s32.totalorder %v4031, 2
        %vm4052 = vcmp.lt.s32.totalorder %v4031, 3
        %vm4053 = vcmp.lt.s32.totalorder %v4031, 4
        %v4054 = vsel %vm4050, %v4034, %v4037
        %v4055 = vsel %vm4053, %v4043, 2102212464
        %v4056 = vsel %vm4052, %v4040, %v4055
        %v4057 = vsel %vm4051, %v4054, %v4056
        %v4058 = vsel %vm4050, %v4037, %v4040
        %v4059 = vsel %vm4053, %v4046, 920167782
        %v4060 = vsel %vm4052, %v4043, %v4059
        %v4061 = vsel %vm4051, %v4058, %v4060
        %v4062 = vsel %vm4050, %v4040, %v4043
        %v4063 = vsel %vm4053, %v4049, 1326507024
        %v4064 = vsel %vm4052, %v4046, %v4063
        %v4065 = vsel %vm4051, %v4062, %v4064
        %v4066 = vshll.u32 %v4026, 8
        %v4067 = vmul.u32.u64.compose %v4066, %v4065
        %v4068 = vextract.low.u32 %v4067
        %v4069 = vextract.high.u32 %v4067
        %v4070 = vmul.u32.u64.compose %v4066, %v4061
        %v4071 = vextract.low.u32 %v4070
        %v4072 = vextract.high.u32 %v4070
        %v4073 = vmul.u32 %v4066, %v4057
        %v4074 = vadd.s32 %v4069, %v4071
        %vm4075 = vc.u32 %v4069, %v4071
        %v4076 = vadd.s32 %v4072, 1
        %v4077 = vsel %vm4075, %v4076, %v4072
        %v4078 = vadd.s32 %v4073, %v4077
        %v4079 = vadd.s32 %v4078, 536870912
        %v4080 = vshrl.u32 %v4079, 30
        %v4081 = vshll.u32 %v4080, 30
        %v4082 = vsub.s32 %v4078, %v4081
        %vm4083 = vcmp.lt.s32.totalorder %v4082, 0
        %v4084 = vsub.s32 0, %v4082
        %v4085 = vsel %vm4083, %v4084, %v4082
        %v4086 = vclz %v4085
        %v4087 = vsub.s32 %v4086, 2
        %vm4088 = vcmp.gt.s32.totalorder 0, %v4087
        %v4089 = vsel %vm4088, 0, %v4087
        %v4090 = vsub.s32 32, %v4089
        %v4091 = vshll.u32 %v4082, %v4089
        %v4092 = vshrl.u32 %v4074, %v4090
        %v4093 = vor.u32 %v4091, %v4092
        %v4094 = vsub.s32 4294967266, %v4089
        %v4095 = vadd.s32 %v4094, 127
        %v4096 = vshll.u32 %v4095, 23
        %v4097 = vor.u32 4788187, %v4096
        %v4098 = vand.u32 2147483647, %v4097
        %v4100 = vcvt.s32.f32 %v4093
        %v4101 = vmul.f32 %v4100, %v4098
        %v4102 = vxor.u32 %v4101, 2147483648
        %v4103 = vsel %vm4020, %v4102, %v4101
        %v4104 = vsub.s32 4, %v4080
        %v4105 = vsel %vm4020, %v4104, %v4080
        %v4106 = vsel %vm4019, %v659, %v4103
        %v4107 = vsel %vm4019, 0, %v4105
        %v4108 = vcosq.f32.pop %v4106
        %v4109 = vsinq.f32.pop %v4106
        %vm4110 = vweird.f32 %v659
        %v4111 = vadd.s32 %v4107, 3
        %v4112 = vand.u32 %v4111, 3
        %vm4113 = vcmp.lt.s32.totalorder %v4112, 2
        %vm4114 = vcmp.eq.s32.totalorder %v4112, 0
        %v4115 = vxor.u32 %v4109, 2147483648
        %v4116 = vsel %vm4114, %v4108, %v4115
        %vm4117 = vcmp.eq.s32.totalorder %v4112, 2
        %v4118 = vxor.u32 %v4108, 2147483648
        %v4119 = vsel %vm4117, %v4118, %v4109
        %v4120 = vsel %vm4113, %v4116, %v4119
        %v4121 = vsel %vm4110, nan, %v4120
        %v4122 = vand.u32 2147483647, %v660
        %vm4123 = vcmp.le.f32.partialorder %v4122, 0.7853982
        %vm4124 = vcmp.lt.s32.totalorder %v660, 0
        %v4125 = vand.u32 %v660, 2139095040
        %v4126 = vshrl.u32 %v4125, 23
        %v4127 = vsub.s32 %v4126, 127
        %v4128 = vand.u32 2147483647, %v660
        %v4129 = vand.u32 %v4128, 8388607
        %v4130 = vor.u32 %v4129, 8388608
        %v4131 = vsub.s32 0, %v4130
        %v4132 = vadd.s32 %v4127, 1
        %vm4133 = vcmp.gt.s32.totalorder %v4132, 0
        %v4134 = vsel %vm4133, %v4132, 0
        %v4135 = vshrl.u32 %v4134, 5
        %v4136 = vand.u32 %v4134, 31
        %v4137 = vsub.s32 32, %v4136
        %v4138 = vshrl.u32 683565275, %v4137
        %v4139 = vshll.u32 683565275, %v4136
        %v4140 = vshrl.u32 2475754826, %v4137
        %v4141 = vor.u32 %v4139, %v4140
        %v4142 = vshll.u32 2475754826, %v4136
        %v4143 = vshrl.u32 2131351028, %v4137
        %v4144 = vor.u32 %v4142, %v4143
        %v4145 = vshll.u32 2131351028, %v4136
        %v4146 = vshrl.u32 2102212464, %v4137
        %v4147 = vor.u32 %v4145, %v4146
        %v4148 = vshll.u32 2102212464, %v4136
        %v4149 = vshrl.u32 920167782, %v4137
        %v4150 = vor.u32 %v4148, %v4149
        %v4151 = vshll.u32 920167782, %v4136
        %v4152 = vshrl.u32 1326507024, %v4137
        %v4153 = vor.u32 %v4151, %v4152
        %vm4154 = vcmp.lt.s32.totalorder %v4135, 1
        %vm4155 = vcmp.lt.s32.totalorder %v4135, 2
        %vm4156 = vcmp.lt.s32.totalorder %v4135, 3
        %vm4157 = vcmp.lt.s32.totalorder %v4135, 4
        %v4158 = vsel %vm4154, %v4138, %v4141
        %v4159 = vsel %vm4157, %v4147, 2102212464
        %v4160 = vsel %vm4156, %v4144, %v4159
        %v4161 = vsel %vm4155, %v4158, %v4160
        %v4162 = vsel %vm4154, %v4141, %v4144
        %v4163 = vsel %vm4157, %v4150, 920167782
        %v4164 = vsel %vm4156, %v4147, %v4163
        %v4165 = vsel %vm4155, %v4162, %v4164
        %v4166 = vsel %vm4154, %v4144, %v4147
        %v4167 = vsel %vm4157, %v4153, 1326507024
        %v4168 = vsel %vm4156, %v4150, %v4167
        %v4169 = vsel %vm4155, %v4166, %v4168
        %v4170 = vshll.u32 %v4130, 8
        %v4171 = vmul.u32.u64.compose %v4170, %v4169
        %v4172 = vextract.low.u32 %v4171
        %v4173 = vextract.high.u32 %v4171
        %v4174 = vmul.u32.u64.compose %v4170, %v4165
        %v4175 = vextract.low.u32 %v4174
        %v4176 = vextract.high.u32 %v4174
        %v4177 = vmul.u32 %v4170, %v4161
        %v4178 = vadd.s32 %v4173, %v4175
        %vm4179 = vc.u32 %v4173, %v4175
        %v4180 = vadd.s32 %v4176, 1
        %v4181 = vsel %vm4179, %v4180, %v4176
        %v4182 = vadd.s32 %v4177, %v4181
        %v4183 = vadd.s32 %v4182, 536870912
        %v4184 = vshrl.u32 %v4183, 30
        %v4185 = vshll.u32 %v4184, 30
        %v4186 = vsub.s32 %v4182, %v4185
        %vm4187 = vcmp.lt.s32.totalorder %v4186, 0
        %v4188 = vsub.s32 0, %v4186
        %v4189 = vsel %vm4187, %v4188, %v4186
        %v4190 = vclz %v4189
        %v4191 = vsub.s32 %v4190, 2
        %vm4192 = vcmp.gt.s32.totalorder 0, %v4191
        %v4193 = vsel %vm4192, 0, %v4191
        %v4194 = vsub.s32 32, %v4193
        %v4195 = vshll.u32 %v4186, %v4193
        %v4196 = vshrl.u32 %v4178, %v4194
        %v4197 = vor.u32 %v4195, %v4196
        %v4198 = vsub.s32 4294967266, %v4193
        %v4199 = vadd.s32 %v4198, 127
        %v4200 = vshll.u32 %v4199, 23
        %v4201 = vor.u32 4788187, %v4200
        %v4202 = vand.u32 2147483647, %v4201
        %v4204 = vcvt.s32.f32 %v4197
        %v4205 = vmul.f32 %v4204, %v4202
        %v4206 = vxor.u32 %v4205, 2147483648
        %v4207 = vsel %vm4124, %v4206, %v4205
        %v4208 = vsub.s32 4, %v4184
        %v4209 = vsel %vm4124, %v4208, %v4184
        %v4210 = vsel %vm4123, %v660, %v4207
        %v4211 = vsel %vm4123, 0, %v4209
        %v4212 = vcosq.f32.pop %v4210
        %v4213 = vsinq.f32.pop %v4210
        %vm4214 = vweird.f32 %v660
        %v4215 = vadd.s32 %v4211, 3
        %v4216 = vand.u32 %v4215, 3
        %vm4217 = vcmp.lt.s32.totalorder %v4216, 2
        %vm4218 = vcmp.eq.s32.totalorder %v4216, 0
        %v4219 = vxor.u32 %v4213, 2147483648
        %v4220 = vsel %vm4218, %v4212, %v4219
        %vm4221 = vcmp.eq.s32.totalorder %v4216, 2
        %v4222 = vxor.u32 %v4212, 2147483648
        %v4223 = vsel %vm4221, %v4222, %v4213
        %v4224 = vsel %vm4217, %v4220, %v4223
        %v4225 = vsel %vm4214, nan, %v4224
        %v4226 = vand.u32 2147483647, %v661
        %vm4227 = vcmp.le.f32.partialorder %v4226, 0.7853982
        %vm4228 = vcmp.lt.s32.totalorder %v661, 0
        %v4229 = vand.u32 %v661, 2139095040
        %v4230 = vshrl.u32 %v4229, 23
        %v4231 = vsub.s32 %v4230, 127
        %v4232 = vand.u32 2147483647, %v661
        %v4233 = vand.u32 %v4232, 8388607
        %v4234 = vor.u32 %v4233, 8388608
        %v4235 = vsub.s32 0, %v4234
        %v4236 = vadd.s32 %v4231, 1
        %vm4237 = vcmp.gt.s32.totalorder %v4236, 0
        %v4238 = vsel %vm4237, %v4236, 0
        %v4239 = vshrl.u32 %v4238, 5
        %v4240 = vand.u32 %v4238, 31
        %v4241 = vsub.s32 32, %v4240
        %v4242 = vshrl.u32 683565275, %v4241
        %v4243 = vshll.u32 683565275, %v4240
        %v4244 = vshrl.u32 2475754826, %v4241
        %v4245 = vor.u32 %v4243, %v4244
        %v4246 = vshll.u32 2475754826, %v4240
        %v4247 = vshrl.u32 2131351028, %v4241
        %v4248 = vor.u32 %v4246, %v4247
        %v4249 = vshll.u32 2131351028, %v4240
        %v4250 = vshrl.u32 2102212464, %v4241
        %v4251 = vor.u32 %v4249, %v4250
        %v4252 = vshll.u32 2102212464, %v4240
        %v4253 = vshrl.u32 920167782, %v4241
        %v4254 = vor.u32 %v4252, %v4253
        %v4255 = vshll.u32 920167782, %v4240
        %v4256 = vshrl.u32 1326507024, %v4241
        %v4257 = vor.u32 %v4255, %v4256
        %vm4258 = vcmp.lt.s32.totalorder %v4239, 1
        %vm4259 = vcmp.lt.s32.totalorder %v4239, 2
        %vm4260 = vcmp.lt.s32.totalorder %v4239, 3
        %vm4261 = vcmp.lt.s32.totalorder %v4239, 4
        %v4262 = vsel %vm4258, %v4242, %v4245
        %v4263 = vsel %vm4261, %v4251, 2102212464
        %v4264 = vsel %vm4260, %v4248, %v4263
        %v4265 = vsel %vm4259, %v4262, %v4264
        %v4266 = vsel %vm4258, %v4245, %v4248
        %v4267 = vsel %vm4261, %v4254, 920167782
        %v4268 = vsel %vm4260, %v4251, %v4267
        %v4269 = vsel %vm4259, %v4266, %v4268
        %v4270 = vsel %vm4258, %v4248, %v4251
        %v4271 = vsel %vm4261, %v4257, 1326507024
        %v4272 = vsel %vm4260, %v4254, %v4271
        %v4273 = vsel %vm4259, %v4270, %v4272
        %v4274 = vshll.u32 %v4234, 8
        %v4275 = vmul.u32.u64.compose %v4274, %v4273
        %v4276 = vextract.low.u32 %v4275
        %v4277 = vextract.high.u32 %v4275
        %v4278 = vmul.u32.u64.compose %v4274, %v4269
        %v4279 = vextract.low.u32 %v4278
        %v4280 = vextract.high.u32 %v4278
        %v4281 = vmul.u32 %v4274, %v4265
        %v4282 = vadd.s32 %v4277, %v4279
        %vm4283 = vc.u32 %v4277, %v4279
        %v4284 = vadd.s32 %v4280, 1
        %v4285 = vsel %vm4283, %v4284, %v4280
        %v4286 = vadd.s32 %v4281, %v4285
        %v4287 = vadd.s32 %v4286, 536870912
        %v4288 = vshrl.u32 %v4287, 30
        %v4289 = vshll.u32 %v4288, 30
        %v4290 = vsub.s32 %v4286, %v4289
        %vm4291 = vcmp.lt.s32.totalorder %v4290, 0
        %v4292 = vsub.s32 0, %v4290
        %v4293 = vsel %vm4291, %v4292, %v4290
        %v4294 = vclz %v4293
        %v4295 = vsub.s32 %v4294, 2
        %vm4296 = vcmp.gt.s32.totalorder 0, %v4295
        %v4297 = vsel %vm4296, 0, %v4295
        %v4298 = vsub.s32 32, %v4297
        %v4299 = vshll.u32 %v4290, %v4297
        %v4300 = vshrl.u32 %v4282, %v4298
        %v4301 = vor.u32 %v4299, %v4300
        %v4302 = vsub.s32 4294967266, %v4297
        %v4303 = vadd.s32 %v4302, 127
        %v4304 = vshll.u32 %v4303, 23
        %v4305 = vor.u32 4788187, %v4304
        %v4306 = vand.u32 2147483647, %v4305
        %v4308 = vcvt.s32.f32 %v4301
        %v4309 = vmul.f32 %v4308, %v4306
        %v4310 = vxor.u32 %v4309, 2147483648
        %v4311 = vsel %vm4228, %v4310, %v4309
        %v4312 = vsub.s32 4, %v4288
        %v4313 = vsel %vm4228, %v4312, %v4288
        %v4314 = vsel %vm4227, %v661, %v4311
        %v4315 = vsel %vm4227, 0, %v4313
        %v4316 = vcosq.f32.pop %v4314
        %v4317 = vsinq.f32.pop %v4314
        %vm4318 = vweird.f32 %v661
        %v4319 = vadd.s32 %v4315, 3
        %v4320 = vand.u32 %v4319, 3
        %vm4321 = vcmp.lt.s32.totalorder %v4320, 2
        %vm4322 = vcmp.eq.s32.totalorder %v4320, 0
        %v4323 = vxor.u32 %v4317, 2147483648
        %v4324 = vsel %vm4322, %v4316, %v4323
        %vm4325 = vcmp.eq.s32.totalorder %v4320, 2
        %v4326 = vxor.u32 %v4316, 2147483648
        %v4327 = vsel %vm4325, %v4326, %v4317
        %v4328 = vsel %vm4321, %v4324, %v4327
        %v4329 = vsel %vm4318, nan, %v4328
        %v4330 = vand.u32 2147483647, %v662
        %vm4331 = vcmp.le.f32.partialorder %v4330, 0.7853982
        %vm4332 = vcmp.lt.s32.totalorder %v662, 0
        %v4333 = vand.u32 %v662, 2139095040
        %v4334 = vshrl.u32 %v4333, 23
        %v4335 = vsub.s32 %v4334, 127
        %v4336 = vand.u32 2147483647, %v662
        %v4337 = vand.u32 %v4336, 8388607
        %v4338 = vor.u32 %v4337, 8388608
        %v4339 = vsub.s32 0, %v4338
        %v4340 = vadd.s32 %v4335, 1
        %vm4341 = vcmp.gt.s32.totalorder %v4340, 0
        %v4342 = vsel %vm4341, %v4340, 0
        %v4343 = vshrl.u32 %v4342, 5
        %v4344 = vand.u32 %v4342, 31
        %v4345 = vsub.s32 32, %v4344
        %v4346 = vshrl.u32 683565275, %v4345
        %v4347 = vshll.u32 683565275, %v4344
        %v4348 = vshrl.u32 2475754826, %v4345
        %v4349 = vor.u32 %v4347, %v4348
        %v4350 = vshll.u32 2475754826, %v4344
        %v4351 = vshrl.u32 2131351028, %v4345
        %v4352 = vor.u32 %v4350, %v4351
        %v4353 = vshll.u32 2131351028, %v4344
        %v4354 = vshrl.u32 2102212464, %v4345
        %v4355 = vor.u32 %v4353, %v4354
        %v4356 = vshll.u32 2102212464, %v4344
        %v4357 = vshrl.u32 920167782, %v4345
        %v4358 = vor.u32 %v4356, %v4357
        %v4359 = vshll.u32 920167782, %v4344
        %v4360 = vshrl.u32 1326507024, %v4345
        %v4361 = vor.u32 %v4359, %v4360
        %vm4362 = vcmp.lt.s32.totalorder %v4343, 1
        %vm4363 = vcmp.lt.s32.totalorder %v4343, 2
        %vm4364 = vcmp.lt.s32.totalorder %v4343, 3
        %vm4365 = vcmp.lt.s32.totalorder %v4343, 4
        %v4366 = vsel %vm4362, %v4346, %v4349
        %v4367 = vsel %vm4365, %v4355, 2102212464
        %v4368 = vsel %vm4364, %v4352, %v4367
        %v4369 = vsel %vm4363, %v4366, %v4368
        %v4370 = vsel %vm4362, %v4349, %v4352
        %v4371 = vsel %vm4365, %v4358, 920167782
        %v4372 = vsel %vm4364, %v4355, %v4371
        %v4373 = vsel %vm4363, %v4370, %v4372
        %v4374 = vsel %vm4362, %v4352, %v4355
        %v4375 = vsel %vm4365, %v4361, 1326507024
        %v4376 = vsel %vm4364, %v4358, %v4375
        %v4377 = vsel %vm4363, %v4374, %v4376
        %v4378 = vshll.u32 %v4338, 8
        %v4379 = vmul.u32.u64.compose %v4378, %v4377
        %v4380 = vextract.low.u32 %v4379
        %v4381 = vextract.high.u32 %v4379
        %v4382 = vmul.u32.u64.compose %v4378, %v4373
        %v4383 = vextract.low.u32 %v4382
        %v4384 = vextract.high.u32 %v4382
        %v4385 = vmul.u32 %v4378, %v4369
        %v4386 = vadd.s32 %v4381, %v4383
        %vm4387 = vc.u32 %v4381, %v4383
        %v4388 = vadd.s32 %v4384, 1
        %v4389 = vsel %vm4387, %v4388, %v4384
        %v4390 = vadd.s32 %v4385, %v4389
        %v4391 = vadd.s32 %v4390, 536870912
        %v4392 = vshrl.u32 %v4391, 30
        %v4393 = vshll.u32 %v4392, 30
        %v4394 = vsub.s32 %v4390, %v4393
        %vm4395 = vcmp.lt.s32.totalorder %v4394, 0
        %v4396 = vsub.s32 0, %v4394
        %v4397 = vsel %vm4395, %v4396, %v4394
        %v4398 = vclz %v4397
        %v4399 = vsub.s32 %v4398, 2
        %vm4400 = vcmp.gt.s32.totalorder 0, %v4399
        %v4401 = vsel %vm4400, 0, %v4399
        %v4402 = vsub.s32 32, %v4401
        %v4403 = vshll.u32 %v4394, %v4401
        %v4404 = vshrl.u32 %v4386, %v4402
        %v4405 = vor.u32 %v4403, %v4404
        %v4406 = vsub.s32 4294967266, %v4401
        %v4407 = vadd.s32 %v4406, 127
        %v4408 = vshll.u32 %v4407, 23
        %v4409 = vor.u32 4788187, %v4408
        %v4410 = vand.u32 2147483647, %v4409
        %v4412 = vcvt.s32.f32 %v4405
        %v4413 = vmul.f32 %v4412, %v4410
        %v4414 = vxor.u32 %v4413, 2147483648
        %v4415 = vsel %vm4332, %v4414, %v4413
        %v4416 = vsub.s32 4, %v4392
        %v4417 = vsel %vm4332, %v4416, %v4392
        %v4418 = vsel %vm4331, %v662, %v4415
        %v4419 = vsel %vm4331, 0, %v4417
        %v4420 = vcosq.f32.pop %v4418
        %v4421 = vsinq.f32.pop %v4418
        %vm4422 = vweird.f32 %v662
        %v4423 = vadd.s32 %v4419, 3
        %v4424 = vand.u32 %v4423, 3
        %vm4425 = vcmp.lt.s32.totalorder %v4424, 2
        %vm4426 = vcmp.eq.s32.totalorder %v4424, 0
        %v4427 = vxor.u32 %v4421, 2147483648
        %v4428 = vsel %vm4426, %v4420, %v4427
        %vm4429 = vcmp.eq.s32.totalorder %v4424, 2
        %v4430 = vxor.u32 %v4420, 2147483648
        %v4431 = vsel %vm4429, %v4430, %v4421
        %v4432 = vsel %vm4425, %v4428, %v4431
        %v4433 = vsel %vm4422, nan, %v4432
        %v4434 = vand.u32 2147483647, %v663
        %vm4435 = vcmp.le.f32.partialorder %v4434, 0.7853982
        %vm4436 = vcmp.lt.s32.totalorder %v663, 0
        %v4437 = vand.u32 %v663, 2139095040
        %v4438 = vshrl.u32 %v4437, 23
        %v4439 = vsub.s32 %v4438, 127
        %v4440 = vand.u32 2147483647, %v663
        %v4441 = vand.u32 %v4440, 8388607
        %v4442 = vor.u32 %v4441, 8388608
        %v4443 = vsub.s32 0, %v4442
        %v4444 = vadd.s32 %v4439, 1
        %vm4445 = vcmp.gt.s32.totalorder %v4444, 0
        %v4446 = vsel %vm4445, %v4444, 0
        %v4447 = vshrl.u32 %v4446, 5
        %v4448 = vand.u32 %v4446, 31
        %v4449 = vsub.s32 32, %v4448
        %v4450 = vshrl.u32 683565275, %v4449
        %v4451 = vshll.u32 683565275, %v4448
        %v4452 = vshrl.u32 2475754826, %v4449
        %v4453 = vor.u32 %v4451, %v4452
        %v4454 = vshll.u32 2475754826, %v4448
        %v4455 = vshrl.u32 2131351028, %v4449
        %v4456 = vor.u32 %v4454, %v4455
        %v4457 = vshll.u32 2131351028, %v4448
        %v4458 = vshrl.u32 2102212464, %v4449
        %v4459 = vor.u32 %v4457, %v4458
        %v4460 = vshll.u32 2102212464, %v4448
        %v4461 = vshrl.u32 920167782, %v4449
        %v4462 = vor.u32 %v4460, %v4461
        %v4463 = vshll.u32 920167782, %v4448
        %v4464 = vshrl.u32 1326507024, %v4449
        %v4465 = vor.u32 %v4463, %v4464
        %vm4466 = vcmp.lt.s32.totalorder %v4447, 1
        %vm4467 = vcmp.lt.s32.totalorder %v4447, 2
        %vm4468 = vcmp.lt.s32.totalorder %v4447, 3
        %vm4469 = vcmp.lt.s32.totalorder %v4447, 4
        %v4470 = vsel %vm4466, %v4450, %v4453
        %v4471 = vsel %vm4469, %v4459, 2102212464
        %v4472 = vsel %vm4468, %v4456, %v4471
        %v4473 = vsel %vm4467, %v4470, %v4472
        %v4474 = vsel %vm4466, %v4453, %v4456
        %v4475 = vsel %vm4469, %v4462, 920167782
        %v4476 = vsel %vm4468, %v4459, %v4475
        %v4477 = vsel %vm4467, %v4474, %v4476
        %v4478 = vsel %vm4466, %v4456, %v4459
        %v4479 = vsel %vm4469, %v4465, 1326507024
        %v4480 = vsel %vm4468, %v4462, %v4479
        %v4481 = vsel %vm4467, %v4478, %v4480
        %v4482 = vshll.u32 %v4442, 8
        %v4483 = vmul.u32.u64.compose %v4482, %v4481
        %v4484 = vextract.low.u32 %v4483
        %v4485 = vextract.high.u32 %v4483
        %v4486 = vmul.u32.u64.compose %v4482, %v4477
        %v4487 = vextract.low.u32 %v4486
        %v4488 = vextract.high.u32 %v4486
        %v4489 = vmul.u32 %v4482, %v4473
        %v4490 = vadd.s32 %v4485, %v4487
        %vm4491 = vc.u32 %v4485, %v4487
        %v4492 = vadd.s32 %v4488, 1
        %v4493 = vsel %vm4491, %v4492, %v4488
        %v4494 = vadd.s32 %v4489, %v4493
        %v4495 = vadd.s32 %v4494, 536870912
        %v4496 = vshrl.u32 %v4495, 30
        %v4497 = vshll.u32 %v4496, 30
        %v4498 = vsub.s32 %v4494, %v4497
        %vm4499 = vcmp.lt.s32.totalorder %v4498, 0
        %v4500 = vsub.s32 0, %v4498
        %v4501 = vsel %vm4499, %v4500, %v4498
        %v4502 = vclz %v4501
        %v4503 = vsub.s32 %v4502, 2
        %vm4504 = vcmp.gt.s32.totalorder 0, %v4503
        %v4505 = vsel %vm4504, 0, %v4503
        %v4506 = vsub.s32 32, %v4505
        %v4507 = vshll.u32 %v4498, %v4505
        %v4508 = vshrl.u32 %v4490, %v4506
        %v4509 = vor.u32 %v4507, %v4508
        %v4510 = vsub.s32 4294967266, %v4505
        %v4511 = vadd.s32 %v4510, 127
        %v4512 = vshll.u32 %v4511, 23
        %v4513 = vor.u32 4788187, %v4512
        %v4514 = vand.u32 2147483647, %v4513
        %v4516 = vcvt.s32.f32 %v4509
        %v4517 = vmul.f32 %v4516, %v4514
        %v4518 = vxor.u32 %v4517, 2147483648
        %v4519 = vsel %vm4436, %v4518, %v4517
        %v4520 = vsub.s32 4, %v4496
        %v4521 = vsel %vm4436, %v4520, %v4496
        %v4522 = vsel %vm4435, %v663, %v4519
        %v4523 = vsel %vm4435, 0, %v4521
        %v4524 = vcosq.f32.pop %v4522
        %v4525 = vsinq.f32.pop %v4522
        %vm4526 = vweird.f32 %v663
        %v4527 = vadd.s32 %v4523, 3
        %v4528 = vand.u32 %v4527, 3
        %vm4529 = vcmp.lt.s32.totalorder %v4528, 2
        %vm4530 = vcmp.eq.s32.totalorder %v4528, 0
        %v4531 = vxor.u32 %v4525, 2147483648
        %v4532 = vsel %vm4530, %v4524, %v4531
        %vm4533 = vcmp.eq.s32.totalorder %v4528, 2
        %v4534 = vxor.u32 %v4524, 2147483648
        %v4535 = vsel %vm4533, %v4534, %v4525
        %v4536 = vsel %vm4529, %v4532, %v4535
        %v4537 = vsel %vm4526, nan, %v4536
        %v4538 = vand.u32 2147483647, %v664
        %vm4539 = vcmp.le.f32.partialorder %v4538, 0.7853982
        %vm4540 = vcmp.lt.s32.totalorder %v664, 0
        %v4541 = vand.u32 %v664, 2139095040
        %v4542 = vshrl.u32 %v4541, 23
        %v4543 = vsub.s32 %v4542, 127
        %v4544 = vand.u32 2147483647, %v664
        %v4545 = vand.u32 %v4544, 8388607
        %v4546 = vor.u32 %v4545, 8388608
        %v4547 = vsub.s32 0, %v4546
        %v4548 = vadd.s32 %v4543, 1
        %vm4549 = vcmp.gt.s32.totalorder %v4548, 0
        %v4550 = vsel %vm4549, %v4548, 0
        %v4551 = vshrl.u32 %v4550, 5
        %v4552 = vand.u32 %v4550, 31
        %v4553 = vsub.s32 32, %v4552
        %v4554 = vshrl.u32 683565275, %v4553
        %v4555 = vshll.u32 683565275, %v4552
        %v4556 = vshrl.u32 2475754826, %v4553
        %v4557 = vor.u32 %v4555, %v4556
        %v4558 = vshll.u32 2475754826, %v4552
        %v4559 = vshrl.u32 2131351028, %v4553
        %v4560 = vor.u32 %v4558, %v4559
        %v4561 = vshll.u32 2131351028, %v4552
        %v4562 = vshrl.u32 2102212464, %v4553
        %v4563 = vor.u32 %v4561, %v4562
        %v4564 = vshll.u32 2102212464, %v4552
        %v4565 = vshrl.u32 920167782, %v4553
        %v4566 = vor.u32 %v4564, %v4565
        %v4567 = vshll.u32 920167782, %v4552
        %v4568 = vshrl.u32 1326507024, %v4553
        %v4569 = vor.u32 %v4567, %v4568
        %vm4570 = vcmp.lt.s32.totalorder %v4551, 1
        %vm4571 = vcmp.lt.s32.totalorder %v4551, 2
        %vm4572 = vcmp.lt.s32.totalorder %v4551, 3
        %vm4573 = vcmp.lt.s32.totalorder %v4551, 4
        %v4574 = vsel %vm4570, %v4554, %v4557
        %v4575 = vsel %vm4573, %v4563, 2102212464
        %v4576 = vsel %vm4572, %v4560, %v4575
        %v4577 = vsel %vm4571, %v4574, %v4576
        %v4578 = vsel %vm4570, %v4557, %v4560
        %v4579 = vsel %vm4573, %v4566, 920167782
        %v4580 = vsel %vm4572, %v4563, %v4579
        %v4581 = vsel %vm4571, %v4578, %v4580
        %v4582 = vsel %vm4570, %v4560, %v4563
        %v4583 = vsel %vm4573, %v4569, 1326507024
        %v4584 = vsel %vm4572, %v4566, %v4583
        %v4585 = vsel %vm4571, %v4582, %v4584
        %v4586 = vshll.u32 %v4546, 8
        %v4587 = vmul.u32.u64.compose %v4586, %v4585
        %v4588 = vextract.low.u32 %v4587
        %v4589 = vextract.high.u32 %v4587
        %v4590 = vmul.u32.u64.compose %v4586, %v4581
        %v4591 = vextract.low.u32 %v4590
        %v4592 = vextract.high.u32 %v4590
        %v4593 = vmul.u32 %v4586, %v4577
        %v4594 = vadd.s32 %v4589, %v4591
        %vm4595 = vc.u32 %v4589, %v4591
        %v4596 = vadd.s32 %v4592, 1
        %v4597 = vsel %vm4595, %v4596, %v4592
        %v4598 = vadd.s32 %v4593, %v4597
        %v4599 = vadd.s32 %v4598, 536870912
        %v4600 = vshrl.u32 %v4599, 30
        %v4601 = vshll.u32 %v4600, 30
        %v4602 = vsub.s32 %v4598, %v4601
        %vm4603 = vcmp.lt.s32.totalorder %v4602, 0
        %v4604 = vsub.s32 0, %v4602
        %v4605 = vsel %vm4603, %v4604, %v4602
        %v4606 = vclz %v4605
        %v4607 = vsub.s32 %v4606, 2
        %vm4608 = vcmp.gt.s32.totalorder 0, %v4607
        %v4609 = vsel %vm4608, 0, %v4607
        %v4610 = vsub.s32 32, %v4609
        %v4611 = vshll.u32 %v4602, %v4609
        %v4612 = vshrl.u32 %v4594, %v4610
        %v4613 = vor.u32 %v4611, %v4612
        %v4614 = vsub.s32 4294967266, %v4609
        %v4615 = vadd.s32 %v4614, 127
        %v4616 = vshll.u32 %v4615, 23
        %v4617 = vor.u32 4788187, %v4616
        %v4618 = vand.u32 2147483647, %v4617
        %v4620 = vcvt.s32.f32 %v4613
        %v4621 = vmul.f32 %v4620, %v4618
        %v4622 = vxor.u32 %v4621, 2147483648
        %v4623 = vsel %vm4540, %v4622, %v4621
        %v4624 = vsub.s32 4, %v4600
        %v4625 = vsel %vm4540, %v4624, %v4600
        %v4626 = vsel %vm4539, %v664, %v4623
        %v4627 = vsel %vm4539, 0, %v4625
        %v4628 = vcosq.f32.pop %v4626
        %v4629 = vsinq.f32.pop %v4626
        %vm4630 = vweird.f32 %v664
        %v4631 = vadd.s32 %v4627, 3
        %v4632 = vand.u32 %v4631, 3
        %vm4633 = vcmp.lt.s32.totalorder %v4632, 2
        %vm4634 = vcmp.eq.s32.totalorder %v4632, 0
        %v4635 = vxor.u32 %v4629, 2147483648
        %v4636 = vsel %vm4634, %v4628, %v4635
        %vm4637 = vcmp.eq.s32.totalorder %v4632, 2
        %v4638 = vxor.u32 %v4628, 2147483648
        %v4639 = vsel %vm4637, %v4638, %v4629
        %v4640 = vsel %vm4633, %v4636, %v4639
        %v4641 = vsel %vm4630, nan, %v4640
        %v4642 = vand.u32 2147483647, %v665
        %vm4643 = vcmp.le.f32.partialorder %v4642, 0.7853982
        %vm4644 = vcmp.lt.s32.totalorder %v665, 0
        %v4645 = vand.u32 %v665, 2139095040
        %v4646 = vshrl.u32 %v4645, 23
        %v4647 = vsub.s32 %v4646, 127
        %v4648 = vand.u32 2147483647, %v665
        %v4649 = vand.u32 %v4648, 8388607
        %v4650 = vor.u32 %v4649, 8388608
        %v4651 = vsub.s32 0, %v4650
        %v4652 = vadd.s32 %v4647, 1
        %vm4653 = vcmp.gt.s32.totalorder %v4652, 0
        %v4654 = vsel %vm4653, %v4652, 0
        %v4655 = vshrl.u32 %v4654, 5
        %v4656 = vand.u32 %v4654, 31
        %v4657 = vsub.s32 32, %v4656
        %v4658 = vshrl.u32 683565275, %v4657
        %v4659 = vshll.u32 683565275, %v4656
        %v4660 = vshrl.u32 2475754826, %v4657
        %v4661 = vor.u32 %v4659, %v4660
        %v4662 = vshll.u32 2475754826, %v4656
        %v4663 = vshrl.u32 2131351028, %v4657
        %v4664 = vor.u32 %v4662, %v4663
        %v4665 = vshll.u32 2131351028, %v4656
        %v4666 = vshrl.u32 2102212464, %v4657
        %v4667 = vor.u32 %v4665, %v4666
        %v4668 = vshll.u32 2102212464, %v4656
        %v4669 = vshrl.u32 920167782, %v4657
        %v4670 = vor.u32 %v4668, %v4669
        %v4671 = vshll.u32 920167782, %v4656
        %v4672 = vshrl.u32 1326507024, %v4657
        %v4673 = vor.u32 %v4671, %v4672
        %vm4674 = vcmp.lt.s32.totalorder %v4655, 1
        %vm4675 = vcmp.lt.s32.totalorder %v4655, 2
        %vm4676 = vcmp.lt.s32.totalorder %v4655, 3
        %vm4677 = vcmp.lt.s32.totalorder %v4655, 4
        %v4678 = vsel %vm4674, %v4658, %v4661
        %v4679 = vsel %vm4677, %v4667, 2102212464
        %v4680 = vsel %vm4676, %v4664, %v4679
        %v4681 = vsel %vm4675, %v4678, %v4680
        %v4682 = vsel %vm4674, %v4661, %v4664
        %v4683 = vsel %vm4677, %v4670, 920167782
        %v4684 = vsel %vm4676, %v4667, %v4683
        %v4685 = vsel %vm4675, %v4682, %v4684
        %v4686 = vsel %vm4674, %v4664, %v4667
        %v4687 = vsel %vm4677, %v4673, 1326507024
        %v4688 = vsel %vm4676, %v4670, %v4687
        %v4689 = vsel %vm4675, %v4686, %v4688
        %v4690 = vshll.u32 %v4650, 8
        %v4691 = vmul.u32.u64.compose %v4690, %v4689
        %v4692 = vextract.low.u32 %v4691
        %v4693 = vextract.high.u32 %v4691
        %v4694 = vmul.u32.u64.compose %v4690, %v4685
        %v4695 = vextract.low.u32 %v4694
        %v4696 = vextract.high.u32 %v4694
        %v4697 = vmul.u32 %v4690, %v4681
        %v4698 = vadd.s32 %v4693, %v4695
        %vm4699 = vc.u32 %v4693, %v4695
        %v4700 = vadd.s32 %v4696, 1
        %v4701 = vsel %vm4699, %v4700, %v4696
        %v4702 = vadd.s32 %v4697, %v4701
        %v4703 = vadd.s32 %v4702, 536870912
        %v4704 = vshrl.u32 %v4703, 30
        %v4705 = vshll.u32 %v4704, 30
        %v4706 = vsub.s32 %v4702, %v4705
        %vm4707 = vcmp.lt.s32.totalorder %v4706, 0
        %v4708 = vsub.s32 0, %v4706
        %v4709 = vsel %vm4707, %v4708, %v4706
        %v4710 = vclz %v4709
        %v4711 = vsub.s32 %v4710, 2
        %vm4712 = vcmp.gt.s32.totalorder 0, %v4711
        %v4713 = vsel %vm4712, 0, %v4711
        %v4714 = vsub.s32 32, %v4713
        %v4715 = vshll.u32 %v4706, %v4713
        %v4716 = vshrl.u32 %v4698, %v4714
        %v4717 = vor.u32 %v4715, %v4716
        %v4718 = vsub.s32 4294967266, %v4713
        %v4719 = vadd.s32 %v4718, 127
        %v4720 = vshll.u32 %v4719, 23
        %v4721 = vor.u32 4788187, %v4720
        %v4722 = vand.u32 2147483647, %v4721
        %v4724 = vcvt.s32.f32 %v4717
        %v4725 = vmul.f32 %v4724, %v4722
        %v4726 = vxor.u32 %v4725, 2147483648
        %v4727 = vsel %vm4644, %v4726, %v4725
        %v4728 = vsub.s32 4, %v4704
        %v4729 = vsel %vm4644, %v4728, %v4704
        %v4730 = vsel %vm4643, %v665, %v4727
        %v4731 = vsel %vm4643, 0, %v4729
        %v4732 = vcosq.f32.pop %v4730
        %v4733 = vsinq.f32.pop %v4730
        %vm4734 = vweird.f32 %v665
        %v4735 = vadd.s32 %v4731, 3
        %v4736 = vand.u32 %v4735, 3
        %vm4737 = vcmp.lt.s32.totalorder %v4736, 2
        %vm4738 = vcmp.eq.s32.totalorder %v4736, 0
        %v4739 = vxor.u32 %v4733, 2147483648
        %v4740 = vsel %vm4738, %v4732, %v4739
        %vm4741 = vcmp.eq.s32.totalorder %v4736, 2
        %v4742 = vxor.u32 %v4732, 2147483648
        %v4743 = vsel %vm4741, %v4742, %v4733
        %v4744 = vsel %vm4737, %v4740, %v4743
        %v4745 = vsel %vm4734, nan, %v4744
        %v4746 = vand.u32 2147483647, %v666
        %vm4747 = vcmp.le.f32.partialorder %v4746, 0.7853982
        %vm4748 = vcmp.lt.s32.totalorder %v666, 0
        %v4749 = vand.u32 %v666, 2139095040
        %v4750 = vshrl.u32 %v4749, 23
        %v4751 = vsub.s32 %v4750, 127
        %v4752 = vand.u32 2147483647, %v666
        %v4753 = vand.u32 %v4752, 8388607
        %v4754 = vor.u32 %v4753, 8388608
        %v4755 = vsub.s32 0, %v4754
        %v4756 = vadd.s32 %v4751, 1
        %vm4757 = vcmp.gt.s32.totalorder %v4756, 0
        %v4758 = vsel %vm4757, %v4756, 0
        %v4759 = vshrl.u32 %v4758, 5
        %v4760 = vand.u32 %v4758, 31
        %v4761 = vsub.s32 32, %v4760
        %v4762 = vshrl.u32 683565275, %v4761
        %v4763 = vshll.u32 683565275, %v4760
        %v4764 = vshrl.u32 2475754826, %v4761
        %v4765 = vor.u32 %v4763, %v4764
        %v4766 = vshll.u32 2475754826, %v4760
        %v4767 = vshrl.u32 2131351028, %v4761
        %v4768 = vor.u32 %v4766, %v4767
        %v4769 = vshll.u32 2131351028, %v4760
        %v4770 = vshrl.u32 2102212464, %v4761
        %v4771 = vor.u32 %v4769, %v4770
        %v4772 = vshll.u32 2102212464, %v4760
        %v4773 = vshrl.u32 920167782, %v4761
        %v4774 = vor.u32 %v4772, %v4773
        %v4775 = vshll.u32 920167782, %v4760
        %v4776 = vshrl.u32 1326507024, %v4761
        %v4777 = vor.u32 %v4775, %v4776
        %vm4778 = vcmp.lt.s32.totalorder %v4759, 1
        %vm4779 = vcmp.lt.s32.totalorder %v4759, 2
        %vm4780 = vcmp.lt.s32.totalorder %v4759, 3
        %vm4781 = vcmp.lt.s32.totalorder %v4759, 4
        %v4782 = vsel %vm4778, %v4762, %v4765
        %v4783 = vsel %vm4781, %v4771, 2102212464
        %v4784 = vsel %vm4780, %v4768, %v4783
        %v4785 = vsel %vm4779, %v4782, %v4784
        %v4786 = vsel %vm4778, %v4765, %v4768
        %v4787 = vsel %vm4781, %v4774, 920167782
        %v4788 = vsel %vm4780, %v4771, %v4787
        %v4789 = vsel %vm4779, %v4786, %v4788
        %v4790 = vsel %vm4778, %v4768, %v4771
        %v4791 = vsel %vm4781, %v4777, 1326507024
        %v4792 = vsel %vm4780, %v4774, %v4791
        %v4793 = vsel %vm4779, %v4790, %v4792
        %v4794 = vshll.u32 %v4754, 8
        %v4795 = vmul.u32.u64.compose %v4794, %v4793
        %v4796 = vextract.low.u32 %v4795
        %v4797 = vextract.high.u32 %v4795
        %v4798 = vmul.u32.u64.compose %v4794, %v4789
        %v4799 = vextract.low.u32 %v4798
        %v4800 = vextract.high.u32 %v4798
        %v4801 = vmul.u32 %v4794, %v4785
        %v4802 = vadd.s32 %v4797, %v4799
        %vm4803 = vc.u32 %v4797, %v4799
        %v4804 = vadd.s32 %v4800, 1
        %v4805 = vsel %vm4803, %v4804, %v4800
        %v4806 = vadd.s32 %v4801, %v4805
        %v4807 = vadd.s32 %v4806, 536870912
        %v4808 = vshrl.u32 %v4807, 30
        %v4809 = vshll.u32 %v4808, 30
        %v4810 = vsub.s32 %v4806, %v4809
        %vm4811 = vcmp.lt.s32.totalorder %v4810, 0
        %v4812 = vsub.s32 0, %v4810
        %v4813 = vsel %vm4811, %v4812, %v4810
        %v4814 = vclz %v4813
        %v4815 = vsub.s32 %v4814, 2
        %vm4816 = vcmp.gt.s32.totalorder 0, %v4815
        %v4817 = vsel %vm4816, 0, %v4815
        %v4818 = vsub.s32 32, %v4817
        %v4819 = vshll.u32 %v4810, %v4817
        %v4820 = vshrl.u32 %v4802, %v4818
        %v4821 = vor.u32 %v4819, %v4820
        %v4822 = vsub.s32 4294967266, %v4817
        %v4823 = vadd.s32 %v4822, 127
        %v4824 = vshll.u32 %v4823, 23
        %v4825 = vor.u32 4788187, %v4824
        %v4826 = vand.u32 2147483647, %v4825
        %v4828 = vcvt.s32.f32 %v4821
        %v4829 = vmul.f32 %v4828, %v4826
        %v4830 = vxor.u32 %v4829, 2147483648
        %v4831 = vsel %vm4748, %v4830, %v4829
        %v4832 = vsub.s32 4, %v4808
        %v4833 = vsel %vm4748, %v4832, %v4808
        %v4834 = vsel %vm4747, %v666, %v4831
        %v4835 = vsel %vm4747, 0, %v4833
        %v4836 = vcosq.f32.pop %v4834
        %v4837 = vsinq.f32.pop %v4834
        %vm4838 = vweird.f32 %v666
        %v4839 = vadd.s32 %v4835, 3
        %v4840 = vand.u32 %v4839, 3
        %vm4841 = vcmp.lt.s32.totalorder %v4840, 2
        %vm4842 = vcmp.eq.s32.totalorder %v4840, 0
        %v4843 = vxor.u32 %v4837, 2147483648
        %v4844 = vsel %vm4842, %v4836, %v4843
        %vm4845 = vcmp.eq.s32.totalorder %v4840, 2
        %v4846 = vxor.u32 %v4836, 2147483648
        %v4847 = vsel %vm4845, %v4846, %v4837
        %v4848 = vsel %vm4841, %v4844, %v4847
        %v4849 = vsel %vm4838, nan, %v4848
        %v4850 = vand.u32 2147483647, %v667
        %vm4851 = vcmp.le.f32.partialorder %v4850, 0.7853982
        %vm4852 = vcmp.lt.s32.totalorder %v667, 0
        %v4853 = vand.u32 %v667, 2139095040
        %v4854 = vshrl.u32 %v4853, 23
        %v4855 = vsub.s32 %v4854, 127
        %v4856 = vand.u32 2147483647, %v667
        %v4857 = vand.u32 %v4856, 8388607
        %v4858 = vor.u32 %v4857, 8388608
        %v4859 = vsub.s32 0, %v4858
        %v4860 = vadd.s32 %v4855, 1
        %vm4861 = vcmp.gt.s32.totalorder %v4860, 0
        %v4862 = vsel %vm4861, %v4860, 0
        %v4863 = vshrl.u32 %v4862, 5
        %v4864 = vand.u32 %v4862, 31
        %v4865 = vsub.s32 32, %v4864
        %v4866 = vshrl.u32 683565275, %v4865
        %v4867 = vshll.u32 683565275, %v4864
        %v4868 = vshrl.u32 2475754826, %v4865
        %v4869 = vor.u32 %v4867, %v4868
        %v4870 = vshll.u32 2475754826, %v4864
        %v4871 = vshrl.u32 2131351028, %v4865
        %v4872 = vor.u32 %v4870, %v4871
        %v4873 = vshll.u32 2131351028, %v4864
        %v4874 = vshrl.u32 2102212464, %v4865
        %v4875 = vor.u32 %v4873, %v4874
        %v4876 = vshll.u32 2102212464, %v4864
        %v4877 = vshrl.u32 920167782, %v4865
        %v4878 = vor.u32 %v4876, %v4877
        %v4879 = vshll.u32 920167782, %v4864
        %v4880 = vshrl.u32 1326507024, %v4865
        %v4881 = vor.u32 %v4879, %v4880
        %vm4882 = vcmp.lt.s32.totalorder %v4863, 1
        %vm4883 = vcmp.lt.s32.totalorder %v4863, 2
        %vm4884 = vcmp.lt.s32.totalorder %v4863, 3
        %vm4885 = vcmp.lt.s32.totalorder %v4863, 4
        %v4886 = vsel %vm4882, %v4866, %v4869
        %v4887 = vsel %vm4885, %v4875, 2102212464
        %v4888 = vsel %vm4884, %v4872, %v4887
        %v4889 = vsel %vm4883, %v4886, %v4888
        %v4890 = vsel %vm4882, %v4869, %v4872
        %v4891 = vsel %vm4885, %v4878, 920167782
        %v4892 = vsel %vm4884, %v4875, %v4891
        %v4893 = vsel %vm4883, %v4890, %v4892
        %v4894 = vsel %vm4882, %v4872, %v4875
        %v4895 = vsel %vm4885, %v4881, 1326507024
        %v4896 = vsel %vm4884, %v4878, %v4895
        %v4897 = vsel %vm4883, %v4894, %v4896
        %v4898 = vshll.u32 %v4858, 8
        %v4899 = vmul.u32.u64.compose %v4898, %v4897
        %v4900 = vextract.low.u32 %v4899
        %v4901 = vextract.high.u32 %v4899
        %v4902 = vmul.u32.u64.compose %v4898, %v4893
        %v4903 = vextract.low.u32 %v4902
        %v4904 = vextract.high.u32 %v4902
        %v4905 = vmul.u32 %v4898, %v4889
        %v4906 = vadd.s32 %v4901, %v4903
        %vm4907 = vc.u32 %v4901, %v4903
        %v4908 = vadd.s32 %v4904, 1
        %v4909 = vsel %vm4907, %v4908, %v4904
        %v4910 = vadd.s32 %v4905, %v4909
        %v4911 = vadd.s32 %v4910, 536870912
        %v4912 = vshrl.u32 %v4911, 30
        %v4913 = vshll.u32 %v4912, 30
        %v4914 = vsub.s32 %v4910, %v4913
        %vm4915 = vcmp.lt.s32.totalorder %v4914, 0
        %v4916 = vsub.s32 0, %v4914
        %v4917 = vsel %vm4915, %v4916, %v4914
        %v4918 = vclz %v4917
        %v4919 = vsub.s32 %v4918, 2
        %vm4920 = vcmp.gt.s32.totalorder 0, %v4919
        %v4921 = vsel %vm4920, 0, %v4919
        %v4922 = vsub.s32 32, %v4921
        %v4923 = vshll.u32 %v4914, %v4921
        %v4924 = vshrl.u32 %v4906, %v4922
        %v4925 = vor.u32 %v4923, %v4924
        %v4926 = vsub.s32 4294967266, %v4921
        %v4927 = vadd.s32 %v4926, 127
        %v4928 = vshll.u32 %v4927, 23
        %v4929 = vor.u32 4788187, %v4928
        %v4930 = vand.u32 2147483647, %v4929
        %v4932 = vcvt.s32.f32 %v4925
        %v4933 = vmul.f32 %v4932, %v4930
        %v4934 = vxor.u32 %v4933, 2147483648
        %v4935 = vsel %vm4852, %v4934, %v4933
        %v4936 = vsub.s32 4, %v4912
        %v4937 = vsel %vm4852, %v4936, %v4912
        %v4938 = vsel %vm4851, %v667, %v4935
        %v4939 = vsel %vm4851, 0, %v4937
        %v4940 = vcosq.f32.pop %v4938
        %v4941 = vsinq.f32.pop %v4938
        %vm4942 = vweird.f32 %v667
        %v4943 = vadd.s32 %v4939, 3
        %v4944 = vand.u32 %v4943, 3
        %vm4945 = vcmp.lt.s32.totalorder %v4944, 2
        %vm4946 = vcmp.eq.s32.totalorder %v4944, 0
        %v4947 = vxor.u32 %v4941, 2147483648
        %v4948 = vsel %vm4946, %v4940, %v4947
        %vm4949 = vcmp.eq.s32.totalorder %v4944, 2
        %v4950 = vxor.u32 %v4940, 2147483648
        %v4951 = vsel %vm4949, %v4950, %v4941
        %v4952 = vsel %vm4945, %v4948, %v4951
        %v4953 = vsel %vm4942, nan, %v4952
        %v4954 = vand.u32 2147483647, %v668
        %vm4955 = vcmp.le.f32.partialorder %v4954, 0.7853982
        %vm4956 = vcmp.lt.s32.totalorder %v668, 0
        %v4957 = vand.u32 %v668, 2139095040
        %v4958 = vshrl.u32 %v4957, 23
        %v4959 = vsub.s32 %v4958, 127
        %v4960 = vand.u32 2147483647, %v668
        %v4961 = vand.u32 %v4960, 8388607
        %v4962 = vor.u32 %v4961, 8388608
        %v4963 = vsub.s32 0, %v4962
        %v4964 = vadd.s32 %v4959, 1
        %vm4965 = vcmp.gt.s32.totalorder %v4964, 0
        %v4966 = vsel %vm4965, %v4964, 0
        %v4967 = vshrl.u32 %v4966, 5
        %v4968 = vand.u32 %v4966, 31
        %v4969 = vsub.s32 32, %v4968
        %v4970 = vshrl.u32 683565275, %v4969
        %v4971 = vshll.u32 683565275, %v4968
        %v4972 = vshrl.u32 2475754826, %v4969
        %v4973 = vor.u32 %v4971, %v4972
        %v4974 = vshll.u32 2475754826, %v4968
        %v4975 = vshrl.u32 2131351028, %v4969
        %v4976 = vor.u32 %v4974, %v4975
        %v4977 = vshll.u32 2131351028, %v4968
        %v4978 = vshrl.u32 2102212464, %v4969
        %v4979 = vor.u32 %v4977, %v4978
        %v4980 = vshll.u32 2102212464, %v4968
        %v4981 = vshrl.u32 920167782, %v4969
        %v4982 = vor.u32 %v4980, %v4981
        %v4983 = vshll.u32 920167782, %v4968
        %v4984 = vshrl.u32 1326507024, %v4969
        %v4985 = vor.u32 %v4983, %v4984
        %vm4986 = vcmp.lt.s32.totalorder %v4967, 1
        %vm4987 = vcmp.lt.s32.totalorder %v4967, 2
        %vm4988 = vcmp.lt.s32.totalorder %v4967, 3
        %vm4989 = vcmp.lt.s32.totalorder %v4967, 4
        %v4990 = vsel %vm4986, %v4970, %v4973
        %v4991 = vsel %vm4989, %v4979, 2102212464
        %v4992 = vsel %vm4988, %v4976, %v4991
        %v4993 = vsel %vm4987, %v4990, %v4992
        %v4994 = vsel %vm4986, %v4973, %v4976
        %v4995 = vsel %vm4989, %v4982, 920167782
        %v4996 = vsel %vm4988, %v4979, %v4995
        %v4997 = vsel %vm4987, %v4994, %v4996
        %v4998 = vsel %vm4986, %v4976, %v4979
        %v4999 = vsel %vm4989, %v4985, 1326507024
        %v5000 = vsel %vm4988, %v4982, %v4999
        %v5001 = vsel %vm4987, %v4998, %v5000
        %v5002 = vshll.u32 %v4962, 8
        %v5003 = vmul.u32.u64.compose %v5002, %v5001
        %v5004 = vextract.low.u32 %v5003
        %v5005 = vextract.high.u32 %v5003
        %v5006 = vmul.u32.u64.compose %v5002, %v4997
        %v5007 = vextract.low.u32 %v5006
        %v5008 = vextract.high.u32 %v5006
        %v5009 = vmul.u32 %v5002, %v4993
        %v5010 = vadd.s32 %v5005, %v5007
        %vm5011 = vc.u32 %v5005, %v5007
        %v5012 = vadd.s32 %v5008, 1
        %v5013 = vsel %vm5011, %v5012, %v5008
        %v5014 = vadd.s32 %v5009, %v5013
        %v5015 = vadd.s32 %v5014, 536870912
        %v5016 = vshrl.u32 %v5015, 30
        %v5017 = vshll.u32 %v5016, 30
        %v5018 = vsub.s32 %v5014, %v5017
        %vm5019 = vcmp.lt.s32.totalorder %v5018, 0
        %v5020 = vsub.s32 0, %v5018
        %v5021 = vsel %vm5019, %v5020, %v5018
        %v5022 = vclz %v5021
        %v5023 = vsub.s32 %v5022, 2
        %vm5024 = vcmp.gt.s32.totalorder 0, %v5023
        %v5025 = vsel %vm5024, 0, %v5023
        %v5026 = vsub.s32 32, %v5025
        %v5027 = vshll.u32 %v5018, %v5025
        %v5028 = vshrl.u32 %v5010, %v5026
        %v5029 = vor.u32 %v5027, %v5028
        %v5030 = vsub.s32 4294967266, %v5025
        %v5031 = vadd.s32 %v5030, 127
        %v5032 = vshll.u32 %v5031, 23
        %v5033 = vor.u32 4788187, %v5032
        %v5034 = vand.u32 2147483647, %v5033
        %v5036 = vcvt.s32.f32 %v5029
        %v5037 = vmul.f32 %v5036, %v5034
        %v5038 = vxor.u32 %v5037, 2147483648
        %v5039 = vsel %vm4956, %v5038, %v5037
        %v5040 = vsub.s32 4, %v5016
        %v5041 = vsel %vm4956, %v5040, %v5016
        %v5042 = vsel %vm4955, %v668, %v5039
        %v5043 = vsel %vm4955, 0, %v5041
        %v5044 = vcosq.f32.pop %v5042
        %v5045 = vsinq.f32.pop %v5042
        %vm5046 = vweird.f32 %v668
        %v5047 = vadd.s32 %v5043, 3
        %v5048 = vand.u32 %v5047, 3
        %vm5049 = vcmp.lt.s32.totalorder %v5048, 2
        %vm5050 = vcmp.eq.s32.totalorder %v5048, 0
        %v5051 = vxor.u32 %v5045, 2147483648
        %v5052 = vsel %vm5050, %v5044, %v5051
        %vm5053 = vcmp.eq.s32.totalorder %v5048, 2
        %v5054 = vxor.u32 %v5044, 2147483648
        %v5055 = vsel %vm5053, %v5054, %v5045
        %v5056 = vsel %vm5049, %v5052, %v5055
        %v5057 = vsel %vm5046, nan, %v5056
        %v5058 = vand.u32 2147483647, %v669
        %vm5059 = vcmp.le.f32.partialorder %v5058, 0.7853982
        %vm5060 = vcmp.lt.s32.totalorder %v669, 0
        %v5061 = vand.u32 %v669, 2139095040
        %v5062 = vshrl.u32 %v5061, 23
        %v5063 = vsub.s32 %v5062, 127
        %v5064 = vand.u32 2147483647, %v669
        %v5065 = vand.u32 %v5064, 8388607
        %v5066 = vor.u32 %v5065, 8388608
        %v5067 = vsub.s32 0, %v5066
        %v5068 = vadd.s32 %v5063, 1
        %vm5069 = vcmp.gt.s32.totalorder %v5068, 0
        %v5070 = vsel %vm5069, %v5068, 0
        %v5071 = vshrl.u32 %v5070, 5
        %v5072 = vand.u32 %v5070, 31
        %v5073 = vsub.s32 32, %v5072
        %v5074 = vshrl.u32 683565275, %v5073
        %v5075 = vshll.u32 683565275, %v5072
        %v5076 = vshrl.u32 2475754826, %v5073
        %v5077 = vor.u32 %v5075, %v5076
        %v5078 = vshll.u32 2475754826, %v5072
        %v5079 = vshrl.u32 2131351028, %v5073
        %v5080 = vor.u32 %v5078, %v5079
        %v5081 = vshll.u32 2131351028, %v5072
        %v5082 = vshrl.u32 2102212464, %v5073
        %v5083 = vor.u32 %v5081, %v5082
        %v5084 = vshll.u32 2102212464, %v5072
        %v5085 = vshrl.u32 920167782, %v5073
        %v5086 = vor.u32 %v5084, %v5085
        %v5087 = vshll.u32 920167782, %v5072
        %v5088 = vshrl.u32 1326507024, %v5073
        %v5089 = vor.u32 %v5087, %v5088
        %vm5090 = vcmp.lt.s32.totalorder %v5071, 1
        %vm5091 = vcmp.lt.s32.totalorder %v5071, 2
        %vm5092 = vcmp.lt.s32.totalorder %v5071, 3
        %vm5093 = vcmp.lt.s32.totalorder %v5071, 4
        %v5094 = vsel %vm5090, %v5074, %v5077
        %v5095 = vsel %vm5093, %v5083, 2102212464
        %v5096 = vsel %vm5092, %v5080, %v5095
        %v5097 = vsel %vm5091, %v5094, %v5096
        %v5098 = vsel %vm5090, %v5077, %v5080
        %v5099 = vsel %vm5093, %v5086, 920167782
        %v5100 = vsel %vm5092, %v5083, %v5099
        %v5101 = vsel %vm5091, %v5098, %v5100
        %v5102 = vsel %vm5090, %v5080, %v5083
        %v5103 = vsel %vm5093, %v5089, 1326507024
        %v5104 = vsel %vm5092, %v5086, %v5103
        %v5105 = vsel %vm5091, %v5102, %v5104
        %v5106 = vshll.u32 %v5066, 8
        %v5107 = vmul.u32.u64.compose %v5106, %v5105
        %v5108 = vextract.low.u32 %v5107
        %v5109 = vextract.high.u32 %v5107
        %v5110 = vmul.u32.u64.compose %v5106, %v5101
        %v5111 = vextract.low.u32 %v5110
        %v5112 = vextract.high.u32 %v5110
        %v5113 = vmul.u32 %v5106, %v5097
        %v5114 = vadd.s32 %v5109, %v5111
        %vm5115 = vc.u32 %v5109, %v5111
        %v5116 = vadd.s32 %v5112, 1
        %v5117 = vsel %vm5115, %v5116, %v5112
        %v5118 = vadd.s32 %v5113, %v5117
        %v5119 = vadd.s32 %v5118, 536870912
        %v5120 = vshrl.u32 %v5119, 30
        %v5121 = vshll.u32 %v5120, 30
        %v5122 = vsub.s32 %v5118, %v5121
        %vm5123 = vcmp.lt.s32.totalorder %v5122, 0
        %v5124 = vsub.s32 0, %v5122
        %v5125 = vsel %vm5123, %v5124, %v5122
        %v5126 = vclz %v5125
        %v5127 = vsub.s32 %v5126, 2
        %vm5128 = vcmp.gt.s32.totalorder 0, %v5127
        %v5129 = vsel %vm5128, 0, %v5127
        %v5130 = vsub.s32 32, %v5129
        %v5131 = vshll.u32 %v5122, %v5129
        %v5132 = vshrl.u32 %v5114, %v5130
        %v5133 = vor.u32 %v5131, %v5132
        %v5134 = vsub.s32 4294967266, %v5129
        %v5135 = vadd.s32 %v5134, 127
        %v5136 = vshll.u32 %v5135, 23
        %v5137 = vor.u32 4788187, %v5136
        %v5138 = vand.u32 2147483647, %v5137
        %v5140 = vcvt.s32.f32 %v5133
        %v5141 = vmul.f32 %v5140, %v5138
        %v5142 = vxor.u32 %v5141, 2147483648
        %v5143 = vsel %vm5060, %v5142, %v5141
        %v5144 = vsub.s32 4, %v5120
        %v5145 = vsel %vm5060, %v5144, %v5120
        %v5146 = vsel %vm5059, %v669, %v5143
        %v5147 = vsel %vm5059, 0, %v5145
        %v5148 = vcosq.f32.pop %v5146
        %v5149 = vsinq.f32.pop %v5146
        %vm5150 = vweird.f32 %v669
        %v5151 = vadd.s32 %v5147, 3
        %v5152 = vand.u32 %v5151, 3
        %vm5153 = vcmp.lt.s32.totalorder %v5152, 2
        %vm5154 = vcmp.eq.s32.totalorder %v5152, 0
        %v5155 = vxor.u32 %v5149, 2147483648
        %v5156 = vsel %vm5154, %v5148, %v5155
        %vm5157 = vcmp.eq.s32.totalorder %v5152, 2
        %v5158 = vxor.u32 %v5148, 2147483648
        %v5159 = vsel %vm5157, %v5158, %v5149
        %v5160 = vsel %vm5153, %v5156, %v5159
        %v5161 = vsel %vm5150, nan, %v5160
        %v5162 = vand.u32 2147483647, %v670
        %vm5163 = vcmp.le.f32.partialorder %v5162, 0.7853982
        %vm5164 = vcmp.lt.s32.totalorder %v670, 0
        %v5165 = vand.u32 %v670, 2139095040
        %v5166 = vshrl.u32 %v5165, 23
        %v5167 = vsub.s32 %v5166, 127
        %v5168 = vand.u32 2147483647, %v670
        %v5169 = vand.u32 %v5168, 8388607
        %v5170 = vor.u32 %v5169, 8388608
        %v5171 = vsub.s32 0, %v5170
        %v5172 = vadd.s32 %v5167, 1
        %vm5173 = vcmp.gt.s32.totalorder %v5172, 0
        %v5174 = vsel %vm5173, %v5172, 0
        %v5175 = vshrl.u32 %v5174, 5
        %v5176 = vand.u32 %v5174, 31
        %v5177 = vsub.s32 32, %v5176
        %v5178 = vshrl.u32 683565275, %v5177
        %v5179 = vshll.u32 683565275, %v5176
        %v5180 = vshrl.u32 2475754826, %v5177
        %v5181 = vor.u32 %v5179, %v5180
        %v5182 = vshll.u32 2475754826, %v5176
        %v5183 = vshrl.u32 2131351028, %v5177
        %v5184 = vor.u32 %v5182, %v5183
        %v5185 = vshll.u32 2131351028, %v5176
        %v5186 = vshrl.u32 2102212464, %v5177
        %v5187 = vor.u32 %v5185, %v5186
        %v5188 = vshll.u32 2102212464, %v5176
        %v5189 = vshrl.u32 920167782, %v5177
        %v5190 = vor.u32 %v5188, %v5189
        %v5191 = vshll.u32 920167782, %v5176
        %v5192 = vshrl.u32 1326507024, %v5177
        %v5193 = vor.u32 %v5191, %v5192
        %vm5194 = vcmp.lt.s32.totalorder %v5175, 1
        %vm5195 = vcmp.lt.s32.totalorder %v5175, 2
        %vm5196 = vcmp.lt.s32.totalorder %v5175, 3
        %vm5197 = vcmp.lt.s32.totalorder %v5175, 4
        %v5198 = vsel %vm5194, %v5178, %v5181
        %v5199 = vsel %vm5197, %v5187, 2102212464
        %v5200 = vsel %vm5196, %v5184, %v5199
        %v5201 = vsel %vm5195, %v5198, %v5200
        %v5202 = vsel %vm5194, %v5181, %v5184
        %v5203 = vsel %vm5197, %v5190, 920167782
        %v5204 = vsel %vm5196, %v5187, %v5203
        %v5205 = vsel %vm5195, %v5202, %v5204
        %v5206 = vsel %vm5194, %v5184, %v5187
        %v5207 = vsel %vm5197, %v5193, 1326507024
        %v5208 = vsel %vm5196, %v5190, %v5207
        %v5209 = vsel %vm5195, %v5206, %v5208
        %v5210 = vshll.u32 %v5170, 8
        %v5211 = vmul.u32.u64.compose %v5210, %v5209
        %v5212 = vextract.low.u32 %v5211
        %v5213 = vextract.high.u32 %v5211
        %v5214 = vmul.u32.u64.compose %v5210, %v5205
        %v5215 = vextract.low.u32 %v5214
        %v5216 = vextract.high.u32 %v5214
        %v5217 = vmul.u32 %v5210, %v5201
        %v5218 = vadd.s32 %v5213, %v5215
        %vm5219 = vc.u32 %v5213, %v5215
        %v5220 = vadd.s32 %v5216, 1
        %v5221 = vsel %vm5219, %v5220, %v5216
        %v5222 = vadd.s32 %v5217, %v5221
        %v5223 = vadd.s32 %v5222, 536870912
        %v5224 = vshrl.u32 %v5223, 30
        %v5225 = vshll.u32 %v5224, 30
        %v5226 = vsub.s32 %v5222, %v5225
        %vm5227 = vcmp.lt.s32.totalorder %v5226, 0
        %v5228 = vsub.s32 0, %v5226
        %v5229 = vsel %vm5227, %v5228, %v5226
        %v5230 = vclz %v5229
        %v5231 = vsub.s32 %v5230, 2
        %vm5232 = vcmp.gt.s32.totalorder 0, %v5231
        %v5233 = vsel %vm5232, 0, %v5231
        %v5234 = vsub.s32 32, %v5233
        %v5235 = vshll.u32 %v5226, %v5233
        %v5236 = vshrl.u32 %v5218, %v5234
        %v5237 = vor.u32 %v5235, %v5236
        %v5238 = vsub.s32 4294967266, %v5233
        %v5239 = vadd.s32 %v5238, 127
        %v5240 = vshll.u32 %v5239, 23
        %v5241 = vor.u32 4788187, %v5240
        %v5242 = vand.u32 2147483647, %v5241
        %v5244 = vcvt.s32.f32 %v5237
        %v5245 = vmul.f32 %v5244, %v5242
        %v5246 = vxor.u32 %v5245, 2147483648
        %v5247 = vsel %vm5164, %v5246, %v5245
        %v5248 = vsub.s32 4, %v5224
        %v5249 = vsel %vm5164, %v5248, %v5224
        %v5250 = vsel %vm5163, %v670, %v5247
        %v5251 = vsel %vm5163, 0, %v5249
        %v5252 = vcosq.f32.pop %v5250
        %v5253 = vsinq.f32.pop %v5250
        %vm5254 = vweird.f32 %v670
        %v5255 = vadd.s32 %v5251, 3
        %v5256 = vand.u32 %v5255, 3
        %vm5257 = vcmp.lt.s32.totalorder %v5256, 2
        %vm5258 = vcmp.eq.s32.totalorder %v5256, 0
        %v5259 = vxor.u32 %v5253, 2147483648
        %v5260 = vsel %vm5258, %v5252, %v5259
        %vm5261 = vcmp.eq.s32.totalorder %v5256, 2
        %v5262 = vxor.u32 %v5252, 2147483648
        %v5263 = vsel %vm5261, %v5262, %v5253
        %v5264 = vsel %vm5257, %v5260, %v5263
        %v5265 = vsel %vm5254, nan, %v5264
        %v5266 = vand.u32 2147483647, %v671
        %vm5267 = vcmp.le.f32.partialorder %v5266, 0.7853982
        %vm5268 = vcmp.lt.s32.totalorder %v671, 0
        %v5269 = vand.u32 %v671, 2139095040
        %v5270 = vshrl.u32 %v5269, 23
        %v5271 = vsub.s32 %v5270, 127
        %v5272 = vand.u32 2147483647, %v671
        %v5273 = vand.u32 %v5272, 8388607
        %v5274 = vor.u32 %v5273, 8388608
        %v5275 = vsub.s32 0, %v5274
        %v5276 = vadd.s32 %v5271, 1
        %vm5277 = vcmp.gt.s32.totalorder %v5276, 0
        %v5278 = vsel %vm5277, %v5276, 0
        %v5279 = vshrl.u32 %v5278, 5
        %v5280 = vand.u32 %v5278, 31
        %v5281 = vsub.s32 32, %v5280
        %v5282 = vshrl.u32 683565275, %v5281
        %v5283 = vshll.u32 683565275, %v5280
        %v5284 = vshrl.u32 2475754826, %v5281
        %v5285 = vor.u32 %v5283, %v5284
        %v5286 = vshll.u32 2475754826, %v5280
        %v5287 = vshrl.u32 2131351028, %v5281
        %v5288 = vor.u32 %v5286, %v5287
        %v5289 = vshll.u32 2131351028, %v5280
        %v5290 = vshrl.u32 2102212464, %v5281
        %v5291 = vor.u32 %v5289, %v5290
        %v5292 = vshll.u32 2102212464, %v5280
        %v5293 = vshrl.u32 920167782, %v5281
        %v5294 = vor.u32 %v5292, %v5293
        %v5295 = vshll.u32 920167782, %v5280
        %v5296 = vshrl.u32 1326507024, %v5281
        %v5297 = vor.u32 %v5295, %v5296
        %vm5298 = vcmp.lt.s32.totalorder %v5279, 1
        %vm5299 = vcmp.lt.s32.totalorder %v5279, 2
        %vm5300 = vcmp.lt.s32.totalorder %v5279, 3
        %vm5301 = vcmp.lt.s32.totalorder %v5279, 4
        %v5302 = vsel %vm5298, %v5282, %v5285
        %v5303 = vsel %vm5301, %v5291, 2102212464
        %v5304 = vsel %vm5300, %v5288, %v5303
        %v5305 = vsel %vm5299, %v5302, %v5304
        %v5306 = vsel %vm5298, %v5285, %v5288
        %v5307 = vsel %vm5301, %v5294, 920167782
        %v5308 = vsel %vm5300, %v5291, %v5307
        %v5309 = vsel %vm5299, %v5306, %v5308
        %v5310 = vsel %vm5298, %v5288, %v5291
        %v5311 = vsel %vm5301, %v5297, 1326507024
        %v5312 = vsel %vm5300, %v5294, %v5311
        %v5313 = vsel %vm5299, %v5310, %v5312
        %v5314 = vshll.u32 %v5274, 8
        %v5315 = vmul.u32.u64.compose %v5314, %v5313
        %v5316 = vextract.low.u32 %v5315
        %v5317 = vextract.high.u32 %v5315
        %v5318 = vmul.u32.u64.compose %v5314, %v5309
        %v5319 = vextract.low.u32 %v5318
        %v5320 = vextract.high.u32 %v5318
        %v5321 = vmul.u32 %v5314, %v5305
        %v5322 = vadd.s32 %v5317, %v5319
        %vm5323 = vc.u32 %v5317, %v5319
        %v5324 = vadd.s32 %v5320, 1
        %v5325 = vsel %vm5323, %v5324, %v5320
        %v5326 = vadd.s32 %v5321, %v5325
        %v5327 = vadd.s32 %v5326, 536870912
        %v5328 = vshrl.u32 %v5327, 30
        %v5329 = vshll.u32 %v5328, 30
        %v5330 = vsub.s32 %v5326, %v5329
        %vm5331 = vcmp.lt.s32.totalorder %v5330, 0
        %v5332 = vsub.s32 0, %v5330
        %v5333 = vsel %vm5331, %v5332, %v5330
        %v5334 = vclz %v5333
        %v5335 = vsub.s32 %v5334, 2
        %vm5336 = vcmp.gt.s32.totalorder 0, %v5335
        %v5337 = vsel %vm5336, 0, %v5335
        %v5338 = vsub.s32 32, %v5337
        %v5339 = vshll.u32 %v5330, %v5337
        %v5340 = vshrl.u32 %v5322, %v5338
        %v5341 = vor.u32 %v5339, %v5340
        %v5342 = vsub.s32 4294967266, %v5337
        %v5343 = vadd.s32 %v5342, 127
        %v5344 = vshll.u32 %v5343, 23
        %v5345 = vor.u32 4788187, %v5344
        %v5346 = vand.u32 2147483647, %v5345
        %v5348 = vcvt.s32.f32 %v5341
        %v5349 = vmul.f32 %v5348, %v5346
        %v5350 = vxor.u32 %v5349, 2147483648
        %v5351 = vsel %vm5268, %v5350, %v5349
        %v5352 = vsub.s32 4, %v5328
        %v5353 = vsel %vm5268, %v5352, %v5328
        %v5354 = vsel %vm5267, %v671, %v5351
        %v5355 = vsel %vm5267, 0, %v5353
        %v5356 = vcosq.f32.pop %v5354
        %v5357 = vsinq.f32.pop %v5354
        %vm5358 = vweird.f32 %v671
        %v5359 = vadd.s32 %v5355, 3
        %v5360 = vand.u32 %v5359, 3
        %vm5361 = vcmp.lt.s32.totalorder %v5360, 2
        %vm5362 = vcmp.eq.s32.totalorder %v5360, 0
        %v5363 = vxor.u32 %v5357, 2147483648
        %v5364 = vsel %vm5362, %v5356, %v5363
        %vm5365 = vcmp.eq.s32.totalorder %v5360, 2
        %v5366 = vxor.u32 %v5356, 2147483648
        %v5367 = vsel %vm5365, %v5366, %v5357
        %v5368 = vsel %vm5361, %v5364, %v5367
        %v5369 = vsel %vm5358, nan, %v5368
        %v5370 = vand.u32 2147483647, %v672
        %vm5371 = vcmp.le.f32.partialorder %v5370, 0.7853982
        %vm5372 = vcmp.lt.s32.totalorder %v672, 0
        %v5373 = vand.u32 %v672, 2139095040
        %v5374 = vshrl.u32 %v5373, 23
        %v5375 = vsub.s32 %v5374, 127
        %v5376 = vand.u32 2147483647, %v672
        %v5377 = vand.u32 %v5376, 8388607
        %v5378 = vor.u32 %v5377, 8388608
        %v5379 = vsub.s32 0, %v5378
        %v5380 = vadd.s32 %v5375, 1
        %vm5381 = vcmp.gt.s32.totalorder %v5380, 0
        %v5382 = vsel %vm5381, %v5380, 0
        %v5383 = vshrl.u32 %v5382, 5
        %v5384 = vand.u32 %v5382, 31
        %v5385 = vsub.s32 32, %v5384
        %v5386 = vshrl.u32 683565275, %v5385
        %v5387 = vshll.u32 683565275, %v5384
        %v5388 = vshrl.u32 2475754826, %v5385
        %v5389 = vor.u32 %v5387, %v5388
        %v5390 = vshll.u32 2475754826, %v5384
        %v5391 = vshrl.u32 2131351028, %v5385
        %v5392 = vor.u32 %v5390, %v5391
        %v5393 = vshll.u32 2131351028, %v5384
        %v5394 = vshrl.u32 2102212464, %v5385
        %v5395 = vor.u32 %v5393, %v5394
        %v5396 = vshll.u32 2102212464, %v5384
        %v5397 = vshrl.u32 920167782, %v5385
        %v5398 = vor.u32 %v5396, %v5397
        %v5399 = vshll.u32 920167782, %v5384
        %v5400 = vshrl.u32 1326507024, %v5385
        %v5401 = vor.u32 %v5399, %v5400
        %vm5402 = vcmp.lt.s32.totalorder %v5383, 1
        %vm5403 = vcmp.lt.s32.totalorder %v5383, 2
        %vm5404 = vcmp.lt.s32.totalorder %v5383, 3
        %vm5405 = vcmp.lt.s32.totalorder %v5383, 4
        %v5406 = vsel %vm5402, %v5386, %v5389
        %v5407 = vsel %vm5405, %v5395, 2102212464
        %v5408 = vsel %vm5404, %v5392, %v5407
        %v5409 = vsel %vm5403, %v5406, %v5408
        %v5410 = vsel %vm5402, %v5389, %v5392
        %v5411 = vsel %vm5405, %v5398, 920167782
        %v5412 = vsel %vm5404, %v5395, %v5411
        %v5413 = vsel %vm5403, %v5410, %v5412
        %v5414 = vsel %vm5402, %v5392, %v5395
        %v5415 = vsel %vm5405, %v5401, 1326507024
        %v5416 = vsel %vm5404, %v5398, %v5415
        %v5417 = vsel %vm5403, %v5414, %v5416
        %v5418 = vshll.u32 %v5378, 8
        %v5419 = vmul.u32.u64.compose %v5418, %v5417
        %v5420 = vextract.low.u32 %v5419
        %v5421 = vextract.high.u32 %v5419
        %v5422 = vmul.u32.u64.compose %v5418, %v5413
        %v5423 = vextract.low.u32 %v5422
        %v5424 = vextract.high.u32 %v5422
        %v5425 = vmul.u32 %v5418, %v5409
        %v5426 = vadd.s32 %v5421, %v5423
        %vm5427 = vc.u32 %v5421, %v5423
        %v5428 = vadd.s32 %v5424, 1
        %v5429 = vsel %vm5427, %v5428, %v5424
        %v5430 = vadd.s32 %v5425, %v5429
        %v5431 = vadd.s32 %v5430, 536870912
        %v5432 = vshrl.u32 %v5431, 30
        %v5433 = vshll.u32 %v5432, 30
        %v5434 = vsub.s32 %v5430, %v5433
        %vm5435 = vcmp.lt.s32.totalorder %v5434, 0
        %v5436 = vsub.s32 0, %v5434
        %v5437 = vsel %vm5435, %v5436, %v5434
        %v5438 = vclz %v5437
        %v5439 = vsub.s32 %v5438, 2
        %vm5440 = vcmp.gt.s32.totalorder 0, %v5439
        %v5441 = vsel %vm5440, 0, %v5439
        %v5442 = vsub.s32 32, %v5441
        %v5443 = vshll.u32 %v5434, %v5441
        %v5444 = vshrl.u32 %v5426, %v5442
        %v5445 = vor.u32 %v5443, %v5444
        %v5446 = vsub.s32 4294967266, %v5441
        %v5447 = vadd.s32 %v5446, 127
        %v5448 = vshll.u32 %v5447, 23
        %v5449 = vor.u32 4788187, %v5448
        %v5450 = vand.u32 2147483647, %v5449
        %v5452 = vcvt.s32.f32 %v5445
        %v5453 = vmul.f32 %v5452, %v5450
        %v5454 = vxor.u32 %v5453, 2147483648
        %v5455 = vsel %vm5372, %v5454, %v5453
        %v5456 = vsub.s32 4, %v5432
        %v5457 = vsel %vm5372, %v5456, %v5432
        %v5458 = vsel %vm5371, %v672, %v5455
        %v5459 = vsel %vm5371, 0, %v5457
        %v5460 = vcosq.f32.pop %v5458
        %v5461 = vsinq.f32.pop %v5458
        %vm5462 = vweird.f32 %v672
        %v5463 = vadd.s32 %v5459, 3
        %v5464 = vand.u32 %v5463, 3
        %vm5465 = vcmp.lt.s32.totalorder %v5464, 2
        %vm5466 = vcmp.eq.s32.totalorder %v5464, 0
        %v5467 = vxor.u32 %v5461, 2147483648
        %v5468 = vsel %vm5466, %v5460, %v5467
        %vm5469 = vcmp.eq.s32.totalorder %v5464, 2
        %v5470 = vxor.u32 %v5460, 2147483648
        %v5471 = vsel %vm5469, %v5470, %v5461
        %v5472 = vsel %vm5465, %v5468, %v5471
        %v5473 = vsel %vm5462, nan, %v5472
        %v5474 = vand.u32 2147483647, %v673
        %vm5475 = vcmp.le.f32.partialorder %v5474, 0.7853982
        %vm5476 = vcmp.lt.s32.totalorder %v673, 0
        %v5477 = vand.u32 %v673, 2139095040
        %v5478 = vshrl.u32 %v5477, 23
        %v5479 = vsub.s32 %v5478, 127
        %v5480 = vand.u32 2147483647, %v673
        %v5481 = vand.u32 %v5480, 8388607
        %v5482 = vor.u32 %v5481, 8388608
        %v5483 = vsub.s32 0, %v5482
        %v5484 = vadd.s32 %v5479, 1
        %vm5485 = vcmp.gt.s32.totalorder %v5484, 0
        %v5486 = vsel %vm5485, %v5484, 0
        %v5487 = vshrl.u32 %v5486, 5
        %v5488 = vand.u32 %v5486, 31
        %v5489 = vsub.s32 32, %v5488
        %v5490 = vshrl.u32 683565275, %v5489
        %v5491 = vshll.u32 683565275, %v5488
        %v5492 = vshrl.u32 2475754826, %v5489
        %v5493 = vor.u32 %v5491, %v5492
        %v5494 = vshll.u32 2475754826, %v5488
        %v5495 = vshrl.u32 2131351028, %v5489
        %v5496 = vor.u32 %v5494, %v5495
        %v5497 = vshll.u32 2131351028, %v5488
        %v5498 = vshrl.u32 2102212464, %v5489
        %v5499 = vor.u32 %v5497, %v5498
        %v5500 = vshll.u32 2102212464, %v5488
        %v5501 = vshrl.u32 920167782, %v5489
        %v5502 = vor.u32 %v5500, %v5501
        %v5503 = vshll.u32 920167782, %v5488
        %v5504 = vshrl.u32 1326507024, %v5489
        %v5505 = vor.u32 %v5503, %v5504
        %vm5506 = vcmp.lt.s32.totalorder %v5487, 1
        %vm5507 = vcmp.lt.s32.totalorder %v5487, 2
        %vm5508 = vcmp.lt.s32.totalorder %v5487, 3
        %vm5509 = vcmp.lt.s32.totalorder %v5487, 4
        %v5510 = vsel %vm5506, %v5490, %v5493
        %v5511 = vsel %vm5509, %v5499, 2102212464
        %v5512 = vsel %vm5508, %v5496, %v5511
        %v5513 = vsel %vm5507, %v5510, %v5512
        %v5514 = vsel %vm5506, %v5493, %v5496
        %v5515 = vsel %vm5509, %v5502, 920167782
        %v5516 = vsel %vm5508, %v5499, %v5515
        %v5517 = vsel %vm5507, %v5514, %v5516
        %v5518 = vsel %vm5506, %v5496, %v5499
        %v5519 = vsel %vm5509, %v5505, 1326507024
        %v5520 = vsel %vm5508, %v5502, %v5519
        %v5521 = vsel %vm5507, %v5518, %v5520
        %v5522 = vshll.u32 %v5482, 8
        %v5523 = vmul.u32.u64.compose %v5522, %v5521
        %v5524 = vextract.low.u32 %v5523
        %v5525 = vextract.high.u32 %v5523
        %v5526 = vmul.u32.u64.compose %v5522, %v5517
        %v5527 = vextract.low.u32 %v5526
        %v5528 = vextract.high.u32 %v5526
        %v5529 = vmul.u32 %v5522, %v5513
        %v5530 = vadd.s32 %v5525, %v5527
        %vm5531 = vc.u32 %v5525, %v5527
        %v5532 = vadd.s32 %v5528, 1
        %v5533 = vsel %vm5531, %v5532, %v5528
        %v5534 = vadd.s32 %v5529, %v5533
        %v5535 = vadd.s32 %v5534, 536870912
        %v5536 = vshrl.u32 %v5535, 30
        %v5537 = vshll.u32 %v5536, 30
        %v5538 = vsub.s32 %v5534, %v5537
        %vm5539 = vcmp.lt.s32.totalorder %v5538, 0
        %v5540 = vsub.s32 0, %v5538
        %v5541 = vsel %vm5539, %v5540, %v5538
        %v5542 = vclz %v5541
        %v5543 = vsub.s32 %v5542, 2
        %vm5544 = vcmp.gt.s32.totalorder 0, %v5543
        %v5545 = vsel %vm5544, 0, %v5543
        %v5546 = vsub.s32 32, %v5545
        %v5547 = vshll.u32 %v5538, %v5545
        %v5548 = vshrl.u32 %v5530, %v5546
        %v5549 = vor.u32 %v5547, %v5548
        %v5550 = vsub.s32 4294967266, %v5545
        %v5551 = vadd.s32 %v5550, 127
        %v5552 = vshll.u32 %v5551, 23
        %v5553 = vor.u32 4788187, %v5552
        %v5554 = vand.u32 2147483647, %v5553
        %v5556 = vcvt.s32.f32 %v5549
        %v5557 = vmul.f32 %v5556, %v5554
        %v5558 = vxor.u32 %v5557, 2147483648
        %v5559 = vsel %vm5476, %v5558, %v5557
        %v5560 = vsub.s32 4, %v5536
        %v5561 = vsel %vm5476, %v5560, %v5536
        %v5562 = vsel %vm5475, %v673, %v5559
        %v5563 = vsel %vm5475, 0, %v5561
        %v5564 = vcosq.f32.pop %v5562
        %v5565 = vsinq.f32.pop %v5562
        %vm5566 = vweird.f32 %v673
        %v5567 = vadd.s32 %v5563, 3
        %v5568 = vand.u32 %v5567, 3
        %vm5569 = vcmp.lt.s32.totalorder %v5568, 2
        %vm5570 = vcmp.eq.s32.totalorder %v5568, 0
        %v5571 = vxor.u32 %v5565, 2147483648
        %v5572 = vsel %vm5570, %v5564, %v5571
        %vm5573 = vcmp.eq.s32.totalorder %v5568, 2
        %v5574 = vxor.u32 %v5564, 2147483648
        %v5575 = vsel %vm5573, %v5574, %v5565
        %v5576 = vsel %vm5569, %v5572, %v5575
        %v5577 = vsel %vm5566, nan, %v5576
        %v5578 = vand.u32 2147483647, %v674
        %vm5579 = vcmp.le.f32.partialorder %v5578, 0.7853982
        %vm5580 = vcmp.lt.s32.totalorder %v674, 0
        %v5581 = vand.u32 %v674, 2139095040
        %v5582 = vshrl.u32 %v5581, 23
        %v5583 = vsub.s32 %v5582, 127
        %v5584 = vand.u32 2147483647, %v674
        %v5585 = vand.u32 %v5584, 8388607
        %v5586 = vor.u32 %v5585, 8388608
        %v5587 = vsub.s32 0, %v5586
        %v5588 = vadd.s32 %v5583, 1
        %vm5589 = vcmp.gt.s32.totalorder %v5588, 0
        %v5590 = vsel %vm5589, %v5588, 0
        %v5591 = vshrl.u32 %v5590, 5
        %v5592 = vand.u32 %v5590, 31
        %v5593 = vsub.s32 32, %v5592
        %v5594 = vshrl.u32 683565275, %v5593
        %v5595 = vshll.u32 683565275, %v5592
        %v5596 = vshrl.u32 2475754826, %v5593
        %v5597 = vor.u32 %v5595, %v5596
        %v5598 = vshll.u32 2475754826, %v5592
        %v5599 = vshrl.u32 2131351028, %v5593
        %v5600 = vor.u32 %v5598, %v5599
        %v5601 = vshll.u32 2131351028, %v5592
        %v5602 = vshrl.u32 2102212464, %v5593
        %v5603 = vor.u32 %v5601, %v5602
        %v5604 = vshll.u32 2102212464, %v5592
        %v5605 = vshrl.u32 920167782, %v5593
        %v5606 = vor.u32 %v5604, %v5605
        %v5607 = vshll.u32 920167782, %v5592
        %v5608 = vshrl.u32 1326507024, %v5593
        %v5609 = vor.u32 %v5607, %v5608
        %vm5610 = vcmp.lt.s32.totalorder %v5591, 1
        %vm5611 = vcmp.lt.s32.totalorder %v5591, 2
        %vm5612 = vcmp.lt.s32.totalorder %v5591, 3
        %vm5613 = vcmp.lt.s32.totalorder %v5591, 4
        %v5614 = vsel %vm5610, %v5594, %v5597
        %v5615 = vsel %vm5613, %v5603, 2102212464
        %v5616 = vsel %vm5612, %v5600, %v5615
        %v5617 = vsel %vm5611, %v5614, %v5616
        %v5618 = vsel %vm5610, %v5597, %v5600
        %v5619 = vsel %vm5613, %v5606, 920167782
        %v5620 = vsel %vm5612, %v5603, %v5619
        %v5621 = vsel %vm5611, %v5618, %v5620
        %v5622 = vsel %vm5610, %v5600, %v5603
        %v5623 = vsel %vm5613, %v5609, 1326507024
        %v5624 = vsel %vm5612, %v5606, %v5623
        %v5625 = vsel %vm5611, %v5622, %v5624
        %v5626 = vshll.u32 %v5586, 8
        %v5627 = vmul.u32.u64.compose %v5626, %v5625
        %v5628 = vextract.low.u32 %v5627
        %v5629 = vextract.high.u32 %v5627
        %v5630 = vmul.u32.u64.compose %v5626, %v5621
        %v5631 = vextract.low.u32 %v5630
        %v5632 = vextract.high.u32 %v5630
        %v5633 = vmul.u32 %v5626, %v5617
        %v5634 = vadd.s32 %v5629, %v5631
        %vm5635 = vc.u32 %v5629, %v5631
        %v5636 = vadd.s32 %v5632, 1
        %v5637 = vsel %vm5635, %v5636, %v5632
        %v5638 = vadd.s32 %v5633, %v5637
        %v5639 = vadd.s32 %v5638, 536870912
        %v5640 = vshrl.u32 %v5639, 30
        %v5641 = vshll.u32 %v5640, 30
        %v5642 = vsub.s32 %v5638, %v5641
        %vm5643 = vcmp.lt.s32.totalorder %v5642, 0
        %v5644 = vsub.s32 0, %v5642
        %v5645 = vsel %vm5643, %v5644, %v5642
        %v5646 = vclz %v5645
        %v5647 = vsub.s32 %v5646, 2
        %vm5648 = vcmp.gt.s32.totalorder 0, %v5647
        %v5649 = vsel %vm5648, 0, %v5647
        %v5650 = vsub.s32 32, %v5649
        %v5651 = vshll.u32 %v5642, %v5649
        %v5652 = vshrl.u32 %v5634, %v5650
        %v5653 = vor.u32 %v5651, %v5652
        %v5654 = vsub.s32 4294967266, %v5649
        %v5655 = vadd.s32 %v5654, 127
        %v5656 = vshll.u32 %v5655, 23
        %v5657 = vor.u32 4788187, %v5656
        %v5658 = vand.u32 2147483647, %v5657
        %v5660 = vcvt.s32.f32 %v5653
        %v5661 = vmul.f32 %v5660, %v5658
        %v5662 = vxor.u32 %v5661, 2147483648
        %v5663 = vsel %vm5580, %v5662, %v5661
        %v5664 = vsub.s32 4, %v5640
        %v5665 = vsel %vm5580, %v5664, %v5640
        %v5666 = vsel %vm5579, %v674, %v5663
        %v5667 = vsel %vm5579, 0, %v5665
        %v5668 = vcosq.f32.pop %v5666
        %v5669 = vsinq.f32.pop %v5666
        %vm5670 = vweird.f32 %v674
        %v5671 = vadd.s32 %v5667, 3
        %v5672 = vand.u32 %v5671, 3
        %vm5673 = vcmp.lt.s32.totalorder %v5672, 2
        %vm5674 = vcmp.eq.s32.totalorder %v5672, 0
        %v5675 = vxor.u32 %v5669, 2147483648
        %v5676 = vsel %vm5674, %v5668, %v5675
        %vm5677 = vcmp.eq.s32.totalorder %v5672, 2
        %v5678 = vxor.u32 %v5668, 2147483648
        %v5679 = vsel %vm5677, %v5678, %v5669
        %v5680 = vsel %vm5673, %v5676, %v5679
        %v5681 = vsel %vm5670, nan, %v5680
        %v5682 = vand.u32 2147483647, %v675
        %vm5683 = vcmp.le.f32.partialorder %v5682, 0.7853982
        %vm5684 = vcmp.lt.s32.totalorder %v675, 0
        %v5685 = vand.u32 %v675, 2139095040
        %v5686 = vshrl.u32 %v5685, 23
        %v5687 = vsub.s32 %v5686, 127
        %v5688 = vand.u32 2147483647, %v675
        %v5689 = vand.u32 %v5688, 8388607
        %v5690 = vor.u32 %v5689, 8388608
        %v5691 = vsub.s32 0, %v5690
        %v5692 = vadd.s32 %v5687, 1
        %vm5693 = vcmp.gt.s32.totalorder %v5692, 0
        %v5694 = vsel %vm5693, %v5692, 0
        %v5695 = vshrl.u32 %v5694, 5
        %v5696 = vand.u32 %v5694, 31
        %v5697 = vsub.s32 32, %v5696
        %v5698 = vshrl.u32 683565275, %v5697
        %v5699 = vshll.u32 683565275, %v5696
        %v5700 = vshrl.u32 2475754826, %v5697
        %v5701 = vor.u32 %v5699, %v5700
        %v5702 = vshll.u32 2475754826, %v5696
        %v5703 = vshrl.u32 2131351028, %v5697
        %v5704 = vor.u32 %v5702, %v5703
        %v5705 = vshll.u32 2131351028, %v5696
        %v5706 = vshrl.u32 2102212464, %v5697
        %v5707 = vor.u32 %v5705, %v5706
        %v5708 = vshll.u32 2102212464, %v5696
        %v5709 = vshrl.u32 920167782, %v5697
        %v5710 = vor.u32 %v5708, %v5709
        %v5711 = vshll.u32 920167782, %v5696
        %v5712 = vshrl.u32 1326507024, %v5697
        %v5713 = vor.u32 %v5711, %v5712
        %vm5714 = vcmp.lt.s32.totalorder %v5695, 1
        %vm5715 = vcmp.lt.s32.totalorder %v5695, 2
        %vm5716 = vcmp.lt.s32.totalorder %v5695, 3
        %vm5717 = vcmp.lt.s32.totalorder %v5695, 4
        %v5718 = vsel %vm5714, %v5698, %v5701
        %v5719 = vsel %vm5717, %v5707, 2102212464
        %v5720 = vsel %vm5716, %v5704, %v5719
        %v5721 = vsel %vm5715, %v5718, %v5720
        %v5722 = vsel %vm5714, %v5701, %v5704
        %v5723 = vsel %vm5717, %v5710, 920167782
        %v5724 = vsel %vm5716, %v5707, %v5723
        %v5725 = vsel %vm5715, %v5722, %v5724
        %v5726 = vsel %vm5714, %v5704, %v5707
        %v5727 = vsel %vm5717, %v5713, 1326507024
        %v5728 = vsel %vm5716, %v5710, %v5727
        %v5729 = vsel %vm5715, %v5726, %v5728
        %v5730 = vshll.u32 %v5690, 8
        %v5731 = vmul.u32.u64.compose %v5730, %v5729
        %v5732 = vextract.low.u32 %v5731
        %v5733 = vextract.high.u32 %v5731
        %v5734 = vmul.u32.u64.compose %v5730, %v5725
        %v5735 = vextract.low.u32 %v5734
        %v5736 = vextract.high.u32 %v5734
        %v5737 = vmul.u32 %v5730, %v5721
        %v5738 = vadd.s32 %v5733, %v5735
        %vm5739 = vc.u32 %v5733, %v5735
        %v5740 = vadd.s32 %v5736, 1
        %v5741 = vsel %vm5739, %v5740, %v5736
        %v5742 = vadd.s32 %v5737, %v5741
        %v5743 = vadd.s32 %v5742, 536870912
        %v5744 = vshrl.u32 %v5743, 30
        %v5745 = vshll.u32 %v5744, 30
        %v5746 = vsub.s32 %v5742, %v5745
        %vm5747 = vcmp.lt.s32.totalorder %v5746, 0
        %v5748 = vsub.s32 0, %v5746
        %v5749 = vsel %vm5747, %v5748, %v5746
        %v5750 = vclz %v5749
        %v5751 = vsub.s32 %v5750, 2
        %vm5752 = vcmp.gt.s32.totalorder 0, %v5751
        %v5753 = vsel %vm5752, 0, %v5751
        %v5754 = vsub.s32 32, %v5753
        %v5755 = vshll.u32 %v5746, %v5753
        %v5756 = vshrl.u32 %v5738, %v5754
        %v5757 = vor.u32 %v5755, %v5756
        %v5758 = vsub.s32 4294967266, %v5753
        %v5759 = vadd.s32 %v5758, 127
        %v5760 = vshll.u32 %v5759, 23
        %v5761 = vor.u32 4788187, %v5760
        %v5762 = vand.u32 2147483647, %v5761
        %v5764 = vcvt.s32.f32 %v5757
        %v5765 = vmul.f32 %v5764, %v5762
        %v5766 = vxor.u32 %v5765, 2147483648
        %v5767 = vsel %vm5684, %v5766, %v5765
        %v5768 = vsub.s32 4, %v5744
        %v5769 = vsel %vm5684, %v5768, %v5744
        %v5770 = vsel %vm5683, %v675, %v5767
        %v5771 = vsel %vm5683, 0, %v5769
        %v5772 = vcosq.f32.pop %v5770
        %v5773 = vsinq.f32.pop %v5770
        %vm5774 = vweird.f32 %v675
        %v5775 = vadd.s32 %v5771, 3
        %v5776 = vand.u32 %v5775, 3
        %vm5777 = vcmp.lt.s32.totalorder %v5776, 2
        %vm5778 = vcmp.eq.s32.totalorder %v5776, 0
        %v5779 = vxor.u32 %v5773, 2147483648
        %v5780 = vsel %vm5778, %v5772, %v5779
        %vm5781 = vcmp.eq.s32.totalorder %v5776, 2
        %v5782 = vxor.u32 %v5772, 2147483648
        %v5783 = vsel %vm5781, %v5782, %v5773
        %v5784 = vsel %vm5777, %v5780, %v5783
        %v5785 = vsel %vm5774, nan, %v5784
        %v5786 = vand.u32 2147483647, %v676
        %vm5787 = vcmp.le.f32.partialorder %v5786, 0.7853982
        %vm5788 = vcmp.lt.s32.totalorder %v676, 0
        %v5789 = vand.u32 %v676, 2139095040
        %v5790 = vshrl.u32 %v5789, 23
        %v5791 = vsub.s32 %v5790, 127
        %v5792 = vand.u32 2147483647, %v676
        %v5793 = vand.u32 %v5792, 8388607
        %v5794 = vor.u32 %v5793, 8388608
        %v5795 = vsub.s32 0, %v5794
        %v5796 = vadd.s32 %v5791, 1
        %vm5797 = vcmp.gt.s32.totalorder %v5796, 0
        %v5798 = vsel %vm5797, %v5796, 0
        %v5799 = vshrl.u32 %v5798, 5
        %v5800 = vand.u32 %v5798, 31
        %v5801 = vsub.s32 32, %v5800
        %v5802 = vshrl.u32 683565275, %v5801
        %v5803 = vshll.u32 683565275, %v5800
        %v5804 = vshrl.u32 2475754826, %v5801
        %v5805 = vor.u32 %v5803, %v5804
        %v5806 = vshll.u32 2475754826, %v5800
        %v5807 = vshrl.u32 2131351028, %v5801
        %v5808 = vor.u32 %v5806, %v5807
        %v5809 = vshll.u32 2131351028, %v5800
        %v5810 = vshrl.u32 2102212464, %v5801
        %v5811 = vor.u32 %v5809, %v5810
        %v5812 = vshll.u32 2102212464, %v5800
        %v5813 = vshrl.u32 920167782, %v5801
        %v5814 = vor.u32 %v5812, %v5813
        %v5815 = vshll.u32 920167782, %v5800
        %v5816 = vshrl.u32 1326507024, %v5801
        %v5817 = vor.u32 %v5815, %v5816
        %vm5818 = vcmp.lt.s32.totalorder %v5799, 1
        %vm5819 = vcmp.lt.s32.totalorder %v5799, 2
        %vm5820 = vcmp.lt.s32.totalorder %v5799, 3
        %vm5821 = vcmp.lt.s32.totalorder %v5799, 4
        %v5822 = vsel %vm5818, %v5802, %v5805
        %v5823 = vsel %vm5821, %v5811, 2102212464
        %v5824 = vsel %vm5820, %v5808, %v5823
        %v5825 = vsel %vm5819, %v5822, %v5824
        %v5826 = vsel %vm5818, %v5805, %v5808
        %v5827 = vsel %vm5821, %v5814, 920167782
        %v5828 = vsel %vm5820, %v5811, %v5827
        %v5829 = vsel %vm5819, %v5826, %v5828
        %v5830 = vsel %vm5818, %v5808, %v5811
        %v5831 = vsel %vm5821, %v5817, 1326507024
        %v5832 = vsel %vm5820, %v5814, %v5831
        %v5833 = vsel %vm5819, %v5830, %v5832
        %v5834 = vshll.u32 %v5794, 8
        %v5835 = vmul.u32.u64.compose %v5834, %v5833
        %v5836 = vextract.low.u32 %v5835
        %v5837 = vextract.high.u32 %v5835
        %v5838 = vmul.u32.u64.compose %v5834, %v5829
        %v5839 = vextract.low.u32 %v5838
        %v5840 = vextract.high.u32 %v5838
        %v5841 = vmul.u32 %v5834, %v5825
        %v5842 = vadd.s32 %v5837, %v5839
        %vm5843 = vc.u32 %v5837, %v5839
        %v5844 = vadd.s32 %v5840, 1
        %v5845 = vsel %vm5843, %v5844, %v5840
        %v5846 = vadd.s32 %v5841, %v5845
        %v5847 = vadd.s32 %v5846, 536870912
        %v5848 = vshrl.u32 %v5847, 30
        %v5849 = vshll.u32 %v5848, 30
        %v5850 = vsub.s32 %v5846, %v5849
        %vm5851 = vcmp.lt.s32.totalorder %v5850, 0
        %v5852 = vsub.s32 0, %v5850
        %v5853 = vsel %vm5851, %v5852, %v5850
        %v5854 = vclz %v5853
        %v5855 = vsub.s32 %v5854, 2
        %vm5856 = vcmp.gt.s32.totalorder 0, %v5855
        %v5857 = vsel %vm5856, 0, %v5855
        %v5858 = vsub.s32 32, %v5857
        %v5859 = vshll.u32 %v5850, %v5857
        %v5860 = vshrl.u32 %v5842, %v5858
        %v5861 = vor.u32 %v5859, %v5860
        %v5862 = vsub.s32 4294967266, %v5857
        %v5863 = vadd.s32 %v5862, 127
        %v5864 = vshll.u32 %v5863, 23
        %v5865 = vor.u32 4788187, %v5864
        %v5866 = vand.u32 2147483647, %v5865
        %v5868 = vcvt.s32.f32 %v5861
        %v5869 = vmul.f32 %v5868, %v5866
        %v5870 = vxor.u32 %v5869, 2147483648
        %v5871 = vsel %vm5788, %v5870, %v5869
        %v5872 = vsub.s32 4, %v5848
        %v5873 = vsel %vm5788, %v5872, %v5848
        %v5874 = vsel %vm5787, %v676, %v5871
        %v5875 = vsel %vm5787, 0, %v5873
        %v5876 = vcosq.f32.pop %v5874
        %v5877 = vsinq.f32.pop %v5874
        %vm5878 = vweird.f32 %v676
        %v5879 = vadd.s32 %v5875, 3
        %v5880 = vand.u32 %v5879, 3
        %vm5881 = vcmp.lt.s32.totalorder %v5880, 2
        %vm5882 = vcmp.eq.s32.totalorder %v5880, 0
        %v5883 = vxor.u32 %v5877, 2147483648
        %v5884 = vsel %vm5882, %v5876, %v5883
        %vm5885 = vcmp.eq.s32.totalorder %v5880, 2
        %v5886 = vxor.u32 %v5876, 2147483648
        %v5887 = vsel %vm5885, %v5886, %v5877
        %v5888 = vsel %vm5881, %v5884, %v5887
        %v5889 = vsel %vm5878, nan, %v5888
        %v5890 = vand.u32 2147483647, %v677
        %vm5891 = vcmp.le.f32.partialorder %v5890, 0.7853982
        %vm5892 = vcmp.lt.s32.totalorder %v677, 0
        %v5893 = vand.u32 %v677, 2139095040
        %v5894 = vshrl.u32 %v5893, 23
        %v5895 = vsub.s32 %v5894, 127
        %v5896 = vand.u32 2147483647, %v677
        %v5897 = vand.u32 %v5896, 8388607
        %v5898 = vor.u32 %v5897, 8388608
        %v5899 = vsub.s32 0, %v5898
        %v5900 = vadd.s32 %v5895, 1
        %vm5901 = vcmp.gt.s32.totalorder %v5900, 0
        %v5902 = vsel %vm5901, %v5900, 0
        %v5903 = vshrl.u32 %v5902, 5
        %v5904 = vand.u32 %v5902, 31
        %v5905 = vsub.s32 32, %v5904
        %v5906 = vshrl.u32 683565275, %v5905
        %v5907 = vshll.u32 683565275, %v5904
        %v5908 = vshrl.u32 2475754826, %v5905
        %v5909 = vor.u32 %v5907, %v5908
        %v5910 = vshll.u32 2475754826, %v5904
        %v5911 = vshrl.u32 2131351028, %v5905
        %v5912 = vor.u32 %v5910, %v5911
        %v5913 = vshll.u32 2131351028, %v5904
        %v5914 = vshrl.u32 2102212464, %v5905
        %v5915 = vor.u32 %v5913, %v5914
        %v5916 = vshll.u32 2102212464, %v5904
        %v5917 = vshrl.u32 920167782, %v5905
        %v5918 = vor.u32 %v5916, %v5917
        %v5919 = vshll.u32 920167782, %v5904
        %v5920 = vshrl.u32 1326507024, %v5905
        %v5921 = vor.u32 %v5919, %v5920
        %vm5922 = vcmp.lt.s32.totalorder %v5903, 1
        %vm5923 = vcmp.lt.s32.totalorder %v5903, 2
        %vm5924 = vcmp.lt.s32.totalorder %v5903, 3
        %vm5925 = vcmp.lt.s32.totalorder %v5903, 4
        %v5926 = vsel %vm5922, %v5906, %v5909
        %v5927 = vsel %vm5925, %v5915, 2102212464
        %v5928 = vsel %vm5924, %v5912, %v5927
        %v5929 = vsel %vm5923, %v5926, %v5928
        %v5930 = vsel %vm5922, %v5909, %v5912
        %v5931 = vsel %vm5925, %v5918, 920167782
        %v5932 = vsel %vm5924, %v5915, %v5931
        %v5933 = vsel %vm5923, %v5930, %v5932
        %v5934 = vsel %vm5922, %v5912, %v5915
        %v5935 = vsel %vm5925, %v5921, 1326507024
        %v5936 = vsel %vm5924, %v5918, %v5935
        %v5937 = vsel %vm5923, %v5934, %v5936
        %v5938 = vshll.u32 %v5898, 8
        %v5939 = vmul.u32.u64.compose %v5938, %v5937
        %v5940 = vextract.low.u32 %v5939
        %v5941 = vextract.high.u32 %v5939
        %v5942 = vmul.u32.u64.compose %v5938, %v5933
        %v5943 = vextract.low.u32 %v5942
        %v5944 = vextract.high.u32 %v5942
        %v5945 = vmul.u32 %v5938, %v5929
        %v5946 = vadd.s32 %v5941, %v5943
        %vm5947 = vc.u32 %v5941, %v5943
        %v5948 = vadd.s32 %v5944, 1
        %v5949 = vsel %vm5947, %v5948, %v5944
        %v5950 = vadd.s32 %v5945, %v5949
        %v5951 = vadd.s32 %v5950, 536870912
        %v5952 = vshrl.u32 %v5951, 30
        %v5953 = vshll.u32 %v5952, 30
        %v5954 = vsub.s32 %v5950, %v5953
        %vm5955 = vcmp.lt.s32.totalorder %v5954, 0
        %v5956 = vsub.s32 0, %v5954
        %v5957 = vsel %vm5955, %v5956, %v5954
        %v5958 = vclz %v5957
        %v5959 = vsub.s32 %v5958, 2
        %vm5960 = vcmp.gt.s32.totalorder 0, %v5959
        %v5961 = vsel %vm5960, 0, %v5959
        %v5962 = vsub.s32 32, %v5961
        %v5963 = vshll.u32 %v5954, %v5961
        %v5964 = vshrl.u32 %v5946, %v5962
        %v5965 = vor.u32 %v5963, %v5964
        %v5966 = vsub.s32 4294967266, %v5961
        %v5967 = vadd.s32 %v5966, 127
        %v5968 = vshll.u32 %v5967, 23
        %v5969 = vor.u32 4788187, %v5968
        %v5970 = vand.u32 2147483647, %v5969
        %v5972 = vcvt.s32.f32 %v5965
        %v5973 = vmul.f32 %v5972, %v5970
        %v5974 = vxor.u32 %v5973, 2147483648
        %v5975 = vsel %vm5892, %v5974, %v5973
        %v5976 = vsub.s32 4, %v5952
        %v5977 = vsel %vm5892, %v5976, %v5952
        %v5978 = vsel %vm5891, %v677, %v5975
        %v5979 = vsel %vm5891, 0, %v5977
        %v5980 = vcosq.f32.pop %v5978
        %v5981 = vsinq.f32.pop %v5978
        %vm5982 = vweird.f32 %v677
        %v5983 = vadd.s32 %v5979, 3
        %v5984 = vand.u32 %v5983, 3
        %vm5985 = vcmp.lt.s32.totalorder %v5984, 2
        %vm5986 = vcmp.eq.s32.totalorder %v5984, 0
        %v5987 = vxor.u32 %v5981, 2147483648
        %v5988 = vsel %vm5986, %v5980, %v5987
        %vm5989 = vcmp.eq.s32.totalorder %v5984, 2
        %v5990 = vxor.u32 %v5980, 2147483648
        %v5991 = vsel %vm5989, %v5990, %v5981
        %v5992 = vsel %vm5985, %v5988, %v5991
        %v5993 = vsel %vm5982, nan, %v5992
        %v5994 = vand.u32 2147483647, %v678
        %vm5995 = vcmp.le.f32.partialorder %v5994, 0.7853982
        %vm5996 = vcmp.lt.s32.totalorder %v678, 0
        %v5997 = vand.u32 %v678, 2139095040
        %v5998 = vshrl.u32 %v5997, 23
        %v5999 = vsub.s32 %v5998, 127
        %v6000 = vand.u32 2147483647, %v678
        %v6001 = vand.u32 %v6000, 8388607
        %v6002 = vor.u32 %v6001, 8388608
        %v6003 = vsub.s32 0, %v6002
        %v6004 = vadd.s32 %v5999, 1
        %vm6005 = vcmp.gt.s32.totalorder %v6004, 0
        %v6006 = vsel %vm6005, %v6004, 0
        %v6007 = vshrl.u32 %v6006, 5
        %v6008 = vand.u32 %v6006, 31
        %v6009 = vsub.s32 32, %v6008
        %v6010 = vshrl.u32 683565275, %v6009
        %v6011 = vshll.u32 683565275, %v6008
        %v6012 = vshrl.u32 2475754826, %v6009
        %v6013 = vor.u32 %v6011, %v6012
        %v6014 = vshll.u32 2475754826, %v6008
        %v6015 = vshrl.u32 2131351028, %v6009
        %v6016 = vor.u32 %v6014, %v6015
        %v6017 = vshll.u32 2131351028, %v6008
        %v6018 = vshrl.u32 2102212464, %v6009
        %v6019 = vor.u32 %v6017, %v6018
        %v6020 = vshll.u32 2102212464, %v6008
        %v6021 = vshrl.u32 920167782, %v6009
        %v6022 = vor.u32 %v6020, %v6021
        %v6023 = vshll.u32 920167782, %v6008
        %v6024 = vshrl.u32 1326507024, %v6009
        %v6025 = vor.u32 %v6023, %v6024
        %vm6026 = vcmp.lt.s32.totalorder %v6007, 1
        %vm6027 = vcmp.lt.s32.totalorder %v6007, 2
        %vm6028 = vcmp.lt.s32.totalorder %v6007, 3
        %vm6029 = vcmp.lt.s32.totalorder %v6007, 4
        %v6030 = vsel %vm6026, %v6010, %v6013
        %v6031 = vsel %vm6029, %v6019, 2102212464
        %v6032 = vsel %vm6028, %v6016, %v6031
        %v6033 = vsel %vm6027, %v6030, %v6032
        %v6034 = vsel %vm6026, %v6013, %v6016
        %v6035 = vsel %vm6029, %v6022, 920167782
        %v6036 = vsel %vm6028, %v6019, %v6035
        %v6037 = vsel %vm6027, %v6034, %v6036
        %v6038 = vsel %vm6026, %v6016, %v6019
        %v6039 = vsel %vm6029, %v6025, 1326507024
        %v6040 = vsel %vm6028, %v6022, %v6039
        %v6041 = vsel %vm6027, %v6038, %v6040
        %v6042 = vshll.u32 %v6002, 8
        %v6043 = vmul.u32.u64.compose %v6042, %v6041
        %v6044 = vextract.low.u32 %v6043
        %v6045 = vextract.high.u32 %v6043
        %v6046 = vmul.u32.u64.compose %v6042, %v6037
        %v6047 = vextract.low.u32 %v6046
        %v6048 = vextract.high.u32 %v6046
        %v6049 = vmul.u32 %v6042, %v6033
        %v6050 = vadd.s32 %v6045, %v6047
        %vm6051 = vc.u32 %v6045, %v6047
        %v6052 = vadd.s32 %v6048, 1
        %v6053 = vsel %vm6051, %v6052, %v6048
        %v6054 = vadd.s32 %v6049, %v6053
        %v6055 = vadd.s32 %v6054, 536870912
        %v6056 = vshrl.u32 %v6055, 30
        %v6057 = vshll.u32 %v6056, 30
        %v6058 = vsub.s32 %v6054, %v6057
        %vm6059 = vcmp.lt.s32.totalorder %v6058, 0
        %v6060 = vsub.s32 0, %v6058
        %v6061 = vsel %vm6059, %v6060, %v6058
        %v6062 = vclz %v6061
        %v6063 = vsub.s32 %v6062, 2
        %vm6064 = vcmp.gt.s32.totalorder 0, %v6063
        %v6065 = vsel %vm6064, 0, %v6063
        %v6066 = vsub.s32 32, %v6065
        %v6067 = vshll.u32 %v6058, %v6065
        %v6068 = vshrl.u32 %v6050, %v6066
        %v6069 = vor.u32 %v6067, %v6068
        %v6070 = vsub.s32 4294967266, %v6065
        %v6071 = vadd.s32 %v6070, 127
        %v6072 = vshll.u32 %v6071, 23
        %v6073 = vor.u32 4788187, %v6072
        %v6074 = vand.u32 2147483647, %v6073
        %v6076 = vcvt.s32.f32 %v6069
        %v6077 = vmul.f32 %v6076, %v6074
        %v6078 = vxor.u32 %v6077, 2147483648
        %v6079 = vsel %vm5996, %v6078, %v6077
        %v6080 = vsub.s32 4, %v6056
        %v6081 = vsel %vm5996, %v6080, %v6056
        %v6082 = vsel %vm5995, %v678, %v6079
        %v6083 = vsel %vm5995, 0, %v6081
        %v6084 = vcosq.f32.pop %v6082
        %v6085 = vsinq.f32.pop %v6082
        %vm6086 = vweird.f32 %v678
        %v6087 = vadd.s32 %v6083, 3
        %v6088 = vand.u32 %v6087, 3
        %vm6089 = vcmp.lt.s32.totalorder %v6088, 2
        %vm6090 = vcmp.eq.s32.totalorder %v6088, 0
        %v6091 = vxor.u32 %v6085, 2147483648
        %v6092 = vsel %vm6090, %v6084, %v6091
        %vm6093 = vcmp.eq.s32.totalorder %v6088, 2
        %v6094 = vxor.u32 %v6084, 2147483648
        %v6095 = vsel %vm6093, %v6094, %v6085
        %v6096 = vsel %vm6089, %v6092, %v6095
        %v6097 = vsel %vm6086, nan, %v6096
        %v6098 = vand.u32 2147483647, %v679
        %vm6099 = vcmp.le.f32.partialorder %v6098, 0.7853982
        %vm6100 = vcmp.lt.s32.totalorder %v679, 0
        %v6101 = vand.u32 %v679, 2139095040
        %v6102 = vshrl.u32 %v6101, 23
        %v6103 = vsub.s32 %v6102, 127
        %v6104 = vand.u32 2147483647, %v679
        %v6105 = vand.u32 %v6104, 8388607
        %v6106 = vor.u32 %v6105, 8388608
        %v6107 = vsub.s32 0, %v6106
        %v6108 = vadd.s32 %v6103, 1
        %vm6109 = vcmp.gt.s32.totalorder %v6108, 0
        %v6110 = vsel %vm6109, %v6108, 0
        %v6111 = vshrl.u32 %v6110, 5
        %v6112 = vand.u32 %v6110, 31
        %v6113 = vsub.s32 32, %v6112
        %v6114 = vshrl.u32 683565275, %v6113
        %v6115 = vshll.u32 683565275, %v6112
        %v6116 = vshrl.u32 2475754826, %v6113
        %v6117 = vor.u32 %v6115, %v6116
        %v6118 = vshll.u32 2475754826, %v6112
        %v6119 = vshrl.u32 2131351028, %v6113
        %v6120 = vor.u32 %v6118, %v6119
        %v6121 = vshll.u32 2131351028, %v6112
        %v6122 = vshrl.u32 2102212464, %v6113
        %v6123 = vor.u32 %v6121, %v6122
        %v6124 = vshll.u32 2102212464, %v6112
        %v6125 = vshrl.u32 920167782, %v6113
        %v6126 = vor.u32 %v6124, %v6125
        %v6127 = vshll.u32 920167782, %v6112
        %v6128 = vshrl.u32 1326507024, %v6113
        %v6129 = vor.u32 %v6127, %v6128
        %vm6130 = vcmp.lt.s32.totalorder %v6111, 1
        %vm6131 = vcmp.lt.s32.totalorder %v6111, 2
        %vm6132 = vcmp.lt.s32.totalorder %v6111, 3
        %vm6133 = vcmp.lt.s32.totalorder %v6111, 4
        %v6134 = vsel %vm6130, %v6114, %v6117
        %v6135 = vsel %vm6133, %v6123, 2102212464
        %v6136 = vsel %vm6132, %v6120, %v6135
        %v6137 = vsel %vm6131, %v6134, %v6136
        %v6138 = vsel %vm6130, %v6117, %v6120
        %v6139 = vsel %vm6133, %v6126, 920167782
        %v6140 = vsel %vm6132, %v6123, %v6139
        %v6141 = vsel %vm6131, %v6138, %v6140
        %v6142 = vsel %vm6130, %v6120, %v6123
        %v6143 = vsel %vm6133, %v6129, 1326507024
        %v6144 = vsel %vm6132, %v6126, %v6143
        %v6145 = vsel %vm6131, %v6142, %v6144
        %v6146 = vshll.u32 %v6106, 8
        %v6147 = vmul.u32.u64.compose %v6146, %v6145
        %v6148 = vextract.low.u32 %v6147
        %v6149 = vextract.high.u32 %v6147
        %v6150 = vmul.u32.u64.compose %v6146, %v6141
        %v6151 = vextract.low.u32 %v6150
        %v6152 = vextract.high.u32 %v6150
        %v6153 = vmul.u32 %v6146, %v6137
        %v6154 = vadd.s32 %v6149, %v6151
        %vm6155 = vc.u32 %v6149, %v6151
        %v6156 = vadd.s32 %v6152, 1
        %v6157 = vsel %vm6155, %v6156, %v6152
        %v6158 = vadd.s32 %v6153, %v6157
        %v6159 = vadd.s32 %v6158, 536870912
        %v6160 = vshrl.u32 %v6159, 30
        %v6161 = vshll.u32 %v6160, 30
        %v6162 = vsub.s32 %v6158, %v6161
        %vm6163 = vcmp.lt.s32.totalorder %v6162, 0
        %v6164 = vsub.s32 0, %v6162
        %v6165 = vsel %vm6163, %v6164, %v6162
        %v6166 = vclz %v6165
        %v6167 = vsub.s32 %v6166, 2
        %vm6168 = vcmp.gt.s32.totalorder 0, %v6167
        %v6169 = vsel %vm6168, 0, %v6167
        %v6170 = vsub.s32 32, %v6169
        %v6171 = vshll.u32 %v6162, %v6169
        %v6172 = vshrl.u32 %v6154, %v6170
        %v6173 = vor.u32 %v6171, %v6172
        %v6174 = vsub.s32 4294967266, %v6169
        %v6175 = vadd.s32 %v6174, 127
        %v6176 = vshll.u32 %v6175, 23
        %v6177 = vor.u32 4788187, %v6176
        %v6178 = vand.u32 2147483647, %v6177
        %v6180 = vcvt.s32.f32 %v6173
        %v6181 = vmul.f32 %v6180, %v6178
        %v6182 = vxor.u32 %v6181, 2147483648
        %v6183 = vsel %vm6100, %v6182, %v6181
        %v6184 = vsub.s32 4, %v6160
        %v6185 = vsel %vm6100, %v6184, %v6160
        %v6186 = vsel %vm6099, %v679, %v6183
        %v6187 = vsel %vm6099, 0, %v6185
        %v6188 = vcosq.f32.pop %v6186
        %v6189 = vsinq.f32.pop %v6186
        %vm6190 = vweird.f32 %v679
        %v6191 = vadd.s32 %v6187, 3
        %v6192 = vand.u32 %v6191, 3
        %vm6193 = vcmp.lt.s32.totalorder %v6192, 2
        %vm6194 = vcmp.eq.s32.totalorder %v6192, 0
        %v6195 = vxor.u32 %v6189, 2147483648
        %v6196 = vsel %vm6194, %v6188, %v6195
        %vm6197 = vcmp.eq.s32.totalorder %v6192, 2
        %v6198 = vxor.u32 %v6188, 2147483648
        %v6199 = vsel %vm6197, %v6198, %v6189
        %v6200 = vsel %vm6193, %v6196, %v6199
        %v6201 = vsel %vm6190, nan, %v6200
        %v6202 = vand.u32 2147483647, %v680
        %vm6203 = vcmp.le.f32.partialorder %v6202, 0.7853982
        %vm6204 = vcmp.lt.s32.totalorder %v680, 0
        %v6205 = vand.u32 %v680, 2139095040
        %v6206 = vshrl.u32 %v6205, 23
        %v6207 = vsub.s32 %v6206, 127
        %v6208 = vand.u32 2147483647, %v680
        %v6209 = vand.u32 %v6208, 8388607
        %v6210 = vor.u32 %v6209, 8388608
        %v6211 = vsub.s32 0, %v6210
        %v6212 = vadd.s32 %v6207, 1
        %vm6213 = vcmp.gt.s32.totalorder %v6212, 0
        %v6214 = vsel %vm6213, %v6212, 0
        %v6215 = vshrl.u32 %v6214, 5
        %v6216 = vand.u32 %v6214, 31
        %v6217 = vsub.s32 32, %v6216
        %v6218 = vshrl.u32 683565275, %v6217
        %v6219 = vshll.u32 683565275, %v6216
        %v6220 = vshrl.u32 2475754826, %v6217
        %v6221 = vor.u32 %v6219, %v6220
        %v6222 = vshll.u32 2475754826, %v6216
        %v6223 = vshrl.u32 2131351028, %v6217
        %v6224 = vor.u32 %v6222, %v6223
        %v6225 = vshll.u32 2131351028, %v6216
        %v6226 = vshrl.u32 2102212464, %v6217
        %v6227 = vor.u32 %v6225, %v6226
        %v6228 = vshll.u32 2102212464, %v6216
        %v6229 = vshrl.u32 920167782, %v6217
        %v6230 = vor.u32 %v6228, %v6229
        %v6231 = vshll.u32 920167782, %v6216
        %v6232 = vshrl.u32 1326507024, %v6217
        %v6233 = vor.u32 %v6231, %v6232
        %vm6234 = vcmp.lt.s32.totalorder %v6215, 1
        %vm6235 = vcmp.lt.s32.totalorder %v6215, 2
        %vm6236 = vcmp.lt.s32.totalorder %v6215, 3
        %vm6237 = vcmp.lt.s32.totalorder %v6215, 4
        %v6238 = vsel %vm6234, %v6218, %v6221
        %v6239 = vsel %vm6237, %v6227, 2102212464
        %v6240 = vsel %vm6236, %v6224, %v6239
        %v6241 = vsel %vm6235, %v6238, %v6240
        %v6242 = vsel %vm6234, %v6221, %v6224
        %v6243 = vsel %vm6237, %v6230, 920167782
        %v6244 = vsel %vm6236, %v6227, %v6243
        %v6245 = vsel %vm6235, %v6242, %v6244
        %v6246 = vsel %vm6234, %v6224, %v6227
        %v6247 = vsel %vm6237, %v6233, 1326507024
        %v6248 = vsel %vm6236, %v6230, %v6247
        %v6249 = vsel %vm6235, %v6246, %v6248
        %v6250 = vshll.u32 %v6210, 8
        %v6251 = vmul.u32.u64.compose %v6250, %v6249
        %v6252 = vextract.low.u32 %v6251
        %v6253 = vextract.high.u32 %v6251
        %v6254 = vmul.u32.u64.compose %v6250, %v6245
        %v6255 = vextract.low.u32 %v6254
        %v6256 = vextract.high.u32 %v6254
        %v6257 = vmul.u32 %v6250, %v6241
        %v6258 = vadd.s32 %v6253, %v6255
        %vm6259 = vc.u32 %v6253, %v6255
        %v6260 = vadd.s32 %v6256, 1
        %v6261 = vsel %vm6259, %v6260, %v6256
        %v6262 = vadd.s32 %v6257, %v6261
        %v6263 = vadd.s32 %v6262, 536870912
        %v6264 = vshrl.u32 %v6263, 30
        %v6265 = vshll.u32 %v6264, 30
        %v6266 = vsub.s32 %v6262, %v6265
        %vm6267 = vcmp.lt.s32.totalorder %v6266, 0
        %v6268 = vsub.s32 0, %v6266
        %v6269 = vsel %vm6267, %v6268, %v6266
        %v6270 = vclz %v6269
        %v6271 = vsub.s32 %v6270, 2
        %vm6272 = vcmp.gt.s32.totalorder 0, %v6271
        %v6273 = vsel %vm6272, 0, %v6271
        %v6274 = vsub.s32 32, %v6273
        %v6275 = vshll.u32 %v6266, %v6273
        %v6276 = vshrl.u32 %v6258, %v6274
        %v6277 = vor.u32 %v6275, %v6276
        %v6278 = vsub.s32 4294967266, %v6273
        %v6279 = vadd.s32 %v6278, 127
        %v6280 = vshll.u32 %v6279, 23
        %v6281 = vor.u32 4788187, %v6280
        %v6282 = vand.u32 2147483647, %v6281
        %v6284 = vcvt.s32.f32 %v6277
        %v6285 = vmul.f32 %v6284, %v6282
        %v6286 = vxor.u32 %v6285, 2147483648
        %v6287 = vsel %vm6204, %v6286, %v6285
        %v6288 = vsub.s32 4, %v6264
        %v6289 = vsel %vm6204, %v6288, %v6264
        %v6290 = vsel %vm6203, %v680, %v6287
        %v6291 = vsel %vm6203, 0, %v6289
        %v6292 = vcosq.f32.pop %v6290
        %v6293 = vsinq.f32.pop %v6290
        %vm6294 = vweird.f32 %v680
        %v6295 = vadd.s32 %v6291, 3
        %v6296 = vand.u32 %v6295, 3
        %vm6297 = vcmp.lt.s32.totalorder %v6296, 2
        %vm6298 = vcmp.eq.s32.totalorder %v6296, 0
        %v6299 = vxor.u32 %v6293, 2147483648
        %v6300 = vsel %vm6298, %v6292, %v6299
        %vm6301 = vcmp.eq.s32.totalorder %v6296, 2
        %v6302 = vxor.u32 %v6292, 2147483648
        %v6303 = vsel %vm6301, %v6302, %v6293
        %v6304 = vsel %vm6297, %v6300, %v6303
        %v6305 = vsel %vm6294, nan, %v6304
        %v6306 = vand.u32 2147483647, %v681
        %vm6307 = vcmp.le.f32.partialorder %v6306, 0.7853982
        %vm6308 = vcmp.lt.s32.totalorder %v681, 0
        %v6309 = vand.u32 %v681, 2139095040
        %v6310 = vshrl.u32 %v6309, 23
        %v6311 = vsub.s32 %v6310, 127
        %v6312 = vand.u32 2147483647, %v681
        %v6313 = vand.u32 %v6312, 8388607
        %v6314 = vor.u32 %v6313, 8388608
        %v6315 = vsub.s32 0, %v6314
        %v6316 = vadd.s32 %v6311, 1
        %vm6317 = vcmp.gt.s32.totalorder %v6316, 0
        %v6318 = vsel %vm6317, %v6316, 0
        %v6319 = vshrl.u32 %v6318, 5
        %v6320 = vand.u32 %v6318, 31
        %v6321 = vsub.s32 32, %v6320
        %v6322 = vshrl.u32 683565275, %v6321
        %v6323 = vshll.u32 683565275, %v6320
        %v6324 = vshrl.u32 2475754826, %v6321
        %v6325 = vor.u32 %v6323, %v6324
        %v6326 = vshll.u32 2475754826, %v6320
        %v6327 = vshrl.u32 2131351028, %v6321
        %v6328 = vor.u32 %v6326, %v6327
        %v6329 = vshll.u32 2131351028, %v6320
        %v6330 = vshrl.u32 2102212464, %v6321
        %v6331 = vor.u32 %v6329, %v6330
        %v6332 = vshll.u32 2102212464, %v6320
        %v6333 = vshrl.u32 920167782, %v6321
        %v6334 = vor.u32 %v6332, %v6333
        %v6335 = vshll.u32 920167782, %v6320
        %v6336 = vshrl.u32 1326507024, %v6321
        %v6337 = vor.u32 %v6335, %v6336
        %vm6338 = vcmp.lt.s32.totalorder %v6319, 1
        %vm6339 = vcmp.lt.s32.totalorder %v6319, 2
        %vm6340 = vcmp.lt.s32.totalorder %v6319, 3
        %vm6341 = vcmp.lt.s32.totalorder %v6319, 4
        %v6342 = vsel %vm6338, %v6322, %v6325
        %v6343 = vsel %vm6341, %v6331, 2102212464
        %v6344 = vsel %vm6340, %v6328, %v6343
        %v6345 = vsel %vm6339, %v6342, %v6344
        %v6346 = vsel %vm6338, %v6325, %v6328
        %v6347 = vsel %vm6341, %v6334, 920167782
        %v6348 = vsel %vm6340, %v6331, %v6347
        %v6349 = vsel %vm6339, %v6346, %v6348
        %v6350 = vsel %vm6338, %v6328, %v6331
        %v6351 = vsel %vm6341, %v6337, 1326507024
        %v6352 = vsel %vm6340, %v6334, %v6351
        %v6353 = vsel %vm6339, %v6350, %v6352
        %v6354 = vshll.u32 %v6314, 8
        %v6355 = vmul.u32.u64.compose %v6354, %v6353
        %v6356 = vextract.low.u32 %v6355
        %v6357 = vextract.high.u32 %v6355
        %v6358 = vmul.u32.u64.compose %v6354, %v6349
        %v6359 = vextract.low.u32 %v6358
        %v6360 = vextract.high.u32 %v6358
        %v6361 = vmul.u32 %v6354, %v6345
        %v6362 = vadd.s32 %v6357, %v6359
        %vm6363 = vc.u32 %v6357, %v6359
        %v6364 = vadd.s32 %v6360, 1
        %v6365 = vsel %vm6363, %v6364, %v6360
        %v6366 = vadd.s32 %v6361, %v6365
        %v6367 = vadd.s32 %v6366, 536870912
        %v6368 = vshrl.u32 %v6367, 30
        %v6369 = vshll.u32 %v6368, 30
        %v6370 = vsub.s32 %v6366, %v6369
        %vm6371 = vcmp.lt.s32.totalorder %v6370, 0
        %v6372 = vsub.s32 0, %v6370
        %v6373 = vsel %vm6371, %v6372, %v6370
        %v6374 = vclz %v6373
        %v6375 = vsub.s32 %v6374, 2
        %vm6376 = vcmp.gt.s32.totalorder 0, %v6375
        %v6377 = vsel %vm6376, 0, %v6375
        %v6378 = vsub.s32 32, %v6377
        %v6379 = vshll.u32 %v6370, %v6377
        %v6380 = vshrl.u32 %v6362, %v6378
        %v6381 = vor.u32 %v6379, %v6380
        %v6382 = vsub.s32 4294967266, %v6377
        %v6383 = vadd.s32 %v6382, 127
        %v6384 = vshll.u32 %v6383, 23
        %v6385 = vor.u32 4788187, %v6384
        %v6386 = vand.u32 2147483647, %v6385
        %v6388 = vcvt.s32.f32 %v6381
        %v6389 = vmul.f32 %v6388, %v6386
        %v6390 = vxor.u32 %v6389, 2147483648
        %v6391 = vsel %vm6308, %v6390, %v6389
        %v6392 = vsub.s32 4, %v6368
        %v6393 = vsel %vm6308, %v6392, %v6368
        %v6394 = vsel %vm6307, %v681, %v6391
        %v6395 = vsel %vm6307, 0, %v6393
        %v6396 = vcosq.f32.pop %v6394
        %v6397 = vsinq.f32.pop %v6394
        %vm6398 = vweird.f32 %v681
        %v6399 = vadd.s32 %v6395, 3
        %v6400 = vand.u32 %v6399, 3
        %vm6401 = vcmp.lt.s32.totalorder %v6400, 2
        %vm6402 = vcmp.eq.s32.totalorder %v6400, 0
        %v6403 = vxor.u32 %v6397, 2147483648
        %v6404 = vsel %vm6402, %v6396, %v6403
        %vm6405 = vcmp.eq.s32.totalorder %v6400, 2
        %v6406 = vxor.u32 %v6396, 2147483648
        %v6407 = vsel %vm6405, %v6406, %v6397
        %v6408 = vsel %vm6401, %v6404, %v6407
        %v6409 = vsel %vm6398, nan, %v6408
        %v6410 = vand.u32 2147483647, %v682
        %vm6411 = vcmp.le.f32.partialorder %v6410, 0.7853982
        %vm6412 = vcmp.lt.s32.totalorder %v682, 0
        %v6413 = vand.u32 %v682, 2139095040
        %v6414 = vshrl.u32 %v6413, 23
        %v6415 = vsub.s32 %v6414, 127
        %v6416 = vand.u32 2147483647, %v682
        %v6417 = vand.u32 %v6416, 8388607
        %v6418 = vor.u32 %v6417, 8388608
        %v6419 = vsub.s32 0, %v6418
        %v6420 = vadd.s32 %v6415, 1
        %vm6421 = vcmp.gt.s32.totalorder %v6420, 0
        %v6422 = vsel %vm6421, %v6420, 0
        %v6423 = vshrl.u32 %v6422, 5
        %v6424 = vand.u32 %v6422, 31
        %v6425 = vsub.s32 32, %v6424
        %v6426 = vshrl.u32 683565275, %v6425
        %v6427 = vshll.u32 683565275, %v6424
        %v6428 = vshrl.u32 2475754826, %v6425
        %v6429 = vor.u32 %v6427, %v6428
        %v6430 = vshll.u32 2475754826, %v6424
        %v6431 = vshrl.u32 2131351028, %v6425
        %v6432 = vor.u32 %v6430, %v6431
        %v6433 = vshll.u32 2131351028, %v6424
        %v6434 = vshrl.u32 2102212464, %v6425
        %v6435 = vor.u32 %v6433, %v6434
        %v6436 = vshll.u32 2102212464, %v6424
        %v6437 = vshrl.u32 920167782, %v6425
        %v6438 = vor.u32 %v6436, %v6437
        %v6439 = vshll.u32 920167782, %v6424
        %v6440 = vshrl.u32 1326507024, %v6425
        %v6441 = vor.u32 %v6439, %v6440
        %vm6442 = vcmp.lt.s32.totalorder %v6423, 1
        %vm6443 = vcmp.lt.s32.totalorder %v6423, 2
        %vm6444 = vcmp.lt.s32.totalorder %v6423, 3
        %vm6445 = vcmp.lt.s32.totalorder %v6423, 4
        %v6446 = vsel %vm6442, %v6426, %v6429
        %v6447 = vsel %vm6445, %v6435, 2102212464
        %v6448 = vsel %vm6444, %v6432, %v6447
        %v6449 = vsel %vm6443, %v6446, %v6448
        %v6450 = vsel %vm6442, %v6429, %v6432
        %v6451 = vsel %vm6445, %v6438, 920167782
        %v6452 = vsel %vm6444, %v6435, %v6451
        %v6453 = vsel %vm6443, %v6450, %v6452
        %v6454 = vsel %vm6442, %v6432, %v6435
        %v6455 = vsel %vm6445, %v6441, 1326507024
        %v6456 = vsel %vm6444, %v6438, %v6455
        %v6457 = vsel %vm6443, %v6454, %v6456
        %v6458 = vshll.u32 %v6418, 8
        %v6459 = vmul.u32.u64.compose %v6458, %v6457
        %v6460 = vextract.low.u32 %v6459
        %v6461 = vextract.high.u32 %v6459
        %v6462 = vmul.u32.u64.compose %v6458, %v6453
        %v6463 = vextract.low.u32 %v6462
        %v6464 = vextract.high.u32 %v6462
        %v6465 = vmul.u32 %v6458, %v6449
        %v6466 = vadd.s32 %v6461, %v6463
        %vm6467 = vc.u32 %v6461, %v6463
        %v6468 = vadd.s32 %v6464, 1
        %v6469 = vsel %vm6467, %v6468, %v6464
        %v6470 = vadd.s32 %v6465, %v6469
        %v6471 = vadd.s32 %v6470, 536870912
        %v6472 = vshrl.u32 %v6471, 30
        %v6473 = vshll.u32 %v6472, 30
        %v6474 = vsub.s32 %v6470, %v6473
        %vm6475 = vcmp.lt.s32.totalorder %v6474, 0
        %v6476 = vsub.s32 0, %v6474
        %v6477 = vsel %vm6475, %v6476, %v6474
        %v6478 = vclz %v6477
        %v6479 = vsub.s32 %v6478, 2
        %vm6480 = vcmp.gt.s32.totalorder 0, %v6479
        %v6481 = vsel %vm6480, 0, %v6479
        %v6482 = vsub.s32 32, %v6481
        %v6483 = vshll.u32 %v6474, %v6481
        %v6484 = vshrl.u32 %v6466, %v6482
        %v6485 = vor.u32 %v6483, %v6484
        %v6486 = vsub.s32 4294967266, %v6481
        %v6487 = vadd.s32 %v6486, 127
        %v6488 = vshll.u32 %v6487, 23
        %v6489 = vor.u32 4788187, %v6488
        %v6490 = vand.u32 2147483647, %v6489
        %v6492 = vcvt.s32.f32 %v6485
        %v6493 = vmul.f32 %v6492, %v6490
        %v6494 = vxor.u32 %v6493, 2147483648
        %v6495 = vsel %vm6412, %v6494, %v6493
        %v6496 = vsub.s32 4, %v6472
        %v6497 = vsel %vm6412, %v6496, %v6472
        %v6498 = vsel %vm6411, %v682, %v6495
        %v6499 = vsel %vm6411, 0, %v6497
        %v6500 = vcosq.f32.pop %v6498
        %v6501 = vsinq.f32.pop %v6498
        %vm6502 = vweird.f32 %v682
        %v6503 = vadd.s32 %v6499, 3
        %v6504 = vand.u32 %v6503, 3
        %vm6505 = vcmp.lt.s32.totalorder %v6504, 2
        %vm6506 = vcmp.eq.s32.totalorder %v6504, 0
        %v6507 = vxor.u32 %v6501, 2147483648
        %v6508 = vsel %vm6506, %v6500, %v6507
        %vm6509 = vcmp.eq.s32.totalorder %v6504, 2
        %v6510 = vxor.u32 %v6500, 2147483648
        %v6511 = vsel %vm6509, %v6510, %v6501
        %v6512 = vsel %vm6505, %v6508, %v6511
        %v6513 = vsel %vm6502, nan, %v6512
        %v6514 = vand.u32 2147483647, %v683
        %vm6515 = vcmp.le.f32.partialorder %v6514, 0.7853982
        %vm6516 = vcmp.lt.s32.totalorder %v683, 0
        %v6517 = vand.u32 %v683, 2139095040
        %v6518 = vshrl.u32 %v6517, 23
        %v6519 = vsub.s32 %v6518, 127
        %v6520 = vand.u32 2147483647, %v683
        %v6521 = vand.u32 %v6520, 8388607
        %v6522 = vor.u32 %v6521, 8388608
        %v6523 = vsub.s32 0, %v6522
        %v6524 = vadd.s32 %v6519, 1
        %vm6525 = vcmp.gt.s32.totalorder %v6524, 0
        %v6526 = vsel %vm6525, %v6524, 0
        %v6527 = vshrl.u32 %v6526, 5
        %v6528 = vand.u32 %v6526, 31
        %v6529 = vsub.s32 32, %v6528
        %v6530 = vshrl.u32 683565275, %v6529
        %v6531 = vshll.u32 683565275, %v6528
        %v6532 = vshrl.u32 2475754826, %v6529
        %v6533 = vor.u32 %v6531, %v6532
        %v6534 = vshll.u32 2475754826, %v6528
        %v6535 = vshrl.u32 2131351028, %v6529
        %v6536 = vor.u32 %v6534, %v6535
        %v6537 = vshll.u32 2131351028, %v6528
        %v6538 = vshrl.u32 2102212464, %v6529
        %v6539 = vor.u32 %v6537, %v6538
        %v6540 = vshll.u32 2102212464, %v6528
        %v6541 = vshrl.u32 920167782, %v6529
        %v6542 = vor.u32 %v6540, %v6541
        %v6543 = vshll.u32 920167782, %v6528
        %v6544 = vshrl.u32 1326507024, %v6529
        %v6545 = vor.u32 %v6543, %v6544
        %vm6546 = vcmp.lt.s32.totalorder %v6527, 1
        %vm6547 = vcmp.lt.s32.totalorder %v6527, 2
        %vm6548 = vcmp.lt.s32.totalorder %v6527, 3
        %vm6549 = vcmp.lt.s32.totalorder %v6527, 4
        %v6550 = vsel %vm6546, %v6530, %v6533
        %v6551 = vsel %vm6549, %v6539, 2102212464
        %v6552 = vsel %vm6548, %v6536, %v6551
        %v6553 = vsel %vm6547, %v6550, %v6552
        %v6554 = vsel %vm6546, %v6533, %v6536
        %v6555 = vsel %vm6549, %v6542, 920167782
        %v6556 = vsel %vm6548, %v6539, %v6555
        %v6557 = vsel %vm6547, %v6554, %v6556
        %v6558 = vsel %vm6546, %v6536, %v6539
        %v6559 = vsel %vm6549, %v6545, 1326507024
        %v6560 = vsel %vm6548, %v6542, %v6559
        %v6561 = vsel %vm6547, %v6558, %v6560
        %v6562 = vshll.u32 %v6522, 8
        %v6563 = vmul.u32.u64.compose %v6562, %v6561
        %v6564 = vextract.low.u32 %v6563
        %v6565 = vextract.high.u32 %v6563
        %v6566 = vmul.u32.u64.compose %v6562, %v6557
        %v6567 = vextract.low.u32 %v6566
        %v6568 = vextract.high.u32 %v6566
        %v6569 = vmul.u32 %v6562, %v6553
        %v6570 = vadd.s32 %v6565, %v6567
        %vm6571 = vc.u32 %v6565, %v6567
        %v6572 = vadd.s32 %v6568, 1
        %v6573 = vsel %vm6571, %v6572, %v6568
        %v6574 = vadd.s32 %v6569, %v6573
        %v6575 = vadd.s32 %v6574, 536870912
        %v6576 = vshrl.u32 %v6575, 30
        %v6577 = vshll.u32 %v6576, 30
        %v6578 = vsub.s32 %v6574, %v6577
        %vm6579 = vcmp.lt.s32.totalorder %v6578, 0
        %v6580 = vsub.s32 0, %v6578
        %v6581 = vsel %vm6579, %v6580, %v6578
        %v6582 = vclz %v6581
        %v6583 = vsub.s32 %v6582, 2
        %vm6584 = vcmp.gt.s32.totalorder 0, %v6583
        %v6585 = vsel %vm6584, 0, %v6583
        %v6586 = vsub.s32 32, %v6585
        %v6587 = vshll.u32 %v6578, %v6585
        %v6588 = vshrl.u32 %v6570, %v6586
        %v6589 = vor.u32 %v6587, %v6588
        %v6590 = vsub.s32 4294967266, %v6585
        %v6591 = vadd.s32 %v6590, 127
        %v6592 = vshll.u32 %v6591, 23
        %v6593 = vor.u32 4788187, %v6592
        %v6594 = vand.u32 2147483647, %v6593
        %v6596 = vcvt.s32.f32 %v6589
        %v6597 = vmul.f32 %v6596, %v6594
        %v6598 = vxor.u32 %v6597, 2147483648
        %v6599 = vsel %vm6516, %v6598, %v6597
        %v6600 = vsub.s32 4, %v6576
        %v6601 = vsel %vm6516, %v6600, %v6576
        %v6602 = vsel %vm6515, %v683, %v6599
        %v6603 = vsel %vm6515, 0, %v6601
        %v6604 = vcosq.f32.pop %v6602
        %v6605 = vsinq.f32.pop %v6602
        %vm6606 = vweird.f32 %v683
        %v6607 = vadd.s32 %v6603, 3
        %v6608 = vand.u32 %v6607, 3
        %vm6609 = vcmp.lt.s32.totalorder %v6608, 2
        %vm6610 = vcmp.eq.s32.totalorder %v6608, 0
        %v6611 = vxor.u32 %v6605, 2147483648
        %v6612 = vsel %vm6610, %v6604, %v6611
        %vm6613 = vcmp.eq.s32.totalorder %v6608, 2
        %v6614 = vxor.u32 %v6604, 2147483648
        %v6615 = vsel %vm6613, %v6614, %v6605
        %v6616 = vsel %vm6609, %v6612, %v6615
        %v6617 = vsel %vm6606, nan, %v6616
        %v6618 = vand.u32 2147483647, %v684
        %vm6619 = vcmp.le.f32.partialorder %v6618, 0.7853982
        %vm6620 = vcmp.lt.s32.totalorder %v684, 0
        %v6621 = vand.u32 %v684, 2139095040
        %v6622 = vshrl.u32 %v6621, 23
        %v6623 = vsub.s32 %v6622, 127
        %v6624 = vand.u32 2147483647, %v684
        %v6625 = vand.u32 %v6624, 8388607
        %v6626 = vor.u32 %v6625, 8388608
        %v6627 = vsub.s32 0, %v6626
        %v6628 = vadd.s32 %v6623, 1
        %vm6629 = vcmp.gt.s32.totalorder %v6628, 0
        %v6630 = vsel %vm6629, %v6628, 0
        %v6631 = vshrl.u32 %v6630, 5
        %v6632 = vand.u32 %v6630, 31
        %v6633 = vsub.s32 32, %v6632
        %v6634 = vshrl.u32 683565275, %v6633
        %v6635 = vshll.u32 683565275, %v6632
        %v6636 = vshrl.u32 2475754826, %v6633
        %v6637 = vor.u32 %v6635, %v6636
        %v6638 = vshll.u32 2475754826, %v6632
        %v6639 = vshrl.u32 2131351028, %v6633
        %v6640 = vor.u32 %v6638, %v6639
        %v6641 = vshll.u32 2131351028, %v6632
        %v6642 = vshrl.u32 2102212464, %v6633
        %v6643 = vor.u32 %v6641, %v6642
        %v6644 = vshll.u32 2102212464, %v6632
        %v6645 = vshrl.u32 920167782, %v6633
        %v6646 = vor.u32 %v6644, %v6645
        %v6647 = vshll.u32 920167782, %v6632
        %v6648 = vshrl.u32 1326507024, %v6633
        %v6649 = vor.u32 %v6647, %v6648
        %vm6650 = vcmp.lt.s32.totalorder %v6631, 1
        %vm6651 = vcmp.lt.s32.totalorder %v6631, 2
        %vm6652 = vcmp.lt.s32.totalorder %v6631, 3
        %vm6653 = vcmp.lt.s32.totalorder %v6631, 4
        %v6654 = vsel %vm6650, %v6634, %v6637
        %v6655 = vsel %vm6653, %v6643, 2102212464
        %v6656 = vsel %vm6652, %v6640, %v6655
        %v6657 = vsel %vm6651, %v6654, %v6656
        %v6658 = vsel %vm6650, %v6637, %v6640
        %v6659 = vsel %vm6653, %v6646, 920167782
        %v6660 = vsel %vm6652, %v6643, %v6659
        %v6661 = vsel %vm6651, %v6658, %v6660
        %v6662 = vsel %vm6650, %v6640, %v6643
        %v6663 = vsel %vm6653, %v6649, 1326507024
        %v6664 = vsel %vm6652, %v6646, %v6663
        %v6665 = vsel %vm6651, %v6662, %v6664
        %v6666 = vshll.u32 %v6626, 8
        %v6667 = vmul.u32.u64.compose %v6666, %v6665
        %v6668 = vextract.low.u32 %v6667
        %v6669 = vextract.high.u32 %v6667
        %v6670 = vmul.u32.u64.compose %v6666, %v6661
        %v6671 = vextract.low.u32 %v6670
        %v6672 = vextract.high.u32 %v6670
        %v6673 = vmul.u32 %v6666, %v6657
        %v6674 = vadd.s32 %v6669, %v6671
        %vm6675 = vc.u32 %v6669, %v6671
        %v6676 = vadd.s32 %v6672, 1
        %v6677 = vsel %vm6675, %v6676, %v6672
        %v6678 = vadd.s32 %v6673, %v6677
        %v6679 = vadd.s32 %v6678, 536870912
        %v6680 = vshrl.u32 %v6679, 30
        %v6681 = vshll.u32 %v6680, 30
        %v6682 = vsub.s32 %v6678, %v6681
        %vm6683 = vcmp.lt.s32.totalorder %v6682, 0
        %v6684 = vsub.s32 0, %v6682
        %v6685 = vsel %vm6683, %v6684, %v6682
        %v6686 = vclz %v6685
        %v6687 = vsub.s32 %v6686, 2
        %vm6688 = vcmp.gt.s32.totalorder 0, %v6687
        %v6689 = vsel %vm6688, 0, %v6687
        %v6690 = vsub.s32 32, %v6689
        %v6691 = vshll.u32 %v6682, %v6689
        %v6692 = vshrl.u32 %v6674, %v6690
        %v6693 = vor.u32 %v6691, %v6692
        %v6694 = vsub.s32 4294967266, %v6689
        %v6695 = vadd.s32 %v6694, 127
        %v6696 = vshll.u32 %v6695, 23
        %v6697 = vor.u32 4788187, %v6696
        %v6698 = vand.u32 2147483647, %v6697
        %v6700 = vcvt.s32.f32 %v6693
        %v6701 = vmul.f32 %v6700, %v6698
        %v6702 = vxor.u32 %v6701, 2147483648
        %v6703 = vsel %vm6620, %v6702, %v6701
        %v6704 = vsub.s32 4, %v6680
        %v6705 = vsel %vm6620, %v6704, %v6680
        %v6706 = vsel %vm6619, %v684, %v6703
        %v6707 = vsel %vm6619, 0, %v6705
        %v6708 = vcosq.f32.pop %v6706
        %v6709 = vsinq.f32.pop %v6706
        %vm6710 = vweird.f32 %v684
        %v6711 = vadd.s32 %v6707, 3
        %v6712 = vand.u32 %v6711, 3
        %vm6713 = vcmp.lt.s32.totalorder %v6712, 2
        %vm6714 = vcmp.eq.s32.totalorder %v6712, 0
        %v6715 = vxor.u32 %v6709, 2147483648
        %v6716 = vsel %vm6714, %v6708, %v6715
        %vm6717 = vcmp.eq.s32.totalorder %v6712, 2
        %v6718 = vxor.u32 %v6708, 2147483648
        %v6719 = vsel %vm6717, %v6718, %v6709
        %v6720 = vsel %vm6713, %v6716, %v6719
        %v6721 = vsel %vm6710, nan, %v6720
        %v6722 = vand.u32 2147483647, %v685
        %vm6723 = vcmp.le.f32.partialorder %v6722, 0.7853982
        %vm6724 = vcmp.lt.s32.totalorder %v685, 0
        %v6725 = vand.u32 %v685, 2139095040
        %v6726 = vshrl.u32 %v6725, 23
        %v6727 = vsub.s32 %v6726, 127
        %v6728 = vand.u32 2147483647, %v685
        %v6729 = vand.u32 %v6728, 8388607
        %v6730 = vor.u32 %v6729, 8388608
        %v6731 = vsub.s32 0, %v6730
        %v6732 = vadd.s32 %v6727, 1
        %vm6733 = vcmp.gt.s32.totalorder %v6732, 0
        %v6734 = vsel %vm6733, %v6732, 0
        %v6735 = vshrl.u32 %v6734, 5
        %v6736 = vand.u32 %v6734, 31
        %v6737 = vsub.s32 32, %v6736
        %v6738 = vshrl.u32 683565275, %v6737
        %v6739 = vshll.u32 683565275, %v6736
        %v6740 = vshrl.u32 2475754826, %v6737
        %v6741 = vor.u32 %v6739, %v6740
        %v6742 = vshll.u32 2475754826, %v6736
        %v6743 = vshrl.u32 2131351028, %v6737
        %v6744 = vor.u32 %v6742, %v6743
        %v6745 = vshll.u32 2131351028, %v6736
        %v6746 = vshrl.u32 2102212464, %v6737
        %v6747 = vor.u32 %v6745, %v6746
        %v6748 = vshll.u32 2102212464, %v6736
        %v6749 = vshrl.u32 920167782, %v6737
        %v6750 = vor.u32 %v6748, %v6749
        %v6751 = vshll.u32 920167782, %v6736
        %v6752 = vshrl.u32 1326507024, %v6737
        %v6753 = vor.u32 %v6751, %v6752
        %vm6754 = vcmp.lt.s32.totalorder %v6735, 1
        %vm6755 = vcmp.lt.s32.totalorder %v6735, 2
        %vm6756 = vcmp.lt.s32.totalorder %v6735, 3
        %vm6757 = vcmp.lt.s32.totalorder %v6735, 4
        %v6758 = vsel %vm6754, %v6738, %v6741
        %v6759 = vsel %vm6757, %v6747, 2102212464
        %v6760 = vsel %vm6756, %v6744, %v6759
        %v6761 = vsel %vm6755, %v6758, %v6760
        %v6762 = vsel %vm6754, %v6741, %v6744
        %v6763 = vsel %vm6757, %v6750, 920167782
        %v6764 = vsel %vm6756, %v6747, %v6763
        %v6765 = vsel %vm6755, %v6762, %v6764
        %v6766 = vsel %vm6754, %v6744, %v6747
        %v6767 = vsel %vm6757, %v6753, 1326507024
        %v6768 = vsel %vm6756, %v6750, %v6767
        %v6769 = vsel %vm6755, %v6766, %v6768
        %v6770 = vshll.u32 %v6730, 8
        %v6771 = vmul.u32.u64.compose %v6770, %v6769
        %v6772 = vextract.low.u32 %v6771
        %v6773 = vextract.high.u32 %v6771
        %v6774 = vmul.u32.u64.compose %v6770, %v6765
        %v6775 = vextract.low.u32 %v6774
        %v6776 = vextract.high.u32 %v6774
        %v6777 = vmul.u32 %v6770, %v6761
        %v6778 = vadd.s32 %v6773, %v6775
        %vm6779 = vc.u32 %v6773, %v6775
        %v6780 = vadd.s32 %v6776, 1
        %v6781 = vsel %vm6779, %v6780, %v6776
        %v6782 = vadd.s32 %v6777, %v6781
        %v6783 = vadd.s32 %v6782, 536870912
        %v6784 = vshrl.u32 %v6783, 30
        %v6785 = vshll.u32 %v6784, 30
        %v6786 = vsub.s32 %v6782, %v6785
        %vm6787 = vcmp.lt.s32.totalorder %v6786, 0
        %v6788 = vsub.s32 0, %v6786
        %v6789 = vsel %vm6787, %v6788, %v6786
        %v6790 = vclz %v6789
        %v6791 = vsub.s32 %v6790, 2
        %vm6792 = vcmp.gt.s32.totalorder 0, %v6791
        %v6793 = vsel %vm6792, 0, %v6791
        %v6794 = vsub.s32 32, %v6793
        %v6795 = vshll.u32 %v6786, %v6793
        %v6796 = vshrl.u32 %v6778, %v6794
        %v6797 = vor.u32 %v6795, %v6796
        %v6798 = vsub.s32 4294967266, %v6793
        %v6799 = vadd.s32 %v6798, 127
        %v6800 = vshll.u32 %v6799, 23
        %v6801 = vor.u32 4788187, %v6800
        %v6802 = vand.u32 2147483647, %v6801
        %v6804 = vcvt.s32.f32 %v6797
        %v6805 = vmul.f32 %v6804, %v6802
        %v6806 = vxor.u32 %v6805, 2147483648
        %v6807 = vsel %vm6724, %v6806, %v6805
        %v6808 = vsub.s32 4, %v6784
        %v6809 = vsel %vm6724, %v6808, %v6784
        %v6810 = vsel %vm6723, %v685, %v6807
        %v6811 = vsel %vm6723, 0, %v6809
        %v6812 = vcosq.f32.pop %v6810
        %v6813 = vsinq.f32.pop %v6810
        %vm6814 = vweird.f32 %v685
        %v6815 = vadd.s32 %v6811, 3
        %v6816 = vand.u32 %v6815, 3
        %vm6817 = vcmp.lt.s32.totalorder %v6816, 2
        %vm6818 = vcmp.eq.s32.totalorder %v6816, 0
        %v6819 = vxor.u32 %v6813, 2147483648
        %v6820 = vsel %vm6818, %v6812, %v6819
        %vm6821 = vcmp.eq.s32.totalorder %v6816, 2
        %v6822 = vxor.u32 %v6812, 2147483648
        %v6823 = vsel %vm6821, %v6822, %v6813
        %v6824 = vsel %vm6817, %v6820, %v6823
        %v6825 = vsel %vm6814, nan, %v6824
        %v6826 = vand.u32 2147483647, %v686
        %vm6827 = vcmp.le.f32.partialorder %v6826, 0.7853982
        %vm6828 = vcmp.lt.s32.totalorder %v686, 0
        %v6829 = vand.u32 %v686, 2139095040
        %v6830 = vshrl.u32 %v6829, 23
        %v6831 = vsub.s32 %v6830, 127
        %v6832 = vand.u32 2147483647, %v686
        %v6833 = vand.u32 %v6832, 8388607
        %v6834 = vor.u32 %v6833, 8388608
        %v6835 = vsub.s32 0, %v6834
        %v6836 = vadd.s32 %v6831, 1
        %vm6837 = vcmp.gt.s32.totalorder %v6836, 0
        %v6838 = vsel %vm6837, %v6836, 0
        %v6839 = vshrl.u32 %v6838, 5
        %v6840 = vand.u32 %v6838, 31
        %v6841 = vsub.s32 32, %v6840
        %v6842 = vshrl.u32 683565275, %v6841
        %v6843 = vshll.u32 683565275, %v6840
        %v6844 = vshrl.u32 2475754826, %v6841
        %v6845 = vor.u32 %v6843, %v6844
        %v6846 = vshll.u32 2475754826, %v6840
        %v6847 = vshrl.u32 2131351028, %v6841
        %v6848 = vor.u32 %v6846, %v6847
        %v6849 = vshll.u32 2131351028, %v6840
        %v6850 = vshrl.u32 2102212464, %v6841
        %v6851 = vor.u32 %v6849, %v6850
        %v6852 = vshll.u32 2102212464, %v6840
        %v6853 = vshrl.u32 920167782, %v6841
        %v6854 = vor.u32 %v6852, %v6853
        %v6855 = vshll.u32 920167782, %v6840
        %v6856 = vshrl.u32 1326507024, %v6841
        %v6857 = vor.u32 %v6855, %v6856
        %vm6858 = vcmp.lt.s32.totalorder %v6839, 1
        %vm6859 = vcmp.lt.s32.totalorder %v6839, 2
        %vm6860 = vcmp.lt.s32.totalorder %v6839, 3
        %vm6861 = vcmp.lt.s32.totalorder %v6839, 4
        %v6862 = vsel %vm6858, %v6842, %v6845
        %v6863 = vsel %vm6861, %v6851, 2102212464
        %v6864 = vsel %vm6860, %v6848, %v6863
        %v6865 = vsel %vm6859, %v6862, %v6864
        %v6866 = vsel %vm6858, %v6845, %v6848
        %v6867 = vsel %vm6861, %v6854, 920167782
        %v6868 = vsel %vm6860, %v6851, %v6867
        %v6869 = vsel %vm6859, %v6866, %v6868
        %v6870 = vsel %vm6858, %v6848, %v6851
        %v6871 = vsel %vm6861, %v6857, 1326507024
        %v6872 = vsel %vm6860, %v6854, %v6871
        %v6873 = vsel %vm6859, %v6870, %v6872
        %v6874 = vshll.u32 %v6834, 8
        %v6875 = vmul.u32.u64.compose %v6874, %v6873
        %v6876 = vextract.low.u32 %v6875
        %v6877 = vextract.high.u32 %v6875
        %v6878 = vmul.u32.u64.compose %v6874, %v6869
        %v6879 = vextract.low.u32 %v6878
        %v6880 = vextract.high.u32 %v6878
        %v6881 = vmul.u32 %v6874, %v6865
        %v6882 = vadd.s32 %v6877, %v6879
        %vm6883 = vc.u32 %v6877, %v6879
        %v6884 = vadd.s32 %v6880, 1
        %v6885 = vsel %vm6883, %v6884, %v6880
        %v6886 = vadd.s32 %v6881, %v6885
        %v6887 = vadd.s32 %v6886, 536870912
        %v6888 = vshrl.u32 %v6887, 30
        %v6889 = vshll.u32 %v6888, 30
        %v6890 = vsub.s32 %v6886, %v6889
        %vm6891 = vcmp.lt.s32.totalorder %v6890, 0
        %v6892 = vsub.s32 0, %v6890
        %v6893 = vsel %vm6891, %v6892, %v6890
        %v6894 = vclz %v6893
        %v6895 = vsub.s32 %v6894, 2
        %vm6896 = vcmp.gt.s32.totalorder 0, %v6895
        %v6897 = vsel %vm6896, 0, %v6895
        %v6898 = vsub.s32 32, %v6897
        %v6899 = vshll.u32 %v6890, %v6897
        %v6900 = vshrl.u32 %v6882, %v6898
        %v6901 = vor.u32 %v6899, %v6900
        %v6902 = vsub.s32 4294967266, %v6897
        %v6903 = vadd.s32 %v6902, 127
        %v6904 = vshll.u32 %v6903, 23
        %v6905 = vor.u32 4788187, %v6904
        %v6906 = vand.u32 2147483647, %v6905
        %v6908 = vcvt.s32.f32 %v6901
        %v6909 = vmul.f32 %v6908, %v6906
        %v6910 = vxor.u32 %v6909, 2147483648
        %v6911 = vsel %vm6828, %v6910, %v6909
        %v6912 = vsub.s32 4, %v6888
        %v6913 = vsel %vm6828, %v6912, %v6888
        %v6914 = vsel %vm6827, %v686, %v6911
        %v6915 = vsel %vm6827, 0, %v6913
        %v6916 = vcosq.f32.pop %v6914
        %v6917 = vsinq.f32.pop %v6914
        %vm6918 = vweird.f32 %v686
        %v6919 = vadd.s32 %v6915, 3
        %v6920 = vand.u32 %v6919, 3
        %vm6921 = vcmp.lt.s32.totalorder %v6920, 2
        %vm6922 = vcmp.eq.s32.totalorder %v6920, 0
        %v6923 = vxor.u32 %v6917, 2147483648
        %v6924 = vsel %vm6922, %v6916, %v6923
        %vm6925 = vcmp.eq.s32.totalorder %v6920, 2
        %v6926 = vxor.u32 %v6916, 2147483648
        %v6927 = vsel %vm6925, %v6926, %v6917
        %v6928 = vsel %vm6921, %v6924, %v6927
        %v6929 = vsel %vm6918, nan, %v6928
        %v6930 = vand.u32 2147483647, %v687
        %vm6931 = vcmp.le.f32.partialorder %v6930, 0.7853982
        %vm6932 = vcmp.lt.s32.totalorder %v687, 0
        %v6933 = vand.u32 %v687, 2139095040
        %v6934 = vshrl.u32 %v6933, 23
        %v6935 = vsub.s32 %v6934, 127
        %v6936 = vand.u32 2147483647, %v687
        %v6937 = vand.u32 %v6936, 8388607
        %v6938 = vor.u32 %v6937, 8388608
        %v6939 = vsub.s32 0, %v6938
        %v6940 = vadd.s32 %v6935, 1
        %vm6941 = vcmp.gt.s32.totalorder %v6940, 0
        %v6942 = vsel %vm6941, %v6940, 0
        %v6943 = vshrl.u32 %v6942, 5
        %v6944 = vand.u32 %v6942, 31
        %v6945 = vsub.s32 32, %v6944
        %v6946 = vshrl.u32 683565275, %v6945
        %v6947 = vshll.u32 683565275, %v6944
        %v6948 = vshrl.u32 2475754826, %v6945
        %v6949 = vor.u32 %v6947, %v6948
        %v6950 = vshll.u32 2475754826, %v6944
        %v6951 = vshrl.u32 2131351028, %v6945
        %v6952 = vor.u32 %v6950, %v6951
        %v6953 = vshll.u32 2131351028, %v6944
        %v6954 = vshrl.u32 2102212464, %v6945
        %v6955 = vor.u32 %v6953, %v6954
        %v6956 = vshll.u32 2102212464, %v6944
        %v6957 = vshrl.u32 920167782, %v6945
        %v6958 = vor.u32 %v6956, %v6957
        %v6959 = vshll.u32 920167782, %v6944
        %v6960 = vshrl.u32 1326507024, %v6945
        %v6961 = vor.u32 %v6959, %v6960
        %vm6962 = vcmp.lt.s32.totalorder %v6943, 1
        %vm6963 = vcmp.lt.s32.totalorder %v6943, 2
        %vm6964 = vcmp.lt.s32.totalorder %v6943, 3
        %vm6965 = vcmp.lt.s32.totalorder %v6943, 4
        %v6966 = vsel %vm6962, %v6946, %v6949
        %v6967 = vsel %vm6965, %v6955, 2102212464
        %v6968 = vsel %vm6964, %v6952, %v6967
        %v6969 = vsel %vm6963, %v6966, %v6968
        %v6970 = vsel %vm6962, %v6949, %v6952
        %v6971 = vsel %vm6965, %v6958, 920167782
        %v6972 = vsel %vm6964, %v6955, %v6971
        %v6973 = vsel %vm6963, %v6970, %v6972
        %v6974 = vsel %vm6962, %v6952, %v6955
        %v6975 = vsel %vm6965, %v6961, 1326507024
        %v6976 = vsel %vm6964, %v6958, %v6975
        %v6977 = vsel %vm6963, %v6974, %v6976
        %v6978 = vshll.u32 %v6938, 8
        %v6979 = vmul.u32.u64.compose %v6978, %v6977
        %v6980 = vextract.low.u32 %v6979
        %v6981 = vextract.high.u32 %v6979
        %v6982 = vmul.u32.u64.compose %v6978, %v6973
        %v6983 = vextract.low.u32 %v6982
        %v6984 = vextract.high.u32 %v6982
        %v6985 = vmul.u32 %v6978, %v6969
        %v6986 = vadd.s32 %v6981, %v6983
        %vm6987 = vc.u32 %v6981, %v6983
        %v6988 = vadd.s32 %v6984, 1
        %v6989 = vsel %vm6987, %v6988, %v6984
        %v6990 = vadd.s32 %v6985, %v6989
        %v6991 = vadd.s32 %v6990, 536870912
        %v6992 = vshrl.u32 %v6991, 30
        %v6993 = vshll.u32 %v6992, 30
        %v6994 = vsub.s32 %v6990, %v6993
        %vm6995 = vcmp.lt.s32.totalorder %v6994, 0
        %v6996 = vsub.s32 0, %v6994
        %v6997 = vsel %vm6995, %v6996, %v6994
        %v6998 = vclz %v6997
        %v6999 = vsub.s32 %v6998, 2
        %vm7000 = vcmp.gt.s32.totalorder 0, %v6999
        %v7001 = vsel %vm7000, 0, %v6999
        %v7002 = vsub.s32 32, %v7001
        %v7003 = vshll.u32 %v6994, %v7001
        %v7004 = vshrl.u32 %v6986, %v7002
        %v7005 = vor.u32 %v7003, %v7004
        %v7006 = vsub.s32 4294967266, %v7001
        %v7007 = vadd.s32 %v7006, 127
        %v7008 = vshll.u32 %v7007, 23
        %v7009 = vor.u32 4788187, %v7008
        %v7010 = vand.u32 2147483647, %v7009
        %v7012 = vcvt.s32.f32 %v7005
        %v7013 = vmul.f32 %v7012, %v7010
        %v7014 = vxor.u32 %v7013, 2147483648
        %v7015 = vsel %vm6932, %v7014, %v7013
        %v7016 = vsub.s32 4, %v6992
        %v7017 = vsel %vm6932, %v7016, %v6992
        %v7018 = vsel %vm6931, %v687, %v7015
        %v7019 = vsel %vm6931, 0, %v7017
        %v7020 = vcosq.f32.pop %v7018
        %v7021 = vsinq.f32.pop %v7018
        %vm7022 = vweird.f32 %v687
        %v7023 = vadd.s32 %v7019, 3
        %v7024 = vand.u32 %v7023, 3
        %vm7025 = vcmp.lt.s32.totalorder %v7024, 2
        %vm7026 = vcmp.eq.s32.totalorder %v7024, 0
        %v7027 = vxor.u32 %v7021, 2147483648
        %v7028 = vsel %vm7026, %v7020, %v7027
        %vm7029 = vcmp.eq.s32.totalorder %v7024, 2
        %v7030 = vxor.u32 %v7020, 2147483648
        %v7031 = vsel %vm7029, %v7030, %v7021
        %v7032 = vsel %vm7025, %v7028, %v7031
        %v7033 = vsel %vm7022, nan, %v7032
        %v7034 = vand.u32 2147483647, %v688
        %vm7035 = vcmp.le.f32.partialorder %v7034, 0.7853982
        %vm7036 = vcmp.lt.s32.totalorder %v688, 0
        %v7037 = vand.u32 %v688, 2139095040
        %v7038 = vshrl.u32 %v7037, 23
        %v7039 = vsub.s32 %v7038, 127
        %v7040 = vand.u32 2147483647, %v688
        %v7041 = vand.u32 %v7040, 8388607
        %v7042 = vor.u32 %v7041, 8388608
        %v7043 = vsub.s32 0, %v7042
        %v7044 = vadd.s32 %v7039, 1
        %vm7045 = vcmp.gt.s32.totalorder %v7044, 0
        %v7046 = vsel %vm7045, %v7044, 0
        %v7047 = vshrl.u32 %v7046, 5
        %v7048 = vand.u32 %v7046, 31
        %v7049 = vsub.s32 32, %v7048
        %v7050 = vshrl.u32 683565275, %v7049
        %v7051 = vshll.u32 683565275, %v7048
        %v7052 = vshrl.u32 2475754826, %v7049
        %v7053 = vor.u32 %v7051, %v7052
        %v7054 = vshll.u32 2475754826, %v7048
        %v7055 = vshrl.u32 2131351028, %v7049
        %v7056 = vor.u32 %v7054, %v7055
        %v7057 = vshll.u32 2131351028, %v7048
        %v7058 = vshrl.u32 2102212464, %v7049
        %v7059 = vor.u32 %v7057, %v7058
        %v7060 = vshll.u32 2102212464, %v7048
        %v7061 = vshrl.u32 920167782, %v7049
        %v7062 = vor.u32 %v7060, %v7061
        %v7063 = vshll.u32 920167782, %v7048
        %v7064 = vshrl.u32 1326507024, %v7049
        %v7065 = vor.u32 %v7063, %v7064
        %vm7066 = vcmp.lt.s32.totalorder %v7047, 1
        %vm7067 = vcmp.lt.s32.totalorder %v7047, 2
        %vm7068 = vcmp.lt.s32.totalorder %v7047, 3
        %vm7069 = vcmp.lt.s32.totalorder %v7047, 4
        %v7070 = vsel %vm7066, %v7050, %v7053
        %v7071 = vsel %vm7069, %v7059, 2102212464
        %v7072 = vsel %vm7068, %v7056, %v7071
        %v7073 = vsel %vm7067, %v7070, %v7072
        %v7074 = vsel %vm7066, %v7053, %v7056
        %v7075 = vsel %vm7069, %v7062, 920167782
        %v7076 = vsel %vm7068, %v7059, %v7075
        %v7077 = vsel %vm7067, %v7074, %v7076
        %v7078 = vsel %vm7066, %v7056, %v7059
        %v7079 = vsel %vm7069, %v7065, 1326507024
        %v7080 = vsel %vm7068, %v7062, %v7079
        %v7081 = vsel %vm7067, %v7078, %v7080
        %v7082 = vshll.u32 %v7042, 8
        %v7083 = vmul.u32.u64.compose %v7082, %v7081
        %v7084 = vextract.low.u32 %v7083
        %v7085 = vextract.high.u32 %v7083
        %v7086 = vmul.u32.u64.compose %v7082, %v7077
        %v7087 = vextract.low.u32 %v7086
        %v7088 = vextract.high.u32 %v7086
        %v7089 = vmul.u32 %v7082, %v7073
        %v7090 = vadd.s32 %v7085, %v7087
        %vm7091 = vc.u32 %v7085, %v7087
        %v7092 = vadd.s32 %v7088, 1
        %v7093 = vsel %vm7091, %v7092, %v7088
        %v7094 = vadd.s32 %v7089, %v7093
        %v7095 = vadd.s32 %v7094, 536870912
        %v7096 = vshrl.u32 %v7095, 30
        %v7097 = vshll.u32 %v7096, 30
        %v7098 = vsub.s32 %v7094, %v7097
        %vm7099 = vcmp.lt.s32.totalorder %v7098, 0
        %v7100 = vsub.s32 0, %v7098
        %v7101 = vsel %vm7099, %v7100, %v7098
        %v7102 = vclz %v7101
        %v7103 = vsub.s32 %v7102, 2
        %vm7104 = vcmp.gt.s32.totalorder 0, %v7103
        %v7105 = vsel %vm7104, 0, %v7103
        %v7106 = vsub.s32 32, %v7105
        %v7107 = vshll.u32 %v7098, %v7105
        %v7108 = vshrl.u32 %v7090, %v7106
        %v7109 = vor.u32 %v7107, %v7108
        %v7110 = vsub.s32 4294967266, %v7105
        %v7111 = vadd.s32 %v7110, 127
        %v7112 = vshll.u32 %v7111, 23
        %v7113 = vor.u32 4788187, %v7112
        %v7114 = vand.u32 2147483647, %v7113
        %v7116 = vcvt.s32.f32 %v7109
        %v7117 = vmul.f32 %v7116, %v7114
        %v7118 = vxor.u32 %v7117, 2147483648
        %v7119 = vsel %vm7036, %v7118, %v7117
        %v7120 = vsub.s32 4, %v7096
        %v7121 = vsel %vm7036, %v7120, %v7096
        %v7122 = vsel %vm7035, %v688, %v7119
        %v7123 = vsel %vm7035, 0, %v7121
        %v7124 = vcosq.f32.pop %v7122
        %v7125 = vsinq.f32.pop %v7122
        %vm7126 = vweird.f32 %v688
        %v7127 = vadd.s32 %v7123, 3
        %v7128 = vand.u32 %v7127, 3
        %vm7129 = vcmp.lt.s32.totalorder %v7128, 2
        %vm7130 = vcmp.eq.s32.totalorder %v7128, 0
        %v7131 = vxor.u32 %v7125, 2147483648
        %v7132 = vsel %vm7130, %v7124, %v7131
        %vm7133 = vcmp.eq.s32.totalorder %v7128, 2
        %v7134 = vxor.u32 %v7124, 2147483648
        %v7135 = vsel %vm7133, %v7134, %v7125
        %v7136 = vsel %vm7129, %v7132, %v7135
        %v7137 = vsel %vm7126, nan, %v7136
        %v7138 = vand.u32 2147483647, %v689
        %vm7139 = vcmp.le.f32.partialorder %v7138, 0.7853982
        %vm7140 = vcmp.lt.s32.totalorder %v689, 0
        %v7141 = vand.u32 %v689, 2139095040
        %v7142 = vshrl.u32 %v7141, 23
        %v7143 = vsub.s32 %v7142, 127
        %v7144 = vand.u32 2147483647, %v689
        %v7145 = vand.u32 %v7144, 8388607
        %v7146 = vor.u32 %v7145, 8388608
        %v7147 = vsub.s32 0, %v7146
        %v7148 = vadd.s32 %v7143, 1
        %vm7149 = vcmp.gt.s32.totalorder %v7148, 0
        %v7150 = vsel %vm7149, %v7148, 0
        %v7151 = vshrl.u32 %v7150, 5
        %v7152 = vand.u32 %v7150, 31
        %v7153 = vsub.s32 32, %v7152
        %v7154 = vshrl.u32 683565275, %v7153
        %v7155 = vshll.u32 683565275, %v7152
        %v7156 = vshrl.u32 2475754826, %v7153
        %v7157 = vor.u32 %v7155, %v7156
        %v7158 = vshll.u32 2475754826, %v7152
        %v7159 = vshrl.u32 2131351028, %v7153
        %v7160 = vor.u32 %v7158, %v7159
        %v7161 = vshll.u32 2131351028, %v7152
        %v7162 = vshrl.u32 2102212464, %v7153
        %v7163 = vor.u32 %v7161, %v7162
        %v7164 = vshll.u32 2102212464, %v7152
        %v7165 = vshrl.u32 920167782, %v7153
        %v7166 = vor.u32 %v7164, %v7165
        %v7167 = vshll.u32 920167782, %v7152
        %v7168 = vshrl.u32 1326507024, %v7153
        %v7169 = vor.u32 %v7167, %v7168
        %vm7170 = vcmp.lt.s32.totalorder %v7151, 1
        %vm7171 = vcmp.lt.s32.totalorder %v7151, 2
        %vm7172 = vcmp.lt.s32.totalorder %v7151, 3
        %vm7173 = vcmp.lt.s32.totalorder %v7151, 4
        %v7174 = vsel %vm7170, %v7154, %v7157
        %v7175 = vsel %vm7173, %v7163, 2102212464
        %v7176 = vsel %vm7172, %v7160, %v7175
        %v7177 = vsel %vm7171, %v7174, %v7176
        %v7178 = vsel %vm7170, %v7157, %v7160
        %v7179 = vsel %vm7173, %v7166, 920167782
        %v7180 = vsel %vm7172, %v7163, %v7179
        %v7181 = vsel %vm7171, %v7178, %v7180
        %v7182 = vsel %vm7170, %v7160, %v7163
        %v7183 = vsel %vm7173, %v7169, 1326507024
        %v7184 = vsel %vm7172, %v7166, %v7183
        %v7185 = vsel %vm7171, %v7182, %v7184
        %v7186 = vshll.u32 %v7146, 8
        %v7187 = vmul.u32.u64.compose %v7186, %v7185
        %v7188 = vextract.low.u32 %v7187
        %v7189 = vextract.high.u32 %v7187
        %v7190 = vmul.u32.u64.compose %v7186, %v7181
        %v7191 = vextract.low.u32 %v7190
        %v7192 = vextract.high.u32 %v7190
        %v7193 = vmul.u32 %v7186, %v7177
        %v7194 = vadd.s32 %v7189, %v7191
        %vm7195 = vc.u32 %v7189, %v7191
        %v7196 = vadd.s32 %v7192, 1
        %v7197 = vsel %vm7195, %v7196, %v7192
        %v7198 = vadd.s32 %v7193, %v7197
        %v7199 = vadd.s32 %v7198, 536870912
        %v7200 = vshrl.u32 %v7199, 30
        %v7201 = vshll.u32 %v7200, 30
        %v7202 = vsub.s32 %v7198, %v7201
        %vm7203 = vcmp.lt.s32.totalorder %v7202, 0
        %v7204 = vsub.s32 0, %v7202
        %v7205 = vsel %vm7203, %v7204, %v7202
        %v7206 = vclz %v7205
        %v7207 = vsub.s32 %v7206, 2
        %vm7208 = vcmp.gt.s32.totalorder 0, %v7207
        %v7209 = vsel %vm7208, 0, %v7207
        %v7210 = vsub.s32 32, %v7209
        %v7211 = vshll.u32 %v7202, %v7209
        %v7212 = vshrl.u32 %v7194, %v7210
        %v7213 = vor.u32 %v7211, %v7212
        %v7214 = vsub.s32 4294967266, %v7209
        %v7215 = vadd.s32 %v7214, 127
        %v7216 = vshll.u32 %v7215, 23
        %v7217 = vor.u32 4788187, %v7216
        %v7218 = vand.u32 2147483647, %v7217
        %v7220 = vcvt.s32.f32 %v7213
        %v7221 = vmul.f32 %v7220, %v7218
        %v7222 = vxor.u32 %v7221, 2147483648
        %v7223 = vsel %vm7140, %v7222, %v7221
        %v7224 = vsub.s32 4, %v7200
        %v7225 = vsel %vm7140, %v7224, %v7200
        %v7226 = vsel %vm7139, %v689, %v7223
        %v7227 = vsel %vm7139, 0, %v7225
        %v7228 = vcosq.f32.pop %v7226
        %v7229 = vsinq.f32.pop %v7226
        %vm7230 = vweird.f32 %v689
        %v7231 = vadd.s32 %v7227, 3
        %v7232 = vand.u32 %v7231, 3
        %vm7233 = vcmp.lt.s32.totalorder %v7232, 2
        %vm7234 = vcmp.eq.s32.totalorder %v7232, 0
        %v7235 = vxor.u32 %v7229, 2147483648
        %v7236 = vsel %vm7234, %v7228, %v7235
        %vm7237 = vcmp.eq.s32.totalorder %v7232, 2
        %v7238 = vxor.u32 %v7228, 2147483648
        %v7239 = vsel %vm7237, %v7238, %v7229
        %v7240 = vsel %vm7233, %v7236, %v7239
        %v7241 = vsel %vm7230, nan, %v7240
        %7242 = vst [vmem:[%s164] sm:$0xff] %v793
        %7243 = vst [vmem:[%s164 + $0x8] sm:$0xff] %v897
        %7244 = vst [vmem:[%s164 + $0x10] sm:$0xff] %v1001
        %7245 = vst [vmem:[%s164 + $0x18] sm:$0xff] %v1105
        %7246 = vst [vmem:[%s164 + $0x20] sm:$0xff] %v1209
        %7247 = vst [vmem:[%s164 + $0x28] sm:$0xff] %v1313
        %7248 = vst [vmem:[%s164 + $0x30] sm:$0xff] %v1417
        %7249 = vst [vmem:[%s164 + $0x38] sm:$0xff] %v1521
        %7250 = vst [vmem:[%s164 + $0x40] sm:$0xff] %v1625
        %7251 = vst [vmem:[%s164 + $0x48] sm:$0xff] %v1729
        %7252 = vst [vmem:[%s164 + $0x50] sm:$0xff] %v1833
        %7253 = vst [vmem:[%s164 + $0x58] sm:$0xff] %v1937
        %7254 = vst [vmem:[%s164 + $0x60] sm:$0xff] %v2041
        %7255 = vst [vmem:[%s164 + $0x68] sm:$0xff] %v2145
        %7256 = vst [vmem:[%s164 + $0x70] sm:$0xff] %v2249
        %7257 = vst [vmem:[%s164 + $0x78] sm:$0xff] %v2353
        %7258 = vst [vmem:[%s164 + $0x80] sm:$0xff] %v2457
        %7259 = vst [vmem:[%s164 + $0x88] sm:$0xff] %v2561
        %7260 = vst [vmem:[%s164 + $0x90] sm:$0xff] %v2665
        %7261 = vst [vmem:[%s164 + $0x98] sm:$0xff] %v2769
        %7262 = vst [vmem:[%s164 + $0xa0] sm:$0xff] %v2873
        %7263 = vst [vmem:[%s164 + $0xa8] sm:$0xff] %v2977
        %7264 = vst [vmem:[%s164 + $0xb0] sm:$0xff] %v3081
        %7265 = vst [vmem:[%s164 + $0xb8] sm:$0xff] %v3185
        %7266 = vst [vmem:[%s164 + $0xc0] sm:$0xff] %v3289
        %7267 = vst [vmem:[%s164 + $0xc8] sm:$0xff] %v3393
        %7268 = vst [vmem:[%s164 + $0xd0] sm:$0xff] %v3497
        %7269 = vst [vmem:[%s164 + $0xd8] sm:$0xff] %v3601
        %7270 = vst [vmem:[%s164 + $0xe0] sm:$0xff] %v3705
        %7271 = vst [vmem:[%s164 + $0xe8] sm:$0xff] %v3809
        %7272 = vst [vmem:[%s164 + $0xf0] sm:$0xff] %v3913
        %7273 = vst [vmem:[%s164 + $0xf8] sm:$0xff] %v4017
        %7274 = vst [vmem:[%s164 + $0x100] sm:$0xff] %v4121
        %7275 = vst [vmem:[%s164 + $0x108] sm:$0xff] %v4225
        %7276 = vst [vmem:[%s164 + $0x110] sm:$0xff] %v4329
        %7277 = vst [vmem:[%s164 + $0x118] sm:$0xff] %v4433
        %7278 = vst [vmem:[%s164 + $0x120] sm:$0xff] %v4537
        %7279 = vst [vmem:[%s164 + $0x128] sm:$0xff] %v4641
        %7280 = vst [vmem:[%s164 + $0x130] sm:$0xff] %v4745
        %7281 = vst [vmem:[%s164 + $0x138] sm:$0xff] %v4849
        %7282 = vst [vmem:[%s164 + $0x140] sm:$0xff] %v4953
        %7283 = vst [vmem:[%s164 + $0x148] sm:$0xff] %v5057
        %7284 = vst [vmem:[%s164 + $0x150] sm:$0xff] %v5161
        %7285 = vst [vmem:[%s164 + $0x158] sm:$0xff] %v5265
        %7286 = vst [vmem:[%s164 + $0x160] sm:$0xff] %v5369
        %7287 = vst [vmem:[%s164 + $0x168] sm:$0xff] %v5473
        %7288 = vst [vmem:[%s164 + $0x170] sm:$0xff] %v5577
        %7289 = vst [vmem:[%s164 + $0x178] sm:$0xff] %v5681
        %7290 = vst [vmem:[%s164 + $0x180] sm:$0xff] %v5785
        %7291 = vst [vmem:[%s164 + $0x188] sm:$0xff] %v5889
        %7292 = vst [vmem:[%s164 + $0x190] sm:$0xff] %v5993
        %7293 = vst [vmem:[%s164 + $0x198] sm:$0xff] %v6097
        %7294 = vst [vmem:[%s164 + $0x1a0] sm:$0xff] %v6201
        %7295 = vst [vmem:[%s164 + $0x1a8] sm:$0xff] %v6305
        %7296 = vst [vmem:[%s164 + $0x1b0] sm:$0xff] %v6409
        %7297 = vst [vmem:[%s164 + $0x1b8] sm:$0xff] %v6513
        %7298 = vst [vmem:[%s164 + $0x1c0] sm:$0xff] %v6617
        %7299 = vst [vmem:[%s164 + $0x1c8] sm:$0xff] %v6721
        %7300 = vst [vmem:[%s164 + $0x1d0] sm:$0xff] %v6825
        %7301 = vst [vmem:[%s164 + $0x1d8] sm:$0xff] %v6929
        %7302 = vst [vmem:[%s164 + $0x1e0] sm:$0xff] %v7033
        %7303 = vst [vmem:[%s164 + $0x1e8] sm:$0xff] %v7137
        %7304 = vst [vmem:[%s164 + $0x1f0] sm:$0xff] %v7241
        %s7305 = sand.u32 %s93, 1
        %s7306 = scalar_lea.sflag [#allocation3], %s7305
        %s7307 = sand.u32 %s93, 1
        %s7308 = smul.addr %s7307, 504
        %s7309 = scalar_lea.vmem [#allocation2], %s7308
        // Predicated region
        $region33: #{tpu_custom_call.1} parent=31 // pred_check
          %p7310 = pneg %p103
        $region34: #{tpu_custom_call.1} parent=31 // pred_check_branch
          %7312 = sbr.rel (%p7310) target = $region36
        $region35: #{tpu_custom_call.1} parent=31 // pred_region
          %s7313 = smul.u32 63, %s17
          %s7315 = ssub.s32 8064, 8064
          %7316 = vsyncadd %s7306, %s7315
          %s7317 = smul.addr %s7313, 128
          %s7318 = scalar_lea.hbm %s3, %s7317
          %s7319 = sshll.u32 %s7309, 4
          %s7320 = int_to_ptr.vmem [resolvable:$true] %s7319
          %7325 = dma.vmem_to_hbm [thread:$0]  %s7320, 8064, %s7318, %s7306, 128, 128, 8
        $region36: #{tpu_custom_call.1} parent=31 // pred_fallthru
          _
      $region32: #{tpu_custom_call.1} parent=5 // pred_fallthru
        _
      %p7326 = scmp.le.s32.totalorder 2, %s12
      // Predicated region
      $region37: #{tpu_custom_call.1} parent=5 // pred_check
        %p7327 = pneg %p7326
      $region38: #{tpu_custom_call.1} parent=5 // pred_check_branch
        %7329 = sbr.rel (%p7327) target = $region40
      $region39: #{tpu_custom_call.1} parent=5 // pred_region
        %s7330 = ssub.s32 %s12, 2
        // Predicated region
        $region41: #{tpu_custom_call.1} parent=39 // pred_check
          %p7331 = pneg %p109
        $region42: #{tpu_custom_call.1} parent=39 // pred_check_branch
          %7333 = sbr.rel (%p7331) target = $region44
        $region43: #{tpu_custom_call.1} parent=39 // pred_region
          %s7334 = sand.u32 %s94, 1
          %s7335 = scalar_lea.sflag [#allocation3], %s7334
          %s7336 = sand.u32 %s94, 1
          %s7337 = smul.addr %s7336, 504
          %s7338 = scalar_lea.vmem [#allocation2], %s7337
          %7339 = dma.done %s7335, 8064
        $region44: #{tpu_custom_call.1} parent=39 // pred_fallthru
          _
      $region40: #{tpu_custom_call.1} parent=5 // pred_fallthru
        _
    $region6: #{tpu_custom_call.1} parent=1 // loop_footer
      %s16 = sadd.s32 1, %s12
    $region7: #{tpu_custom_call.1} parent=1 // loop_footer_branch
      %11 = sbr.rel target = $region3
    $region8: #{tpu_custom_call.1} parent=1 // loop_exit
      _
    %7340 = vsyncpa [#allocation3], 1
    %s7341 = scalar_lea.sflag [#allocation3], 1
    %7342 = vsyncpa %s7341, 1

</llo_original>
